<compile_context>
chip_gen: v7x
topology: tpu7x:2x2x1
jax: 0.10.0
libtpu: 0.0.40
codegen_flags: <defaults>
</compile_context>

<pallas_src>
import functools

import jax
import jax.numpy as jnp
from jax.experimental import pallas as pl
from jax.experimental.pallas import tpu as pltpu

_LANE = 128      # channel dims are zero-padded to a multiple of this
_SUBLANE = 8     # scratch row dim rounded to a multiple of this


def _round_up(x, m):
    return -(-x // m) * m


def _mbconv_kernel(x_ref, w1_ref, b1_ref, dw_ref, b2_ref, w3_ref, b3_ref,
                   o_ref, pad_ref, *, k, stride, pad, w_left, h, w,
                   h_out, w_out, res_connect, has_expand):
    """Fused MBConv for one batch element (all channel dims lane-padded).

    x_ref  : (1, H, W, Cin_p)         input tile
    w1_ref : (Cin_p, Cexp_p)          1x1 expand weight (BN1 scale folded in)
    b1_ref : (1, Cexp_p)              BN1 shift
    dw_ref : (k*k, Cexp_p)            depthwise weight (BN2 scale folded in)
    b2_ref : (1, Cexp_p)              BN2 shift
    w3_ref : (Cexp_p, Cout_p)         1x1 project weight (BN3 scale folded in)
    b3_ref : (1, Cout_p)              BN3 shift
    o_ref  : (1, Hout, Wout, Cout_p)
    pad_ref: (H+2p, round_up(w_left+W+p, 8), Cexp_p)  VMEM halo scratch
    """
    c_exp = pad_ref.shape[-1]
    c_out = o_ref.shape[-1]
    w_row = pad_ref.shape[1]

    x2d = x_ref[0].reshape(h * w, x_ref.shape[-1]).astype(jnp.float32)

    # ---- 1x1 expansion conv (MXU) + folded BN + ReLU6 (skip if expansion==1)
    if has_expand:
        h1 = jnp.dot(x2d, w1_ref[...],
                     preferred_element_type=jnp.float32,
                     precision=jax.lax.Precision.HIGHEST)
        h1 = jnp.clip(h1 + b1_ref[...], 0.0, 6.0)                 # ReLU6
    else:
        h1 = x2d                                                  # Cexp_p == Cin_p

    # ---- expanded activation -> VMEM halo scratch (aligned interior store) --
    pad_ref[pad:pad + h, w_left:w_left + w, :] = h1.reshape(h, w, c_exp)

    # ---- zero ONLY the halo cells the taps read (megacore-safe, cheap) ------
    if pad > 0:
        off = w_left - pad
        zrow = jnp.zeros((pad, w_row, c_exp), jnp.float32)
        zcol = jnp.zeros((h, pad, c_exp), jnp.float32)
        pad_ref[0:pad] = zrow                                     # top rows
        pad_ref[pad + h:pad + h + pad] = zrow                     # bottom rows
        pad_ref[pad:pad + h, off:off + pad, :] = zcol             # left cols
        pad_ref[pad:pad + h, w_left + w:w_left + w + pad, :] = zcol   # right
    else:
        off = 0

    # ---- depthwise kxk conv (stride) + folded BN + ReLU6 --------------------
    dw = dw_ref[...]                                   # (k*k, Cexp_p)
    row_span = (h_out - 1) * stride + 1
    col_span = (w_out - 1) * stride + 1
    # BN2 shift hoisted into the accumulator init (single broadcast).
    acc = jnp.broadcast_to(b2_ref[...].reshape(1, 1, c_exp),
                           (h_out, w_out, c_exp))
    for di in range(k):
        band = pad_ref[di:di + row_span]               # (row_span, w_row, Cexp_p)
        if stride > 1:
            band = band[::stride]                      # decimate rows once per di
        for dj in range(k):
            c0 = off + dj
            patch = band[:, c0:c0 + col_span:stride, :]
            acc = acc + patch * dw[di * k + dj]
    h2 = jnp.clip(acc, 0.0, 6.0)                       # ReLU6

    # ---- 1x1 projection conv (MXU) + folded BN (no activation) --------------
    y = jnp.dot(h2.reshape(h_out * w_out, c_exp), w3_ref[...],
                preferred_element_type=jnp.float32,
                precision=jax.lax.Precision.HIGHEST)
    y = y + b3_ref[...]

    if res_connect:
        y = y + x2d                                    # stride==1, Cin==Cout

    o_ref[0] = y.reshape(h_out, w_out, c_out).astype(o_ref.dtype)


def mbconv(x_nchw, params, *, kernel_size, stride, expansion_factor):
    """Full MBConv forward. Input/output are NCHW to match PyTorch."""
    n, c_in, h, w = x_nchw.shape
    k = kernel_size
    pad = k // 2                      # depthwise_conv() always uses k // 2
    c_exp = c_in * expansion_factor
    c_out = params["w3"].shape[1]
    has_expand = expansion_factor != 1
    res_connect = (c_in == c_out) and (stride == 1)

    # Lane-pad every channel dim to a multiple of 128 (lane density / MXU).
    c_in_p = _round_up(c_in, _LANE)
    c_exp_p = _round_up(c_exp, _LANE)
    c_out_p = _round_up(c_out, _LANE)

    # Fold inference BatchNorm into the conv weights (host side, tiny).
    eps = 1e-5

    def fold(prefix):
        g, b = params[prefix + "_gamma"], params[prefix + "_beta"]
        m, v = params[prefix + "_mean"], params[prefix + "_var"]
        scale = g / jnp.sqrt(v + eps)
        return scale, b - m * scale

    s1, sh1 = fold("bn1")
    s2, sh2 = fold("bn2")
    s3, sh3 = fold("bn3")

    def pad2(a, rows, cols):          # zero-pad a 2-D array to (rows, cols)
        return jnp.pad(a, ((0, rows - a.shape[0]), (0, cols - a.shape[1])))

    w1 = pad2((params["w1"] * s1[None, :]).astype(jnp.float32), c_in_p, c_exp_p)
    dw = pad2((params["dw"] * s2[None, :]).astype(jnp.float32), k * k, c_exp_p)
    w3 = pad2((params["w3"] * s3[None, :]).astype(jnp.float32), c_exp_p, c_out_p)
    b1 = pad2(sh1[None, :].astype(jnp.float32), 1, c_exp_p)
    b2 = pad2(sh2[None, :].astype(jnp.float32), 1, c_exp_p)
    b3 = pad2(sh3[None, :].astype(jnp.float32), 1, c_out_p)

    hp = h + 2 * pad
    h_out = (h + 2 * pad - k) // stride + 1
    w_out = (w + 2 * pad - k) // stride + 1
    # Sublane-aligned start column for the interior of the halo scratch, and
    # scratch row width rounded to a hardware tile (multiple of 8).
    w_left = _round_up(pad, _SUBLANE) if pad > 0 else 0
    w_row = _round_up(w_left + w + pad, _SUBLANE)

    x = jnp.transpose(x_nchw, (0, 2, 3, 1))                   # NCHW -> NHWC
    x = jnp.pad(x, ((0, 0), (0, 0), (0, 0), (0, c_in_p - c_in)))

    kernel = functools.partial(
        _mbconv_kernel, k=k, stride=stride, pad=pad, w_left=w_left,
        h=h, w=w, h_out=h_out, w_out=w_out,
        res_connect=res_connect, has_expand=has_expand)

    out = pl.pallas_call(
        kernel,
        out_shape=jax.ShapeDtypeStruct((n, h_out, w_out, c_out_p), x.dtype),
        grid=(n,),
        in_specs=[
            pl.BlockSpec((1, h, w, c_in_p), lambda i: (i, 0, 0, 0)),
            pl.BlockSpec((c_in_p, c_exp_p), lambda i: (0, 0)),
            pl.BlockSpec((1, c_exp_p), lambda i: (0, 0)),
            pl.BlockSpec((k * k, c_exp_p), lambda i: (0, 0)),
            pl.BlockSpec((1, c_exp_p), lambda i: (0, 0)),
            pl.BlockSpec((c_exp_p, c_out_p), lambda i: (0, 0)),
            pl.BlockSpec((1, c_out_p), lambda i: (0, 0)),
        ],
        out_specs=pl.BlockSpec((1, h_out, w_out, c_out_p),
                               lambda i: (i, 0, 0, 0)),
        scratch_shapes=[pltpu.VMEM((hp, w_row, c_exp_p), jnp.float32)],
        compiler_params=pltpu.CompilerParams(
            dimension_semantics=("parallel",),        # batch -> both v7x cores
            vmem_limit_bytes=32 * 1024 * 1024),
    )(x, w1, b1, dw, b2, w3, b3)

    out = out[..., :c_out]                                    # drop lane padding
    return jnp.transpose(out, (0, 3, 1, 2))                   # NHWC -> NCHW


def init_params(key, c_in, c_out, k, expansion_factor):
    """Deterministic params matching the PyTorch layer shapes.

    torch expand  Conv2d weight (Cexp, Cin, 1, 1) -> stored as (Cin, Cexp)
    torch dw      Conv2d weight (Cexp, 1, k, k)   -> stored as (k*k, Cexp)
    torch project Conv2d weight (Cout, Cexp,1, 1) -> stored as (Cexp, Cout)
    Each BatchNorm2d: gamma/beta random, running stats randomized.
    """
    c_exp = c_in * expansion_factor
    ks = jax.random.split(key, 15)

    def bn_params(kg, kb, km, kv, c):
        gamma = 1.0 + 0.1 * jax.random.normal(kg, (c,), jnp.float32)
        beta = 0.1 * jax.random.normal(kb, (c,), jnp.float32)
        mean = 0.1 * jax.random.normal(km, (c,), jnp.float32)
        var = jax.random.uniform(kv, (c,), jnp.float32, 0.5, 1.5)
        return gamma, beta, mean, var

    w1 = 0.2 * jax.random.normal(ks[0], (c_in, c_exp), jnp.float32)
    dw = 0.2 * jax.random.normal(ks[1], (k * k, c_exp), jnp.float32)
    w3 = 0.2 * jax.random.normal(ks[2], (c_exp, c_out), jnp.float32)
    g1, b1, m1, v1 = bn_params(ks[3], ks[4], ks[5], ks[6], c_exp)
    g2, b2, m2, v2 = bn_params(ks[7], ks[8], ks[9], ks[10], c_exp)
    g3, b3, m3, v3 = bn_params(ks[11], ks[12], ks[13], ks[14], c_out)
    return {
        "w1": w1, "dw": dw, "w3": w3,
        "bn1_gamma": g1, "bn1_beta": b1, "bn1_mean": m1, "bn1_var": v1,
        "bn2_gamma": g2, "bn2_beta": b2, "bn2_mean": m2, "bn2_var": v2,
        "bn3_gamma": g3, "bn3_beta": b3, "bn3_mean": m3, "bn3_var": v3,
    }


def _reference(x_nchw, params, *, kernel_size, stride, expansion_factor):
    """Pure-JAX reference (lax.conv) mirroring the PyTorch MBConv module."""
    eps = 1e-5
    k = kernel_size
    pad = k // 2
    c_in = x_nchw.shape[1]
    c_out = params["w3"].shape[1]
    dn = ("NCHW", "OIHW", "NCHW")
    relu6 = lambda v: jnp.clip(v, 0.0, 6.0)

    def bn(x, g, b, m, v):
        inv = g / jnp.sqrt(v + eps)
        return (x - m[None, :, None, None]) * inv[None, :, None, None] \
            + b[None, :, None, None]

    def conv1x1(x, w_io):
        wk = jnp.transpose(w_io)[:, :, None, None]            # (O, I, 1, 1)
        return jax.lax.conv_general_dilated(
            x, wk, (1, 1), [(0, 0), (0, 0)], dimension_numbers=dn,
            precision=jax.lax.Precision.HIGHEST)

    def dwconv(x, w_kkc, s, p):
        c = x.shape[1]
        wk = jnp.transpose(w_kkc.reshape(k, k, c), (2, 0, 1))[:, None, :, :]
        return jax.lax.conv_general_dilated(
            x, wk, (s, s), [(p, p), (p, p)], dimension_numbers=dn,
            feature_group_count=c, precision=jax.lax.Precision.HIGHEST)

    y = x_nchw
    if expansion_factor != 1:
        y = conv1x1(y, params["w1"])
        y = bn(y, params["bn1_gamma"], params["bn1_beta"],
               params["bn1_mean"], params["bn1_var"])
        y = relu6(y)
    y = dwconv(y, params["dw"], stride, pad)
    y = bn(y, params["bn2_gamma"], params["bn2_beta"],
           params["bn2_mean"], params["bn2_var"])
    y = relu6(y)
    y = conv1x1(y, params["w3"])
    y = bn(y, params["bn3_gamma"], params["bn3_beta"],
           params["bn3_mean"], params["bn3_var"])
    if c_in == c_out and stride == 1:
        y = y + x_nchw
    return y


if __name__ == "__main__":
    # Small demo config exercising the residual path (C_in == C_out, stride 1).
    C_IN, C_OUT, K, STRIDE, EXPANSION = 8, 8, 3, 1, 4
    N, H, W = 2, 16, 16

    key = jax.random.PRNGKey(0)
    kx, kp = jax.random.split(key)
    x = jax.random.normal(kx, (N, C_IN, H, W), jnp.float32)   # NCHW input
    params = init_params(kp, C_IN, C_OUT, K, EXPANSION)

    out = mbconv(x, params, kernel_size=K, stride=STRIDE,
                 expansion_factor=EXPANSION)
    out = jax.block_until_ready(out)

    ref = _reference(x, params, kernel_size=K, stride=STRIDE,
                     expansion_factor=EXPANSION)
    assert out.shape == ref.shape, (out.shape, ref.shape)
    err = float(jnp.max(jnp.abs(out - ref)))
    # fp32-precision MXU contraction requested; tolerance left with headroom
    # for any compiler-chosen reduced-pass matmul.
    assert jnp.allclose(out, ref, rtol=2e-2, atol=2e-2), err

    print("KERNEL_OK")
</pallas_src>

<mosaic_0001>
module attributes {stable_mosaic.version = 11 : i64} {
  func.func @_mbconv_kernel(%arg0: i32, %arg1: memref<1x16x16x128xf32, #tpu.memory_space<vmem>>, %arg2: memref<128x128xf32, #tpu.memory_space<vmem>>, %arg3: memref<1x128xf32, #tpu.memory_space<vmem>>, %arg4: memref<9x128xf32, #tpu.memory_space<vmem>>, %arg5: memref<1x128xf32, #tpu.memory_space<vmem>>, %arg6: memref<128x128xf32, #tpu.memory_space<vmem>>, %arg7: memref<1x128xf32, #tpu.memory_space<vmem>>, %arg8: memref<1x16x16x128xf32, #tpu.memory_space<vmem>>, %arg9: memref<18x32x128xf32, #tpu.memory_space<vmem>>) attributes {dimension_semantics = [#tpu.dimension_semantics<parallel>], iteration_bounds = array<i64: 2>, scalar_prefetch = 0 : i64, scratch_operands = 1 : i64, tpu.core_type = #tpu.core_type<tc>, window_params = [{transform_indices = @transform_0, window_bounds = array<i64: 1, 16, 16, 128>}, {pipeline_mode = #tpu.pipeline_mode<synchronous>, transform_indices = @transform_1, window_bounds = array<i64: 128, 128>}, {pipeline_mode = #tpu.pipeline_mode<synchronous>, transform_indices = @transform_2, window_bounds = array<i64: 1, 128>}, {pipeline_mode = #tpu.pipeline_mode<synchronous>, transform_indices = @transform_3, window_bounds = array<i64: 9, 128>}, {pipeline_mode = #tpu.pipeline_mode<synchronous>, transform_indices = @transform_4, window_bounds = array<i64: 1, 128>}, {pipeline_mode = #tpu.pipeline_mode<synchronous>, transform_indices = @transform_5, window_bounds = array<i64: 128, 128>}, {pipeline_mode = #tpu.pipeline_mode<synchronous>, transform_indices = @transform_6, window_bounds = array<i64: 1, 128>}, {transform_indices = @transform_7, window_bounds = array<i64: 1, 16, 16, 128>}]} {
    %c0 = arith.constant 0 : index
    %c0_0 = arith.constant 0 : index
    %c0_1 = arith.constant 0 : index
    %c0_2 = arith.constant 0 : index
    %0 = vector.load %arg1[%c0, %c0_0, %c0_1, %c0_2] : memref<1x16x16x128xf32, #tpu.memory_space<vmem>>, vector<1x16x16x128xf32>
    %1 = vector.shape_cast %0 : vector<1x16x16x128xf32> to vector<16x16x128xf32>
    %2 = vector.shape_cast %1 : vector<16x16x128xf32> to vector<256x128xf32>
    %c0_3 = arith.constant 0 : index
    %c0_4 = arith.constant 0 : index
    %3 = vector.load %arg2[%c0_3, %c0_4] : memref<128x128xf32, #tpu.memory_space<vmem>>, vector<128x128xf32>
    %cst = arith.constant dense<0.000000e+00> : vector<256x128xf32>
    %4 = tpu.matmul %2, %3, %cst {dimension_numbers = #tpu.dot_dimension_numbers<[1], [0], [0], [1], [0, 0, 1, 1], [], []>, precision = #tpu.contract_precision<fp32>} : vector<256x128xf32>, vector<128x128xf32>, vector<256x128xf32> -> vector<256x128xf32>
    %c0_5 = arith.constant 0 : index
    %c0_6 = arith.constant 0 : index
    %5 = vector.load %arg3[%c0_5, %c0_6] : memref<1x128xf32, #tpu.memory_space<vmem>>, vector<1x128xf32>
    %6 = vector.broadcast %5 : vector<1x128xf32> to vector<256x128xf32>
    %7 = arith.addf %4, %6 : vector<256x128xf32>
    %cst_7 = arith.constant 0.000000e+00 : f32
    %cst_8 = arith.constant 6.000000e+00 : f32
    %8 = vector.broadcast %cst_7 : f32 to vector<256x128xf32>
    %9 = arith.maximumf %8, %7 : vector<256x128xf32>
    %10 = vector.broadcast %cst_8 : f32 to vector<256x128xf32>
    %11 = arith.minimumf %10, %9 : vector<256x128xf32>
    %12 = vector.shape_cast %11 : vector<256x128xf32> to vector<16x16x128xf32>
    %c1 = arith.constant 1 : index
    %c8 = arith.constant 8 : index
    %c0_9 = arith.constant 0 : index
    %13 = vector.load %arg9[%c1, %c8, %c0_9] : memref<18x32x128xf32, #tpu.memory_space<vmem>>, vector<16x16x128xf32>
    tpu.vector_store %arg9[%c1, %c8, %c0_9], %12 {strides = array<i32>} : memref<18x32x128xf32, #tpu.memory_space<vmem>>, vector<16x16x128xf32>,
    %cst_10 = arith.constant 0.000000e+00 : f32
    %14 = vector.broadcast %cst_10 : f32 to vector<1x32x128xf32>
    %cst_11 = arith.constant 0.000000e+00 : f32
    %15 = vector.broadcast %cst_11 : f32 to vector<16x1x128xf32>
    %c0_12 = arith.constant 0 : index
    %c0_13 = arith.constant 0 : index
    %c0_14 = arith.constant 0 : index
    %16 = vector.load %arg9[%c0_12, %c0_13, %c0_14] : memref<18x32x128xf32, #tpu.memory_space<vmem>>, vector<1x32x128xf32>
    tpu.vector_store %arg9[%c0_12, %c0_13, %c0_14], %14 {strides = array<i32>} : memref<18x32x128xf32, #tpu.memory_space<vmem>>, vector<1x32x128xf32>,
    %c17 = arith.constant 17 : index
    %c0_15 = arith.constant 0 : index
    %c0_16 = arith.constant 0 : index
    %17 = vector.load %arg9[%c17, %c0_15, %c0_16] : memref<18x32x128xf32, #tpu.memory_space<vmem>>, vector<1x32x128xf32>
    tpu.vector_store %arg9[%c17, %c0_15, %c0_16], %14 {strides = array<i32>} : memref<18x32x128xf32, #tpu.memory_space<vmem>>, vector<1x32x128xf32>,
    %c1_17 = arith.constant 1 : index
    %c7 = arith.constant 7 : index
    %c0_18 = arith.constant 0 : index
    %18 = vector.load %arg9[%c1_17, %c7, %c0_18] : memref<18x32x128xf32, #tpu.memory_space<vmem>>, vector<16x1x128xf32>
    tpu.vector_store %arg9[%c1_17, %c7, %c0_18], %15 {strides = array<i32>} : memref<18x32x128xf32, #tpu.memory_space<vmem>>, vector<16x1x128xf32>,
    %c1_19 = arith.constant 1 : index
    %c24 = arith.constant 24 : index
    %c0_20 = arith.constant 0 : index
    %19 = vector.load %arg9[%c1_19, %c24, %c0_20] : memref<18x32x128xf32, #tpu.memory_space<vmem>>, vector<16x1x128xf32>
    tpu.vector_store %arg9[%c1_19, %c24, %c0_20], %15 {strides = array<i32>} : memref<18x32x128xf32, #tpu.memory_space<vmem>>, vector<16x1x128xf32>,
    %c0_21 = arith.constant 0 : index
    %c0_22 = arith.constant 0 : index
    %20 = vector.load %arg4[%c0_21, %c0_22] : memref<9x128xf32, #tpu.memory_space<vmem>>, vector<9x128xf32>
    %c0_23 = arith.constant 0 : index
    %c0_24 = arith.constant 0 : index
    %21 = vector.load %arg5[%c0_23, %c0_24] : memref<1x128xf32, #tpu.memory_space<vmem>>, vector<1x128xf32>
    %22 = vector.shape_cast %21 : vector<1x128xf32> to vector<1x1x128xf32>
    %23 = vector.shape_cast %22 : vector<1x1x128xf32> to vector<1x1x128xf32>
    %24 = vector.broadcast %23 : vector<1x1x128xf32> to vector<16x16x128xf32>
    %c0_25 = arith.constant 0 : index
    %c0_26 = arith.constant 0 : index
    %c0_27 = arith.constant 0 : index
    %25 = vector.load %arg9[%c0_25, %c0_26, %c0_27] : memref<18x32x128xf32, #tpu.memory_space<vmem>>, vector<16x32x128xf32>
    %26 = vector.extract_strided_slice %25 {offsets = [0, 7, 0], sizes = [16, 16, 128], strides = [1, 1, 1]} : vector<16x32x128xf32> to vector<16x16x128xf32>
    %27 = vector.extract_strided_slice %20 {offsets = [0, 0], sizes = [1, 128], strides = [1, 1]} : vector<9x128xf32> to vector<1x128xf32>
    %28 = vector.shape_cast %27 : vector<1x128xf32> to vector<128xf32>
    %29 = vector.shape_cast %28 : vector<128xf32> to vector<1x1x128xf32>
    %30 = vector.broadcast %29 : vector<1x1x128xf32> to vector<16x16x128xf32>
    %31 = arith.mulf %26, %30 : vector<16x16x128xf32>
    %32 = arith.addf %24, %31 : vector<16x16x128xf32>
    %33 = vector.extract_strided_slice %25 {offsets = [0, 8, 0], sizes = [16, 16, 128], strides = [1, 1, 1]} : vector<16x32x128xf32> to vector<16x16x128xf32>
    %34 = vector.extract_strided_slice %20 {offsets = [1, 0], sizes = [1, 128], strides = [1, 1]} : vector<9x128xf32> to vector<1x128xf32>
    %35 = vector.shape_cast %34 : vector<1x128xf32> to vector<128xf32>
    %36 = vector.shape_cast %35 : vector<128xf32> to vector<1x1x128xf32>
    %37 = vector.broadcast %36 : vector<1x1x128xf32> to vector<16x16x128xf32>
    %38 = arith.mulf %33, %37 : vector<16x16x128xf32>
    %39 = arith.addf %32, %38 : vector<16x16x128xf32>
    %40 = vector.extract_strided_slice %25 {offsets = [0, 9, 0], sizes = [16, 16, 128], strides = [1, 1, 1]} : vector<16x32x128xf32> to vector<16x16x128xf32>
    %41 = vector.extract_strided_slice %20 {offsets = [2, 0], sizes = [1, 128], strides = [1, 1]} : vector<9x128xf32> to vector<1x128xf32>
    %42 = vector.shape_cast %41 : vector<1x128xf32> to vector<128xf32>
    %43 = vector.shape_cast %42 : vector<128xf32> to vector<1x1x128xf32>
    %44 = vector.broadcast %43 : vector<1x1x128xf32> to vector<16x16x128xf32>
    %45 = arith.mulf %40, %44 : vector<16x16x128xf32>
    %46 = arith.addf %39, %45 : vector<16x16x128xf32>
    %c1_28 = arith.constant 1 : index
    %c0_29 = arith.constant 0 : index
    %c0_30 = arith.constant 0 : index
    %47 = vector.load %arg9[%c1_28, %c0_29, %c0_30] : memref<18x32x128xf32, #tpu.memory_space<vmem>>, vector<16x32x128xf32>
    %48 = vector.extract_strided_slice %47 {offsets = [0, 7, 0], sizes = [16, 16, 128], strides = [1, 1, 1]} : vector<16x32x128xf32> to vector<16x16x128xf32>
    %49 = vector.extract_strided_slice %20 {offsets = [3, 0], sizes = [1, 128], strides = [1, 1]} : vector<9x128xf32> to vector<1x128xf32>
    %50 = vector.shape_cast %49 : vector<1x128xf32> to vector<128xf32>
    %51 = vector.shape_cast %50 : vector<128xf32> to vector<1x1x128xf32>
    %52 = vector.broadcast %51 : vector<1x1x128xf32> to vector<16x16x128xf32>
    %53 = arith.mulf %48, %52 : vector<16x16x128xf32>
    %54 = arith.addf %46, %53 : vector<16x16x128xf32>
    %55 = vector.extract_strided_slice %47 {offsets = [0, 8, 0], sizes = [16, 16, 128], strides = [1, 1, 1]} : vector<16x32x128xf32> to vector<16x16x128xf32>
    %56 = vector.extract_strided_slice %20 {offsets = [4, 0], sizes = [1, 128], strides = [1, 1]} : vector<9x128xf32> to vector<1x128xf32>
    %57 = vector.shape_cast %56 : vector<1x128xf32> to vector<128xf32>
    %58 = vector.shape_cast %57 : vector<128xf32> to vector<1x1x128xf32>
    %59 = vector.broadcast %58 : vector<1x1x128xf32> to vector<16x16x128xf32>
    %60 = arith.mulf %55, %59 : vector<16x16x128xf32>
    %61 = arith.addf %54, %60 : vector<16x16x128xf32>
    %62 = vector.extract_strided_slice %47 {offsets = [0, 9, 0], sizes = [16, 16, 128], strides = [1, 1, 1]} : vector<16x32x128xf32> to vector<16x16x128xf32>
    %63 = vector.extract_strided_slice %20 {offsets = [5, 0], sizes = [1, 128], strides = [1, 1]} : vector<9x128xf32> to vector<1x128xf32>
    %64 = vector.shape_cast %63 : vector<1x128xf32> to vector<128xf32>
    %65 = vector.shape_cast %64 : vector<128xf32> to vector<1x1x128xf32>
    %66 = vector.broadcast %65 : vector<1x1x128xf32> to vector<16x16x128xf32>
    %67 = arith.mulf %62, %66 : vector<16x16x128xf32>
    %68 = arith.addf %61, %67 : vector<16x16x128xf32>
    %c2 = arith.constant 2 : index
    %c0_31 = arith.constant 0 : index
    %c0_32 = arith.constant 0 : index
    %69 = vector.load %arg9[%c2, %c0_31, %c0_32] : memref<18x32x128xf32, #tpu.memory_space<vmem>>, vector<16x32x128xf32>
    %70 = vector.extract_strided_slice %69 {offsets = [0, 7, 0], sizes = [16, 16, 128], strides = [1, 1, 1]} : vector<16x32x128xf32> to vector<16x16x128xf32>
    %71 = vector.extract_strided_slice %20 {offsets = [6, 0], sizes = [1, 128], strides = [1, 1]} : vector<9x128xf32> to vector<1x128xf32>
    %72 = vector.shape_cast %71 : vector<1x128xf32> to vector<128xf32>
    %73 = vector.shape_cast %72 : vector<128xf32> to vector<1x1x128xf32>
    %74 = vector.broadcast %73 : vector<1x1x128xf32> to vector<16x16x128xf32>
    %75 = arith.mulf %70, %74 : vector<16x16x128xf32>
    %76 = arith.addf %68, %75 : vector<16x16x128xf32>
    %77 = vector.extract_strided_slice %69 {offsets = [0, 8, 0], sizes = [16, 16, 128], strides = [1, 1, 1]} : vector<16x32x128xf32> to vector<16x16x128xf32>
    %78 = vector.extract_strided_slice %20 {offsets = [7, 0], sizes = [1, 128], strides = [1, 1]} : vector<9x128xf32> to vector<1x128xf32>
    %79 = vector.shape_cast %78 : vector<1x128xf32> to vector<128xf32>
    %80 = vector.shape_cast %79 : vector<128xf32> to vector<1x1x128xf32>
    %81 = vector.broadcast %80 : vector<1x1x128xf32> to vector<16x16x128xf32>
    %82 = arith.mulf %77, %81 : vector<16x16x128xf32>
    %83 = arith.addf %76, %82 : vector<16x16x128xf32>
    %84 = vector.extract_strided_slice %69 {offsets = [0, 9, 0], sizes = [16, 16, 128], strides = [1, 1, 1]} : vector<16x32x128xf32> to vector<16x16x128xf32>
    %85 = vector.extract_strided_slice %20 {offsets = [8, 0], sizes = [1, 128], strides = [1, 1]} : vector<9x128xf32> to vector<1x128xf32>
    %86 = vector.shape_cast %85 : vector<1x128xf32> to vector<128xf32>
    %87 = vector.shape_cast %86 : vector<128xf32> to vector<1x1x128xf32>
    %88 = vector.broadcast %87 : vector<1x1x128xf32> to vector<16x16x128xf32>
    %89 = arith.mulf %84, %88 : vector<16x16x128xf32>
    %90 = arith.addf %83, %89 : vector<16x16x128xf32>
    %cst_33 = arith.constant 0.000000e+00 : f32
    %cst_34 = arith.constant 6.000000e+00 : f32
    %91 = vector.broadcast %cst_33 : f32 to vector<16x16x128xf32>
    %92 = arith.maximumf %91, %90 : vector<16x16x128xf32>
    %93 = vector.broadcast %cst_34 : f32 to vector<16x16x128xf32>
    %94 = arith.minimumf %93, %92 : vector<16x16x128xf32>
    %95 = vector.shape_cast %94 : vector<16x16x128xf32> to vector<256x128xf32>
    %c0_35 = arith.constant 0 : index
    %c0_36 = arith.constant 0 : index
    %96 = vector.load %arg6[%c0_35, %c0_36] : memref<128x128xf32, #tpu.memory_space<vmem>>, vector<128x128xf32>
    %cst_37 = arith.constant dense<0.000000e+00> : vector<256x128xf32>
    %97 = tpu.matmul %95, %96, %cst_37 {dimension_numbers = #tpu.dot_dimension_numbers<[1], [0], [0], [1], [0, 0, 1, 1], [], []>, precision = #tpu.contract_precision<fp32>} : vector<256x128xf32>, vector<128x128xf32>, vector<256x128xf32> -> vector<256x128xf32>
    %c0_38 = arith.constant 0 : index
    %c0_39 = arith.constant 0 : index
    %98 = vector.load %arg7[%c0_38, %c0_39] : memref<1x128xf32, #tpu.memory_space<vmem>>, vector<1x128xf32>
    %99 = vector.broadcast %98 : vector<1x128xf32> to vector<256x128xf32>
    %100 = arith.addf %97, %99 : vector<256x128xf32>
    %101 = arith.addf %100, %2 : vector<256x128xf32>
    %102 = vector.shape_cast %101 : vector<256x128xf32> to vector<16x16x128xf32>
    %c0_40 = arith.constant 0 : index
    %c0_41 = arith.constant 0 : index
    %c0_42 = arith.constant 0 : index
    %c0_43 = arith.constant 0 : index
    %103 = vector.load %arg8[%c0_40, %c0_41, %c0_42, %c0_43] : memref<1x16x16x128xf32, #tpu.memory_space<vmem>>, vector<1x16x16x128xf32>
    %104 = vector.shape_cast %103 : vector<1x16x16x128xf32> to vector<16x16x128xf32>
    %105 = vector.shape_cast %102 : vector<16x16x128xf32> to vector<1x16x16x128xf32>
    tpu.vector_store %arg8[%c0_40, %c0_41, %c0_42, %c0_43], %105 {strides = array<i32>} : memref<1x16x16x128xf32, #tpu.memory_space<vmem>>, vector<1x16x16x128xf32>,
    return
  }
  func.func @transform_0(%arg0: i32) -> (i32, i32, i32, i32) {
    %c0_i32 = arith.constant 0 : i32
    %c0_i32_0 = arith.constant 0 : i32
    %c0_i32_1 = arith.constant 0 : i32
    %c0_i32_2 = arith.constant 0 : i32
    return %arg0, %c0_i32, %c0_i32_0, %c0_i32_1 : i32, i32, i32, i32
  }
  func.func @transform_1(%arg0: i32) -> (i32, i32) {
    %c0_i32 = arith.constant 0 : i32
    %c0_i32_0 = arith.constant 0 : i32
    %c0_i32_1 = arith.constant 0 : i32
    return %c0_i32, %c0_i32_0 : i32, i32
  }
  func.func @transform_2(%arg0: i32) -> (i32, i32) {
    %c0_i32 = arith.constant 0 : i32
    %c0_i32_0 = arith.constant 0 : i32
    %c0_i32_1 = arith.constant 0 : i32
    return %c0_i32, %c0_i32_0 : i32, i32
  }
  func.func @transform_3(%arg0: i32) -> (i32, i32) {
    %c0_i32 = arith.constant 0 : i32
    %c0_i32_0 = arith.constant 0 : i32
    %c0_i32_1 = arith.constant 0 : i32
    return %c0_i32, %c0_i32_0 : i32, i32
  }
  func.func @transform_4(%arg0: i32) -> (i32, i32) {
    %c0_i32 = arith.constant 0 : i32
    %c0_i32_0 = arith.constant 0 : i32
    %c0_i32_1 = arith.constant 0 : i32
    return %c0_i32, %c0_i32_0 : i32, i32
  }
  func.func @transform_5(%arg0: i32) -> (i32, i32) {
    %c0_i32 = arith.constant 0 : i32
    %c0_i32_0 = arith.constant 0 : i32
    %c0_i32_1 = arith.constant 0 : i32
    return %c0_i32, %c0_i32_0 : i32, i32
  }
  func.func @transform_6(%arg0: i32) -> (i32, i32) {
    %c0_i32 = arith.constant 0 : i32
    %c0_i32_0 = arith.constant 0 : i32
    %c0_i32_1 = arith.constant 0 : i32
    return %c0_i32, %c0_i32_0 : i32, i32
  }
  func.func @transform_7(%arg0: i32) -> (i32, i32, i32, i32) {
    %c0_i32 = arith.constant 0 : i32
    %c0_i32_0 = arith.constant 0 : i32
    %c0_i32_1 = arith.constant 0 : i32
    %c0_i32_2 = arith.constant 0 : i32
    return %arg0, %c0_i32, %c0_i32_0, %c0_i32_1 : i32, i32, i32, i32
  }
}

</mosaic_0001>

<llo_original>
// kernel: tpu_custom_call.1
$region0: #{tpu_custom_call.1}
  #allocation0 [shape = 'u32[]', space=smem, size = 0x4, offset = 0x4, fixed_abs, tag = 'smem constant byte address 0x4 - core index']
  #allocation1 [shape = 'u32[144,128]{1,0:T(1,128)}', space=vmem, size = 0x12000, scoped, tag = 'internal scratch']
  #allocation2 [shape = 'f32[18,32,128]{2,1,0:T(8,128)}', space=vmem, size = 0x48000, scoped, tag = 'scratch operand']
  %s0 = inlined_call_operand.hbm [shape: f32[2,16,16,128], index: 0, kind: input, shape index: {}]
  %s1 = inlined_call_operand.hbm [shape: f32[128,128], index: 1, kind: input, shape index: {}]
  %s2 = inlined_call_operand.vmem [shape: f32[1,128], index: 2, kind: input, shape index: {}]
  %s3 = inlined_call_operand.hbm [shape: f32[9,128], index: 3, kind: input, shape index: {}]
  %s4 = inlined_call_operand.vmem [shape: f32[1,128], index: 4, kind: input, shape index: {}]
  %s5 = inlined_call_operand.hbm [shape: f32[128,128], index: 5, kind: input, shape index: {}]
  %s6 = inlined_call_operand.vmem [shape: f32[1,128], index: 6, kind: input, shape index: {}]
  %s7 = inlined_call_operand.hbm [shape: f32[2,16,16,128], index: 7, kind: output, shape index: {}]
  %s8 = sld [smem:[#allocation0]]
  $region77: #{tpu_custom_call.1} parent=0
    _
  %s10 = ssub.s32 1, %s8
  %s11 = scalar_select 0, %s10, %s8
  $region1: #{tpu_custom_call.1} parent=0
    #allocation3 [shape = 'u8[262144]{0}', space=vmem, size = 0x40000, scoped, tag = 'input window, operand 0']
    #allocation4 [shape = 's32[2]{0}', space=sflag, size = 0x8, scoped, tag = 'scoped memory for tpu_custom_call.1']
    #allocation5 [shape = 's32[2]{0}', space=sflag, size = 0x8, scoped, tag = 'scoped memory for tpu_custom_call.1']
    #allocation6 [shape = 'u8[65536]{0}', space=vmem, size = 0x10000, scoped, tag = 'input window, operand 1, single buffered']
    #allocation7 [shape = 's32[1]{0}', space=sflag, size = 0x4, scoped, tag = 'scoped memory for tpu_custom_call.1']
    #allocation8 [shape = 'u8[8192]{0}', space=vmem, size = 0x2000, scoped, tag = 'input window, operand 3, single buffered']
    #allocation9 [shape = 'u8[65536]{0}', space=vmem, size = 0x10000, scoped, tag = 'input window, operand 5, single buffered']
    #allocation10 [shape = 's32[1]{0}', space=sflag, size = 0x4, scoped, tag = 'scoped memory for tpu_custom_call.1']
    #allocation11 [shape = 'u8[262144]{0}', space=vmem, size = 0x40000, scoped, tag = 'output window, operand 0']
    %12 = vsyncpa [#allocation4], 0
    %s13 = scalar_lea.sflag [#allocation4], 1
    %14 = vsyncpa %s13, 0
    %15 = vsyncpa [#allocation7], 0
    %16 = vsyncpa [#allocation10], 0
    %17 = vsyncpa [#allocation5], 0
    %s18 = scalar_lea.sflag [#allocation5], 1
    %19 = vsyncpa %s18, 0
    loop: start=0, step=1, limit=4
    $region2: #{tpu_custom_call.1} parent=1 // loop_pre_header
      _
    $region3: #{tpu_custom_call.1} parent=1 // loop_header
      %s21 = sphi 0, %s25
      %p22 = scmp.ge.s32.totalorder %s21, 4
      %s31 = sphi 0, %s33
      %s34 = sphi 0, %s31
      %s35 = sphi 0, %s34
      %s51 = sphi 0, %s35
      %s55 = sphi 0, %s55
      %s57 = sphi 0, %s55
      %s58 = sphi 0, %s57
      %s72 = sphi 0, %s58
      %s76 = sphi 0, %s76
      %s78 = sphi 0, %s76
      %s79 = sphi 0, %s78
      %s93 = sphi 0, %s79
      %s97 = sphi 0, %s97
      %s99 = sphi 0, %s97
      %s100 = sphi 0, %s99
      %s114 = sphi 0, %s100
      %s118 = sphi 0, %s118
      %s120 = sphi 0, %s118
      %s121 = sphi 0, %s120
      %s135 = sphi 0, %s121
      %s139 = sphi 0, %s139
      %s141 = sphi 0, %s139
      %s142 = sphi 0, %s141
      %s156 = sphi 0, %s142
      %s160 = sphi 0, %s160
      %s162 = sphi 0, %s160
      %s163 = sphi 0, %s162
      %s177 = sphi 0, %s163
      %s183 = sphi 0, %s185
      %s186 = sphi 0, %s183
      %s187 = sphi 0, %s186
      %s203 = sphi 0, %s187
    $region4: #{tpu_custom_call.1} parent=1 // loop_header_branch
      %24 = sbr.rel (%p22) target = $region8
    $region5: #{tpu_custom_call.1} parent=1 // loop_body
      %s26 = ssub.s32 %s21, 1
      %s27 = ssub.s32 %s21, 2
      %s28 = sadd.s32 %s21, 1
      %s29 = ssub.s32 %s21, %s28
      %p30 = scmp.eq.s32.totalorder %s29, 0
      %s32 = sadd.s32 %s31, 1
      %s33 = scalar_select %p30, %s31, %s32
      %p36 = pneg %p30
      %p37 = scmp.eq.s32.totalorder %s21, 1
      %p38 = por %p36, %p37
      %p39 = scmp.ne.s32.totalorder %s31, %s34
      %p40 = scmp.eq.s32.totalorder %s21, 0
      %p41 = por %p39, %p40
      %p42 = scmp.ne.s32.totalorder %s31, %s34
      %p43 = scmp.eq.s32.totalorder %s26, 1
      %p44 = por %p42, %p43
      %p45 = scmp.ne.s32.totalorder %s34, %s35
      %p46 = scmp.eq.s32.totalorder %s26, 0
      %p47 = por %p45, %p46
      %p48 = scmp.ne.s32.totalorder %s34, %s35
      %p49 = scmp.eq.s32.totalorder %s27, 1
      %p50 = por %p48, %p49
      %p52 = scmp.ne.s32.totalorder %s35, %s51
      %p53 = scmp.eq.s32.totalorder %s27, 0
      %p54 = por %p52, %p53
      %s56 = sadd.s32 %s55, 1
      %p59 = scmp.eq.s32.totalorder %s21, 1
      %p60 = scmp.ne.s32.totalorder %s55, %s57
      %p61 = scmp.eq.s32.totalorder %s21, 0
      %p62 = por %p60, %p61
      %p63 = scmp.ne.s32.totalorder %s55, %s57
      %p64 = scmp.eq.s32.totalorder %s26, 1
      %p65 = por %p63, %p64
      %p66 = scmp.ne.s32.totalorder %s57, %s58
      %p67 = scmp.eq.s32.totalorder %s26, 0
      %p68 = por %p66, %p67
      %p69 = scmp.ne.s32.totalorder %s57, %s58
      %p70 = scmp.eq.s32.totalorder %s27, 1
      %p71 = por %p69, %p70
      %p73 = scmp.ne.s32.totalorder %s58, %s72
      %p74 = scmp.eq.s32.totalorder %s27, 0
      %p75 = por %p73, %p74
      %s77 = sadd.s32 %s76, 1
      %p80 = scmp.eq.s32.totalorder %s21, 1
      %p81 = scmp.ne.s32.totalorder %s76, %s78
      %p82 = scmp.eq.s32.totalorder %s21, 0
      %p83 = por %p81, %p82
      %p84 = scmp.ne.s32.totalorder %s76, %s78
      %p85 = scmp.eq.s32.totalorder %s26, 1
      %p86 = por %p84, %p85
      %p87 = scmp.ne.s32.totalorder %s78, %s79
      %p88 = scmp.eq.s32.totalorder %s26, 0
      %p89 = por %p87, %p88
      %p90 = scmp.ne.s32.totalorder %s78, %s79
      %p91 = scmp.eq.s32.totalorder %s27, 1
      %p92 = por %p90, %p91
      %p94 = scmp.ne.s32.totalorder %s79, %s93
      %p95 = scmp.eq.s32.totalorder %s27, 0
      %p96 = por %p94, %p95
      %s98 = sadd.s32 %s97, 1
      %p101 = scmp.eq.s32.totalorder %s21, 1
      %p102 = scmp.ne.s32.totalorder %s97, %s99
      %p103 = scmp.eq.s32.totalorder %s21, 0
      %p104 = por %p102, %p103
      %p105 = scmp.ne.s32.totalorder %s97, %s99
      %p106 = scmp.eq.s32.totalorder %s26, 1
      %p107 = por %p105, %p106
      %p108 = scmp.ne.s32.totalorder %s99, %s100
      %p109 = scmp.eq.s32.totalorder %s26, 0
      %p110 = por %p108, %p109
      %p111 = scmp.ne.s32.totalorder %s99, %s100
      %p112 = scmp.eq.s32.totalorder %s27, 1
      %p113 = por %p111, %p112
      %p115 = scmp.ne.s32.totalorder %s100, %s114
      %p116 = scmp.eq.s32.totalorder %s27, 0
      %p117 = por %p115, %p116
      %s119 = sadd.s32 %s118, 1
      %p122 = scmp.eq.s32.totalorder %s21, 1
      %p123 = scmp.ne.s32.totalorder %s118, %s120
      %p124 = scmp.eq.s32.totalorder %s21, 0
      %p125 = por %p123, %p124
      %p126 = scmp.ne.s32.totalorder %s118, %s120
      %p127 = scmp.eq.s32.totalorder %s26, 1
      %p128 = por %p126, %p127
      %p129 = scmp.ne.s32.totalorder %s120, %s121
      %p130 = scmp.eq.s32.totalorder %s26, 0
      %p131 = por %p129, %p130
      %p132 = scmp.ne.s32.totalorder %s120, %s121
      %p133 = scmp.eq.s32.totalorder %s27, 1
      %p134 = por %p132, %p133
      %p136 = scmp.ne.s32.totalorder %s121, %s135
      %p137 = scmp.eq.s32.totalorder %s27, 0
      %p138 = por %p136, %p137
      %s140 = sadd.s32 %s139, 1
      %p143 = scmp.eq.s32.totalorder %s21, 1
      %p144 = scmp.ne.s32.totalorder %s139, %s141
      %p145 = scmp.eq.s32.totalorder %s21, 0
      %p146 = por %p144, %p145
      %p147 = scmp.ne.s32.totalorder %s139, %s141
      %p148 = scmp.eq.s32.totalorder %s26, 1
      %p149 = por %p147, %p148
      %p150 = scmp.ne.s32.totalorder %s141, %s142
      %p151 = scmp.eq.s32.totalorder %s26, 0
      %p152 = por %p150, %p151
      %p153 = scmp.ne.s32.totalorder %s141, %s142
      %p154 = scmp.eq.s32.totalorder %s27, 1
      %p155 = por %p153, %p154
      %p157 = scmp.ne.s32.totalorder %s142, %s156
      %p158 = scmp.eq.s32.totalorder %s27, 0
      %p159 = por %p157, %p158
      %s161 = sadd.s32 %s160, 1
      %p164 = scmp.eq.s32.totalorder %s21, 1
      %p165 = scmp.ne.s32.totalorder %s160, %s162
      %p166 = scmp.eq.s32.totalorder %s21, 0
      %p167 = por %p165, %p166
      %p168 = scmp.ne.s32.totalorder %s160, %s162
      %p169 = scmp.eq.s32.totalorder %s26, 1
      %p170 = por %p168, %p169
      %p171 = scmp.ne.s32.totalorder %s162, %s163
      %p172 = scmp.eq.s32.totalorder %s26, 0
      %p173 = por %p171, %p172
      %p174 = scmp.ne.s32.totalorder %s162, %s163
      %p175 = scmp.eq.s32.totalorder %s27, 1
      %p176 = por %p174, %p175
      %p178 = scmp.ne.s32.totalorder %s163, %s177
      %p179 = scmp.eq.s32.totalorder %s27, 0
      %p180 = por %p178, %p179
      %s181 = ssub.s32 %s21, %s28
      %p182 = scmp.eq.s32.totalorder %s181, 0
      %s184 = sadd.s32 %s183, 1
      %s185 = scalar_select %p182, %s183, %s184
      %p188 = pneg %p182
      %p189 = scmp.eq.s32.totalorder %s21, 1
      %p190 = por %p188, %p189
      %p191 = scmp.ne.s32.totalorder %s183, %s186
      %p192 = scmp.eq.s32.totalorder %s21, 0
      %p193 = por %p191, %p192
      %p194 = scmp.ne.s32.totalorder %s183, %s186
      %p195 = scmp.eq.s32.totalorder %s26, 1
      %p196 = por %p194, %p195
      %p197 = scmp.ne.s32.totalorder %s186, %s187
      %p198 = scmp.eq.s32.totalorder %s26, 0
      %p199 = por %p197, %p198
      %p200 = scmp.ne.s32.totalorder %s186, %s187
      %p201 = scmp.eq.s32.totalorder %s27, 1
      %p202 = por %p200, %p201
      %p204 = scmp.ne.s32.totalorder %s187, %s203
      %p205 = scmp.eq.s32.totalorder %s27, 0
      %p206 = por %p204, %p205
      %p207 = scmp.le.s32.totalorder 1, %s21
      %p208 = scmp.lt.s32.totalorder %s21, 3
      %p209 = pnand %p207, %p208
      %p210 = pneg %p209
      // Predicated region
      $region9: #{tpu_custom_call.1} parent=5 // pred_check
        _
      $region10: #{tpu_custom_call.1} parent=5 // pred_check_branch
        %212 = sbr.rel (%p209) target = $region12
      $region11: #{tpu_custom_call.1} parent=5 // pred_region
        %s213 = ssub.s32 %s21, 1
        // Predicated region
        $region13: #{tpu_custom_call.1} parent=11 // pred_check
          %p214 = pneg %p68
        $region14: #{tpu_custom_call.1} parent=11 // pred_check_branch
          %216 = sbr.rel (%p214) target = $region16
        $region15: #{tpu_custom_call.1} parent=11 // pred_region
          %s218 = ssub.s32 2048, 2048
          %219 = vsyncadd [#allocation7], %s218
          %s220 = sshll.u32 [#allocation6], 4
          %s221 = int_to_ptr.vmem [resolvable:$true] %s220
          %226 = dma.hbm_to_vmem [thread:$0]  %s1, 2048, %s221, [#allocation7], 128, 128, 8
        $region16: #{tpu_custom_call.1} parent=11 // pred_fallthru
          _
        // Predicated region
        $region17: #{tpu_custom_call.1} parent=11 // pred_check
          %p227 = pneg %p89
        $region18: #{tpu_custom_call.1} parent=11 // pred_check_branch
          %229 = sbr.rel (%p227) target = $region20
        $region19: #{tpu_custom_call.1} parent=11 // pred_region
          _
        $region20: #{tpu_custom_call.1} parent=11 // pred_fallthru
          _
        // Predicated region
        $region21: #{tpu_custom_call.1} parent=11 // pred_check
          %p230 = pneg %p110
        $region22: #{tpu_custom_call.1} parent=11 // pred_check_branch
          %232 = sbr.rel (%p230) target = $region24
        $region23: #{tpu_custom_call.1} parent=11 // pred_region
          %s234 = ssub.s32 256, 256
          %235 = vsyncadd [#allocation7], %s234
          %s236 = sshll.u32 [#allocation8], 4
          %s237 = int_to_ptr.vmem [resolvable:$true] %s236
          %242 = dma.hbm_to_vmem [thread:$0]  %s3, 256, %s237, [#allocation7], 128, 128, 8
        $region24: #{tpu_custom_call.1} parent=11 // pred_fallthru
          _
        // Predicated region
        $region25: #{tpu_custom_call.1} parent=11 // pred_check
          %p243 = pneg %p131
        $region26: #{tpu_custom_call.1} parent=11 // pred_check_branch
          %245 = sbr.rel (%p243) target = $region28
        $region27: #{tpu_custom_call.1} parent=11 // pred_region
          _
        $region28: #{tpu_custom_call.1} parent=11 // pred_fallthru
          _
        // Predicated region
        $region29: #{tpu_custom_call.1} parent=11 // pred_check
          %p246 = pneg %p152
        $region30: #{tpu_custom_call.1} parent=11 // pred_check_branch
          %248 = sbr.rel (%p246) target = $region32
        $region31: #{tpu_custom_call.1} parent=11 // pred_region
          %s250 = ssub.s32 2048, 2048
          %251 = vsyncadd [#allocation10], %s250
          %s252 = sshll.u32 [#allocation9], 4
          %s253 = int_to_ptr.vmem [resolvable:$true] %s252
          %258 = dma.hbm_to_vmem [thread:$0]  %s5, 2048, %s253, [#allocation10], 128, 128, 8
        $region32: #{tpu_custom_call.1} parent=11 // pred_fallthru
          _
        // Predicated region
        $region33: #{tpu_custom_call.1} parent=11 // pred_check
          %p259 = pneg %p173
        $region34: #{tpu_custom_call.1} parent=11 // pred_check_branch
          %261 = sbr.rel (%p259) target = $region36
        $region35: #{tpu_custom_call.1} parent=11 // pred_region
          _
        $region36: #{tpu_custom_call.1} parent=11 // pred_fallthru
          _
      $region12: #{tpu_custom_call.1} parent=5 // pred_fallthru
        _
      %p262 = scmp.lt.s32.totalorder %s21, 2
      // Predicated region
      $region37: #{tpu_custom_call.1} parent=5 // pred_check
        %p263 = pneg %p262
      $region38: #{tpu_custom_call.1} parent=5 // pred_check_branch
        %265 = sbr.rel (%p263) target = $region40
      $region39: #{tpu_custom_call.1} parent=5 // pred_region
        // Predicated region
        $region41: #{tpu_custom_call.1} parent=39 // pred_check
          %p266 = pneg %p41
        $region42: #{tpu_custom_call.1} parent=39 // pred_check_branch
          %268 = sbr.rel (%p266) target = $region44
        $region43: #{tpu_custom_call.1} parent=39 // pred_region
          %s269 = sand.u32 %s31, 1
          %s270 = scalar_lea.sflag [#allocation4], %s269
          %s271 = sand.u32 %s31, 1
          %s272 = smul.addr %s271, 256
          %s273 = scalar_lea.vmem [#allocation3], %s272
          %s275 = ssub.s32 4096, 4096
          %276 = vsyncadd %s270, %s275
          %s277 = smul.addr %s21, 32
          %s278 = smul.addr %s277, 128
          %s279 = scalar_lea.hbm %s0, %s278
          %s280 = sshll.u32 %s273, 4
          %s281 = int_to_ptr.vmem [resolvable:$true] %s280
          %286 = dma.hbm_to_vmem [thread:$0]  %s279, 4096, %s281, %s270, 128, 128, 8
        $region44: #{tpu_custom_call.1} parent=39 // pred_fallthru
          _
      $region40: #{tpu_custom_call.1} parent=5 // pred_fallthru
        _
      %p287 = scmp.le.s32.totalorder 1, %s21
      %p288 = scmp.lt.s32.totalorder %s21, 3
      %p289 = pnand %p287, %p288
      %p290 = pneg %p289
      // Predicated region
      $region45: #{tpu_custom_call.1} parent=5 // pred_check
        _
      $region46: #{tpu_custom_call.1} parent=5 // pred_check_branch
        %292 = sbr.rel (%p289) target = $region48
      $region47: #{tpu_custom_call.1} parent=5 // pred_region
        %s293 = ssub.s32 %s21, 1
        %s294 = sand.u32 %s34, 1
        %s295 = scalar_lea.sflag [#allocation4], %s294
        %s296 = sand.u32 %s34, 1
        %s297 = smul.addr %s296, 256
        %s298 = scalar_lea.vmem [#allocation3], %s297
        // Predicated region
        $region49: #{tpu_custom_call.1} parent=47 // pred_check
          %p299 = pneg %p47
        $region50: #{tpu_custom_call.1} parent=47 // pred_check_branch
          %301 = sbr.rel (%p299) target = $region52
        $region51: #{tpu_custom_call.1} parent=47 // pred_region
          %302 = dma.done %s295, 4096
        $region52: #{tpu_custom_call.1} parent=47 // pred_fallthru
          _
        // Predicated region
        $region53: #{tpu_custom_call.1} parent=47 // pred_check
          %p303 = pneg %p68
        $region54: #{tpu_custom_call.1} parent=47 // pred_check_branch
          %305 = sbr.rel (%p303) target = $region56
        $region55: #{tpu_custom_call.1} parent=47 // pred_region
          %306 = dma.done [#allocation7], 2048
        $region56: #{tpu_custom_call.1} parent=47 // pred_fallthru
          _
        // Predicated region
        $region57: #{tpu_custom_call.1} parent=47 // pred_check
          %p307 = pneg %p110
        $region58: #{tpu_custom_call.1} parent=47 // pred_check_branch
          %309 = sbr.rel (%p307) target = $region60
        $region59: #{tpu_custom_call.1} parent=47 // pred_region
          %310 = dma.done [#allocation7], 256
        $region60: #{tpu_custom_call.1} parent=47 // pred_fallthru
          _
        // Predicated region
        $region61: #{tpu_custom_call.1} parent=47 // pred_check
          %p311 = pneg %p152
        $region62: #{tpu_custom_call.1} parent=47 // pred_check_branch
          %313 = sbr.rel (%p311) target = $region64
        $region63: #{tpu_custom_call.1} parent=47 // pred_region
          %314 = dma.done [#allocation10], 2048
        $region64: #{tpu_custom_call.1} parent=47 // pred_fallthru
          _
        %s315 = sand.u32 %s34, 1
        %s316 = scalar_lea.sflag [#allocation4], %s315
        %s317 = sand.u32 %s34, 1
        %s318 = smul.addr %s317, 256
        %s319 = scalar_lea.vmem [#allocation3], %s318
        %p320 = pneg %p47
        %p321 = pneg %p44
        %p322 = pneg %p68
        %p323 = pneg %p65
        %p324 = pneg %p89
        %p325 = pneg %p86
        %p326 = pneg %p110
        %p327 = pneg %p107
        %p328 = pneg %p131
        %p329 = pneg %p128
        %p330 = pneg %p152
        %p331 = pneg %p149
        %p332 = pneg %p173
        %p333 = pneg %p170
        %p334 = pneg %p199
        %p335 = pneg %p196
        %s336 = sand.u32 %s186, 1
        %s337 = scalar_lea.sflag [#allocation5], %s336
        %s338 = sand.u32 %s186, 1
        %s339 = smul.addr %s338, 256
        %s340 = scalar_lea.vmem [#allocation11], %s339
        %v341 = vld [vmem:[%s298] sm:$0xff]
        %v342 = vld [vmem:[%s298 + $0x8] sm:$0xff]
        %v343 = vld [vmem:[%s298 + $0x10] sm:$0xff]
        %v344 = vld [vmem:[%s298 + $0x18] sm:$0xff]
        %v345 = vld [vmem:[%s298 + $0x20] sm:$0xff]
        %v346 = vld [vmem:[%s298 + $0x28] sm:$0xff]
        %v347 = vld [vmem:[%s298 + $0x30] sm:$0xff]
        %v348 = vld [vmem:[%s298 + $0x38] sm:$0xff]
        %v349 = vld [vmem:[%s298 + $0x40] sm:$0xff]
        %v350 = vld [vmem:[%s298 + $0x48] sm:$0xff]
        %v351 = vld [vmem:[%s298 + $0x50] sm:$0xff]
        %v352 = vld [vmem:[%s298 + $0x58] sm:$0xff]
        %v353 = vld [vmem:[%s298 + $0x60] sm:$0xff]
        %v354 = vld [vmem:[%s298 + $0x68] sm:$0xff]
        %v355 = vld [vmem:[%s298 + $0x70] sm:$0xff]
        %v356 = vld [vmem:[%s298 + $0x78] sm:$0xff]
        %v357 = vld [vmem:[%s298 + $0x80] sm:$0xff]
        %v358 = vld [vmem:[%s298 + $0x88] sm:$0xff]
        %v359 = vld [vmem:[%s298 + $0x90] sm:$0xff]
        %v360 = vld [vmem:[%s298 + $0x98] sm:$0xff]
        %v361 = vld [vmem:[%s298 + $0xa0] sm:$0xff]
        %v362 = vld [vmem:[%s298 + $0xa8] sm:$0xff]
        %v363 = vld [vmem:[%s298 + $0xb0] sm:$0xff]
        %v364 = vld [vmem:[%s298 + $0xb8] sm:$0xff]
        %v365 = vld [vmem:[%s298 + $0xc0] sm:$0xff]
        %v366 = vld [vmem:[%s298 + $0xc8] sm:$0xff]
        %v367 = vld [vmem:[%s298 + $0xd0] sm:$0xff]
        %v368 = vld [vmem:[%s298 + $0xd8] sm:$0xff]
        %v369 = vld [vmem:[%s298 + $0xe0] sm:$0xff]
        %v370 = vld [vmem:[%s298 + $0xe8] sm:$0xff]
        %v371 = vld [vmem:[%s298 + $0xf0] sm:$0xff]
        %v372 = vld [vmem:[%s298 + $0xf8] sm:$0xff]
        %v373 = vld [vmem:[#allocation6] sm:$0xff]
        %v374 = vld [vmem:[#allocation6 + $0x8] sm:$0xff]
        %v375 = vld [vmem:[#allocation6 + $0x10] sm:$0xff]
        %v376 = vld [vmem:[#allocation6 + $0x18] sm:$0xff]
        %v377 = vld [vmem:[#allocation6 + $0x20] sm:$0xff]
        %v378 = vld [vmem:[#allocation6 + $0x28] sm:$0xff]
        %v379 = vld [vmem:[#allocation6 + $0x30] sm:$0xff]
        %v380 = vld [vmem:[#allocation6 + $0x38] sm:$0xff]
        %v381 = vld [vmem:[#allocation6 + $0x40] sm:$0xff]
        %v382 = vld [vmem:[#allocation6 + $0x48] sm:$0xff]
        %v383 = vld [vmem:[#allocation6 + $0x50] sm:$0xff]
        %v384 = vld [vmem:[#allocation6 + $0x58] sm:$0xff]
        %v385 = vld [vmem:[#allocation6 + $0x60] sm:$0xff]
        %v386 = vld [vmem:[#allocation6 + $0x68] sm:$0xff]
        %v387 = vld [vmem:[#allocation6 + $0x70] sm:$0xff]
        %v388 = vld [vmem:[#allocation6 + $0x78] sm:$0xff]
        %v389 = vld [vmem:[%s2] sm:$0x1]
        %v391 = vlaneseq
        %v392 = vshrl.u32 %v391, 7
        %v393 = vsub.s32 0, %v392
        %v394 = vrot.slane %v389, %v393
        %396 = vmatprep.subr.mxu0 0.0
        %v397 = vand.u32 %v373, 4294901760
        %398 = vmatpush1.msra.mxu0 %v397
        %399 = vmatprep.subr.mxu0 0.0
        %v400 = vand.u32 %v374, 4294901760
        %401 = vmatpush1.msra.mxu0 %v400
        %402 = vmatprep.subr.mxu0 0.0
        %v403 = vand.u32 %v375, 4294901760
        %404 = vmatpush1.msra.mxu0 %v403
        %405 = vmatprep.subr.mxu0 0.0
        %v406 = vand.u32 %v376, 4294901760
        %407 = vmatpush1.msra.mxu0 %v406
        %408 = vmatprep.subr.mxu0 0.0
        %v409 = vand.u32 %v377, 4294901760
        %410 = vmatpush1.msra.mxu0 %v409
        %411 = vmatprep.subr.mxu0 0.0
        %v412 = vand.u32 %v378, 4294901760
        %413 = vmatpush1.msra.mxu0 %v412
        %414 = vmatprep.subr.mxu0 0.0
        %v415 = vand.u32 %v379, 4294901760
        %416 = vmatpush1.msra.mxu0 %v415
        %417 = vmatprep.subr.mxu0 0.0
        %v418 = vand.u32 %v380, 4294901760
        %419 = vmatpush1.msra.mxu0 %v418
        %420 = vmatprep.subr.mxu0 0.0
        %v421 = vand.u32 %v381, 4294901760
        %422 = vmatpush1.msra.mxu0 %v421
        %423 = vmatprep.subr.mxu0 0.0
        %v424 = vand.u32 %v382, 4294901760
        %425 = vmatpush1.msra.mxu0 %v424
        %426 = vmatprep.subr.mxu0 0.0
        %v427 = vand.u32 %v383, 4294901760
        %428 = vmatpush1.msra.mxu0 %v427
        %429 = vmatprep.subr.mxu0 0.0
        %v430 = vand.u32 %v384, 4294901760
        %431 = vmatpush1.msra.mxu0 %v430
        %432 = vmatprep.subr.mxu0 0.0
        %v433 = vand.u32 %v385, 4294901760
        %434 = vmatpush1.msra.mxu0 %v433
        %435 = vmatprep.subr.mxu0 0.0
        %v436 = vand.u32 %v386, 4294901760
        %437 = vmatpush1.msra.mxu0 %v436
        %438 = vmatprep.subr.mxu0 0.0
        %v439 = vand.u32 %v387, 4294901760
        %440 = vmatpush1.msra.mxu0 %v439
        %441 = vmatprep.subr.mxu0 0.0
        %v442 = vand.u32 %v388, 4294901760
        %443 = vmatpush1.msra.mxu0 %v442
        %444 = vmatprep.subr.mxu0 0.0
        %445 = vmatpush1.msra.mxu0 0.0
        %446 = vmatprep.subr.mxu0 0.0
        %447 = vmatpush1.msra.mxu0 0.0
        %448 = vmatprep.subr.mxu0 0.0
        %449 = vmatpush1.msra.mxu0 0.0
        %450 = vmatprep.subr.mxu0 0.0
        %451 = vmatpush1.msra.mxu0 0.0
        %452 = vmatprep.subr.mxu0 0.0
        %453 = vmatpush1.msra.mxu0 0.0
        %454 = vmatprep.subr.mxu0 0.0
        %455 = vmatpush1.msra.mxu0 0.0
        %456 = vmatprep.subr.mxu0 0.0
        %457 = vmatpush1.msra.mxu0 0.0
        %458 = vmatprep.subr.mxu0 0.0
        %459 = vmatpush1.msra.mxu0 0.0
        %460 = vmatprep.subr.mxu0 0.0
        %461 = vmatpush1.msra.mxu0 0.0
        %462 = vmatprep.subr.mxu0 0.0
        %463 = vmatpush1.msra.mxu0 0.0
        %464 = vmatprep.subr.mxu0 0.0
        %465 = vmatpush1.msra.mxu0 0.0
        %466 = vmatprep.subr.mxu0 0.0
        %467 = vmatpush1.msra.mxu0 0.0
        %468 = vmatprep.subr.mxu0 0.0
        %469 = vmatpush1.msra.mxu0 0.0
        %470 = vmatprep.subr.mxu0 0.0
        %471 = vmatpush1.msra.mxu0 0.0
        %472 = vmatprep.subr.mxu0 0.0
        %473 = vmatpush1.msra.mxu0 0.0
        %474 = vmatprep.subr.mxu0 0.0
        %475 = vmatpush1.msra.mxu0 0.0
        %476 = vmatprep.mubr.f32.mxu0 0.0
        %v477 = vand.u32 %v341, 4294901760
        %v478 = vsub.f32 %v341, %v477
        %v479 = vand.u32 %v478, 4294901760
        %v480 = vsub.f32 %v478, %v479
        %v481 = vand.u32 %v480, 4294901760
        %482 = vmatmul.mubr.f32.gmra.mrb[0].mxu0 %v481
        %v483 = vpop.f32.mrb[0].mxu0
        %v484 = vadd.f32 %v394, %v483
        %v485 = vpop.f32.mrb[0].mxu0
        %486 = vmatprep.mubr.f32.mxu0 0.0
        %v487 = vand.u32 %v342, 4294901760
        %v488 = vsub.f32 %v342, %v487
        %v489 = vand.u32 %v488, 4294901760
        %v490 = vsub.f32 %v488, %v489
        %v491 = vand.u32 %v490, 4294901760
        %492 = vmatmul.mubr.f32.gmra.mrb[0].mxu0 %v491
        %v493 = vpop.f32.mrb[0].mxu0
        %v494 = vadd.f32 %v394, %v493
        %v495 = vpop.f32.mrb[0].mxu0
        %496 = vmatprep.mubr.f32.mxu0 0.0
        %v497 = vand.u32 %v343, 4294901760
        %v498 = vsub.f32 %v343, %v497
        %v499 = vand.u32 %v498, 4294901760
        %v500 = vsub.f32 %v498, %v499
        %v501 = vand.u32 %v500, 4294901760
        %502 = vmatmul.mubr.f32.gmra.mrb[0].mxu0 %v501
        %v503 = vpop.f32.mrb[0].mxu0
        %v504 = vadd.f32 %v394, %v503
        %v505 = vpop.f32.mrb[0].mxu0
        %506 = vmatprep.mubr.f32.mxu0 0.0
        %v507 = vand.u32 %v344, 4294901760
        %v508 = vsub.f32 %v344, %v507
        %v509 = vand.u32 %v508, 4294901760
        %v510 = vsub.f32 %v508, %v509
        %v511 = vand.u32 %v510, 4294901760
        %512 = vmatmul.mubr.f32.gmra.mrb[0].mxu0 %v511
        %v513 = vpop.f32.mrb[0].mxu0
        %v514 = vadd.f32 %v394, %v513
        %v515 = vpop.f32.mrb[0].mxu0
        %516 = vmatprep.mubr.f32.mxu0 0.0
        %v517 = vand.u32 %v345, 4294901760
        %v518 = vsub.f32 %v345, %v517
        %v519 = vand.u32 %v518, 4294901760
        %v520 = vsub.f32 %v518, %v519
        %v521 = vand.u32 %v520, 4294901760
        %522 = vmatmul.mubr.f32.gmra.mrb[0].mxu0 %v521
        %v523 = vpop.f32.mrb[0].mxu0
        %v524 = vadd.f32 %v394, %v523
        %v525 = vpop.f32.mrb[0].mxu0
        %526 = vmatprep.mubr.f32.mxu0 0.0
        %v527 = vand.u32 %v346, 4294901760
        %v528 = vsub.f32 %v346, %v527
        %v529 = vand.u32 %v528, 4294901760
        %v530 = vsub.f32 %v528, %v529
        %v531 = vand.u32 %v530, 4294901760
        %532 = vmatmul.mubr.f32.gmra.mrb[0].mxu0 %v531
        %v533 = vpop.f32.mrb[0].mxu0
        %v534 = vadd.f32 %v394, %v533
        %v535 = vpop.f32.mrb[0].mxu0
        %536 = vmatprep.mubr.f32.mxu0 0.0
        %v537 = vand.u32 %v347, 4294901760
        %v538 = vsub.f32 %v347, %v537
        %v539 = vand.u32 %v538, 4294901760
        %v540 = vsub.f32 %v538, %v539
        %v541 = vand.u32 %v540, 4294901760
        %542 = vmatmul.mubr.f32.gmra.mrb[0].mxu0 %v541
        %v543 = vpop.f32.mrb[0].mxu0
        %v544 = vadd.f32 %v394, %v543
        %v545 = vpop.f32.mrb[0].mxu0
        %546 = vmatprep.mubr.f32.mxu0 0.0
        %v547 = vand.u32 %v348, 4294901760
        %v548 = vsub.f32 %v348, %v547
        %v549 = vand.u32 %v548, 4294901760
        %v550 = vsub.f32 %v548, %v549
        %v551 = vand.u32 %v550, 4294901760
        %552 = vmatmul.mubr.f32.gmra.mrb[0].mxu0 %v551
        %v553 = vpop.f32.mrb[0].mxu0
        %v554 = vadd.f32 %v394, %v553
        %v555 = vpop.f32.mrb[0].mxu0
        %556 = vmatprep.mubr.f32.mxu0 0.0
        %v557 = vand.u32 %v349, 4294901760
        %v558 = vsub.f32 %v349, %v557
        %v559 = vand.u32 %v558, 4294901760
        %v560 = vsub.f32 %v558, %v559
        %v561 = vand.u32 %v560, 4294901760
        %562 = vmatmul.mubr.f32.gmra.mrb[0].mxu0 %v561
        %v563 = vpop.f32.mrb[0].mxu0
        %v564 = vadd.f32 %v394, %v563
        %v565 = vpop.f32.mrb[0].mxu0
        %566 = vmatprep.mubr.f32.mxu0 0.0
        %v567 = vand.u32 %v350, 4294901760
        %v568 = vsub.f32 %v350, %v567
        %v569 = vand.u32 %v568, 4294901760
        %v570 = vsub.f32 %v568, %v569
        %v571 = vand.u32 %v570, 4294901760
        %572 = vmatmul.mubr.f32.gmra.mrb[0].mxu0 %v571
        %v573 = vpop.f32.mrb[0].mxu0
        %v574 = vadd.f32 %v394, %v573
        %v575 = vpop.f32.mrb[0].mxu0
        %576 = vmatprep.mubr.f32.mxu0 0.0
        %v577 = vand.u32 %v351, 4294901760
        %v578 = vsub.f32 %v351, %v577
        %v579 = vand.u32 %v578, 4294901760
        %v580 = vsub.f32 %v578, %v579
        %v581 = vand.u32 %v580, 4294901760
        %582 = vmatmul.mubr.f32.gmra.mrb[0].mxu0 %v581
        %v583 = vpop.f32.mrb[0].mxu0
        %v584 = vadd.f32 %v394, %v583
        %v585 = vpop.f32.mrb[0].mxu0
        %586 = vmatprep.mubr.f32.mxu0 0.0
        %v587 = vand.u32 %v352, 4294901760
        %v588 = vsub.f32 %v352, %v587
        %v589 = vand.u32 %v588, 4294901760
        %v590 = vsub.f32 %v588, %v589
        %v591 = vand.u32 %v590, 4294901760
        %592 = vmatmul.mubr.f32.gmra.mrb[0].mxu0 %v591
        %v593 = vpop.f32.mrb[0].mxu0
        %v594 = vadd.f32 %v394, %v593
        %v595 = vpop.f32.mrb[0].mxu0
        %596 = vmatprep.mubr.f32.mxu0 0.0
        %v597 = vand.u32 %v353, 4294901760
        %v598 = vsub.f32 %v353, %v597
        %v599 = vand.u32 %v598, 4294901760
        %v600 = vsub.f32 %v598, %v599
        %v601 = vand.u32 %v600, 4294901760
        %602 = vmatmul.mubr.f32.gmra.mrb[0].mxu0 %v601
        %v603 = vpop.f32.mrb[0].mxu0
        %v604 = vadd.f32 %v394, %v603
        %v605 = vpop.f32.mrb[0].mxu0
        %606 = vmatprep.mubr.f32.mxu0 0.0
        %v607 = vand.u32 %v354, 4294901760
        %v608 = vsub.f32 %v354, %v607
        %v609 = vand.u32 %v608, 4294901760
        %v610 = vsub.f32 %v608, %v609
        %v611 = vand.u32 %v610, 4294901760
        %612 = vmatmul.mubr.f32.gmra.mrb[0].mxu0 %v611
        %v613 = vpop.f32.mrb[0].mxu0
        %v614 = vadd.f32 %v394, %v613
        %v615 = vpop.f32.mrb[0].mxu0
        %616 = vmatprep.mubr.f32.mxu0 0.0
        %v617 = vand.u32 %v355, 4294901760
        %v618 = vsub.f32 %v355, %v617
        %v619 = vand.u32 %v618, 4294901760
        %v620 = vsub.f32 %v618, %v619
        %v621 = vand.u32 %v620, 4294901760
        %622 = vmatmul.mubr.f32.gmra.mrb[0].mxu0 %v621
        %v623 = vpop.f32.mrb[0].mxu0
        %v624 = vadd.f32 %v394, %v623
        %v625 = vpop.f32.mrb[0].mxu0
        %626 = vmatprep.mubr.f32.mxu0 0.0
        %v627 = vand.u32 %v356, 4294901760
        %v628 = vsub.f32 %v356, %v627
        %v629 = vand.u32 %v628, 4294901760
        %v630 = vsub.f32 %v628, %v629
        %v631 = vand.u32 %v630, 4294901760
        %632 = vmatmul.mubr.f32.gmra.mrb[0].mxu0 %v631
        %v633 = vpop.f32.mrb[0].mxu0
        %v634 = vadd.f32 %v394, %v633
        %v635 = vpop.f32.mrb[0].mxu0
        %636 = vmatprep.mubr.f32.mxu0 0.0
        %v637 = vand.u32 %v357, 4294901760
        %v638 = vsub.f32 %v357, %v637
        %v639 = vand.u32 %v638, 4294901760
        %v640 = vsub.f32 %v638, %v639
        %v641 = vand.u32 %v640, 4294901760
        %642 = vmatmul.mubr.f32.gmra.mrb[0].mxu0 %v641
        %v643 = vpop.f32.mrb[0].mxu0
        %v644 = vadd.f32 %v394, %v643
        %v645 = vpop.f32.mrb[0].mxu0
        %646 = vmatprep.mubr.f32.mxu0 0.0
        %v647 = vand.u32 %v358, 4294901760
        %v648 = vsub.f32 %v358, %v647
        %v649 = vand.u32 %v648, 4294901760
        %v650 = vsub.f32 %v648, %v649
        %v651 = vand.u32 %v650, 4294901760
        %652 = vmatmul.mubr.f32.gmra.mrb[0].mxu0 %v651
        %v653 = vpop.f32.mrb[0].mxu0
        %v654 = vadd.f32 %v394, %v653
        %v655 = vpop.f32.mrb[0].mxu0
        %656 = vmatprep.mubr.f32.mxu0 0.0
        %v657 = vand.u32 %v359, 4294901760
        %v658 = vsub.f32 %v359, %v657
        %v659 = vand.u32 %v658, 4294901760
        %v660 = vsub.f32 %v658, %v659
        %v661 = vand.u32 %v660, 4294901760
        %662 = vmatmul.mubr.f32.gmra.mrb[0].mxu0 %v661
        %v663 = vpop.f32.mrb[0].mxu0
        %v664 = vadd.f32 %v394, %v663
        %v665 = vpop.f32.mrb[0].mxu0
        %666 = vmatprep.mubr.f32.mxu0 0.0
        %v667 = vand.u32 %v360, 4294901760
        %v668 = vsub.f32 %v360, %v667
        %v669 = vand.u32 %v668, 4294901760
        %v670 = vsub.f32 %v668, %v669
        %v671 = vand.u32 %v670, 4294901760
        %672 = vmatmul.mubr.f32.gmra.mrb[0].mxu0 %v671
        %v673 = vpop.f32.mrb[0].mxu0
        %v674 = vadd.f32 %v394, %v673
        %v675 = vpop.f32.mrb[0].mxu0
        %676 = vmatprep.mubr.f32.mxu0 0.0
        %v677 = vand.u32 %v361, 4294901760
        %v678 = vsub.f32 %v361, %v677
        %v679 = vand.u32 %v678, 4294901760
        %v680 = vsub.f32 %v678, %v679
        %v681 = vand.u32 %v680, 4294901760
        %682 = vmatmul.mubr.f32.gmra.mrb[0].mxu0 %v681
        %v683 = vpop.f32.mrb[0].mxu0
        %v684 = vadd.f32 %v394, %v683
        %v685 = vpop.f32.mrb[0].mxu0
        %686 = vmatprep.mubr.f32.mxu0 0.0
        %v687 = vand.u32 %v362, 4294901760
        %v688 = vsub.f32 %v362, %v687
        %v689 = vand.u32 %v688, 4294901760
        %v690 = vsub.f32 %v688, %v689
        %v691 = vand.u32 %v690, 4294901760
        %692 = vmatmul.mubr.f32.gmra.mrb[0].mxu0 %v691
        %v693 = vpop.f32.mrb[0].mxu0
        %v694 = vadd.f32 %v394, %v693
        %v695 = vpop.f32.mrb[0].mxu0
        %696 = vmatprep.mubr.f32.mxu0 0.0
        %v697 = vand.u32 %v363, 4294901760
        %v698 = vsub.f32 %v363, %v697
        %v699 = vand.u32 %v698, 4294901760
        %v700 = vsub.f32 %v698, %v699
        %v701 = vand.u32 %v700, 4294901760
        %702 = vmatmul.mubr.f32.gmra.mrb[0].mxu0 %v701
        %v703 = vpop.f32.mrb[0].mxu0
        %v704 = vadd.f32 %v394, %v703
        %v705 = vpop.f32.mrb[0].mxu0
        %706 = vmatprep.mubr.f32.mxu0 0.0
        %v707 = vand.u32 %v364, 4294901760
        %v708 = vsub.f32 %v364, %v707
        %v709 = vand.u32 %v708, 4294901760
        %v710 = vsub.f32 %v708, %v709
        %v711 = vand.u32 %v710, 4294901760
        %712 = vmatmul.mubr.f32.gmra.mrb[0].mxu0 %v711
        %v713 = vpop.f32.mrb[0].mxu0
        %v714 = vadd.f32 %v394, %v713
        %v715 = vpop.f32.mrb[0].mxu0
        %716 = vmatprep.mubr.f32.mxu0 0.0
        %v717 = vand.u32 %v365, 4294901760
        %v718 = vsub.f32 %v365, %v717
        %v719 = vand.u32 %v718, 4294901760
        %v720 = vsub.f32 %v718, %v719
        %v721 = vand.u32 %v720, 4294901760
        %722 = vmatmul.mubr.f32.gmra.mrb[0].mxu0 %v721
        %v723 = vpop.f32.mrb[0].mxu0
        %v724 = vadd.f32 %v394, %v723
        %v725 = vpop.f32.mrb[0].mxu0
        %726 = vmatprep.mubr.f32.mxu0 0.0
        %v727 = vand.u32 %v366, 4294901760
        %v728 = vsub.f32 %v366, %v727
        %v729 = vand.u32 %v728, 4294901760
        %v730 = vsub.f32 %v728, %v729
        %v731 = vand.u32 %v730, 4294901760
        %732 = vmatmul.mubr.f32.gmra.mrb[0].mxu0 %v731
        %v733 = vpop.f32.mrb[0].mxu0
        %v734 = vadd.f32 %v394, %v733
        %v735 = vpop.f32.mrb[0].mxu0
        %736 = vmatprep.mubr.f32.mxu0 0.0
        %v737 = vand.u32 %v367, 4294901760
        %v738 = vsub.f32 %v367, %v737
        %v739 = vand.u32 %v738, 4294901760
        %v740 = vsub.f32 %v738, %v739
        %v741 = vand.u32 %v740, 4294901760
        %742 = vmatmul.mubr.f32.gmra.mrb[0].mxu0 %v741
        %v743 = vpop.f32.mrb[0].mxu0
        %v744 = vadd.f32 %v394, %v743
        %v745 = vpop.f32.mrb[0].mxu0
        %746 = vmatprep.mubr.f32.mxu0 0.0
        %v747 = vand.u32 %v368, 4294901760
        %v748 = vsub.f32 %v368, %v747
        %v749 = vand.u32 %v748, 4294901760
        %v750 = vsub.f32 %v748, %v749
        %v751 = vand.u32 %v750, 4294901760
        %752 = vmatmul.mubr.f32.gmra.mrb[0].mxu0 %v751
        %v753 = vpop.f32.mrb[0].mxu0
        %v754 = vadd.f32 %v394, %v753
        %v755 = vpop.f32.mrb[0].mxu0
        %756 = vmatprep.mubr.f32.mxu0 0.0
        %v757 = vand.u32 %v369, 4294901760
        %v758 = vsub.f32 %v369, %v757
        %v759 = vand.u32 %v758, 4294901760
        %v760 = vsub.f32 %v758, %v759
        %v761 = vand.u32 %v760, 4294901760
        %762 = vmatmul.mubr.f32.gmra.mrb[0].mxu0 %v761
        %v763 = vpop.f32.mrb[0].mxu0
        %v764 = vadd.f32 %v394, %v763
        %v765 = vpop.f32.mrb[0].mxu0
        %766 = vmatprep.mubr.f32.mxu0 0.0
        %v767 = vand.u32 %v370, 4294901760
        %v768 = vsub.f32 %v370, %v767
        %v769 = vand.u32 %v768, 4294901760
        %v770 = vsub.f32 %v768, %v769
        %v771 = vand.u32 %v770, 4294901760
        %772 = vmatmul.mubr.f32.gmra.mrb[0].mxu0 %v771
        %v773 = vpop.f32.mrb[0].mxu0
        %v774 = vadd.f32 %v394, %v773
        %v775 = vpop.f32.mrb[0].mxu0
        %776 = vmatprep.mubr.f32.mxu0 0.0
        %v777 = vand.u32 %v371, 4294901760
        %v778 = vsub.f32 %v371, %v777
        %v779 = vand.u32 %v778, 4294901760
        %v780 = vsub.f32 %v778, %v779
        %v781 = vand.u32 %v780, 4294901760
        %782 = vmatmul.mubr.f32.gmra.mrb[0].mxu0 %v781
        %v783 = vpop.f32.mrb[0].mxu0
        %v784 = vadd.f32 %v394, %v783
        %v785 = vpop.f32.mrb[0].mxu0
        %786 = vmatprep.mubr.f32.mxu0 0.0
        %v787 = vand.u32 %v372, 4294901760
        %v788 = vsub.f32 %v372, %v787
        %v789 = vand.u32 %v788, 4294901760
        %v790 = vsub.f32 %v788, %v789
        %v791 = vand.u32 %v790, 4294901760
        %792 = vmatmul.mubr.f32.gmra.mrb[0].mxu0 %v791
        %v793 = vpop.f32.mrb[0].mxu0
        %v794 = vadd.f32 %v394, %v793
        %v795 = vpop.f32.mrb[0].mxu0
        %796 = vdwg.mxu0
        %797 = vmatprep.subr.mxu0 0.0
        %v798 = vand.u32 %v373, 4294901760
        %v799 = vsub.f32 %v373, %v798
        %v800 = vand.u32 %v799, 4294901760
        %v801 = vsub.f32 %v799, %v800
        %v802 = vand.u32 %v801, 4294901760
        %803 = vmatpush1.msra.mxu0 %v802
        %804 = vmatprep.subr.mxu0 0.0
        %v805 = vand.u32 %v374, 4294901760
        %v806 = vsub.f32 %v374, %v805
        %v807 = vand.u32 %v806, 4294901760
        %v808 = vsub.f32 %v806, %v807
        %v809 = vand.u32 %v808, 4294901760
        %810 = vmatpush1.msra.mxu0 %v809
        %811 = vmatprep.subr.mxu0 0.0
        %v812 = vand.u32 %v375, 4294901760
        %v813 = vsub.f32 %v375, %v812
        %v814 = vand.u32 %v813, 4294901760
        %v815 = vsub.f32 %v813, %v814
        %v816 = vand.u32 %v815, 4294901760
        %817 = vmatpush1.msra.mxu0 %v816
        %818 = vmatprep.subr.mxu0 0.0
        %v819 = vand.u32 %v376, 4294901760
        %v820 = vsub.f32 %v376, %v819
        %v821 = vand.u32 %v820, 4294901760
        %v822 = vsub.f32 %v820, %v821
        %v823 = vand.u32 %v822, 4294901760
        %824 = vmatpush1.msra.mxu0 %v823
        %825 = vmatprep.subr.mxu0 0.0
        %v826 = vand.u32 %v377, 4294901760
        %v827 = vsub.f32 %v377, %v826
        %v828 = vand.u32 %v827, 4294901760
        %v829 = vsub.f32 %v827, %v828
        %v830 = vand.u32 %v829, 4294901760
        %831 = vmatpush1.msra.mxu0 %v830
        %832 = vmatprep.subr.mxu0 0.0
        %v833 = vand.u32 %v378, 4294901760
        %v834 = vsub.f32 %v378, %v833
        %v835 = vand.u32 %v834, 4294901760
        %v836 = vsub.f32 %v834, %v835
        %v837 = vand.u32 %v836, 4294901760
        %838 = vmatpush1.msra.mxu0 %v837
        %839 = vmatprep.subr.mxu0 0.0
        %v840 = vand.u32 %v379, 4294901760
        %v841 = vsub.f32 %v379, %v840
        %v842 = vand.u32 %v841, 4294901760
        %v843 = vsub.f32 %v841, %v842
        %v844 = vand.u32 %v843, 4294901760
        %845 = vmatpush1.msra.mxu0 %v844
        %846 = vmatprep.subr.mxu0 0.0
        %v847 = vand.u32 %v380, 4294901760
        %v848 = vsub.f32 %v380, %v847
        %v849 = vand.u32 %v848, 4294901760
        %v850 = vsub.f32 %v848, %v849
        %v851 = vand.u32 %v850, 4294901760
        %852 = vmatpush1.msra.mxu0 %v851
        %853 = vmatprep.subr.mxu0 0.0
        %v854 = vand.u32 %v381, 4294901760
        %v855 = vsub.f32 %v381, %v854
        %v856 = vand.u32 %v855, 4294901760
        %v857 = vsub.f32 %v855, %v856
        %v858 = vand.u32 %v857, 4294901760
        %859 = vmatpush1.msra.mxu0 %v858
        %860 = vmatprep.subr.mxu0 0.0
        %v861 = vand.u32 %v382, 4294901760
        %v862 = vsub.f32 %v382, %v861
        %v863 = vand.u32 %v862, 4294901760
        %v864 = vsub.f32 %v862, %v863
        %v865 = vand.u32 %v864, 4294901760
        %866 = vmatpush1.msra.mxu0 %v865
        %867 = vmatprep.subr.mxu0 0.0
        %v868 = vand.u32 %v383, 4294901760
        %v869 = vsub.f32 %v383, %v868
        %v870 = vand.u32 %v869, 4294901760
        %v871 = vsub.f32 %v869, %v870
        %v872 = vand.u32 %v871, 4294901760
        %873 = vmatpush1.msra.mxu0 %v872
        %874 = vmatprep.subr.mxu0 0.0
        %v875 = vand.u32 %v384, 4294901760
        %v876 = vsub.f32 %v384, %v875
        %v877 = vand.u32 %v876, 4294901760
        %v878 = vsub.f32 %v876, %v877
        %v879 = vand.u32 %v878, 4294901760
        %880 = vmatpush1.msra.mxu0 %v879
        %881 = vmatprep.subr.mxu0 0.0
        %v882 = vand.u32 %v385, 4294901760
        %v883 = vsub.f32 %v385, %v882
        %v884 = vand.u32 %v883, 4294901760
        %v885 = vsub.f32 %v883, %v884
        %v886 = vand.u32 %v885, 4294901760
        %887 = vmatpush1.msra.mxu0 %v886
        %888 = vmatprep.subr.mxu0 0.0
        %v889 = vand.u32 %v386, 4294901760
        %v890 = vsub.f32 %v386, %v889
        %v891 = vand.u32 %v890, 4294901760
        %v892 = vsub.f32 %v890, %v891
        %v893 = vand.u32 %v892, 4294901760
        %894 = vmatpush1.msra.mxu0 %v893
        %895 = vmatprep.subr.mxu0 0.0
        %v896 = vand.u32 %v387, 4294901760
        %v897 = vsub.f32 %v387, %v896
        %v898 = vand.u32 %v897, 4294901760
        %v899 = vsub.f32 %v897, %v898
        %v900 = vand.u32 %v899, 4294901760
        %901 = vmatpush1.msra.mxu0 %v900
        %902 = vmatprep.subr.mxu0 0.0
        %v903 = vand.u32 %v388, 4294901760
        %v904 = vsub.f32 %v388, %v903
        %v905 = vand.u32 %v904, 4294901760
        %v906 = vsub.f32 %v904, %v905
        %v907 = vand.u32 %v906, 4294901760
        %908 = vmatpush1.msra.mxu0 %v907
        %909 = vmatprep.subr.mxu0 0.0
        %910 = vmatpush1.msra.mxu0 0.0
        %911 = vmatprep.subr.mxu0 0.0
        %912 = vmatpush1.msra.mxu0 0.0
        %913 = vmatprep.subr.mxu0 0.0
        %914 = vmatpush1.msra.mxu0 0.0
        %915 = vmatprep.subr.mxu0 0.0
        %916 = vmatpush1.msra.mxu0 0.0
        %917 = vmatprep.subr.mxu0 0.0
        %918 = vmatpush1.msra.mxu0 0.0
        %919 = vmatprep.subr.mxu0 0.0
        %920 = vmatpush1.msra.mxu0 0.0
        %921 = vmatprep.subr.mxu0 0.0
        %922 = vmatpush1.msra.mxu0 0.0
        %923 = vmatprep.subr.mxu0 0.0
        %924 = vmatpush1.msra.mxu0 0.0
        %925 = vmatprep.subr.mxu0 0.0
        %926 = vmatpush1.msra.mxu0 0.0
        %927 = vmatprep.subr.mxu0 0.0
        %928 = vmatpush1.msra.mxu0 0.0
        %929 = vmatprep.subr.mxu0 0.0
        %930 = vmatpush1.msra.mxu0 0.0
        %931 = vmatprep.subr.mxu0 0.0
        %932 = vmatpush1.msra.mxu0 0.0
        %933 = vmatprep.subr.mxu0 0.0
        %934 = vmatpush1.msra.mxu0 0.0
        %935 = vmatprep.subr.mxu0 0.0
        %936 = vmatpush1.msra.mxu0 0.0
        %937 = vmatprep.subr.mxu0 0.0
        %938 = vmatpush1.msra.mxu0 0.0
        %939 = vmatprep.subr.mxu0 0.0
        %940 = vmatpush1.msra.mxu0 0.0
        %941 = vmatprep.mubr.f32.mxu0 0.0
        %v942 = vand.u32 %v341, 4294901760
        %943 = vmatmul.mubr.f32.gmra.mrb[0].mxu0 %v942
        %v944 = vpop.f32.mrb[0].mxu0
        %v945 = vadd.f32 %v484, %v944
        %v946 = vpop.f32.mrb[0].mxu0
        %947 = vmatprep.mubr.f32.mxu0 0.0
        %v948 = vand.u32 %v342, 4294901760
        %949 = vmatmul.mubr.f32.gmra.mrb[0].mxu0 %v948
        %v950 = vpop.f32.mrb[0].mxu0
        %v951 = vadd.f32 %v494, %v950
        %v952 = vpop.f32.mrb[0].mxu0
        %953 = vmatprep.mubr.f32.mxu0 0.0
        %v954 = vand.u32 %v343, 4294901760
        %955 = vmatmul.mubr.f32.gmra.mrb[0].mxu0 %v954
        %v956 = vpop.f32.mrb[0].mxu0
        %v957 = vadd.f32 %v504, %v956
        %v958 = vpop.f32.mrb[0].mxu0
        %959 = vmatprep.mubr.f32.mxu0 0.0
        %v960 = vand.u32 %v344, 4294901760
        %961 = vmatmul.mubr.f32.gmra.mrb[0].mxu0 %v960
        %v962 = vpop.f32.mrb[0].mxu0
        %v963 = vadd.f32 %v514, %v962
        %v964 = vpop.f32.mrb[0].mxu0
        %965 = vmatprep.mubr.f32.mxu0 0.0
        %v966 = vand.u32 %v345, 4294901760
        %967 = vmatmul.mubr.f32.gmra.mrb[0].mxu0 %v966
        %v968 = vpop.f32.mrb[0].mxu0
        %v969 = vadd.f32 %v524, %v968
        %v970 = vpop.f32.mrb[0].mxu0
        %971 = vmatprep.mubr.f32.mxu0 0.0
        %v972 = vand.u32 %v346, 4294901760
        %973 = vmatmul.mubr.f32.gmra.mrb[0].mxu0 %v972
        %v974 = vpop.f32.mrb[0].mxu0
        %v975 = vadd.f32 %v534, %v974
        %v976 = vpop.f32.mrb[0].mxu0
        %977 = vmatprep.mubr.f32.mxu0 0.0
        %v978 = vand.u32 %v347, 4294901760
        %979 = vmatmul.mubr.f32.gmra.mrb[0].mxu0 %v978
        %v980 = vpop.f32.mrb[0].mxu0
        %v981 = vadd.f32 %v544, %v980
        %v982 = vpop.f32.mrb[0].mxu0
        %983 = vmatprep.mubr.f32.mxu0 0.0
        %v984 = vand.u32 %v348, 4294901760
        %985 = vmatmul.mubr.f32.gmra.mrb[0].mxu0 %v984
        %v986 = vpop.f32.mrb[0].mxu0
        %v987 = vadd.f32 %v554, %v986
        %v988 = vpop.f32.mrb[0].mxu0
        %989 = vmatprep.mubr.f32.mxu0 0.0
        %v990 = vand.u32 %v349, 4294901760
        %991 = vmatmul.mubr.f32.gmra.mrb[0].mxu0 %v990
        %v992 = vpop.f32.mrb[0].mxu0
        %v993 = vadd.f32 %v564, %v992
        %v994 = vpop.f32.mrb[0].mxu0
        %995 = vmatprep.mubr.f32.mxu0 0.0
        %v996 = vand.u32 %v350, 4294901760
        %997 = vmatmul.mubr.f32.gmra.mrb[0].mxu0 %v996
        %v998 = vpop.f32.mrb[0].mxu0
        %v999 = vadd.f32 %v574, %v998
        %v1000 = vpop.f32.mrb[0].mxu0
        %1001 = vmatprep.mubr.f32.mxu0 0.0
        %v1002 = vand.u32 %v351, 4294901760
        %1003 = vmatmul.mubr.f32.gmra.mrb[0].mxu0 %v1002
        %v1004 = vpop.f32.mrb[0].mxu0
        %v1005 = vadd.f32 %v584, %v1004
        %v1006 = vpop.f32.mrb[0].mxu0
        %1007 = vmatprep.mubr.f32.mxu0 0.0
        %v1008 = vand.u32 %v352, 4294901760
        %1009 = vmatmul.mubr.f32.gmra.mrb[0].mxu0 %v1008
        %v1010 = vpop.f32.mrb[0].mxu0
        %v1011 = vadd.f32 %v594, %v1010
        %v1012 = vpop.f32.mrb[0].mxu0
        %1013 = vmatprep.mubr.f32.mxu0 0.0
        %v1014 = vand.u32 %v353, 4294901760
        %1015 = vmatmul.mubr.f32.gmra.mrb[0].mxu0 %v1014
        %v1016 = vpop.f32.mrb[0].mxu0
        %v1017 = vadd.f32 %v604, %v1016
        %v1018 = vpop.f32.mrb[0].mxu0
        %1019 = vmatprep.mubr.f32.mxu0 0.0
        %v1020 = vand.u32 %v354, 4294901760
        %1021 = vmatmul.mubr.f32.gmra.mrb[0].mxu0 %v1020
        %v1022 = vpop.f32.mrb[0].mxu0
        %v1023 = vadd.f32 %v614, %v1022
        %v1024 = vpop.f32.mrb[0].mxu0
        %1025 = vmatprep.mubr.f32.mxu0 0.0
        %v1026 = vand.u32 %v355, 4294901760
        %1027 = vmatmul.mubr.f32.gmra.mrb[0].mxu0 %v1026
        %v1028 = vpop.f32.mrb[0].mxu0
        %v1029 = vadd.f32 %v624, %v1028
        %v1030 = vpop.f32.mrb[0].mxu0
        %1031 = vmatprep.mubr.f32.mxu0 0.0
        %v1032 = vand.u32 %v356, 4294901760
        %1033 = vmatmul.mubr.f32.gmra.mrb[0].mxu0 %v1032
        %v1034 = vpop.f32.mrb[0].mxu0
        %v1035 = vadd.f32 %v634, %v1034
        %v1036 = vpop.f32.mrb[0].mxu0
        %1037 = vmatprep.mubr.f32.mxu0 0.0
        %v1038 = vand.u32 %v357, 4294901760
        %1039 = vmatmul.mubr.f32.gmra.mrb[0].mxu0 %v1038
        %v1040 = vpop.f32.mrb[0].mxu0
        %v1041 = vadd.f32 %v644, %v1040
        %v1042 = vpop.f32.mrb[0].mxu0
        %1043 = vmatprep.mubr.f32.mxu0 0.0
        %v1044 = vand.u32 %v358, 4294901760
        %1045 = vmatmul.mubr.f32.gmra.mrb[0].mxu0 %v1044
        %v1046 = vpop.f32.mrb[0].mxu0
        %v1047 = vadd.f32 %v654, %v1046
        %v1048 = vpop.f32.mrb[0].mxu0
        %1049 = vmatprep.mubr.f32.mxu0 0.0
        %v1050 = vand.u32 %v359, 4294901760
        %1051 = vmatmul.mubr.f32.gmra.mrb[0].mxu0 %v1050
        %v1052 = vpop.f32.mrb[0].mxu0
        %v1053 = vadd.f32 %v664, %v1052
        %v1054 = vpop.f32.mrb[0].mxu0
        %1055 = vmatprep.mubr.f32.mxu0 0.0
        %v1056 = vand.u32 %v360, 4294901760
        %1057 = vmatmul.mubr.f32.gmra.mrb[0].mxu0 %v1056
        %v1058 = vpop.f32.mrb[0].mxu0
        %v1059 = vadd.f32 %v674, %v1058
        %v1060 = vpop.f32.mrb[0].mxu0
        %1061 = vmatprep.mubr.f32.mxu0 0.0
        %v1062 = vand.u32 %v361, 4294901760
        %1063 = vmatmul.mubr.f32.gmra.mrb[0].mxu0 %v1062
        %v1064 = vpop.f32.mrb[0].mxu0
        %v1065 = vadd.f32 %v684, %v1064
        %v1066 = vpop.f32.mrb[0].mxu0
        %1067 = vmatprep.mubr.f32.mxu0 0.0
        %v1068 = vand.u32 %v362, 4294901760
        %1069 = vmatmul.mubr.f32.gmra.mrb[0].mxu0 %v1068
        %v1070 = vpop.f32.mrb[0].mxu0
        %v1071 = vadd.f32 %v694, %v1070
        %v1072 = vpop.f32.mrb[0].mxu0
        %1073 = vmatprep.mubr.f32.mxu0 0.0
        %v1074 = vand.u32 %v363, 4294901760
        %1075 = vmatmul.mubr.f32.gmra.mrb[0].mxu0 %v1074
        %v1076 = vpop.f32.mrb[0].mxu0
        %v1077 = vadd.f32 %v704, %v1076
        %v1078 = vpop.f32.mrb[0].mxu0
        %1079 = vmatprep.mubr.f32.mxu0 0.0
        %v1080 = vand.u32 %v364, 4294901760
        %1081 = vmatmul.mubr.f32.gmra.mrb[0].mxu0 %v1080
        %v1082 = vpop.f32.mrb[0].mxu0
        %v1083 = vadd.f32 %v714, %v1082
        %v1084 = vpop.f32.mrb[0].mxu0
        %1085 = vmatprep.mubr.f32.mxu0 0.0
        %v1086 = vand.u32 %v365, 4294901760
        %1087 = vmatmul.mubr.f32.gmra.mrb[0].mxu0 %v1086
        %v1088 = vpop.f32.mrb[0].mxu0
        %v1089 = vadd.f32 %v724, %v1088
        %v1090 = vpop.f32.mrb[0].mxu0
        %1091 = vmatprep.mubr.f32.mxu0 0.0
        %v1092 = vand.u32 %v366, 4294901760
        %1093 = vmatmul.mubr.f32.gmra.mrb[0].mxu0 %v1092
        %v1094 = vpop.f32.mrb[0].mxu0
        %v1095 = vadd.f32 %v734, %v1094
        %v1096 = vpop.f32.mrb[0].mxu0
        %1097 = vmatprep.mubr.f32.mxu0 0.0
        %v1098 = vand.u32 %v367, 4294901760
        %1099 = vmatmul.mubr.f32.gmra.mrb[0].mxu0 %v1098
        %v1100 = vpop.f32.mrb[0].mxu0
        %v1101 = vadd.f32 %v744, %v1100
        %v1102 = vpop.f32.mrb[0].mxu0
        %1103 = vmatprep.mubr.f32.mxu0 0.0
        %v1104 = vand.u32 %v368, 4294901760
        %1105 = vmatmul.mubr.f32.gmra.mrb[0].mxu0 %v1104
        %v1106 = vpop.f32.mrb[0].mxu0
        %v1107 = vadd.f32 %v754, %v1106
        %v1108 = vpop.f32.mrb[0].mxu0
        %1109 = vmatprep.mubr.f32.mxu0 0.0
        %v1110 = vand.u32 %v369, 4294901760
        %1111 = vmatmul.mubr.f32.gmra.mrb[0].mxu0 %v1110
        %v1112 = vpop.f32.mrb[0].mxu0
        %v1113 = vadd.f32 %v764, %v1112
        %v1114 = vpop.f32.mrb[0].mxu0
        %1115 = vmatprep.mubr.f32.mxu0 0.0
        %v1116 = vand.u32 %v370, 4294901760
        %1117 = vmatmul.mubr.f32.gmra.mrb[0].mxu0 %v1116
        %v1118 = vpop.f32.mrb[0].mxu0
        %v1119 = vadd.f32 %v774, %v1118
        %v1120 = vpop.f32.mrb[0].mxu0
        %1121 = vmatprep.mubr.f32.mxu0 0.0
        %v1122 = vand.u32 %v371, 4294901760
        %1123 = vmatmul.mubr.f32.gmra.mrb[0].mxu0 %v1122
        %v1124 = vpop.f32.mrb[0].mxu0
        %v1125 = vadd.f32 %v784, %v1124
        %v1126 = vpop.f32.mrb[0].mxu0
        %1127 = vmatprep.mubr.f32.mxu0 0.0
        %v1128 = vand.u32 %v372, 4294901760
        %1129 = vmatmul.mubr.f32.gmra.mrb[0].mxu0 %v1128
        %v1130 = vpop.f32.mrb[0].mxu0
        %v1131 = vadd.f32 %v794, %v1130
        %v1132 = vpop.f32.mrb[0].mxu0
        %1133 = vdwg.mxu0
        %1134 = vmatprep.subr.mxu0 0.0
        %v1135 = vand.u32 %v373, 4294901760
        %v1136 = vsub.f32 %v373, %v1135
        %1137 = vmatpush1.msra.mxu0 %v1136
        %1138 = vmatprep.subr.mxu0 0.0
        %v1139 = vand.u32 %v374, 4294901760
        %v1140 = vsub.f32 %v374, %v1139
        %1141 = vmatpush1.msra.mxu0 %v1140
        %1142 = vmatprep.subr.mxu0 0.0
        %v1143 = vand.u32 %v375, 4294901760
        %v1144 = vsub.f32 %v375, %v1143
        %1145 = vmatpush1.msra.mxu0 %v1144
        %1146 = vmatprep.subr.mxu0 0.0
        %v1147 = vand.u32 %v376, 4294901760
        %v1148 = vsub.f32 %v376, %v1147
        %1149 = vmatpush1.msra.mxu0 %v1148
        %1150 = vmatprep.subr.mxu0 0.0
        %v1151 = vand.u32 %v377, 4294901760
        %v1152 = vsub.f32 %v377, %v1151
        %1153 = vmatpush1.msra.mxu0 %v1152
        %1154 = vmatprep.subr.mxu0 0.0
        %v1155 = vand.u32 %v378, 4294901760
        %v1156 = vsub.f32 %v378, %v1155
        %1157 = vmatpush1.msra.mxu0 %v1156
        %1158 = vmatprep.subr.mxu0 0.0
        %v1159 = vand.u32 %v379, 4294901760
        %v1160 = vsub.f32 %v379, %v1159
        %1161 = vmatpush1.msra.mxu0 %v1160
        %1162 = vmatprep.subr.mxu0 0.0
        %v1163 = vand.u32 %v380, 4294901760
        %v1164 = vsub.f32 %v380, %v1163
        %1165 = vmatpush1.msra.mxu0 %v1164
        %1166 = vmatprep.subr.mxu0 0.0
        %v1167 = vand.u32 %v381, 4294901760
        %v1168 = vsub.f32 %v381, %v1167
        %1169 = vmatpush1.msra.mxu0 %v1168
        %1170 = vmatprep.subr.mxu0 0.0
        %v1171 = vand.u32 %v382, 4294901760
        %v1172 = vsub.f32 %v382, %v1171
        %1173 = vmatpush1.msra.mxu0 %v1172
        %1174 = vmatprep.subr.mxu0 0.0
        %v1175 = vand.u32 %v383, 4294901760
        %v1176 = vsub.f32 %v383, %v1175
        %1177 = vmatpush1.msra.mxu0 %v1176
        %1178 = vmatprep.subr.mxu0 0.0
        %v1179 = vand.u32 %v384, 4294901760
        %v1180 = vsub.f32 %v384, %v1179
        %1181 = vmatpush1.msra.mxu0 %v1180
        %1182 = vmatprep.subr.mxu0 0.0
        %v1183 = vand.u32 %v385, 4294901760
        %v1184 = vsub.f32 %v385, %v1183
        %1185 = vmatpush1.msra.mxu0 %v1184
        %1186 = vmatprep.subr.mxu0 0.0
        %v1187 = vand.u32 %v386, 4294901760
        %v1188 = vsub.f32 %v386, %v1187
        %1189 = vmatpush1.msra.mxu0 %v1188
        %1190 = vmatprep.subr.mxu0 0.0
        %v1191 = vand.u32 %v387, 4294901760
        %v1192 = vsub.f32 %v387, %v1191
        %1193 = vmatpush1.msra.mxu0 %v1192
        %1194 = vmatprep.subr.mxu0 0.0
        %v1195 = vand.u32 %v388, 4294901760
        %v1196 = vsub.f32 %v388, %v1195
        %1197 = vmatpush1.msra.mxu0 %v1196
        %1198 = vmatprep.subr.mxu0 0.0
        %1199 = vmatpush1.msra.mxu0 0.0
        %1200 = vmatprep.subr.mxu0 0.0
        %1201 = vmatpush1.msra.mxu0 0.0
        %1202 = vmatprep.subr.mxu0 0.0
        %1203 = vmatpush1.msra.mxu0 0.0
        %1204 = vmatprep.subr.mxu0 0.0
        %1205 = vmatpush1.msra.mxu0 0.0
        %1206 = vmatprep.subr.mxu0 0.0
        %1207 = vmatpush1.msra.mxu0 0.0
        %1208 = vmatprep.subr.mxu0 0.0
        %1209 = vmatpush1.msra.mxu0 0.0
        %1210 = vmatprep.subr.mxu0 0.0
        %1211 = vmatpush1.msra.mxu0 0.0
        %1212 = vmatprep.subr.mxu0 0.0
        %1213 = vmatpush1.msra.mxu0 0.0
        %1214 = vmatprep.subr.mxu0 0.0
        %1215 = vmatpush1.msra.mxu0 0.0
        %1216 = vmatprep.subr.mxu0 0.0
        %1217 = vmatpush1.msra.mxu0 0.0
        %1218 = vmatprep.subr.mxu0 0.0
        %1219 = vmatpush1.msra.mxu0 0.0
        %1220 = vmatprep.subr.mxu0 0.0
        %1221 = vmatpush1.msra.mxu0 0.0
        %1222 = vmatprep.subr.mxu0 0.0
        %1223 = vmatpush1.msra.mxu0 0.0
        %1224 = vmatprep.subr.mxu0 0.0
        %1225 = vmatpush1.msra.mxu0 0.0
        %1226 = vmatprep.subr.mxu0 0.0
        %1227 = vmatpush1.msra.mxu0 0.0
        %1228 = vmatprep.subr.mxu0 0.0
        %1229 = vmatpush1.msra.mxu0 0.0
        %1230 = vmatprep.mubr.f32.mxu0 0.0
        %v1231 = vand.u32 %v341, 4294901760
        %v1232 = vsub.f32 %v341, %v1231
        %1233 = vmatmul.mubr.f32.gmra.mrb[0].mxu0 %v1232
        %v1234 = vpop.f32.mrb[0].mxu0
        %v1235 = vadd.f32 %v945, %v1234
        %v1236 = vpop.f32.mrb[0].mxu0
        %1237 = vmatprep.mubr.f32.mxu0 0.0
        %v1238 = vand.u32 %v342, 4294901760
        %v1239 = vsub.f32 %v342, %v1238
        %1240 = vmatmul.mubr.f32.gmra.mrb[0].mxu0 %v1239
        %v1241 = vpop.f32.mrb[0].mxu0
        %v1242 = vadd.f32 %v951, %v1241
        %v1243 = vpop.f32.mrb[0].mxu0
        %1244 = vmatprep.mubr.f32.mxu0 0.0
        %v1245 = vand.u32 %v343, 4294901760
        %v1246 = vsub.f32 %v343, %v1245
        %1247 = vmatmul.mubr.f32.gmra.mrb[0].mxu0 %v1246
        %v1248 = vpop.f32.mrb[0].mxu0
        %v1249 = vadd.f32 %v957, %v1248
        %v1250 = vpop.f32.mrb[0].mxu0
        %1251 = vmatprep.mubr.f32.mxu0 0.0
        %v1252 = vand.u32 %v344, 4294901760
        %v1253 = vsub.f32 %v344, %v1252
        %1254 = vmatmul.mubr.f32.gmra.mrb[0].mxu0 %v1253
        %v1255 = vpop.f32.mrb[0].mxu0
        %v1256 = vadd.f32 %v963, %v1255
        %v1257 = vpop.f32.mrb[0].mxu0
        %1258 = vmatprep.mubr.f32.mxu0 0.0
        %v1259 = vand.u32 %v345, 4294901760
        %v1260 = vsub.f32 %v345, %v1259
        %1261 = vmatmul.mubr.f32.gmra.mrb[0].mxu0 %v1260
        %v1262 = vpop.f32.mrb[0].mxu0
        %v1263 = vadd.f32 %v969, %v1262
        %v1264 = vpop.f32.mrb[0].mxu0
        %1265 = vmatprep.mubr.f32.mxu0 0.0
        %v1266 = vand.u32 %v346, 4294901760
        %v1267 = vsub.f32 %v346, %v1266
        %1268 = vmatmul.mubr.f32.gmra.mrb[0].mxu0 %v1267
        %v1269 = vpop.f32.mrb[0].mxu0
        %v1270 = vadd.f32 %v975, %v1269
        %v1271 = vpop.f32.mrb[0].mxu0
        %1272 = vmatprep.mubr.f32.mxu0 0.0
        %v1273 = vand.u32 %v347, 4294901760
        %v1274 = vsub.f32 %v347, %v1273
        %1275 = vmatmul.mubr.f32.gmra.mrb[0].mxu0 %v1274
        %v1276 = vpop.f32.mrb[0].mxu0
        %v1277 = vadd.f32 %v981, %v1276
        %v1278 = vpop.f32.mrb[0].mxu0
        %1279 = vmatprep.mubr.f32.mxu0 0.0
        %v1280 = vand.u32 %v348, 4294901760
        %v1281 = vsub.f32 %v348, %v1280
        %1282 = vmatmul.mubr.f32.gmra.mrb[0].mxu0 %v1281
        %v1283 = vpop.f32.mrb[0].mxu0
        %v1284 = vadd.f32 %v987, %v1283
        %v1285 = vpop.f32.mrb[0].mxu0
        %1286 = vmatprep.mubr.f32.mxu0 0.0
        %v1287 = vand.u32 %v349, 4294901760
        %v1288 = vsub.f32 %v349, %v1287
        %1289 = vmatmul.mubr.f32.gmra.mrb[0].mxu0 %v1288
        %v1290 = vpop.f32.mrb[0].mxu0
        %v1291 = vadd.f32 %v993, %v1290
        %v1292 = vpop.f32.mrb[0].mxu0
        %1293 = vmatprep.mubr.f32.mxu0 0.0
        %v1294 = vand.u32 %v350, 4294901760
        %v1295 = vsub.f32 %v350, %v1294
        %1296 = vmatmul.mubr.f32.gmra.mrb[0].mxu0 %v1295
        %v1297 = vpop.f32.mrb[0].mxu0
        %v1298 = vadd.f32 %v999, %v1297
        %v1299 = vpop.f32.mrb[0].mxu0
        %1300 = vmatprep.mubr.f32.mxu0 0.0
        %v1301 = vand.u32 %v351, 4294901760
        %v1302 = vsub.f32 %v351, %v1301
        %1303 = vmatmul.mubr.f32.gmra.mrb[0].mxu0 %v1302
        %v1304 = vpop.f32.mrb[0].mxu0
        %v1305 = vadd.f32 %v1005, %v1304
        %v1306 = vpop.f32.mrb[0].mxu0
        %1307 = vmatprep.mubr.f32.mxu0 0.0
        %v1308 = vand.u32 %v352, 4294901760
        %v1309 = vsub.f32 %v352, %v1308
        %1310 = vmatmul.mubr.f32.gmra.mrb[0].mxu0 %v1309
        %v1311 = vpop.f32.mrb[0].mxu0
        %v1312 = vadd.f32 %v1011, %v1311
        %v1313 = vpop.f32.mrb[0].mxu0
        %1314 = vmatprep.mubr.f32.mxu0 0.0
        %v1315 = vand.u32 %v353, 4294901760
        %v1316 = vsub.f32 %v353, %v1315
        %1317 = vmatmul.mubr.f32.gmra.mrb[0].mxu0 %v1316
        %v1318 = vpop.f32.mrb[0].mxu0
        %v1319 = vadd.f32 %v1017, %v1318
        %v1320 = vpop.f32.mrb[0].mxu0
        %1321 = vmatprep.mubr.f32.mxu0 0.0
        %v1322 = vand.u32 %v354, 4294901760
        %v1323 = vsub.f32 %v354, %v1322
        %1324 = vmatmul.mubr.f32.gmra.mrb[0].mxu0 %v1323
        %v1325 = vpop.f32.mrb[0].mxu0
        %v1326 = vadd.f32 %v1023, %v1325
        %v1327 = vpop.f32.mrb[0].mxu0
        %1328 = vmatprep.mubr.f32.mxu0 0.0
        %v1329 = vand.u32 %v355, 4294901760
        %v1330 = vsub.f32 %v355, %v1329
        %1331 = vmatmul.mubr.f32.gmra.mrb[0].mxu0 %v1330
        %v1332 = vpop.f32.mrb[0].mxu0
        %v1333 = vadd.f32 %v1029, %v1332
        %v1334 = vpop.f32.mrb[0].mxu0
        %1335 = vmatprep.mubr.f32.mxu0 0.0
        %v1336 = vand.u32 %v356, 4294901760
        %v1337 = vsub.f32 %v356, %v1336
        %1338 = vmatmul.mubr.f32.gmra.mrb[0].mxu0 %v1337
        %v1339 = vpop.f32.mrb[0].mxu0
        %v1340 = vadd.f32 %v1035, %v1339
        %v1341 = vpop.f32.mrb[0].mxu0
        %1342 = vmatprep.mubr.f32.mxu0 0.0
        %v1343 = vand.u32 %v357, 4294901760
        %v1344 = vsub.f32 %v357, %v1343
        %1345 = vmatmul.mubr.f32.gmra.mrb[0].mxu0 %v1344
        %v1346 = vpop.f32.mrb[0].mxu0
        %v1347 = vadd.f32 %v1041, %v1346
        %v1348 = vpop.f32.mrb[0].mxu0
        %1349 = vmatprep.mubr.f32.mxu0 0.0
        %v1350 = vand.u32 %v358, 4294901760
        %v1351 = vsub.f32 %v358, %v1350
        %1352 = vmatmul.mubr.f32.gmra.mrb[0].mxu0 %v1351
        %v1353 = vpop.f32.mrb[0].mxu0
        %v1354 = vadd.f32 %v1047, %v1353
        %v1355 = vpop.f32.mrb[0].mxu0
        %1356 = vmatprep.mubr.f32.mxu0 0.0
        %v1357 = vand.u32 %v359, 4294901760
        %v1358 = vsub.f32 %v359, %v1357
        %1359 = vmatmul.mubr.f32.gmra.mrb[0].mxu0 %v1358
        %v1360 = vpop.f32.mrb[0].mxu0
        %v1361 = vadd.f32 %v1053, %v1360
        %v1362 = vpop.f32.mrb[0].mxu0
        %1363 = vmatprep.mubr.f32.mxu0 0.0
        %v1364 = vand.u32 %v360, 4294901760
        %v1365 = vsub.f32 %v360, %v1364
        %1366 = vmatmul.mubr.f32.gmra.mrb[0].mxu0 %v1365
        %v1367 = vpop.f32.mrb[0].mxu0
        %v1368 = vadd.f32 %v1059, %v1367
        %v1369 = vpop.f32.mrb[0].mxu0
        %1370 = vmatprep.mubr.f32.mxu0 0.0
        %v1371 = vand.u32 %v361, 4294901760
        %v1372 = vsub.f32 %v361, %v1371
        %1373 = vmatmul.mubr.f32.gmra.mrb[0].mxu0 %v1372
        %v1374 = vpop.f32.mrb[0].mxu0
        %v1375 = vadd.f32 %v1065, %v1374
        %v1376 = vpop.f32.mrb[0].mxu0
        %1377 = vmatprep.mubr.f32.mxu0 0.0
        %v1378 = vand.u32 %v362, 4294901760
        %v1379 = vsub.f32 %v362, %v1378
        %1380 = vmatmul.mubr.f32.gmra.mrb[0].mxu0 %v1379
        %v1381 = vpop.f32.mrb[0].mxu0
        %v1382 = vadd.f32 %v1071, %v1381
        %v1383 = vpop.f32.mrb[0].mxu0
        %1384 = vmatprep.mubr.f32.mxu0 0.0
        %v1385 = vand.u32 %v363, 4294901760
        %v1386 = vsub.f32 %v363, %v1385
        %1387 = vmatmul.mubr.f32.gmra.mrb[0].mxu0 %v1386
        %v1388 = vpop.f32.mrb[0].mxu0
        %v1389 = vadd.f32 %v1077, %v1388
        %v1390 = vpop.f32.mrb[0].mxu0
        %1391 = vmatprep.mubr.f32.mxu0 0.0
        %v1392 = vand.u32 %v364, 4294901760
        %v1393 = vsub.f32 %v364, %v1392
        %1394 = vmatmul.mubr.f32.gmra.mrb[0].mxu0 %v1393
        %v1395 = vpop.f32.mrb[0].mxu0
        %v1396 = vadd.f32 %v1083, %v1395
        %v1397 = vpop.f32.mrb[0].mxu0
        %1398 = vmatprep.mubr.f32.mxu0 0.0
        %v1399 = vand.u32 %v365, 4294901760
        %v1400 = vsub.f32 %v365, %v1399
        %1401 = vmatmul.mubr.f32.gmra.mrb[0].mxu0 %v1400
        %v1402 = vpop.f32.mrb[0].mxu0
        %v1403 = vadd.f32 %v1089, %v1402
        %v1404 = vpop.f32.mrb[0].mxu0
        %1405 = vmatprep.mubr.f32.mxu0 0.0
        %v1406 = vand.u32 %v366, 4294901760
        %v1407 = vsub.f32 %v366, %v1406
        %1408 = vmatmul.mubr.f32.gmra.mrb[0].mxu0 %v1407
        %v1409 = vpop.f32.mrb[0].mxu0
        %v1410 = vadd.f32 %v1095, %v1409
        %v1411 = vpop.f32.mrb[0].mxu0
        %1412 = vmatprep.mubr.f32.mxu0 0.0
        %v1413 = vand.u32 %v367, 4294901760
        %v1414 = vsub.f32 %v367, %v1413
        %1415 = vmatmul.mubr.f32.gmra.mrb[0].mxu0 %v1414
        %v1416 = vpop.f32.mrb[0].mxu0
        %v1417 = vadd.f32 %v1101, %v1416
        %v1418 = vpop.f32.mrb[0].mxu0
        %1419 = vmatprep.mubr.f32.mxu0 0.0
        %v1420 = vand.u32 %v368, 4294901760
        %v1421 = vsub.f32 %v368, %v1420
        %1422 = vmatmul.mubr.f32.gmra.mrb[0].mxu0 %v1421
        %v1423 = vpop.f32.mrb[0].mxu0
        %v1424 = vadd.f32 %v1107, %v1423
        %v1425 = vpop.f32.mrb[0].mxu0
        %1426 = vmatprep.mubr.f32.mxu0 0.0
        %v1427 = vand.u32 %v369, 4294901760
        %v1428 = vsub.f32 %v369, %v1427
        %1429 = vmatmul.mubr.f32.gmra.mrb[0].mxu0 %v1428
        %v1430 = vpop.f32.mrb[0].mxu0
        %v1431 = vadd.f32 %v1113, %v1430
        %v1432 = vpop.f32.mrb[0].mxu0
        %1433 = vmatprep.mubr.f32.mxu0 0.0
        %v1434 = vand.u32 %v370, 4294901760
        %v1435 = vsub.f32 %v370, %v1434
        %1436 = vmatmul.mubr.f32.gmra.mrb[0].mxu0 %v1435
        %v1437 = vpop.f32.mrb[0].mxu0
        %v1438 = vadd.f32 %v1119, %v1437
        %v1439 = vpop.f32.mrb[0].mxu0
        %1440 = vmatprep.mubr.f32.mxu0 0.0
        %v1441 = vand.u32 %v371, 4294901760
        %v1442 = vsub.f32 %v371, %v1441
        %1443 = vmatmul.mubr.f32.gmra.mrb[0].mxu0 %v1442
        %v1444 = vpop.f32.mrb[0].mxu0
        %v1445 = vadd.f32 %v1125, %v1444
        %v1446 = vpop.f32.mrb[0].mxu0
        %1447 = vmatprep.mubr.f32.mxu0 0.0
        %v1448 = vand.u32 %v372, 4294901760
        %v1449 = vsub.f32 %v372, %v1448
        %1450 = vmatmul.mubr.f32.gmra.mrb[0].mxu0 %v1449
        %v1451 = vpop.f32.mrb[0].mxu0
        %v1452 = vadd.f32 %v1131, %v1451
        %v1453 = vpop.f32.mrb[0].mxu0
        %1454 = vdwg.mxu0
        %1455 = vmatprep.subr.mxu0 0.0
        %v1456 = vand.u32 %v373, 4294901760
        %1457 = vmatpush1.msra.mxu0 %v1456
        %1458 = vmatprep.subr.mxu0 0.0
        %v1459 = vand.u32 %v374, 4294901760
        %1460 = vmatpush1.msra.mxu0 %v1459
        %1461 = vmatprep.subr.mxu0 0.0
        %v1462 = vand.u32 %v375, 4294901760
        %1463 = vmatpush1.msra.mxu0 %v1462
        %1464 = vmatprep.subr.mxu0 0.0
        %v1465 = vand.u32 %v376, 4294901760
        %1466 = vmatpush1.msra.mxu0 %v1465
        %1467 = vmatprep.subr.mxu0 0.0
        %v1468 = vand.u32 %v377, 4294901760
        %1469 = vmatpush1.msra.mxu0 %v1468
        %1470 = vmatprep.subr.mxu0 0.0
        %v1471 = vand.u32 %v378, 4294901760
        %1472 = vmatpush1.msra.mxu0 %v1471
        %1473 = vmatprep.subr.mxu0 0.0
        %v1474 = vand.u32 %v379, 4294901760
        %1475 = vmatpush1.msra.mxu0 %v1474
        %1476 = vmatprep.subr.mxu0 0.0
        %v1477 = vand.u32 %v380, 4294901760
        %1478 = vmatpush1.msra.mxu0 %v1477
        %1479 = vmatprep.subr.mxu0 0.0
        %v1480 = vand.u32 %v381, 4294901760
        %1481 = vmatpush1.msra.mxu0 %v1480
        %1482 = vmatprep.subr.mxu0 0.0
        %v1483 = vand.u32 %v382, 4294901760
        %1484 = vmatpush1.msra.mxu0 %v1483
        %1485 = vmatprep.subr.mxu0 0.0
        %v1486 = vand.u32 %v383, 4294901760
        %1487 = vmatpush1.msra.mxu0 %v1486
        %1488 = vmatprep.subr.mxu0 0.0
        %v1489 = vand.u32 %v384, 4294901760
        %1490 = vmatpush1.msra.mxu0 %v1489
        %1491 = vmatprep.subr.mxu0 0.0
        %v1492 = vand.u32 %v385, 4294901760
        %1493 = vmatpush1.msra.mxu0 %v1492
        %1494 = vmatprep.subr.mxu0 0.0
        %v1495 = vand.u32 %v386, 4294901760
        %1496 = vmatpush1.msra.mxu0 %v1495
        %1497 = vmatprep.subr.mxu0 0.0
        %v1498 = vand.u32 %v387, 4294901760
        %1499 = vmatpush1.msra.mxu0 %v1498
        %1500 = vmatprep.subr.mxu0 0.0
        %v1501 = vand.u32 %v388, 4294901760
        %1502 = vmatpush1.msra.mxu0 %v1501
        %1503 = vmatprep.subr.mxu0 0.0
        %1504 = vmatpush1.msra.mxu0 0.0
        %1505 = vmatprep.subr.mxu0 0.0
        %1506 = vmatpush1.msra.mxu0 0.0
        %1507 = vmatprep.subr.mxu0 0.0
        %1508 = vmatpush1.msra.mxu0 0.0
        %1509 = vmatprep.subr.mxu0 0.0
        %1510 = vmatpush1.msra.mxu0 0.0
        %1511 = vmatprep.subr.mxu0 0.0
        %1512 = vmatpush1.msra.mxu0 0.0
        %1513 = vmatprep.subr.mxu0 0.0
        %1514 = vmatpush1.msra.mxu0 0.0
        %1515 = vmatprep.subr.mxu0 0.0
        %1516 = vmatpush1.msra.mxu0 0.0
        %1517 = vmatprep.subr.mxu0 0.0
        %1518 = vmatpush1.msra.mxu0 0.0
        %1519 = vmatprep.subr.mxu0 0.0
        %1520 = vmatpush1.msra.mxu0 0.0
        %1521 = vmatprep.subr.mxu0 0.0
        %1522 = vmatpush1.msra.mxu0 0.0
        %1523 = vmatprep.subr.mxu0 0.0
        %1524 = vmatpush1.msra.mxu0 0.0
        %1525 = vmatprep.subr.mxu0 0.0
        %1526 = vmatpush1.msra.mxu0 0.0
        %1527 = vmatprep.subr.mxu0 0.0
        %1528 = vmatpush1.msra.mxu0 0.0
        %1529 = vmatprep.subr.mxu0 0.0
        %1530 = vmatpush1.msra.mxu0 0.0
        %1531 = vmatprep.subr.mxu0 0.0
        %1532 = vmatpush1.msra.mxu0 0.0
        %1533 = vmatprep.subr.mxu0 0.0
        %1534 = vmatpush1.msra.mxu0 0.0
        %1535 = vmatprep.mubr.f32.mxu0 0.0
        %v1536 = vand.u32 %v341, 4294901760
        %v1537 = vsub.f32 %v341, %v1536
        %v1538 = vand.u32 %v1537, 4294901760
        %1539 = vmatmul.mubr.f32.gmra.mrb[0].mxu0 %v1538
        %v1540 = vpop.f32.mrb[0].mxu0
        %v1541 = vadd.f32 %v1235, %v1540
        %v1542 = vpop.f32.mrb[0].mxu0
        %1543 = vmatprep.mubr.f32.mxu0 0.0
        %v1544 = vand.u32 %v342, 4294901760
        %v1545 = vsub.f32 %v342, %v1544
        %v1546 = vand.u32 %v1545, 4294901760
        %1547 = vmatmul.mubr.f32.gmra.mrb[0].mxu0 %v1546
        %v1548 = vpop.f32.mrb[0].mxu0
        %v1549 = vadd.f32 %v1242, %v1548
        %v1550 = vpop.f32.mrb[0].mxu0
        %1551 = vmatprep.mubr.f32.mxu0 0.0
        %v1552 = vand.u32 %v343, 4294901760
        %v1553 = vsub.f32 %v343, %v1552
        %v1554 = vand.u32 %v1553, 4294901760
        %1555 = vmatmul.mubr.f32.gmra.mrb[0].mxu0 %v1554
        %v1556 = vpop.f32.mrb[0].mxu0
        %v1557 = vadd.f32 %v1249, %v1556
        %v1558 = vpop.f32.mrb[0].mxu0
        %1559 = vmatprep.mubr.f32.mxu0 0.0
        %v1560 = vand.u32 %v344, 4294901760
        %v1561 = vsub.f32 %v344, %v1560
        %v1562 = vand.u32 %v1561, 4294901760
        %1563 = vmatmul.mubr.f32.gmra.mrb[0].mxu0 %v1562
        %v1564 = vpop.f32.mrb[0].mxu0
        %v1565 = vadd.f32 %v1256, %v1564
        %v1566 = vpop.f32.mrb[0].mxu0
        %1567 = vmatprep.mubr.f32.mxu0 0.0
        %v1568 = vand.u32 %v345, 4294901760
        %v1569 = vsub.f32 %v345, %v1568
        %v1570 = vand.u32 %v1569, 4294901760
        %1571 = vmatmul.mubr.f32.gmra.mrb[0].mxu0 %v1570
        %v1572 = vpop.f32.mrb[0].mxu0
        %v1573 = vadd.f32 %v1263, %v1572
        %v1574 = vpop.f32.mrb[0].mxu0
        %1575 = vmatprep.mubr.f32.mxu0 0.0
        %v1576 = vand.u32 %v346, 4294901760
        %v1577 = vsub.f32 %v346, %v1576
        %v1578 = vand.u32 %v1577, 4294901760
        %1579 = vmatmul.mubr.f32.gmra.mrb[0].mxu0 %v1578
        %v1580 = vpop.f32.mrb[0].mxu0
        %v1581 = vadd.f32 %v1270, %v1580
        %v1582 = vpop.f32.mrb[0].mxu0
        %1583 = vmatprep.mubr.f32.mxu0 0.0
        %v1584 = vand.u32 %v347, 4294901760
        %v1585 = vsub.f32 %v347, %v1584
        %v1586 = vand.u32 %v1585, 4294901760
        %1587 = vmatmul.mubr.f32.gmra.mrb[0].mxu0 %v1586
        %v1588 = vpop.f32.mrb[0].mxu0
        %v1589 = vadd.f32 %v1277, %v1588
        %v1590 = vpop.f32.mrb[0].mxu0
        %1591 = vmatprep.mubr.f32.mxu0 0.0
        %v1592 = vand.u32 %v348, 4294901760
        %v1593 = vsub.f32 %v348, %v1592
        %v1594 = vand.u32 %v1593, 4294901760
        %1595 = vmatmul.mubr.f32.gmra.mrb[0].mxu0 %v1594
        %v1596 = vpop.f32.mrb[0].mxu0
        %v1597 = vadd.f32 %v1284, %v1596
        %v1598 = vpop.f32.mrb[0].mxu0
        %1599 = vmatprep.mubr.f32.mxu0 0.0
        %v1600 = vand.u32 %v349, 4294901760
        %v1601 = vsub.f32 %v349, %v1600
        %v1602 = vand.u32 %v1601, 4294901760
        %1603 = vmatmul.mubr.f32.gmra.mrb[0].mxu0 %v1602
        %v1604 = vpop.f32.mrb[0].mxu0
        %v1605 = vadd.f32 %v1291, %v1604
        %v1606 = vpop.f32.mrb[0].mxu0
        %1607 = vmatprep.mubr.f32.mxu0 0.0
        %v1608 = vand.u32 %v350, 4294901760
        %v1609 = vsub.f32 %v350, %v1608
        %v1610 = vand.u32 %v1609, 4294901760
        %1611 = vmatmul.mubr.f32.gmra.mrb[0].mxu0 %v1610
        %v1612 = vpop.f32.mrb[0].mxu0
        %v1613 = vadd.f32 %v1298, %v1612
        %v1614 = vpop.f32.mrb[0].mxu0
        %1615 = vmatprep.mubr.f32.mxu0 0.0
        %v1616 = vand.u32 %v351, 4294901760
        %v1617 = vsub.f32 %v351, %v1616
        %v1618 = vand.u32 %v1617, 4294901760
        %1619 = vmatmul.mubr.f32.gmra.mrb[0].mxu0 %v1618
        %v1620 = vpop.f32.mrb[0].mxu0
        %v1621 = vadd.f32 %v1305, %v1620
        %v1622 = vpop.f32.mrb[0].mxu0
        %1623 = vmatprep.mubr.f32.mxu0 0.0
        %v1624 = vand.u32 %v352, 4294901760
        %v1625 = vsub.f32 %v352, %v1624
        %v1626 = vand.u32 %v1625, 4294901760
        %1627 = vmatmul.mubr.f32.gmra.mrb[0].mxu0 %v1626
        %v1628 = vpop.f32.mrb[0].mxu0
        %v1629 = vadd.f32 %v1312, %v1628
        %v1630 = vpop.f32.mrb[0].mxu0
        %1631 = vmatprep.mubr.f32.mxu0 0.0
        %v1632 = vand.u32 %v353, 4294901760
        %v1633 = vsub.f32 %v353, %v1632
        %v1634 = vand.u32 %v1633, 4294901760
        %1635 = vmatmul.mubr.f32.gmra.mrb[0].mxu0 %v1634
        %v1636 = vpop.f32.mrb[0].mxu0
        %v1637 = vadd.f32 %v1319, %v1636
        %v1638 = vpop.f32.mrb[0].mxu0
        %1639 = vmatprep.mubr.f32.mxu0 0.0
        %v1640 = vand.u32 %v354, 4294901760
        %v1641 = vsub.f32 %v354, %v1640
        %v1642 = vand.u32 %v1641, 4294901760
        %1643 = vmatmul.mubr.f32.gmra.mrb[0].mxu0 %v1642
        %v1644 = vpop.f32.mrb[0].mxu0
        %v1645 = vadd.f32 %v1326, %v1644
        %v1646 = vpop.f32.mrb[0].mxu0
        %1647 = vmatprep.mubr.f32.mxu0 0.0
        %v1648 = vand.u32 %v355, 4294901760
        %v1649 = vsub.f32 %v355, %v1648
        %v1650 = vand.u32 %v1649, 4294901760
        %1651 = vmatmul.mubr.f32.gmra.mrb[0].mxu0 %v1650
        %v1652 = vpop.f32.mrb[0].mxu0
        %v1653 = vadd.f32 %v1333, %v1652
        %v1654 = vpop.f32.mrb[0].mxu0
        %1655 = vmatprep.mubr.f32.mxu0 0.0
        %v1656 = vand.u32 %v356, 4294901760
        %v1657 = vsub.f32 %v356, %v1656
        %v1658 = vand.u32 %v1657, 4294901760
        %1659 = vmatmul.mubr.f32.gmra.mrb[0].mxu0 %v1658
        %v1660 = vpop.f32.mrb[0].mxu0
        %v1661 = vadd.f32 %v1340, %v1660
        %v1662 = vpop.f32.mrb[0].mxu0
        %1663 = vmatprep.mubr.f32.mxu0 0.0
        %v1664 = vand.u32 %v357, 4294901760
        %v1665 = vsub.f32 %v357, %v1664
        %v1666 = vand.u32 %v1665, 4294901760
        %1667 = vmatmul.mubr.f32.gmra.mrb[0].mxu0 %v1666
        %v1668 = vpop.f32.mrb[0].mxu0
        %v1669 = vadd.f32 %v1347, %v1668
        %v1670 = vpop.f32.mrb[0].mxu0
        %1671 = vmatprep.mubr.f32.mxu0 0.0
        %v1672 = vand.u32 %v358, 4294901760
        %v1673 = vsub.f32 %v358, %v1672
        %v1674 = vand.u32 %v1673, 4294901760
        %1675 = vmatmul.mubr.f32.gmra.mrb[0].mxu0 %v1674
        %v1676 = vpop.f32.mrb[0].mxu0
        %v1677 = vadd.f32 %v1354, %v1676
        %v1678 = vpop.f32.mrb[0].mxu0
        %1679 = vmatprep.mubr.f32.mxu0 0.0
        %v1680 = vand.u32 %v359, 4294901760
        %v1681 = vsub.f32 %v359, %v1680
        %v1682 = vand.u32 %v1681, 4294901760
        %1683 = vmatmul.mubr.f32.gmra.mrb[0].mxu0 %v1682
        %v1684 = vpop.f32.mrb[0].mxu0
        %v1685 = vadd.f32 %v1361, %v1684
        %v1686 = vpop.f32.mrb[0].mxu0
        %1687 = vmatprep.mubr.f32.mxu0 0.0
        %v1688 = vand.u32 %v360, 4294901760
        %v1689 = vsub.f32 %v360, %v1688
        %v1690 = vand.u32 %v1689, 4294901760
        %1691 = vmatmul.mubr.f32.gmra.mrb[0].mxu0 %v1690
        %v1692 = vpop.f32.mrb[0].mxu0
        %v1693 = vadd.f32 %v1368, %v1692
        %v1694 = vpop.f32.mrb[0].mxu0
        %1695 = vmatprep.mubr.f32.mxu0 0.0
        %v1696 = vand.u32 %v361, 4294901760
        %v1697 = vsub.f32 %v361, %v1696
        %v1698 = vand.u32 %v1697, 4294901760
        %1699 = vmatmul.mubr.f32.gmra.mrb[0].mxu0 %v1698
        %v1700 = vpop.f32.mrb[0].mxu0
        %v1701 = vadd.f32 %v1375, %v1700
        %v1702 = vpop.f32.mrb[0].mxu0
        %1703 = vmatprep.mubr.f32.mxu0 0.0
        %v1704 = vand.u32 %v362, 4294901760
        %v1705 = vsub.f32 %v362, %v1704
        %v1706 = vand.u32 %v1705, 4294901760
        %1707 = vmatmul.mubr.f32.gmra.mrb[0].mxu0 %v1706
        %v1708 = vpop.f32.mrb[0].mxu0
        %v1709 = vadd.f32 %v1382, %v1708
        %v1710 = vpop.f32.mrb[0].mxu0
        %1711 = vmatprep.mubr.f32.mxu0 0.0
        %v1712 = vand.u32 %v363, 4294901760
        %v1713 = vsub.f32 %v363, %v1712
        %v1714 = vand.u32 %v1713, 4294901760
        %1715 = vmatmul.mubr.f32.gmra.mrb[0].mxu0 %v1714
        %v1716 = vpop.f32.mrb[0].mxu0
        %v1717 = vadd.f32 %v1389, %v1716
        %v1718 = vpop.f32.mrb[0].mxu0
        %1719 = vmatprep.mubr.f32.mxu0 0.0
        %v1720 = vand.u32 %v364, 4294901760
        %v1721 = vsub.f32 %v364, %v1720
        %v1722 = vand.u32 %v1721, 4294901760
        %1723 = vmatmul.mubr.f32.gmra.mrb[0].mxu0 %v1722
        %v1724 = vpop.f32.mrb[0].mxu0
        %v1725 = vadd.f32 %v1396, %v1724
        %v1726 = vpop.f32.mrb[0].mxu0
        %1727 = vmatprep.mubr.f32.mxu0 0.0
        %v1728 = vand.u32 %v365, 4294901760
        %v1729 = vsub.f32 %v365, %v1728
        %v1730 = vand.u32 %v1729, 4294901760
        %1731 = vmatmul.mubr.f32.gmra.mrb[0].mxu0 %v1730
        %v1732 = vpop.f32.mrb[0].mxu0
        %v1733 = vadd.f32 %v1403, %v1732
        %v1734 = vpop.f32.mrb[0].mxu0
        %1735 = vmatprep.mubr.f32.mxu0 0.0
        %v1736 = vand.u32 %v366, 4294901760
        %v1737 = vsub.f32 %v366, %v1736
        %v1738 = vand.u32 %v1737, 4294901760
        %1739 = vmatmul.mubr.f32.gmra.mrb[0].mxu0 %v1738
        %v1740 = vpop.f32.mrb[0].mxu0
        %v1741 = vadd.f32 %v1410, %v1740
        %v1742 = vpop.f32.mrb[0].mxu0
        %1743 = vmatprep.mubr.f32.mxu0 0.0
        %v1744 = vand.u32 %v367, 4294901760
        %v1745 = vsub.f32 %v367, %v1744
        %v1746 = vand.u32 %v1745, 4294901760
        %1747 = vmatmul.mubr.f32.gmra.mrb[0].mxu0 %v1746
        %v1748 = vpop.f32.mrb[0].mxu0
        %v1749 = vadd.f32 %v1417, %v1748
        %v1750 = vpop.f32.mrb[0].mxu0
        %1751 = vmatprep.mubr.f32.mxu0 0.0
        %v1752 = vand.u32 %v368, 4294901760
        %v1753 = vsub.f32 %v368, %v1752
        %v1754 = vand.u32 %v1753, 4294901760
        %1755 = vmatmul.mubr.f32.gmra.mrb[0].mxu0 %v1754
        %v1756 = vpop.f32.mrb[0].mxu0
        %v1757 = vadd.f32 %v1424, %v1756
        %v1758 = vpop.f32.mrb[0].mxu0
        %1759 = vmatprep.mubr.f32.mxu0 0.0
        %v1760 = vand.u32 %v369, 4294901760
        %v1761 = vsub.f32 %v369, %v1760
        %v1762 = vand.u32 %v1761, 4294901760
        %1763 = vmatmul.mubr.f32.gmra.mrb[0].mxu0 %v1762
        %v1764 = vpop.f32.mrb[0].mxu0
        %v1765 = vadd.f32 %v1431, %v1764
        %v1766 = vpop.f32.mrb[0].mxu0
        %1767 = vmatprep.mubr.f32.mxu0 0.0
        %v1768 = vand.u32 %v370, 4294901760
        %v1769 = vsub.f32 %v370, %v1768
        %v1770 = vand.u32 %v1769, 4294901760
        %1771 = vmatmul.mubr.f32.gmra.mrb[0].mxu0 %v1770
        %v1772 = vpop.f32.mrb[0].mxu0
        %v1773 = vadd.f32 %v1438, %v1772
        %v1774 = vpop.f32.mrb[0].mxu0
        %1775 = vmatprep.mubr.f32.mxu0 0.0
        %v1776 = vand.u32 %v371, 4294901760
        %v1777 = vsub.f32 %v371, %v1776
        %v1778 = vand.u32 %v1777, 4294901760
        %1779 = vmatmul.mubr.f32.gmra.mrb[0].mxu0 %v1778
        %v1780 = vpop.f32.mrb[0].mxu0
        %v1781 = vadd.f32 %v1445, %v1780
        %v1782 = vpop.f32.mrb[0].mxu0
        %1783 = vmatprep.mubr.f32.mxu0 0.0
        %v1784 = vand.u32 %v372, 4294901760
        %v1785 = vsub.f32 %v372, %v1784
        %v1786 = vand.u32 %v1785, 4294901760
        %1787 = vmatmul.mubr.f32.gmra.mrb[0].mxu0 %v1786
        %v1788 = vpop.f32.mrb[0].mxu0
        %v1789 = vadd.f32 %v1452, %v1788
        %v1790 = vpop.f32.mrb[0].mxu0
        %1791 = vdwg.mxu0
        %1792 = vmatprep.subr.mxu0 0.0
        %v1793 = vand.u32 %v373, 4294901760
        %v1794 = vsub.f32 %v373, %v1793
        %v1795 = vand.u32 %v1794, 4294901760
        %1796 = vmatpush1.msra.mxu0 %v1795
        %1797 = vmatprep.subr.mxu0 0.0
        %v1798 = vand.u32 %v374, 4294901760
        %v1799 = vsub.f32 %v374, %v1798
        %v1800 = vand.u32 %v1799, 4294901760
        %1801 = vmatpush1.msra.mxu0 %v1800
        %1802 = vmatprep.subr.mxu0 0.0
        %v1803 = vand.u32 %v375, 4294901760
        %v1804 = vsub.f32 %v375, %v1803
        %v1805 = vand.u32 %v1804, 4294901760
        %1806 = vmatpush1.msra.mxu0 %v1805
        %1807 = vmatprep.subr.mxu0 0.0
        %v1808 = vand.u32 %v376, 4294901760
        %v1809 = vsub.f32 %v376, %v1808
        %v1810 = vand.u32 %v1809, 4294901760
        %1811 = vmatpush1.msra.mxu0 %v1810
        %1812 = vmatprep.subr.mxu0 0.0
        %v1813 = vand.u32 %v377, 4294901760
        %v1814 = vsub.f32 %v377, %v1813
        %v1815 = vand.u32 %v1814, 4294901760
        %1816 = vmatpush1.msra.mxu0 %v1815
        %1817 = vmatprep.subr.mxu0 0.0
        %v1818 = vand.u32 %v378, 4294901760
        %v1819 = vsub.f32 %v378, %v1818
        %v1820 = vand.u32 %v1819, 4294901760
        %1821 = vmatpush1.msra.mxu0 %v1820
        %1822 = vmatprep.subr.mxu0 0.0
        %v1823 = vand.u32 %v379, 4294901760
        %v1824 = vsub.f32 %v379, %v1823
        %v1825 = vand.u32 %v1824, 4294901760
        %1826 = vmatpush1.msra.mxu0 %v1825
        %1827 = vmatprep.subr.mxu0 0.0
        %v1828 = vand.u32 %v380, 4294901760
        %v1829 = vsub.f32 %v380, %v1828
        %v1830 = vand.u32 %v1829, 4294901760
        %1831 = vmatpush1.msra.mxu0 %v1830
        %1832 = vmatprep.subr.mxu0 0.0
        %v1833 = vand.u32 %v381, 4294901760
        %v1834 = vsub.f32 %v381, %v1833
        %v1835 = vand.u32 %v1834, 4294901760
        %1836 = vmatpush1.msra.mxu0 %v1835
        %1837 = vmatprep.subr.mxu0 0.0
        %v1838 = vand.u32 %v382, 4294901760
        %v1839 = vsub.f32 %v382, %v1838
        %v1840 = vand.u32 %v1839, 4294901760
        %1841 = vmatpush1.msra.mxu0 %v1840
        %1842 = vmatprep.subr.mxu0 0.0
        %v1843 = vand.u32 %v383, 4294901760
        %v1844 = vsub.f32 %v383, %v1843
        %v1845 = vand.u32 %v1844, 4294901760
        %1846 = vmatpush1.msra.mxu0 %v1845
        %1847 = vmatprep.subr.mxu0 0.0
        %v1848 = vand.u32 %v384, 4294901760
        %v1849 = vsub.f32 %v384, %v1848
        %v1850 = vand.u32 %v1849, 4294901760
        %1851 = vmatpush1.msra.mxu0 %v1850
        %1852 = vmatprep.subr.mxu0 0.0
        %v1853 = vand.u32 %v385, 4294901760
        %v1854 = vsub.f32 %v385, %v1853
        %v1855 = vand.u32 %v1854, 4294901760
        %1856 = vmatpush1.msra.mxu0 %v1855
        %1857 = vmatprep.subr.mxu0 0.0
        %v1858 = vand.u32 %v386, 4294901760
        %v1859 = vsub.f32 %v386, %v1858
        %v1860 = vand.u32 %v1859, 4294901760
        %1861 = vmatpush1.msra.mxu0 %v1860
        %1862 = vmatprep.subr.mxu0 0.0
        %v1863 = vand.u32 %v387, 4294901760
        %v1864 = vsub.f32 %v387, %v1863
        %v1865 = vand.u32 %v1864, 4294901760
        %1866 = vmatpush1.msra.mxu0 %v1865
        %1867 = vmatprep.subr.mxu0 0.0
        %v1868 = vand.u32 %v388, 4294901760
        %v1869 = vsub.f32 %v388, %v1868
        %v1870 = vand.u32 %v1869, 4294901760
        %1871 = vmatpush1.msra.mxu0 %v1870
        %1872 = vmatprep.subr.mxu0 0.0
        %1873 = vmatpush1.msra.mxu0 0.0
        %1874 = vmatprep.subr.mxu0 0.0
        %1875 = vmatpush1.msra.mxu0 0.0
        %1876 = vmatprep.subr.mxu0 0.0
        %1877 = vmatpush1.msra.mxu0 0.0
        %1878 = vmatprep.subr.mxu0 0.0
        %1879 = vmatpush1.msra.mxu0 0.0
        %1880 = vmatprep.subr.mxu0 0.0
        %1881 = vmatpush1.msra.mxu0 0.0
        %1882 = vmatprep.subr.mxu0 0.0
        %1883 = vmatpush1.msra.mxu0 0.0
        %1884 = vmatprep.subr.mxu0 0.0
        %1885 = vmatpush1.msra.mxu0 0.0
        %1886 = vmatprep.subr.mxu0 0.0
        %1887 = vmatpush1.msra.mxu0 0.0
        %1888 = vmatprep.subr.mxu0 0.0
        %1889 = vmatpush1.msra.mxu0 0.0
        %1890 = vmatprep.subr.mxu0 0.0
        %1891 = vmatpush1.msra.mxu0 0.0
        %1892 = vmatprep.subr.mxu0 0.0
        %1893 = vmatpush1.msra.mxu0 0.0
        %1894 = vmatprep.subr.mxu0 0.0
        %1895 = vmatpush1.msra.mxu0 0.0
        %1896 = vmatprep.subr.mxu0 0.0
        %1897 = vmatpush1.msra.mxu0 0.0
        %1898 = vmatprep.subr.mxu0 0.0
        %1899 = vmatpush1.msra.mxu0 0.0
        %1900 = vmatprep.subr.mxu0 0.0
        %1901 = vmatpush1.msra.mxu0 0.0
        %1902 = vmatprep.subr.mxu0 0.0
        %1903 = vmatpush1.msra.mxu0 0.0
        %1904 = vmatprep.mubr.f32.mxu0 0.0
        %v1905 = vand.u32 %v341, 4294901760
        %1906 = vmatmul.mubr.f32.gmra.mrb[0].mxu0 %v1905
        %v1907 = vpop.f32.mrb[0].mxu0
        %v1908 = vadd.f32 %v1541, %v1907
        %v1909 = vpop.f32.mrb[0].mxu0
        %1910 = vmatprep.mubr.f32.mxu0 0.0
        %v1911 = vand.u32 %v342, 4294901760
        %1912 = vmatmul.mubr.f32.gmra.mrb[0].mxu0 %v1911
        %v1913 = vpop.f32.mrb[0].mxu0
        %v1914 = vadd.f32 %v1549, %v1913
        %v1915 = vpop.f32.mrb[0].mxu0
        %1916 = vmatprep.mubr.f32.mxu0 0.0
        %v1917 = vand.u32 %v343, 4294901760
        %1918 = vmatmul.mubr.f32.gmra.mrb[0].mxu0 %v1917
        %v1919 = vpop.f32.mrb[0].mxu0
        %v1920 = vadd.f32 %v1557, %v1919
        %v1921 = vpop.f32.mrb[0].mxu0
        %1922 = vmatprep.mubr.f32.mxu0 0.0
        %v1923 = vand.u32 %v344, 4294901760
        %1924 = vmatmul.mubr.f32.gmra.mrb[0].mxu0 %v1923
        %v1925 = vpop.f32.mrb[0].mxu0
        %v1926 = vadd.f32 %v1565, %v1925
        %v1927 = vpop.f32.mrb[0].mxu0
        %1928 = vmatprep.mubr.f32.mxu0 0.0
        %v1929 = vand.u32 %v345, 4294901760
        %1930 = vmatmul.mubr.f32.gmra.mrb[0].mxu0 %v1929
        %v1931 = vpop.f32.mrb[0].mxu0
        %v1932 = vadd.f32 %v1573, %v1931
        %v1933 = vpop.f32.mrb[0].mxu0
        %1934 = vmatprep.mubr.f32.mxu0 0.0
        %v1935 = vand.u32 %v346, 4294901760
        %1936 = vmatmul.mubr.f32.gmra.mrb[0].mxu0 %v1935
        %v1937 = vpop.f32.mrb[0].mxu0
        %v1938 = vadd.f32 %v1581, %v1937
        %v1939 = vpop.f32.mrb[0].mxu0
        %1940 = vmatprep.mubr.f32.mxu0 0.0
        %v1941 = vand.u32 %v347, 4294901760
        %1942 = vmatmul.mubr.f32.gmra.mrb[0].mxu0 %v1941
        %v1943 = vpop.f32.mrb[0].mxu0
        %v1944 = vadd.f32 %v1589, %v1943
        %v1945 = vpop.f32.mrb[0].mxu0
        %1946 = vmatprep.mubr.f32.mxu0 0.0
        %v1947 = vand.u32 %v348, 4294901760
        %1948 = vmatmul.mubr.f32.gmra.mrb[0].mxu0 %v1947
        %v1949 = vpop.f32.mrb[0].mxu0
        %v1950 = vadd.f32 %v1597, %v1949
        %v1951 = vpop.f32.mrb[0].mxu0
        %1952 = vmatprep.mubr.f32.mxu0 0.0
        %v1953 = vand.u32 %v349, 4294901760
        %1954 = vmatmul.mubr.f32.gmra.mrb[0].mxu0 %v1953
        %v1955 = vpop.f32.mrb[0].mxu0
        %v1956 = vadd.f32 %v1605, %v1955
        %v1957 = vpop.f32.mrb[0].mxu0
        %1958 = vmatprep.mubr.f32.mxu0 0.0
        %v1959 = vand.u32 %v350, 4294901760
        %1960 = vmatmul.mubr.f32.gmra.mrb[0].mxu0 %v1959
        %v1961 = vpop.f32.mrb[0].mxu0
        %v1962 = vadd.f32 %v1613, %v1961
        %v1963 = vpop.f32.mrb[0].mxu0
        %1964 = vmatprep.mubr.f32.mxu0 0.0
        %v1965 = vand.u32 %v351, 4294901760
        %1966 = vmatmul.mubr.f32.gmra.mrb[0].mxu0 %v1965
        %v1967 = vpop.f32.mrb[0].mxu0
        %v1968 = vadd.f32 %v1621, %v1967
        %v1969 = vpop.f32.mrb[0].mxu0
        %1970 = vmatprep.mubr.f32.mxu0 0.0
        %v1971 = vand.u32 %v352, 4294901760
        %1972 = vmatmul.mubr.f32.gmra.mrb[0].mxu0 %v1971
        %v1973 = vpop.f32.mrb[0].mxu0
        %v1974 = vadd.f32 %v1629, %v1973
        %v1975 = vpop.f32.mrb[0].mxu0
        %1976 = vmatprep.mubr.f32.mxu0 0.0
        %v1977 = vand.u32 %v353, 4294901760
        %1978 = vmatmul.mubr.f32.gmra.mrb[0].mxu0 %v1977
        %v1979 = vpop.f32.mrb[0].mxu0
        %v1980 = vadd.f32 %v1637, %v1979
        %v1981 = vpop.f32.mrb[0].mxu0
        %1982 = vmatprep.mubr.f32.mxu0 0.0
        %v1983 = vand.u32 %v354, 4294901760
        %1984 = vmatmul.mubr.f32.gmra.mrb[0].mxu0 %v1983
        %v1985 = vpop.f32.mrb[0].mxu0
        %v1986 = vadd.f32 %v1645, %v1985
        %v1987 = vpop.f32.mrb[0].mxu0
        %1988 = vmatprep.mubr.f32.mxu0 0.0
        %v1989 = vand.u32 %v355, 4294901760
        %1990 = vmatmul.mubr.f32.gmra.mrb[0].mxu0 %v1989
        %v1991 = vpop.f32.mrb[0].mxu0
        %v1992 = vadd.f32 %v1653, %v1991
        %v1993 = vpop.f32.mrb[0].mxu0
        %1994 = vmatprep.mubr.f32.mxu0 0.0
        %v1995 = vand.u32 %v356, 4294901760
        %1996 = vmatmul.mubr.f32.gmra.mrb[0].mxu0 %v1995
        %v1997 = vpop.f32.mrb[0].mxu0
        %v1998 = vadd.f32 %v1661, %v1997
        %v1999 = vpop.f32.mrb[0].mxu0
        %2000 = vmatprep.mubr.f32.mxu0 0.0
        %v2001 = vand.u32 %v357, 4294901760
        %2002 = vmatmul.mubr.f32.gmra.mrb[0].mxu0 %v2001
        %v2003 = vpop.f32.mrb[0].mxu0
        %v2004 = vadd.f32 %v1669, %v2003
        %v2005 = vpop.f32.mrb[0].mxu0
        %2006 = vmatprep.mubr.f32.mxu0 0.0
        %v2007 = vand.u32 %v358, 4294901760
        %2008 = vmatmul.mubr.f32.gmra.mrb[0].mxu0 %v2007
        %v2009 = vpop.f32.mrb[0].mxu0
        %v2010 = vadd.f32 %v1677, %v2009
        %v2011 = vpop.f32.mrb[0].mxu0
        %2012 = vmatprep.mubr.f32.mxu0 0.0
        %v2013 = vand.u32 %v359, 4294901760
        %2014 = vmatmul.mubr.f32.gmra.mrb[0].mxu0 %v2013
        %v2015 = vpop.f32.mrb[0].mxu0
        %v2016 = vadd.f32 %v1685, %v2015
        %v2017 = vpop.f32.mrb[0].mxu0
        %2018 = vmatprep.mubr.f32.mxu0 0.0
        %v2019 = vand.u32 %v360, 4294901760
        %2020 = vmatmul.mubr.f32.gmra.mrb[0].mxu0 %v2019
        %v2021 = vpop.f32.mrb[0].mxu0
        %v2022 = vadd.f32 %v1693, %v2021
        %v2023 = vpop.f32.mrb[0].mxu0
        %2024 = vmatprep.mubr.f32.mxu0 0.0
        %v2025 = vand.u32 %v361, 4294901760
        %2026 = vmatmul.mubr.f32.gmra.mrb[0].mxu0 %v2025
        %v2027 = vpop.f32.mrb[0].mxu0
        %v2028 = vadd.f32 %v1701, %v2027
        %v2029 = vpop.f32.mrb[0].mxu0
        %2030 = vmatprep.mubr.f32.mxu0 0.0
        %v2031 = vand.u32 %v362, 4294901760
        %2032 = vmatmul.mubr.f32.gmra.mrb[0].mxu0 %v2031
        %v2033 = vpop.f32.mrb[0].mxu0
        %v2034 = vadd.f32 %v1709, %v2033
        %v2035 = vpop.f32.mrb[0].mxu0
        %2036 = vmatprep.mubr.f32.mxu0 0.0
        %v2037 = vand.u32 %v363, 4294901760
        %2038 = vmatmul.mubr.f32.gmra.mrb[0].mxu0 %v2037
        %v2039 = vpop.f32.mrb[0].mxu0
        %v2040 = vadd.f32 %v1717, %v2039
        %v2041 = vpop.f32.mrb[0].mxu0
        %2042 = vmatprep.mubr.f32.mxu0 0.0
        %v2043 = vand.u32 %v364, 4294901760
        %2044 = vmatmul.mubr.f32.gmra.mrb[0].mxu0 %v2043
        %v2045 = vpop.f32.mrb[0].mxu0
        %v2046 = vadd.f32 %v1725, %v2045
        %v2047 = vpop.f32.mrb[0].mxu0
        %2048 = vmatprep.mubr.f32.mxu0 0.0
        %v2049 = vand.u32 %v365, 4294901760
        %2050 = vmatmul.mubr.f32.gmra.mrb[0].mxu0 %v2049
        %v2051 = vpop.f32.mrb[0].mxu0
        %v2052 = vadd.f32 %v1733, %v2051
        %v2053 = vpop.f32.mrb[0].mxu0
        %2054 = vmatprep.mubr.f32.mxu0 0.0
        %v2055 = vand.u32 %v366, 4294901760
        %2056 = vmatmul.mubr.f32.gmra.mrb[0].mxu0 %v2055
        %v2057 = vpop.f32.mrb[0].mxu0
        %v2058 = vadd.f32 %v1741, %v2057
        %v2059 = vpop.f32.mrb[0].mxu0
        %2060 = vmatprep.mubr.f32.mxu0 0.0
        %v2061 = vand.u32 %v367, 4294901760
        %2062 = vmatmul.mubr.f32.gmra.mrb[0].mxu0 %v2061
        %v2063 = vpop.f32.mrb[0].mxu0
        %v2064 = vadd.f32 %v1749, %v2063
        %v2065 = vpop.f32.mrb[0].mxu0
        %2066 = vmatprep.mubr.f32.mxu0 0.0
        %v2067 = vand.u32 %v368, 4294901760
        %2068 = vmatmul.mubr.f32.gmra.mrb[0].mxu0 %v2067
        %v2069 = vpop.f32.mrb[0].mxu0
        %v2070 = vadd.f32 %v1757, %v2069
        %v2071 = vpop.f32.mrb[0].mxu0
        %2072 = vmatprep.mubr.f32.mxu0 0.0
        %v2073 = vand.u32 %v369, 4294901760
        %2074 = vmatmul.mubr.f32.gmra.mrb[0].mxu0 %v2073
        %v2075 = vpop.f32.mrb[0].mxu0
        %v2076 = vadd.f32 %v1765, %v2075
        %v2077 = vpop.f32.mrb[0].mxu0
        %2078 = vmatprep.mubr.f32.mxu0 0.0
        %v2079 = vand.u32 %v370, 4294901760
        %2080 = vmatmul.mubr.f32.gmra.mrb[0].mxu0 %v2079
        %v2081 = vpop.f32.mrb[0].mxu0
        %v2082 = vadd.f32 %v1773, %v2081
        %v2083 = vpop.f32.mrb[0].mxu0
        %2084 = vmatprep.mubr.f32.mxu0 0.0
        %v2085 = vand.u32 %v371, 4294901760
        %2086 = vmatmul.mubr.f32.gmra.mrb[0].mxu0 %v2085
        %v2087 = vpop.f32.mrb[0].mxu0
        %v2088 = vadd.f32 %v1781, %v2087
        %v2089 = vpop.f32.mrb[0].mxu0
        %2090 = vmatprep.mubr.f32.mxu0 0.0
        %v2091 = vand.u32 %v372, 4294901760
        %2092 = vmatmul.mubr.f32.gmra.mrb[0].mxu0 %v2091
        %v2093 = vpop.f32.mrb[0].mxu0
        %v2094 = vadd.f32 %v1789, %v2093
        %v2095 = vpop.f32.mrb[0].mxu0
        %2096 = vdwg.mxu0
        %2097 = vmatprep.subr.mxu0 0.0
        %v2098 = vand.u32 %v373, 4294901760
        %2099 = vmatpush1.msra.mxu0 %v2098
        %2100 = vmatprep.subr.mxu0 0.0
        %v2101 = vand.u32 %v374, 4294901760
        %2102 = vmatpush1.msra.mxu0 %v2101
        %2103 = vmatprep.subr.mxu0 0.0
        %v2104 = vand.u32 %v375, 4294901760
        %2105 = vmatpush1.msra.mxu0 %v2104
        %2106 = vmatprep.subr.mxu0 0.0
        %v2107 = vand.u32 %v376, 4294901760
        %2108 = vmatpush1.msra.mxu0 %v2107
        %2109 = vmatprep.subr.mxu0 0.0
        %v2110 = vand.u32 %v377, 4294901760
        %2111 = vmatpush1.msra.mxu0 %v2110
        %2112 = vmatprep.subr.mxu0 0.0
        %v2113 = vand.u32 %v378, 4294901760
        %2114 = vmatpush1.msra.mxu0 %v2113
        %2115 = vmatprep.subr.mxu0 0.0
        %v2116 = vand.u32 %v379, 4294901760
        %2117 = vmatpush1.msra.mxu0 %v2116
        %2118 = vmatprep.subr.mxu0 0.0
        %v2119 = vand.u32 %v380, 4294901760
        %2120 = vmatpush1.msra.mxu0 %v2119
        %2121 = vmatprep.subr.mxu0 0.0
        %v2122 = vand.u32 %v381, 4294901760
        %2123 = vmatpush1.msra.mxu0 %v2122
        %2124 = vmatprep.subr.mxu0 0.0
        %v2125 = vand.u32 %v382, 4294901760
        %2126 = vmatpush1.msra.mxu0 %v2125
        %2127 = vmatprep.subr.mxu0 0.0
        %v2128 = vand.u32 %v383, 4294901760
        %2129 = vmatpush1.msra.mxu0 %v2128
        %2130 = vmatprep.subr.mxu0 0.0
        %v2131 = vand.u32 %v384, 4294901760
        %2132 = vmatpush1.msra.mxu0 %v2131
        %2133 = vmatprep.subr.mxu0 0.0
        %v2134 = vand.u32 %v385, 4294901760
        %2135 = vmatpush1.msra.mxu0 %v2134
        %2136 = vmatprep.subr.mxu0 0.0
        %v2137 = vand.u32 %v386, 4294901760
        %2138 = vmatpush1.msra.mxu0 %v2137
        %2139 = vmatprep.subr.mxu0 0.0
        %v2140 = vand.u32 %v387, 4294901760
        %2141 = vmatpush1.msra.mxu0 %v2140
        %2142 = vmatprep.subr.mxu0 0.0
        %v2143 = vand.u32 %v388, 4294901760
        %2144 = vmatpush1.msra.mxu0 %v2143
        %2145 = vmatprep.subr.mxu0 0.0
        %2146 = vmatpush1.msra.mxu0 0.0
        %2147 = vmatprep.subr.mxu0 0.0
        %2148 = vmatpush1.msra.mxu0 0.0
        %2149 = vmatprep.subr.mxu0 0.0
        %2150 = vmatpush1.msra.mxu0 0.0
        %2151 = vmatprep.subr.mxu0 0.0
        %2152 = vmatpush1.msra.mxu0 0.0
        %2153 = vmatprep.subr.mxu0 0.0
        %2154 = vmatpush1.msra.mxu0 0.0
        %2155 = vmatprep.subr.mxu0 0.0
        %2156 = vmatpush1.msra.mxu0 0.0
        %2157 = vmatprep.subr.mxu0 0.0
        %2158 = vmatpush1.msra.mxu0 0.0
        %2159 = vmatprep.subr.mxu0 0.0
        %2160 = vmatpush1.msra.mxu0 0.0
        %2161 = vmatprep.subr.mxu0 0.0
        %2162 = vmatpush1.msra.mxu0 0.0
        %2163 = vmatprep.subr.mxu0 0.0
        %2164 = vmatpush1.msra.mxu0 0.0
        %2165 = vmatprep.subr.mxu0 0.0
        %2166 = vmatpush1.msra.mxu0 0.0
        %2167 = vmatprep.subr.mxu0 0.0
        %2168 = vmatpush1.msra.mxu0 0.0
        %2169 = vmatprep.subr.mxu0 0.0
        %2170 = vmatpush1.msra.mxu0 0.0
        %2171 = vmatprep.subr.mxu0 0.0
        %2172 = vmatpush1.msra.mxu0 0.0
        %2173 = vmatprep.subr.mxu0 0.0
        %2174 = vmatpush1.msra.mxu0 0.0
        %2175 = vmatprep.subr.mxu0 0.0
        %2176 = vmatpush1.msra.mxu0 0.0
        %2177 = vmatprep.mubr.f32.mxu0 0.0
        %v2178 = vand.u32 %v341, 4294901760
        %2179 = vmatmul.mubr.f32.gmra.mrb[0].mxu0 %v2178
        %v2180 = vpop.f32.mrb[0].mxu0
        %v2181 = vadd.f32 %v1908, %v2180
        %v2182 = vpop.f32.mrb[0].mxu0
        %2183 = vmatprep.mubr.f32.mxu0 0.0
        %v2184 = vand.u32 %v342, 4294901760
        %2185 = vmatmul.mubr.f32.gmra.mrb[0].mxu0 %v2184
        %v2186 = vpop.f32.mrb[0].mxu0
        %v2187 = vadd.f32 %v1914, %v2186
        %v2188 = vpop.f32.mrb[0].mxu0
        %2189 = vmatprep.mubr.f32.mxu0 0.0
        %v2190 = vand.u32 %v343, 4294901760
        %2191 = vmatmul.mubr.f32.gmra.mrb[0].mxu0 %v2190
        %v2192 = vpop.f32.mrb[0].mxu0
        %v2193 = vadd.f32 %v1920, %v2192
        %v2194 = vpop.f32.mrb[0].mxu0
        %2195 = vmatprep.mubr.f32.mxu0 0.0
        %v2196 = vand.u32 %v344, 4294901760
        %2197 = vmatmul.mubr.f32.gmra.mrb[0].mxu0 %v2196
        %v2198 = vpop.f32.mrb[0].mxu0
        %v2199 = vadd.f32 %v1926, %v2198
        %v2200 = vpop.f32.mrb[0].mxu0
        %2201 = vmatprep.mubr.f32.mxu0 0.0
        %v2202 = vand.u32 %v345, 4294901760
        %2203 = vmatmul.mubr.f32.gmra.mrb[0].mxu0 %v2202
        %v2204 = vpop.f32.mrb[0].mxu0
        %v2205 = vadd.f32 %v1932, %v2204
        %v2206 = vpop.f32.mrb[0].mxu0
        %2207 = vmatprep.mubr.f32.mxu0 0.0
        %v2208 = vand.u32 %v346, 4294901760
        %2209 = vmatmul.mubr.f32.gmra.mrb[0].mxu0 %v2208
        %v2210 = vpop.f32.mrb[0].mxu0
        %v2211 = vadd.f32 %v1938, %v2210
        %v2212 = vpop.f32.mrb[0].mxu0
        %2213 = vmatprep.mubr.f32.mxu0 0.0
        %v2214 = vand.u32 %v347, 4294901760
        %2215 = vmatmul.mubr.f32.gmra.mrb[0].mxu0 %v2214
        %v2216 = vpop.f32.mrb[0].mxu0
        %v2217 = vadd.f32 %v1944, %v2216
        %v2218 = vpop.f32.mrb[0].mxu0
        %2219 = vmatprep.mubr.f32.mxu0 0.0
        %v2220 = vand.u32 %v348, 4294901760
        %2221 = vmatmul.mubr.f32.gmra.mrb[0].mxu0 %v2220
        %v2222 = vpop.f32.mrb[0].mxu0
        %v2223 = vadd.f32 %v1950, %v2222
        %v2224 = vpop.f32.mrb[0].mxu0
        %2225 = vmatprep.mubr.f32.mxu0 0.0
        %v2226 = vand.u32 %v349, 4294901760
        %2227 = vmatmul.mubr.f32.gmra.mrb[0].mxu0 %v2226
        %v2228 = vpop.f32.mrb[0].mxu0
        %v2229 = vadd.f32 %v1956, %v2228
        %v2230 = vpop.f32.mrb[0].mxu0
        %2231 = vmatprep.mubr.f32.mxu0 0.0
        %v2232 = vand.u32 %v350, 4294901760
        %2233 = vmatmul.mubr.f32.gmra.mrb[0].mxu0 %v2232
        %v2234 = vpop.f32.mrb[0].mxu0
        %v2235 = vadd.f32 %v1962, %v2234
        %v2236 = vpop.f32.mrb[0].mxu0
        %2237 = vmatprep.mubr.f32.mxu0 0.0
        %v2238 = vand.u32 %v351, 4294901760
        %2239 = vmatmul.mubr.f32.gmra.mrb[0].mxu0 %v2238
        %v2240 = vpop.f32.mrb[0].mxu0
        %v2241 = vadd.f32 %v1968, %v2240
        %v2242 = vpop.f32.mrb[0].mxu0
        %2243 = vmatprep.mubr.f32.mxu0 0.0
        %v2244 = vand.u32 %v352, 4294901760
        %2245 = vmatmul.mubr.f32.gmra.mrb[0].mxu0 %v2244
        %v2246 = vpop.f32.mrb[0].mxu0
        %v2247 = vadd.f32 %v1974, %v2246
        %v2248 = vpop.f32.mrb[0].mxu0
        %2249 = vmatprep.mubr.f32.mxu0 0.0
        %v2250 = vand.u32 %v353, 4294901760
        %2251 = vmatmul.mubr.f32.gmra.mrb[0].mxu0 %v2250
        %v2252 = vpop.f32.mrb[0].mxu0
        %v2253 = vadd.f32 %v1980, %v2252
        %v2254 = vpop.f32.mrb[0].mxu0
        %2255 = vmatprep.mubr.f32.mxu0 0.0
        %v2256 = vand.u32 %v354, 4294901760
        %2257 = vmatmul.mubr.f32.gmra.mrb[0].mxu0 %v2256
        %v2258 = vpop.f32.mrb[0].mxu0
        %v2259 = vadd.f32 %v1986, %v2258
        %v2260 = vpop.f32.mrb[0].mxu0
        %2261 = vmatprep.mubr.f32.mxu0 0.0
        %v2262 = vand.u32 %v355, 4294901760
        %2263 = vmatmul.mubr.f32.gmra.mrb[0].mxu0 %v2262
        %v2264 = vpop.f32.mrb[0].mxu0
        %v2265 = vadd.f32 %v1992, %v2264
        %v2266 = vpop.f32.mrb[0].mxu0
        %2267 = vmatprep.mubr.f32.mxu0 0.0
        %v2268 = vand.u32 %v356, 4294901760
        %2269 = vmatmul.mubr.f32.gmra.mrb[0].mxu0 %v2268
        %v2270 = vpop.f32.mrb[0].mxu0
        %v2271 = vadd.f32 %v1998, %v2270
        %v2272 = vpop.f32.mrb[0].mxu0
        %2273 = vmatprep.mubr.f32.mxu0 0.0
        %v2274 = vand.u32 %v357, 4294901760
        %2275 = vmatmul.mubr.f32.gmra.mrb[0].mxu0 %v2274
        %v2276 = vpop.f32.mrb[0].mxu0
        %v2277 = vadd.f32 %v2004, %v2276
        %v2278 = vpop.f32.mrb[0].mxu0
        %2279 = vmatprep.mubr.f32.mxu0 0.0
        %v2280 = vand.u32 %v358, 4294901760
        %2281 = vmatmul.mubr.f32.gmra.mrb[0].mxu0 %v2280
        %v2282 = vpop.f32.mrb[0].mxu0
        %v2283 = vadd.f32 %v2010, %v2282
        %v2284 = vpop.f32.mrb[0].mxu0
        %2285 = vmatprep.mubr.f32.mxu0 0.0
        %v2286 = vand.u32 %v359, 4294901760
        %2287 = vmatmul.mubr.f32.gmra.mrb[0].mxu0 %v2286
        %v2288 = vpop.f32.mrb[0].mxu0
        %v2289 = vadd.f32 %v2016, %v2288
        %v2290 = vpop.f32.mrb[0].mxu0
        %2291 = vmatprep.mubr.f32.mxu0 0.0
        %v2292 = vand.u32 %v360, 4294901760
        %2293 = vmatmul.mubr.f32.gmra.mrb[0].mxu0 %v2292
        %v2294 = vpop.f32.mrb[0].mxu0
        %v2295 = vadd.f32 %v2022, %v2294
        %v2296 = vpop.f32.mrb[0].mxu0
        %2297 = vmatprep.mubr.f32.mxu0 0.0
        %v2298 = vand.u32 %v361, 4294901760
        %2299 = vmatmul.mubr.f32.gmra.mrb[0].mxu0 %v2298
        %v2300 = vpop.f32.mrb[0].mxu0
        %v2301 = vadd.f32 %v2028, %v2300
        %v2302 = vpop.f32.mrb[0].mxu0
        %2303 = vmatprep.mubr.f32.mxu0 0.0
        %v2304 = vand.u32 %v362, 4294901760
        %2305 = vmatmul.mubr.f32.gmra.mrb[0].mxu0 %v2304
        %v2306 = vpop.f32.mrb[0].mxu0
        %v2307 = vadd.f32 %v2034, %v2306
        %v2308 = vpop.f32.mrb[0].mxu0
        %2309 = vmatprep.mubr.f32.mxu0 0.0
        %v2310 = vand.u32 %v363, 4294901760
        %2311 = vmatmul.mubr.f32.gmra.mrb[0].mxu0 %v2310
        %v2312 = vpop.f32.mrb[0].mxu0
        %v2313 = vadd.f32 %v2040, %v2312
        %v2314 = vpop.f32.mrb[0].mxu0
        %2315 = vmatprep.mubr.f32.mxu0 0.0
        %v2316 = vand.u32 %v364, 4294901760
        %2317 = vmatmul.mubr.f32.gmra.mrb[0].mxu0 %v2316
        %v2318 = vpop.f32.mrb[0].mxu0
        %v2319 = vadd.f32 %v2046, %v2318
        %v2320 = vpop.f32.mrb[0].mxu0
        %2321 = vmatprep.mubr.f32.mxu0 0.0
        %v2322 = vand.u32 %v365, 4294901760
        %2323 = vmatmul.mubr.f32.gmra.mrb[0].mxu0 %v2322
        %v2324 = vpop.f32.mrb[0].mxu0
        %v2325 = vadd.f32 %v2052, %v2324
        %v2326 = vpop.f32.mrb[0].mxu0
        %2327 = vmatprep.mubr.f32.mxu0 0.0
        %v2328 = vand.u32 %v366, 4294901760
        %2329 = vmatmul.mubr.f32.gmra.mrb[0].mxu0 %v2328
        %v2330 = vpop.f32.mrb[0].mxu0
        %v2331 = vadd.f32 %v2058, %v2330
        %v2332 = vpop.f32.mrb[0].mxu0
        %2333 = vmatprep.mubr.f32.mxu0 0.0
        %v2334 = vand.u32 %v367, 4294901760
        %2335 = vmatmul.mubr.f32.gmra.mrb[0].mxu0 %v2334
        %v2336 = vpop.f32.mrb[0].mxu0
        %v2337 = vadd.f32 %v2064, %v2336
        %v2338 = vpop.f32.mrb[0].mxu0
        %2339 = vmatprep.mubr.f32.mxu0 0.0
        %v2340 = vand.u32 %v368, 4294901760
        %2341 = vmatmul.mubr.f32.gmra.mrb[0].mxu0 %v2340
        %v2342 = vpop.f32.mrb[0].mxu0
        %v2343 = vadd.f32 %v2070, %v2342
        %v2344 = vpop.f32.mrb[0].mxu0
        %2345 = vmatprep.mubr.f32.mxu0 0.0
        %v2346 = vand.u32 %v369, 4294901760
        %2347 = vmatmul.mubr.f32.gmra.mrb[0].mxu0 %v2346
        %v2348 = vpop.f32.mrb[0].mxu0
        %v2349 = vadd.f32 %v2076, %v2348
        %v2350 = vpop.f32.mrb[0].mxu0
        %2351 = vmatprep.mubr.f32.mxu0 0.0
        %v2352 = vand.u32 %v370, 4294901760
        %2353 = vmatmul.mubr.f32.gmra.mrb[0].mxu0 %v2352
        %v2354 = vpop.f32.mrb[0].mxu0
        %v2355 = vadd.f32 %v2082, %v2354
        %v2356 = vpop.f32.mrb[0].mxu0
        %2357 = vmatprep.mubr.f32.mxu0 0.0
        %v2358 = vand.u32 %v371, 4294901760
        %2359 = vmatmul.mubr.f32.gmra.mrb[0].mxu0 %v2358
        %v2360 = vpop.f32.mrb[0].mxu0
        %v2361 = vadd.f32 %v2088, %v2360
        %v2362 = vpop.f32.mrb[0].mxu0
        %2363 = vmatprep.mubr.f32.mxu0 0.0
        %v2364 = vand.u32 %v372, 4294901760
        %2365 = vmatmul.mubr.f32.gmra.mrb[0].mxu0 %v2364
        %v2366 = vpop.f32.mrb[0].mxu0
        %v2367 = vadd.f32 %v2094, %v2366
        %v2368 = vpop.f32.mrb[0].mxu0
        %2369 = vdwg.mxu0
        %v2370 = vmax.f32 %v2181, 0.0
        %v2371 = vmax.f32 %v2187, 0.0
        %v2372 = vmax.f32 %v2193, 0.0
        %v2373 = vmax.f32 %v2199, 0.0
        %v2374 = vmax.f32 %v2205, 0.0
        %v2375 = vmax.f32 %v2211, 0.0
        %v2376 = vmax.f32 %v2217, 0.0
        %v2377 = vmax.f32 %v2223, 0.0
        %v2378 = vmax.f32 %v2229, 0.0
        %v2379 = vmax.f32 %v2235, 0.0
        %v2380 = vmax.f32 %v2241, 0.0
        %v2381 = vmax.f32 %v2247, 0.0
        %v2382 = vmax.f32 %v2253, 0.0
        %v2383 = vmax.f32 %v2259, 0.0
        %v2384 = vmax.f32 %v2265, 0.0
        %v2385 = vmax.f32 %v2271, 0.0
        %v2386 = vmax.f32 %v2277, 0.0
        %v2387 = vmax.f32 %v2283, 0.0
        %v2388 = vmax.f32 %v2289, 0.0
        %v2389 = vmax.f32 %v2295, 0.0
        %v2390 = vmax.f32 %v2301, 0.0
        %v2391 = vmax.f32 %v2307, 0.0
        %v2392 = vmax.f32 %v2313, 0.0
        %v2393 = vmax.f32 %v2319, 0.0
        %v2394 = vmax.f32 %v2325, 0.0
        %v2395 = vmax.f32 %v2331, 0.0
        %v2396 = vmax.f32 %v2337, 0.0
        %v2397 = vmax.f32 %v2343, 0.0
        %v2398 = vmax.f32 %v2349, 0.0
        %v2399 = vmax.f32 %v2355, 0.0
        %v2400 = vmax.f32 %v2361, 0.0
        %v2401 = vmax.f32 %v2367, 0.0
        %v2402 = vmin.f32 %v2370, 6.0
        %v2403 = vmin.f32 %v2371, 6.0
        %v2404 = vmin.f32 %v2372, 6.0
        %v2405 = vmin.f32 %v2373, 6.0
        %v2406 = vmin.f32 %v2374, 6.0
        %v2407 = vmin.f32 %v2375, 6.0
        %v2408 = vmin.f32 %v2376, 6.0
        %v2409 = vmin.f32 %v2377, 6.0
        %v2410 = vmin.f32 %v2378, 6.0
        %v2411 = vmin.f32 %v2379, 6.0
        %v2412 = vmin.f32 %v2380, 6.0
        %v2413 = vmin.f32 %v2381, 6.0
        %v2414 = vmin.f32 %v2382, 6.0
        %v2415 = vmin.f32 %v2383, 6.0
        %v2416 = vmin.f32 %v2384, 6.0
        %v2417 = vmin.f32 %v2385, 6.0
        %v2418 = vmin.f32 %v2386, 6.0
        %v2419 = vmin.f32 %v2387, 6.0
        %v2420 = vmin.f32 %v2388, 6.0
        %v2421 = vmin.f32 %v2389, 6.0
        %v2422 = vmin.f32 %v2390, 6.0
        %v2423 = vmin.f32 %v2391, 6.0
        %v2424 = vmin.f32 %v2392, 6.0
        %v2425 = vmin.f32 %v2393, 6.0
        %v2426 = vmin.f32 %v2394, 6.0
        %v2427 = vmin.f32 %v2395, 6.0
        %v2428 = vmin.f32 %v2396, 6.0
        %v2429 = vmin.f32 %v2397, 6.0
        %v2430 = vmin.f32 %v2398, 6.0
        %v2431 = vmin.f32 %v2399, 6.0
        %v2432 = vmin.f32 %v2400, 6.0
        %v2433 = vmin.f32 %v2401, 6.0
        %s2434 = scalar_lea.vmem [#allocation2], 32
        %2435 = vst [vmem:[%s2434 + $0x8] sm:$0xff] %v2402
        %2436 = vst [vmem:[%s2434 + $0x10] sm:$0xff] %v2403
        %2437 = vst [vmem:[%s2434 + $0x28] sm:$0xff] %v2404
        %2438 = vst [vmem:[%s2434 + $0x30] sm:$0xff] %v2405
        %2439 = vst [vmem:[%s2434 + $0x48] sm:$0xff] %v2406
        %2440 = vst [vmem:[%s2434 + $0x50] sm:$0xff] %v2407
        %2441 = vst [vmem:[%s2434 + $0x68] sm:$0xff] %v2408
        %2442 = vst [vmem:[%s2434 + $0x70] sm:$0xff] %v2409
        %2443 = vst [vmem:[%s2434 + $0x88] sm:$0xff] %v2410
        %2444 = vst [vmem:[%s2434 + $0x90] sm:$0xff] %v2411
        %2445 = vst [vmem:[%s2434 + $0xa8] sm:$0xff] %v2412
        %2446 = vst [vmem:[%s2434 + $0xb0] sm:$0xff] %v2413
        %2447 = vst [vmem:[%s2434 + $0xc8] sm:$0xff] %v2414
        %2448 = vst [vmem:[%s2434 + $0xd0] sm:$0xff] %v2415
        %2449 = vst [vmem:[%s2434 + $0xe8] sm:$0xff] %v2416
        %2450 = vst [vmem:[%s2434 + $0xf0] sm:$0xff] %v2417
        %2451 = vst [vmem:[%s2434 + $0x108] sm:$0xff] %v2418
        %2452 = vst [vmem:[%s2434 + $0x110] sm:$0xff] %v2419
        %2453 = vst [vmem:[%s2434 + $0x128] sm:$0xff] %v2420
        %2454 = vst [vmem:[%s2434 + $0x130] sm:$0xff] %v2421
        %2455 = vst [vmem:[%s2434 + $0x148] sm:$0xff] %v2422
        %2456 = vst [vmem:[%s2434 + $0x150] sm:$0xff] %v2423
        %2457 = vst [vmem:[%s2434 + $0x168] sm:$0xff] %v2424
        %2458 = vst [vmem:[%s2434 + $0x170] sm:$0xff] %v2425
        %2459 = vst [vmem:[%s2434 + $0x188] sm:$0xff] %v2426
        %2460 = vst [vmem:[%s2434 + $0x190] sm:$0xff] %v2427
        %2461 = vst [vmem:[%s2434 + $0x1a8] sm:$0xff] %v2428
        %2462 = vst [vmem:[%s2434 + $0x1b0] sm:$0xff] %v2429
        %2463 = vst [vmem:[%s2434 + $0x1c8] sm:$0xff] %v2430
        %2464 = vst [vmem:[%s2434 + $0x1d0] sm:$0xff] %v2431
        %2465 = vst [vmem:[%s2434 + $0x1e8] sm:$0xff] %v2432
        %2466 = vst [vmem:[%s2434 + $0x1f0] sm:$0xff] %v2433
        %2467 = vst [vmem:[#allocation2] sm:$0xff] 0.0
        %2468 = vst [vmem:[#allocation2 + $0x8] sm:$0xff] 0.0
        %2469 = vst [vmem:[#allocation2 + $0x10] sm:$0xff] 0.0
        %2470 = vst [vmem:[#allocation2 + $0x18] sm:$0xff] 0.0
        %s2471 = scalar_lea.vmem [#allocation2], 544
        %2472 = vst [vmem:[%s2471] sm:$0xff] 0.0
        %2473 = vst [vmem:[%s2471 + $0x8] sm:$0xff] 0.0
        %2474 = vst [vmem:[%s2471 + $0x10] sm:$0xff] 0.0
        %2475 = vst [vmem:[%s2471 + $0x18] sm:$0xff] 0.0
        %2476 = vst [vmem:[%s2434 + $0x7] sm:$0x1] 0.0
        %2477 = vst [vmem:[%s2434 + $0x27] sm:$0x1] 0.0
        %2478 = vst [vmem:[%s2434 + $0x47] sm:$0x1] 0.0
        %2479 = vst [vmem:[%s2434 + $0x67] sm:$0x1] 0.0
        %2480 = vst [vmem:[%s2434 + $0x87] sm:$0x1] 0.0
        %2481 = vst [vmem:[%s2434 + $0xa7] sm:$0x1] 0.0
        %2482 = vst [vmem:[%s2434 + $0xc7] sm:$0x1] 0.0
        %2483 = vst [vmem:[%s2434 + $0xe7] sm:$0x1] 0.0
        %2484 = vst [vmem:[%s2434 + $0x107] sm:$0x1] 0.0
        %2485 = vst [vmem:[%s2434 + $0x127] sm:$0x1] 0.0
        %2486 = vst [vmem:[%s2434 + $0x147] sm:$0x1] 0.0
        %2487 = vst [vmem:[%s2434 + $0x167] sm:$0x1] 0.0
        %2488 = vst [vmem:[%s2434 + $0x187] sm:$0x1] 0.0
        %2489 = vst [vmem:[%s2434 + $0x1a7] sm:$0x1] 0.0
        %2490 = vst [vmem:[%s2434 + $0x1c7] sm:$0x1] 0.0
        %2491 = vst [vmem:[%s2434 + $0x1e7] sm:$0x1] 0.0
        %2492 = vst [vmem:[%s2434 + $0x18] sm:$0x1] 0.0
        %2493 = vst [vmem:[%s2434 + $0x38] sm:$0x1] 0.0
        %2494 = vst [vmem:[%s2434 + $0x58] sm:$0x1] 0.0
        %2495 = vst [vmem:[%s2434 + $0x78] sm:$0x1] 0.0
        %2496 = vst [vmem:[%s2434 + $0x98] sm:$0x1] 0.0
        %2497 = vst [vmem:[%s2434 + $0xb8] sm:$0x1] 0.0
        %2498 = vst [vmem:[%s2434 + $0xd8] sm:$0x1] 0.0
        %2499 = vst [vmem:[%s2434 + $0xf8] sm:$0x1] 0.0
        %2500 = vst [vmem:[%s2434 + $0x118] sm:$0x1] 0.0
        %2501 = vst [vmem:[%s2434 + $0x138] sm:$0x1] 0.0
        %2502 = vst [vmem:[%s2434 + $0x158] sm:$0x1] 0.0
        %2503 = vst [vmem:[%s2434 + $0x178] sm:$0x1] 0.0
        %2504 = vst [vmem:[%s2434 + $0x198] sm:$0x1] 0.0
        %2505 = vst [vmem:[%s2434 + $0x1b8] sm:$0x1] 0.0
        %2506 = vst [vmem:[%s2434 + $0x1d8] sm:$0x1] 0.0
        %2507 = vst [vmem:[%s2434 + $0x1f8] sm:$0x1] 0.0
        %v2508 = vld [vmem:[#allocation8] sm:$0xff]
        %v2509 = vld [vmem:[#allocation8 + $0x8] sm:$0x1]
        %v2510 = vld [vmem:[%s4] sm:$0x1]
        %v2512 = vlaneseq
        %v2513 = vshrl.u32 %v2512, 7
        %v2514 = vsub.s32 0, %v2513
        %v2515 = vrot.slane %v2510, %v2514
        %v2517 = vld [vmem:[#allocation2] sm:$0xff]
        %v2518 = vld [vmem:[#allocation2 + $0x8] sm:$0xff]
        %v2519 = vld [vmem:[#allocation2 + $0x10] sm:$0xff]
        %v2520 = vld [vmem:[#allocation2 + $0x18] sm:$0xff]
        %v2521 = vld [vmem:[#allocation2 + $0x20] sm:$0xff]
        %v2522 = vld [vmem:[#allocation2 + $0x28] sm:$0xff]
        %v2523 = vld [vmem:[#allocation2 + $0x30] sm:$0xff]
        %v2524 = vld [vmem:[#allocation2 + $0x38] sm:$0xff]
        %v2525 = vld [vmem:[#allocation2 + $0x40] sm:$0xff]
        %v2526 = vld [vmem:[#allocation2 + $0x48] sm:$0xff]
        %v2527 = vld [vmem:[#allocation2 + $0x50] sm:$0xff]
        %v2528 = vld [vmem:[#allocation2 + $0x58] sm:$0xff]
        %v2529 = vld [vmem:[#allocation2 + $0x60] sm:$0xff]
        %v2530 = vld [vmem:[#allocation2 + $0x68] sm:$0xff]
        %v2531 = vld [vmem:[#allocation2 + $0x70] sm:$0xff]
        %v2532 = vld [vmem:[#allocation2 + $0x78] sm:$0xff]
        %v2533 = vld [vmem:[#allocation2 + $0x80] sm:$0xff]
        %v2534 = vld [vmem:[#allocation2 + $0x88] sm:$0xff]
        %v2535 = vld [vmem:[#allocation2 + $0x90] sm:$0xff]
        %v2536 = vld [vmem:[#allocation2 + $0x98] sm:$0xff]
        %v2537 = vld [vmem:[#allocation2 + $0xa0] sm:$0xff]
        %v2538 = vld [vmem:[#allocation2 + $0xa8] sm:$0xff]
        %v2539 = vld [vmem:[#allocation2 + $0xb0] sm:$0xff]
        %v2540 = vld [vmem:[#allocation2 + $0xb8] sm:$0xff]
        %v2541 = vld [vmem:[#allocation2 + $0xc0] sm:$0xff]
        %v2542 = vld [vmem:[#allocation2 + $0xc8] sm:$0xff]
        %v2543 = vld [vmem:[#allocation2 + $0xd0] sm:$0xff]
        %v2544 = vld [vmem:[#allocation2 + $0xd8] sm:$0xff]
        %v2545 = vld [vmem:[#allocation2 + $0xe0] sm:$0xff]
        %v2546 = vld [vmem:[#allocation2 + $0xe8] sm:$0xff]
        %v2547 = vld [vmem:[#allocation2 + $0xf0] sm:$0xff]
        %v2548 = vld [vmem:[#allocation2 + $0xf8] sm:$0xff]
        %v2549 = vld [vmem:[#allocation2 + $0x100] sm:$0xff]
        %v2550 = vld [vmem:[#allocation2 + $0x108] sm:$0xff]
        %v2551 = vld [vmem:[#allocation2 + $0x110] sm:$0xff]
        %v2552 = vld [vmem:[#allocation2 + $0x118] sm:$0xff]
        %v2553 = vld [vmem:[#allocation2 + $0x120] sm:$0xff]
        %v2554 = vld [vmem:[#allocation2 + $0x128] sm:$0xff]
        %v2555 = vld [vmem:[#allocation2 + $0x130] sm:$0xff]
        %v2556 = vld [vmem:[#allocation2 + $0x138] sm:$0xff]
        %v2557 = vld [vmem:[#allocation2 + $0x140] sm:$0xff]
        %v2558 = vld [vmem:[#allocation2 + $0x148] sm:$0xff]
        %v2559 = vld [vmem:[#allocation2 + $0x150] sm:$0xff]
        %v2560 = vld [vmem:[#allocation2 + $0x158] sm:$0xff]
        %v2561 = vld [vmem:[#allocation2 + $0x160] sm:$0xff]
        %v2562 = vld [vmem:[#allocation2 + $0x168] sm:$0xff]
        %v2563 = vld [vmem:[#allocation2 + $0x170] sm:$0xff]
        %v2564 = vld [vmem:[#allocation2 + $0x178] sm:$0xff]
        %v2565 = vld [vmem:[#allocation2 + $0x180] sm:$0xff]
        %v2566 = vld [vmem:[#allocation2 + $0x188] sm:$0xff]
        %v2567 = vld [vmem:[#allocation2 + $0x190] sm:$0xff]
        %v2568 = vld [vmem:[#allocation2 + $0x198] sm:$0xff]
        %v2569 = vld [vmem:[#allocation2 + $0x1a0] sm:$0xff]
        %v2570 = vld [vmem:[#allocation2 + $0x1a8] sm:$0xff]
        %v2571 = vld [vmem:[#allocation2 + $0x1b0] sm:$0xff]
        %v2572 = vld [vmem:[#allocation2 + $0x1b8] sm:$0xff]
        %v2573 = vld [vmem:[#allocation2 + $0x1c0] sm:$0xff]
        %v2574 = vld [vmem:[#allocation2 + $0x1c8] sm:$0xff]
        %v2575 = vld [vmem:[#allocation2 + $0x1d0] sm:$0xff]
        %v2576 = vld [vmem:[#allocation2 + $0x1d8] sm:$0xff]
        %v2577 = vld [vmem:[#allocation2 + $0x1e0] sm:$0xff]
        %v2578 = vld [vmem:[#allocation2 + $0x1e8] sm:$0xff]
        %v2579 = vld [vmem:[#allocation2 + $0x1f0] sm:$0xff]
        %v2580 = vld [vmem:[#allocation2 + $0x1f8] sm:$0xff]
        %v2581 = vlaneseq
        %v2582 = vshrl.u32 %v2581, 7
        %v2583 = vsub.s32 0, %v2582
        %v2584 = vrot.slane %v2508, %v2583
        %v2585 = vmul.f32 %v2517, %v2584
        %v2586 = vmul.f32 %v2518, %v2584
        %v2587 = vmul.f32 %v2519, %v2584
        %v2588 = vmul.f32 %v2521, %v2584
        %v2589 = vmul.f32 %v2522, %v2584
        %v2590 = vmul.f32 %v2523, %v2584
        %v2591 = vmul.f32 %v2525, %v2584
        %v2592 = vmul.f32 %v2526, %v2584
        %v2593 = vmul.f32 %v2527, %v2584
        %v2594 = vmul.f32 %v2529, %v2584
        %v2595 = vmul.f32 %v2530, %v2584
        %v2596 = vmul.f32 %v2531, %v2584
        %v2597 = vmul.f32 %v2533, %v2584
        %v2598 = vmul.f32 %v2534, %v2584
        %v2599 = vmul.f32 %v2535, %v2584
        %v2600 = vmul.f32 %v2537, %v2584
        %v2601 = vmul.f32 %v2538, %v2584
        %v2602 = vmul.f32 %v2539, %v2584
        %v2603 = vmul.f32 %v2541, %v2584
        %v2604 = vmul.f32 %v2542, %v2584
        %v2605 = vmul.f32 %v2543, %v2584
        %v2606 = vmul.f32 %v2545, %v2584
        %v2607 = vmul.f32 %v2546, %v2584
        %v2608 = vmul.f32 %v2547, %v2584
        %v2609 = vmul.f32 %v2549, %v2584
        %v2610 = vmul.f32 %v2550, %v2584
        %v2611 = vmul.f32 %v2551, %v2584
        %v2612 = vmul.f32 %v2553, %v2584
        %v2613 = vmul.f32 %v2554, %v2584
        %v2614 = vmul.f32 %v2555, %v2584
        %v2615 = vmul.f32 %v2557, %v2584
        %v2616 = vmul.f32 %v2558, %v2584
        %v2617 = vmul.f32 %v2559, %v2584
        %v2618 = vmul.f32 %v2561, %v2584
        %v2619 = vmul.f32 %v2562, %v2584
        %v2620 = vmul.f32 %v2563, %v2584
        %v2621 = vmul.f32 %v2565, %v2584
        %v2622 = vmul.f32 %v2566, %v2584
        %v2623 = vmul.f32 %v2567, %v2584
        %v2624 = vmul.f32 %v2569, %v2584
        %v2625 = vmul.f32 %v2570, %v2584
        %v2626 = vmul.f32 %v2571, %v2584
        %v2627 = vmul.f32 %v2573, %v2584
        %v2628 = vmul.f32 %v2574, %v2584
        %v2629 = vmul.f32 %v2575, %v2584
        %v2630 = vmul.f32 %v2577, %v2584
        %v2631 = vmul.f32 %v2578, %v2584
        %v2632 = vmul.f32 %v2579, %v2584
        %v2633 = vadd.f32 %v2515, %v2585
        %v2634 = vadd.f32 %v2515, %v2586
        %v2635 = vadd.f32 %v2515, %v2587
        %v2636 = vadd.f32 %v2515, %v2588
        %v2637 = vadd.f32 %v2515, %v2589
        %v2638 = vadd.f32 %v2515, %v2590
        %v2639 = vadd.f32 %v2515, %v2591
        %v2640 = vadd.f32 %v2515, %v2592
        %v2641 = vadd.f32 %v2515, %v2593
        %v2642 = vadd.f32 %v2515, %v2594
        %v2643 = vadd.f32 %v2515, %v2595
        %v2644 = vadd.f32 %v2515, %v2596
        %v2645 = vadd.f32 %v2515, %v2597
        %v2646 = vadd.f32 %v2515, %v2598
        %v2647 = vadd.f32 %v2515, %v2599
        %v2648 = vadd.f32 %v2515, %v2600
        %v2649 = vadd.f32 %v2515, %v2601
        %v2650 = vadd.f32 %v2515, %v2602
        %v2651 = vadd.f32 %v2515, %v2603
        %v2652 = vadd.f32 %v2515, %v2604
        %v2653 = vadd.f32 %v2515, %v2605
        %v2654 = vadd.f32 %v2515, %v2606
        %v2655 = vadd.f32 %v2515, %v2607
        %v2656 = vadd.f32 %v2515, %v2608
        %v2657 = vadd.f32 %v2515, %v2609
        %v2658 = vadd.f32 %v2515, %v2610
        %v2659 = vadd.f32 %v2515, %v2611
        %v2660 = vadd.f32 %v2515, %v2612
        %v2661 = vadd.f32 %v2515, %v2613
        %v2662 = vadd.f32 %v2515, %v2614
        %v2663 = vadd.f32 %v2515, %v2615
        %v2664 = vadd.f32 %v2515, %v2616
        %v2665 = vadd.f32 %v2515, %v2617
        %v2666 = vadd.f32 %v2515, %v2618
        %v2667 = vadd.f32 %v2515, %v2619
        %v2668 = vadd.f32 %v2515, %v2620
        %v2669 = vadd.f32 %v2515, %v2621
        %v2670 = vadd.f32 %v2515, %v2622
        %v2671 = vadd.f32 %v2515, %v2623
        %v2672 = vadd.f32 %v2515, %v2624
        %v2673 = vadd.f32 %v2515, %v2625
        %v2674 = vadd.f32 %v2515, %v2626
        %v2675 = vadd.f32 %v2515, %v2627
        %v2676 = vadd.f32 %v2515, %v2628
        %v2677 = vadd.f32 %v2515, %v2629
        %v2678 = vadd.f32 %v2515, %v2630
        %v2679 = vadd.f32 %v2515, %v2631
        %v2680 = vadd.f32 %v2515, %v2632
        %v2681 = vlaneseq
        %v2682 = vshrl.u32 %v2681, 7
        %v2683 = vsub.s32 1, %v2682
        %v2684 = vrot.slane %v2508, %v2683
        %v2685 = vmul.f32 %v2518, %v2684
        %v2686 = vmul.f32 %v2519, %v2684
        %v2687 = vmul.f32 %v2522, %v2684
        %v2688 = vmul.f32 %v2523, %v2684
        %v2689 = vmul.f32 %v2526, %v2684
        %v2690 = vmul.f32 %v2527, %v2684
        %v2691 = vmul.f32 %v2530, %v2684
        %v2692 = vmul.f32 %v2531, %v2684
        %v2693 = vmul.f32 %v2534, %v2684
        %v2694 = vmul.f32 %v2535, %v2684
        %v2695 = vmul.f32 %v2538, %v2684
        %v2696 = vmul.f32 %v2539, %v2684
        %v2697 = vmul.f32 %v2542, %v2684
        %v2698 = vmul.f32 %v2543, %v2684
        %v2699 = vmul.f32 %v2546, %v2684
        %v2700 = vmul.f32 %v2547, %v2684
        %v2701 = vmul.f32 %v2550, %v2684
        %v2702 = vmul.f32 %v2551, %v2684
        %v2703 = vmul.f32 %v2554, %v2684
        %v2704 = vmul.f32 %v2555, %v2684
        %v2705 = vmul.f32 %v2558, %v2684
        %v2706 = vmul.f32 %v2559, %v2684
        %v2707 = vmul.f32 %v2562, %v2684
        %v2708 = vmul.f32 %v2563, %v2684
        %v2709 = vmul.f32 %v2566, %v2684
        %v2710 = vmul.f32 %v2567, %v2684
        %v2711 = vmul.f32 %v2570, %v2684
        %v2712 = vmul.f32 %v2571, %v2684
        %v2713 = vmul.f32 %v2574, %v2684
        %v2714 = vmul.f32 %v2575, %v2684
        %v2715 = vmul.f32 %v2578, %v2684
        %v2716 = vmul.f32 %v2579, %v2684
        %vm2749 = vcmask 1046528
        %v2750 = vrot.slane %v2685, 1
        %v2751 = vrot.slane %v2686, 1
        %v2752 = vsel %vm2749, %v2750, %v2751
        %v2753 = vrot.slane %v2687, 1
        %v2754 = vrot.slane %v2688, 1
        %v2755 = vsel %vm2749, %v2753, %v2754
        %v2756 = vrot.slane %v2689, 1
        %v2757 = vrot.slane %v2690, 1
        %v2758 = vsel %vm2749, %v2756, %v2757
        %v2759 = vrot.slane %v2691, 1
        %v2760 = vrot.slane %v2692, 1
        %v2761 = vsel %vm2749, %v2759, %v2760
        %v2762 = vrot.slane %v2693, 1
        %v2763 = vrot.slane %v2694, 1
        %v2764 = vsel %vm2749, %v2762, %v2763
        %v2765 = vrot.slane %v2695, 1
        %v2766 = vrot.slane %v2696, 1
        %v2767 = vsel %vm2749, %v2765, %v2766
        %v2768 = vrot.slane %v2697, 1
        %v2769 = vrot.slane %v2698, 1
        %v2770 = vsel %vm2749, %v2768, %v2769
        %v2771 = vrot.slane %v2699, 1
        %v2772 = vrot.slane %v2700, 1
        %v2773 = vsel %vm2749, %v2771, %v2772
        %v2774 = vrot.slane %v2701, 1
        %v2775 = vrot.slane %v2702, 1
        %v2776 = vsel %vm2749, %v2774, %v2775
        %v2777 = vrot.slane %v2703, 1
        %v2778 = vrot.slane %v2704, 1
        %v2779 = vsel %vm2749, %v2777, %v2778
        %v2780 = vrot.slane %v2705, 1
        %v2781 = vrot.slane %v2706, 1
        %v2782 = vsel %vm2749, %v2780, %v2781
        %v2783 = vrot.slane %v2707, 1
        %v2784 = vrot.slane %v2708, 1
        %v2785 = vsel %vm2749, %v2783, %v2784
        %v2786 = vrot.slane %v2709, 1
        %v2787 = vrot.slane %v2710, 1
        %v2788 = vsel %vm2749, %v2786, %v2787
        %v2789 = vrot.slane %v2711, 1
        %v2790 = vrot.slane %v2712, 1
        %v2791 = vsel %vm2749, %v2789, %v2790
        %v2792 = vrot.slane %v2713, 1
        %v2793 = vrot.slane %v2714, 1
        %v2794 = vsel %vm2749, %v2792, %v2793
        %v2795 = vrot.slane %v2715, 1
        %v2796 = vrot.slane %v2716, 1
        %v2797 = vsel %vm2749, %v2795, %v2796
        %v2846 = vadd.f32 %v2633, %v2750
        %v2847 = vadd.f32 %v2634, %v2752
        %v2848 = vadd.f32 %v2635, %v2751
        %v2849 = vadd.f32 %v2636, %v2753
        %v2850 = vadd.f32 %v2637, %v2755
        %v2851 = vadd.f32 %v2638, %v2754
        %v2852 = vadd.f32 %v2639, %v2756
        %v2853 = vadd.f32 %v2640, %v2758
        %v2854 = vadd.f32 %v2641, %v2757
        %v2855 = vadd.f32 %v2642, %v2759
        %v2856 = vadd.f32 %v2643, %v2761
        %v2857 = vadd.f32 %v2644, %v2760
        %v2858 = vadd.f32 %v2645, %v2762
        %v2859 = vadd.f32 %v2646, %v2764
        %v2860 = vadd.f32 %v2647, %v2763
        %v2861 = vadd.f32 %v2648, %v2765
        %v2862 = vadd.f32 %v2649, %v2767
        %v2863 = vadd.f32 %v2650, %v2766
        %v2864 = vadd.f32 %v2651, %v2768
        %v2865 = vadd.f32 %v2652, %v2770
        %v2866 = vadd.f32 %v2653, %v2769
        %v2867 = vadd.f32 %v2654, %v2771
        %v2868 = vadd.f32 %v2655, %v2773
        %v2869 = vadd.f32 %v2656, %v2772
        %v2870 = vadd.f32 %v2657, %v2774
        %v2871 = vadd.f32 %v2658, %v2776
        %v2872 = vadd.f32 %v2659, %v2775
        %v2873 = vadd.f32 %v2660, %v2777
        %v2874 = vadd.f32 %v2661, %v2779
        %v2875 = vadd.f32 %v2662, %v2778
        %v2876 = vadd.f32 %v2663, %v2780
        %v2877 = vadd.f32 %v2664, %v2782
        %v2878 = vadd.f32 %v2665, %v2781
        %v2879 = vadd.f32 %v2666, %v2783
        %v2880 = vadd.f32 %v2667, %v2785
        %v2881 = vadd.f32 %v2668, %v2784
        %v2882 = vadd.f32 %v2669, %v2786
        %v2883 = vadd.f32 %v2670, %v2788
        %v2884 = vadd.f32 %v2671, %v2787
        %v2885 = vadd.f32 %v2672, %v2789
        %v2886 = vadd.f32 %v2673, %v2791
        %v2887 = vadd.f32 %v2674, %v2790
        %v2888 = vadd.f32 %v2675, %v2792
        %v2889 = vadd.f32 %v2676, %v2794
        %v2890 = vadd.f32 %v2677, %v2793
        %v2891 = vadd.f32 %v2678, %v2795
        %v2892 = vadd.f32 %v2679, %v2797
        %v2893 = vadd.f32 %v2680, %v2796
        %v2894 = vlaneseq
        %v2895 = vshrl.u32 %v2894, 7
        %v2896 = vsub.s32 2, %v2895
        %v2897 = vrot.slane %v2508, %v2896
        %v2898 = vmul.f32 %v2518, %v2897
        %v2899 = vmul.f32 %v2519, %v2897
        %v2900 = vmul.f32 %v2520, %v2897
        %v2901 = vmul.f32 %v2522, %v2897
        %v2902 = vmul.f32 %v2523, %v2897
        %v2903 = vmul.f32 %v2524, %v2897
        %v2904 = vmul.f32 %v2526, %v2897
        %v2905 = vmul.f32 %v2527, %v2897
        %v2906 = vmul.f32 %v2528, %v2897
        %v2907 = vmul.f32 %v2530, %v2897
        %v2908 = vmul.f32 %v2531, %v2897
        %v2909 = vmul.f32 %v2532, %v2897
        %v2910 = vmul.f32 %v2534, %v2897
        %v2911 = vmul.f32 %v2535, %v2897
        %v2912 = vmul.f32 %v2536, %v2897
        %v2913 = vmul.f32 %v2538, %v2897
        %v2914 = vmul.f32 %v2539, %v2897
        %v2915 = vmul.f32 %v2540, %v2897
        %v2916 = vmul.f32 %v2542, %v2897
        %v2917 = vmul.f32 %v2543, %v2897
        %v2918 = vmul.f32 %v2544, %v2897
        %v2919 = vmul.f32 %v2546, %v2897
        %v2920 = vmul.f32 %v2547, %v2897
        %v2921 = vmul.f32 %v2548, %v2897
        %v2922 = vmul.f32 %v2550, %v2897
        %v2923 = vmul.f32 %v2551, %v2897
        %v2924 = vmul.f32 %v2552, %v2897
        %v2925 = vmul.f32 %v2554, %v2897
        %v2926 = vmul.f32 %v2555, %v2897
        %v2927 = vmul.f32 %v2556, %v2897
        %v2928 = vmul.f32 %v2558, %v2897
        %v2929 = vmul.f32 %v2559, %v2897
        %v2930 = vmul.f32 %v2560, %v2897
        %v2931 = vmul.f32 %v2562, %v2897
        %v2932 = vmul.f32 %v2563, %v2897
        %v2933 = vmul.f32 %v2564, %v2897
        %v2934 = vmul.f32 %v2566, %v2897
        %v2935 = vmul.f32 %v2567, %v2897
        %v2936 = vmul.f32 %v2568, %v2897
        %v2937 = vmul.f32 %v2570, %v2897
        %v2938 = vmul.f32 %v2571, %v2897
        %v2939 = vmul.f32 %v2572, %v2897
        %v2940 = vmul.f32 %v2574, %v2897
        %v2941 = vmul.f32 %v2575, %v2897
        %v2942 = vmul.f32 %v2576, %v2897
        %v2943 = vmul.f32 %v2578, %v2897
        %v2944 = vmul.f32 %v2579, %v2897
        %v2945 = vmul.f32 %v2580, %v2897
        %vm2994 = vcmask 1045504
        %v2995 = vrot.slane %v2898, 2
        %v2996 = vrot.slane %v2899, 2
        %v2997 = vsel %vm2994, %v2995, %v2996
        %v2998 = vrot.slane %v2900, 2
        %v2999 = vsel %vm2994, %v2996, %v2998
        %v3000 = vrot.slane %v2901, 2
        %v3001 = vrot.slane %v2902, 2
        %v3002 = vsel %vm2994, %v3000, %v3001
        %v3003 = vrot.slane %v2903, 2
        %v3004 = vsel %vm2994, %v3001, %v3003
        %v3005 = vrot.slane %v2904, 2
        %v3006 = vrot.slane %v2905, 2
        %v3007 = vsel %vm2994, %v3005, %v3006
        %v3008 = vrot.slane %v2906, 2
        %v3009 = vsel %vm2994, %v3006, %v3008
        %v3010 = vrot.slane %v2907, 2
        %v3011 = vrot.slane %v2908, 2
        %v3012 = vsel %vm2994, %v3010, %v3011
        %v3013 = vrot.slane %v2909, 2
        %v3014 = vsel %vm2994, %v3011, %v3013
        %v3015 = vrot.slane %v2910, 2
        %v3016 = vrot.slane %v2911, 2
        %v3017 = vsel %vm2994, %v3015, %v3016
        %v3018 = vrot.slane %v2912, 2
        %v3019 = vsel %vm2994, %v3016, %v3018
        %v3020 = vrot.slane %v2913, 2
        %v3021 = vrot.slane %v2914, 2
        %v3022 = vsel %vm2994, %v3020, %v3021
        %v3023 = vrot.slane %v2915, 2
        %v3024 = vsel %vm2994, %v3021, %v3023
        %v3025 = vrot.slane %v2916, 2
        %v3026 = vrot.slane %v2917, 2
        %v3027 = vsel %vm2994, %v3025, %v3026
        %v3028 = vrot.slane %v2918, 2
        %v3029 = vsel %vm2994, %v3026, %v3028
        %v3030 = vrot.slane %v2919, 2
        %v3031 = vrot.slane %v2920, 2
        %v3032 = vsel %vm2994, %v3030, %v3031
        %v3033 = vrot.slane %v2921, 2
        %v3034 = vsel %vm2994, %v3031, %v3033
        %v3035 = vrot.slane %v2922, 2
        %v3036 = vrot.slane %v2923, 2
        %v3037 = vsel %vm2994, %v3035, %v3036
        %v3038 = vrot.slane %v2924, 2
        %v3039 = vsel %vm2994, %v3036, %v3038
        %v3040 = vrot.slane %v2925, 2
        %v3041 = vrot.slane %v2926, 2
        %v3042 = vsel %vm2994, %v3040, %v3041
        %v3043 = vrot.slane %v2927, 2
        %v3044 = vsel %vm2994, %v3041, %v3043
        %v3045 = vrot.slane %v2928, 2
        %v3046 = vrot.slane %v2929, 2
        %v3047 = vsel %vm2994, %v3045, %v3046
        %v3048 = vrot.slane %v2930, 2
        %v3049 = vsel %vm2994, %v3046, %v3048
        %v3050 = vrot.slane %v2931, 2
        %v3051 = vrot.slane %v2932, 2
        %v3052 = vsel %vm2994, %v3050, %v3051
        %v3053 = vrot.slane %v2933, 2
        %v3054 = vsel %vm2994, %v3051, %v3053
        %v3055 = vrot.slane %v2934, 2
        %v3056 = vrot.slane %v2935, 2
        %v3057 = vsel %vm2994, %v3055, %v3056
        %v3058 = vrot.slane %v2936, 2
        %v3059 = vsel %vm2994, %v3056, %v3058
        %v3060 = vrot.slane %v2937, 2
        %v3061 = vrot.slane %v2938, 2
        %v3062 = vsel %vm2994, %v3060, %v3061
        %v3063 = vrot.slane %v2939, 2
        %v3064 = vsel %vm2994, %v3061, %v3063
        %v3065 = vrot.slane %v2940, 2
        %v3066 = vrot.slane %v2941, 2
        %v3067 = vsel %vm2994, %v3065, %v3066
        %v3068 = vrot.slane %v2942, 2
        %v3069 = vsel %vm2994, %v3066, %v3068
        %v3070 = vrot.slane %v2943, 2
        %v3071 = vrot.slane %v2944, 2
        %v3072 = vsel %vm2994, %v3070, %v3071
        %v3073 = vrot.slane %v2945, 2
        %v3074 = vsel %vm2994, %v3071, %v3073
        %v3123 = vadd.f32 %v2846, %v2995
        %v3124 = vadd.f32 %v2847, %v2997
        %v3125 = vadd.f32 %v2848, %v2999
        %v3126 = vadd.f32 %v2849, %v3000
        %v3127 = vadd.f32 %v2850, %v3002
        %v3128 = vadd.f32 %v2851, %v3004
        %v3129 = vadd.f32 %v2852, %v3005
        %v3130 = vadd.f32 %v2853, %v3007
        %v3131 = vadd.f32 %v2854, %v3009
        %v3132 = vadd.f32 %v2855, %v3010
        %v3133 = vadd.f32 %v2856, %v3012
        %v3134 = vadd.f32 %v2857, %v3014
        %v3135 = vadd.f32 %v2858, %v3015
        %v3136 = vadd.f32 %v2859, %v3017
        %v3137 = vadd.f32 %v2860, %v3019
        %v3138 = vadd.f32 %v2861, %v3020
        %v3139 = vadd.f32 %v2862, %v3022
        %v3140 = vadd.f32 %v2863, %v3024
        %v3141 = vadd.f32 %v2864, %v3025
        %v3142 = vadd.f32 %v2865, %v3027
        %v3143 = vadd.f32 %v2866, %v3029
        %v3144 = vadd.f32 %v2867, %v3030
        %v3145 = vadd.f32 %v2868, %v3032
        %v3146 = vadd.f32 %v2869, %v3034
        %v3147 = vadd.f32 %v2870, %v3035
        %v3148 = vadd.f32 %v2871, %v3037
        %v3149 = vadd.f32 %v2872, %v3039
        %v3150 = vadd.f32 %v2873, %v3040
        %v3151 = vadd.f32 %v2874, %v3042
        %v3152 = vadd.f32 %v2875, %v3044
        %v3153 = vadd.f32 %v2876, %v3045
        %v3154 = vadd.f32 %v2877, %v3047
        %v3155 = vadd.f32 %v2878, %v3049
        %v3156 = vadd.f32 %v2879, %v3050
        %v3157 = vadd.f32 %v2880, %v3052
        %v3158 = vadd.f32 %v2881, %v3054
        %v3159 = vadd.f32 %v2882, %v3055
        %v3160 = vadd.f32 %v2883, %v3057
        %v3161 = vadd.f32 %v2884, %v3059
        %v3162 = vadd.f32 %v2885, %v3060
        %v3163 = vadd.f32 %v2886, %v3062
        %v3164 = vadd.f32 %v2887, %v3064
        %v3165 = vadd.f32 %v2888, %v3065
        %v3166 = vadd.f32 %v2889, %v3067
        %v3167 = vadd.f32 %v2890, %v3069
        %v3168 = vadd.f32 %v2891, %v3070
        %v3169 = vadd.f32 %v2892, %v3072
        %v3170 = vadd.f32 %v2893, %v3074
        %v3171 = vld [vmem:[%s2434] sm:$0xff]
        %v3172 = vld [vmem:[%s2434 + $0x8] sm:$0xff]
        %v3173 = vld [vmem:[%s2434 + $0x10] sm:$0xff]
        %v3174 = vld [vmem:[%s2434 + $0x18] sm:$0xff]
        %v3175 = vld [vmem:[%s2434 + $0x20] sm:$0xff]
        %v3176 = vld [vmem:[%s2434 + $0x28] sm:$0xff]
        %v3177 = vld [vmem:[%s2434 + $0x30] sm:$0xff]
        %v3178 = vld [vmem:[%s2434 + $0x38] sm:$0xff]
        %v3179 = vld [vmem:[%s2434 + $0x40] sm:$0xff]
        %v3180 = vld [vmem:[%s2434 + $0x48] sm:$0xff]
        %v3181 = vld [vmem:[%s2434 + $0x50] sm:$0xff]
        %v3182 = vld [vmem:[%s2434 + $0x58] sm:$0xff]
        %v3183 = vld [vmem:[%s2434 + $0x60] sm:$0xff]
        %v3184 = vld [vmem:[%s2434 + $0x68] sm:$0xff]
        %v3185 = vld [vmem:[%s2434 + $0x70] sm:$0xff]
        %v3186 = vld [vmem:[%s2434 + $0x78] sm:$0xff]
        %v3187 = vld [vmem:[%s2434 + $0x80] sm:$0xff]
        %v3188 = vld [vmem:[%s2434 + $0x88] sm:$0xff]
        %v3189 = vld [vmem:[%s2434 + $0x90] sm:$0xff]
        %v3190 = vld [vmem:[%s2434 + $0x98] sm:$0xff]
        %v3191 = vld [vmem:[%s2434 + $0xa0] sm:$0xff]
        %v3192 = vld [vmem:[%s2434 + $0xa8] sm:$0xff]
        %v3193 = vld [vmem:[%s2434 + $0xb0] sm:$0xff]
        %v3194 = vld [vmem:[%s2434 + $0xb8] sm:$0xff]
        %v3195 = vld [vmem:[%s2434 + $0xc0] sm:$0xff]
        %v3196 = vld [vmem:[%s2434 + $0xc8] sm:$0xff]
        %v3197 = vld [vmem:[%s2434 + $0xd0] sm:$0xff]
        %v3198 = vld [vmem:[%s2434 + $0xd8] sm:$0xff]
        %v3199 = vld [vmem:[%s2434 + $0xe0] sm:$0xff]
        %v3200 = vld [vmem:[%s2434 + $0xe8] sm:$0xff]
        %v3201 = vld [vmem:[%s2434 + $0xf0] sm:$0xff]
        %v3202 = vld [vmem:[%s2434 + $0xf8] sm:$0xff]
        %v3203 = vld [vmem:[%s2434 + $0x100] sm:$0xff]
        %v3204 = vld [vmem:[%s2434 + $0x108] sm:$0xff]
        %v3205 = vld [vmem:[%s2434 + $0x110] sm:$0xff]
        %v3206 = vld [vmem:[%s2434 + $0x118] sm:$0xff]
        %v3207 = vld [vmem:[%s2434 + $0x120] sm:$0xff]
        %v3208 = vld [vmem:[%s2434 + $0x128] sm:$0xff]
        %v3209 = vld [vmem:[%s2434 + $0x130] sm:$0xff]
        %v3210 = vld [vmem:[%s2434 + $0x138] sm:$0xff]
        %v3211 = vld [vmem:[%s2434 + $0x140] sm:$0xff]
        %v3212 = vld [vmem:[%s2434 + $0x148] sm:$0xff]
        %v3213 = vld [vmem:[%s2434 + $0x150] sm:$0xff]
        %v3214 = vld [vmem:[%s2434 + $0x158] sm:$0xff]
        %v3215 = vld [vmem:[%s2434 + $0x160] sm:$0xff]
        %v3216 = vld [vmem:[%s2434 + $0x168] sm:$0xff]
        %v3217 = vld [vmem:[%s2434 + $0x170] sm:$0xff]
        %v3218 = vld [vmem:[%s2434 + $0x178] sm:$0xff]
        %v3219 = vld [vmem:[%s2434 + $0x180] sm:$0xff]
        %v3220 = vld [vmem:[%s2434 + $0x188] sm:$0xff]
        %v3221 = vld [vmem:[%s2434 + $0x190] sm:$0xff]
        %v3222 = vld [vmem:[%s2434 + $0x198] sm:$0xff]
        %v3223 = vld [vmem:[%s2434 + $0x1a0] sm:$0xff]
        %v3224 = vld [vmem:[%s2434 + $0x1a8] sm:$0xff]
        %v3225 = vld [vmem:[%s2434 + $0x1b0] sm:$0xff]
        %v3226 = vld [vmem:[%s2434 + $0x1b8] sm:$0xff]
        %v3227 = vld [vmem:[%s2434 + $0x1c0] sm:$0xff]
        %v3228 = vld [vmem:[%s2434 + $0x1c8] sm:$0xff]
        %v3229 = vld [vmem:[%s2434 + $0x1d0] sm:$0xff]
        %v3230 = vld [vmem:[%s2434 + $0x1d8] sm:$0xff]
        %v3231 = vld [vmem:[%s2434 + $0x1e0] sm:$0xff]
        %v3232 = vld [vmem:[%s2434 + $0x1e8] sm:$0xff]
        %v3233 = vld [vmem:[%s2434 + $0x1f0] sm:$0xff]
        %v3234 = vld [vmem:[%s2434 + $0x1f8] sm:$0xff]
        %v3235 = vlaneseq
        %v3236 = vshrl.u32 %v3235, 7
        %v3237 = vsub.s32 3, %v3236
        %v3238 = vrot.slane %v2508, %v3237
        %v3239 = vmul.f32 %v3171, %v3238
        %v3240 = vmul.f32 %v3172, %v3238
        %v3241 = vmul.f32 %v3173, %v3238
        %v3242 = vmul.f32 %v3175, %v3238
        %v3243 = vmul.f32 %v3176, %v3238
        %v3244 = vmul.f32 %v3177, %v3238
        %v3245 = vmul.f32 %v3179, %v3238
        %v3246 = vmul.f32 %v3180, %v3238
        %v3247 = vmul.f32 %v3181, %v3238
        %v3248 = vmul.f32 %v3183, %v3238
        %v3249 = vmul.f32 %v3184, %v3238
        %v3250 = vmul.f32 %v3185, %v3238
        %v3251 = vmul.f32 %v3187, %v3238
        %v3252 = vmul.f32 %v3188, %v3238
        %v3253 = vmul.f32 %v3189, %v3238
        %v3254 = vmul.f32 %v3191, %v3238
        %v3255 = vmul.f32 %v3192, %v3238
        %v3256 = vmul.f32 %v3193, %v3238
        %v3257 = vmul.f32 %v3195, %v3238
        %v3258 = vmul.f32 %v3196, %v3238
        %v3259 = vmul.f32 %v3197, %v3238
        %v3260 = vmul.f32 %v3199, %v3238
        %v3261 = vmul.f32 %v3200, %v3238
        %v3262 = vmul.f32 %v3201, %v3238
        %v3263 = vmul.f32 %v3203, %v3238
        %v3264 = vmul.f32 %v3204, %v3238
        %v3265 = vmul.f32 %v3205, %v3238
        %v3266 = vmul.f32 %v3207, %v3238
        %v3267 = vmul.f32 %v3208, %v3238
        %v3268 = vmul.f32 %v3209, %v3238
        %v3269 = vmul.f32 %v3211, %v3238
        %v3270 = vmul.f32 %v3212, %v3238
        %v3271 = vmul.f32 %v3213, %v3238
        %v3272 = vmul.f32 %v3215, %v3238
        %v3273 = vmul.f32 %v3216, %v3238
        %v3274 = vmul.f32 %v3217, %v3238
        %v3275 = vmul.f32 %v3219, %v3238
        %v3276 = vmul.f32 %v3220, %v3238
        %v3277 = vmul.f32 %v3221, %v3238
        %v3278 = vmul.f32 %v3223, %v3238
        %v3279 = vmul.f32 %v3224, %v3238
        %v3280 = vmul.f32 %v3225, %v3238
        %v3281 = vmul.f32 %v3227, %v3238
        %v3282 = vmul.f32 %v3228, %v3238
        %v3283 = vmul.f32 %v3229, %v3238
        %v3284 = vmul.f32 %v3231, %v3238
        %v3285 = vmul.f32 %v3232, %v3238
        %v3286 = vmul.f32 %v3233, %v3238
        %v3287 = vadd.f32 %v3123, %v3239
        %v3288 = vadd.f32 %v3124, %v3240
        %v3289 = vadd.f32 %v3125, %v3241
        %v3290 = vadd.f32 %v3126, %v3242
        %v3291 = vadd.f32 %v3127, %v3243
        %v3292 = vadd.f32 %v3128, %v3244
        %v3293 = vadd.f32 %v3129, %v3245
        %v3294 = vadd.f32 %v3130, %v3246
        %v3295 = vadd.f32 %v3131, %v3247
        %v3296 = vadd.f32 %v3132, %v3248
        %v3297 = vadd.f32 %v3133, %v3249
        %v3298 = vadd.f32 %v3134, %v3250
        %v3299 = vadd.f32 %v3135, %v3251
        %v3300 = vadd.f32 %v3136, %v3252
        %v3301 = vadd.f32 %v3137, %v3253
        %v3302 = vadd.f32 %v3138, %v3254
        %v3303 = vadd.f32 %v3139, %v3255
        %v3304 = vadd.f32 %v3140, %v3256
        %v3305 = vadd.f32 %v3141, %v3257
        %v3306 = vadd.f32 %v3142, %v3258
        %v3307 = vadd.f32 %v3143, %v3259
        %v3308 = vadd.f32 %v3144, %v3260
        %v3309 = vadd.f32 %v3145, %v3261
        %v3310 = vadd.f32 %v3146, %v3262
        %v3311 = vadd.f32 %v3147, %v3263
        %v3312 = vadd.f32 %v3148, %v3264
        %v3313 = vadd.f32 %v3149, %v3265
        %v3314 = vadd.f32 %v3150, %v3266
        %v3315 = vadd.f32 %v3151, %v3267
        %v3316 = vadd.f32 %v3152, %v3268
        %v3317 = vadd.f32 %v3153, %v3269
        %v3318 = vadd.f32 %v3154, %v3270
        %v3319 = vadd.f32 %v3155, %v3271
        %v3320 = vadd.f32 %v3156, %v3272
        %v3321 = vadd.f32 %v3157, %v3273
        %v3322 = vadd.f32 %v3158, %v3274
        %v3323 = vadd.f32 %v3159, %v3275
        %v3324 = vadd.f32 %v3160, %v3276
        %v3325 = vadd.f32 %v3161, %v3277
        %v3326 = vadd.f32 %v3162, %v3278
        %v3327 = vadd.f32 %v3163, %v3279
        %v3328 = vadd.f32 %v3164, %v3280
        %v3329 = vadd.f32 %v3165, %v3281
        %v3330 = vadd.f32 %v3166, %v3282
        %v3331 = vadd.f32 %v3167, %v3283
        %v3332 = vadd.f32 %v3168, %v3284
        %v3333 = vadd.f32 %v3169, %v3285
        %v3334 = vadd.f32 %v3170, %v3286
        %v3335 = vlaneseq
        %v3336 = vshrl.u32 %v3335, 7
        %v3337 = vsub.s32 4, %v3336
        %v3338 = vrot.slane %v2508, %v3337
        %v3339 = vmul.f32 %v3172, %v3338
        %v3340 = vmul.f32 %v3173, %v3338
        %v3341 = vmul.f32 %v3176, %v3338
        %v3342 = vmul.f32 %v3177, %v3338
        %v3343 = vmul.f32 %v3180, %v3338
        %v3344 = vmul.f32 %v3181, %v3338
        %v3345 = vmul.f32 %v3184, %v3338
        %v3346 = vmul.f32 %v3185, %v3338
        %v3347 = vmul.f32 %v3188, %v3338
        %v3348 = vmul.f32 %v3189, %v3338
        %v3349 = vmul.f32 %v3192, %v3338
        %v3350 = vmul.f32 %v3193, %v3338
        %v3351 = vmul.f32 %v3196, %v3338
        %v3352 = vmul.f32 %v3197, %v3338
        %v3353 = vmul.f32 %v3200, %v3338
        %v3354 = vmul.f32 %v3201, %v3338
        %v3355 = vmul.f32 %v3204, %v3338
        %v3356 = vmul.f32 %v3205, %v3338
        %v3357 = vmul.f32 %v3208, %v3338
        %v3358 = vmul.f32 %v3209, %v3338
        %v3359 = vmul.f32 %v3212, %v3338
        %v3360 = vmul.f32 %v3213, %v3338
        %v3361 = vmul.f32 %v3216, %v3338
        %v3362 = vmul.f32 %v3217, %v3338
        %v3363 = vmul.f32 %v3220, %v3338
        %v3364 = vmul.f32 %v3221, %v3338
        %v3365 = vmul.f32 %v3224, %v3338
        %v3366 = vmul.f32 %v3225, %v3338
        %v3367 = vmul.f32 %v3228, %v3338
        %v3368 = vmul.f32 %v3229, %v3338
        %v3369 = vmul.f32 %v3232, %v3338
        %v3370 = vmul.f32 %v3233, %v3338
        %v3403 = vrot.slane %v3339, 1
        %v3404 = vrot.slane %v3340, 1
        %v3405 = vsel %vm2749, %v3403, %v3404
        %v3406 = vrot.slane %v3341, 1
        %v3407 = vrot.slane %v3342, 1
        %v3408 = vsel %vm2749, %v3406, %v3407
        %v3409 = vrot.slane %v3343, 1
        %v3410 = vrot.slane %v3344, 1
        %v3411 = vsel %vm2749, %v3409, %v3410
        %v3412 = vrot.slane %v3345, 1
        %v3413 = vrot.slane %v3346, 1
        %v3414 = vsel %vm2749, %v3412, %v3413
        %v3415 = vrot.slane %v3347, 1
        %v3416 = vrot.slane %v3348, 1
        %v3417 = vsel %vm2749, %v3415, %v3416
        %v3418 = vrot.slane %v3349, 1
        %v3419 = vrot.slane %v3350, 1
        %v3420 = vsel %vm2749, %v3418, %v3419
        %v3421 = vrot.slane %v3351, 1
        %v3422 = vrot.slane %v3352, 1
        %v3423 = vsel %vm2749, %v3421, %v3422
        %v3424 = vrot.slane %v3353, 1
        %v3425 = vrot.slane %v3354, 1
        %v3426 = vsel %vm2749, %v3424, %v3425
        %v3427 = vrot.slane %v3355, 1
        %v3428 = vrot.slane %v3356, 1
        %v3429 = vsel %vm2749, %v3427, %v3428
        %v3430 = vrot.slane %v3357, 1
        %v3431 = vrot.slane %v3358, 1
        %v3432 = vsel %vm2749, %v3430, %v3431
        %v3433 = vrot.slane %v3359, 1
        %v3434 = vrot.slane %v3360, 1
        %v3435 = vsel %vm2749, %v3433, %v3434
        %v3436 = vrot.slane %v3361, 1
        %v3437 = vrot.slane %v3362, 1
        %v3438 = vsel %vm2749, %v3436, %v3437
        %v3439 = vrot.slane %v3363, 1
        %v3440 = vrot.slane %v3364, 1
        %v3441 = vsel %vm2749, %v3439, %v3440
        %v3442 = vrot.slane %v3365, 1
        %v3443 = vrot.slane %v3366, 1
        %v3444 = vsel %vm2749, %v3442, %v3443
        %v3445 = vrot.slane %v3367, 1
        %v3446 = vrot.slane %v3368, 1
        %v3447 = vsel %vm2749, %v3445, %v3446
        %v3448 = vrot.slane %v3369, 1
        %v3449 = vrot.slane %v3370, 1
        %v3450 = vsel %vm2749, %v3448, %v3449
        %v3499 = vadd.f32 %v3287, %v3403
        %v3500 = vadd.f32 %v3288, %v3405
        %v3501 = vadd.f32 %v3289, %v3404
        %v3502 = vadd.f32 %v3290, %v3406
        %v3503 = vadd.f32 %v3291, %v3408
        %v3504 = vadd.f32 %v3292, %v3407
        %v3505 = vadd.f32 %v3293, %v3409
        %v3506 = vadd.f32 %v3294, %v3411
        %v3507 = vadd.f32 %v3295, %v3410
        %v3508 = vadd.f32 %v3296, %v3412
        %v3509 = vadd.f32 %v3297, %v3414
        %v3510 = vadd.f32 %v3298, %v3413
        %v3511 = vadd.f32 %v3299, %v3415
        %v3512 = vadd.f32 %v3300, %v3417
        %v3513 = vadd.f32 %v3301, %v3416
        %v3514 = vadd.f32 %v3302, %v3418
        %v3515 = vadd.f32 %v3303, %v3420
        %v3516 = vadd.f32 %v3304, %v3419
        %v3517 = vadd.f32 %v3305, %v3421
        %v3518 = vadd.f32 %v3306, %v3423
        %v3519 = vadd.f32 %v3307, %v3422
        %v3520 = vadd.f32 %v3308, %v3424
        %v3521 = vadd.f32 %v3309, %v3426
        %v3522 = vadd.f32 %v3310, %v3425
        %v3523 = vadd.f32 %v3311, %v3427
        %v3524 = vadd.f32 %v3312, %v3429
        %v3525 = vadd.f32 %v3313, %v3428
        %v3526 = vadd.f32 %v3314, %v3430
        %v3527 = vadd.f32 %v3315, %v3432
        %v3528 = vadd.f32 %v3316, %v3431
        %v3529 = vadd.f32 %v3317, %v3433
        %v3530 = vadd.f32 %v3318, %v3435
        %v3531 = vadd.f32 %v3319, %v3434
        %v3532 = vadd.f32 %v3320, %v3436
        %v3533 = vadd.f32 %v3321, %v3438
        %v3534 = vadd.f32 %v3322, %v3437
        %v3535 = vadd.f32 %v3323, %v3439
        %v3536 = vadd.f32 %v3324, %v3441
        %v3537 = vadd.f32 %v3325, %v3440
        %v3538 = vadd.f32 %v3326, %v3442
        %v3539 = vadd.f32 %v3327, %v3444
        %v3540 = vadd.f32 %v3328, %v3443
        %v3541 = vadd.f32 %v3329, %v3445
        %v3542 = vadd.f32 %v3330, %v3447
        %v3543 = vadd.f32 %v3331, %v3446
        %v3544 = vadd.f32 %v3332, %v3448
        %v3545 = vadd.f32 %v3333, %v3450
        %v3546 = vadd.f32 %v3334, %v3449
        %v3547 = vlaneseq
        %v3548 = vshrl.u32 %v3547, 7
        %v3549 = vsub.s32 5, %v3548
        %v3550 = vrot.slane %v2508, %v3549
        %v3551 = vmul.f32 %v3172, %v3550
        %v3552 = vmul.f32 %v3173, %v3550
        %v3553 = vmul.f32 %v3174, %v3550
        %v3554 = vmul.f32 %v3176, %v3550
        %v3555 = vmul.f32 %v3177, %v3550
        %v3556 = vmul.f32 %v3178, %v3550
        %v3557 = vmul.f32 %v3180, %v3550
        %v3558 = vmul.f32 %v3181, %v3550
        %v3559 = vmul.f32 %v3182, %v3550
        %v3560 = vmul.f32 %v3184, %v3550
        %v3561 = vmul.f32 %v3185, %v3550
        %v3562 = vmul.f32 %v3186, %v3550
        %v3563 = vmul.f32 %v3188, %v3550
        %v3564 = vmul.f32 %v3189, %v3550
        %v3565 = vmul.f32 %v3190, %v3550
        %v3566 = vmul.f32 %v3192, %v3550
        %v3567 = vmul.f32 %v3193, %v3550
        %v3568 = vmul.f32 %v3194, %v3550
        %v3569 = vmul.f32 %v3196, %v3550
        %v3570 = vmul.f32 %v3197, %v3550
        %v3571 = vmul.f32 %v3198, %v3550
        %v3572 = vmul.f32 %v3200, %v3550
        %v3573 = vmul.f32 %v3201, %v3550
        %v3574 = vmul.f32 %v3202, %v3550
        %v3575 = vmul.f32 %v3204, %v3550
        %v3576 = vmul.f32 %v3205, %v3550
        %v3577 = vmul.f32 %v3206, %v3550
        %v3578 = vmul.f32 %v3208, %v3550
        %v3579 = vmul.f32 %v3209, %v3550
        %v3580 = vmul.f32 %v3210, %v3550
        %v3581 = vmul.f32 %v3212, %v3550
        %v3582 = vmul.f32 %v3213, %v3550
        %v3583 = vmul.f32 %v3214, %v3550
        %v3584 = vmul.f32 %v3216, %v3550
        %v3585 = vmul.f32 %v3217, %v3550
        %v3586 = vmul.f32 %v3218, %v3550
        %v3587 = vmul.f32 %v3220, %v3550
        %v3588 = vmul.f32 %v3221, %v3550
        %v3589 = vmul.f32 %v3222, %v3550
        %v3590 = vmul.f32 %v3224, %v3550
        %v3591 = vmul.f32 %v3225, %v3550
        %v3592 = vmul.f32 %v3226, %v3550
        %v3593 = vmul.f32 %v3228, %v3550
        %v3594 = vmul.f32 %v3229, %v3550
        %v3595 = vmul.f32 %v3230, %v3550
        %v3596 = vmul.f32 %v3232, %v3550
        %v3597 = vmul.f32 %v3233, %v3550
        %v3598 = vmul.f32 %v3234, %v3550
        %v3647 = vrot.slane %v3551, 2
        %v3648 = vrot.slane %v3552, 2
        %v3649 = vsel %vm2994, %v3647, %v3648
        %v3650 = vrot.slane %v3553, 2
        %v3651 = vsel %vm2994, %v3648, %v3650
        %v3652 = vrot.slane %v3554, 2
        %v3653 = vrot.slane %v3555, 2
        %v3654 = vsel %vm2994, %v3652, %v3653
        %v3655 = vrot.slane %v3556, 2
        %v3656 = vsel %vm2994, %v3653, %v3655
        %v3657 = vrot.slane %v3557, 2
        %v3658 = vrot.slane %v3558, 2
        %v3659 = vsel %vm2994, %v3657, %v3658
        %v3660 = vrot.slane %v3559, 2
        %v3661 = vsel %vm2994, %v3658, %v3660
        %v3662 = vrot.slane %v3560, 2
        %v3663 = vrot.slane %v3561, 2
        %v3664 = vsel %vm2994, %v3662, %v3663
        %v3665 = vrot.slane %v3562, 2
        %v3666 = vsel %vm2994, %v3663, %v3665
        %v3667 = vrot.slane %v3563, 2
        %v3668 = vrot.slane %v3564, 2
        %v3669 = vsel %vm2994, %v3667, %v3668
        %v3670 = vrot.slane %v3565, 2
        %v3671 = vsel %vm2994, %v3668, %v3670
        %v3672 = vrot.slane %v3566, 2
        %v3673 = vrot.slane %v3567, 2
        %v3674 = vsel %vm2994, %v3672, %v3673
        %v3675 = vrot.slane %v3568, 2
        %v3676 = vsel %vm2994, %v3673, %v3675
        %v3677 = vrot.slane %v3569, 2
        %v3678 = vrot.slane %v3570, 2
        %v3679 = vsel %vm2994, %v3677, %v3678
        %v3680 = vrot.slane %v3571, 2
        %v3681 = vsel %vm2994, %v3678, %v3680
        %v3682 = vrot.slane %v3572, 2
        %v3683 = vrot.slane %v3573, 2
        %v3684 = vsel %vm2994, %v3682, %v3683
        %v3685 = vrot.slane %v3574, 2
        %v3686 = vsel %vm2994, %v3683, %v3685
        %v3687 = vrot.slane %v3575, 2
        %v3688 = vrot.slane %v3576, 2
        %v3689 = vsel %vm2994, %v3687, %v3688
        %v3690 = vrot.slane %v3577, 2
        %v3691 = vsel %vm2994, %v3688, %v3690
        %v3692 = vrot.slane %v3578, 2
        %v3693 = vrot.slane %v3579, 2
        %v3694 = vsel %vm2994, %v3692, %v3693
        %v3695 = vrot.slane %v3580, 2
        %v3696 = vsel %vm2994, %v3693, %v3695
        %v3697 = vrot.slane %v3581, 2
        %v3698 = vrot.slane %v3582, 2
        %v3699 = vsel %vm2994, %v3697, %v3698
        %v3700 = vrot.slane %v3583, 2
        %v3701 = vsel %vm2994, %v3698, %v3700
        %v3702 = vrot.slane %v3584, 2
        %v3703 = vrot.slane %v3585, 2
        %v3704 = vsel %vm2994, %v3702, %v3703
        %v3705 = vrot.slane %v3586, 2
        %v3706 = vsel %vm2994, %v3703, %v3705
        %v3707 = vrot.slane %v3587, 2
        %v3708 = vrot.slane %v3588, 2
        %v3709 = vsel %vm2994, %v3707, %v3708
        %v3710 = vrot.slane %v3589, 2
        %v3711 = vsel %vm2994, %v3708, %v3710
        %v3712 = vrot.slane %v3590, 2
        %v3713 = vrot.slane %v3591, 2
        %v3714 = vsel %vm2994, %v3712, %v3713
        %v3715 = vrot.slane %v3592, 2
        %v3716 = vsel %vm2994, %v3713, %v3715
        %v3717 = vrot.slane %v3593, 2
        %v3718 = vrot.slane %v3594, 2
        %v3719 = vsel %vm2994, %v3717, %v3718
        %v3720 = vrot.slane %v3595, 2
        %v3721 = vsel %vm2994, %v3718, %v3720
        %v3722 = vrot.slane %v3596, 2
        %v3723 = vrot.slane %v3597, 2
        %v3724 = vsel %vm2994, %v3722, %v3723
        %v3725 = vrot.slane %v3598, 2
        %v3726 = vsel %vm2994, %v3723, %v3725
        %v3775 = vadd.f32 %v3499, %v3647
        %v3776 = vadd.f32 %v3500, %v3649
        %v3777 = vadd.f32 %v3501, %v3651
        %v3778 = vadd.f32 %v3502, %v3652
        %v3779 = vadd.f32 %v3503, %v3654
        %v3780 = vadd.f32 %v3504, %v3656
        %v3781 = vadd.f32 %v3505, %v3657
        %v3782 = vadd.f32 %v3506, %v3659
        %v3783 = vadd.f32 %v3507, %v3661
        %v3784 = vadd.f32 %v3508, %v3662
        %v3785 = vadd.f32 %v3509, %v3664
        %v3786 = vadd.f32 %v3510, %v3666
        %v3787 = vadd.f32 %v3511, %v3667
        %v3788 = vadd.f32 %v3512, %v3669
        %v3789 = vadd.f32 %v3513, %v3671
        %v3790 = vadd.f32 %v3514, %v3672
        %v3791 = vadd.f32 %v3515, %v3674
        %v3792 = vadd.f32 %v3516, %v3676
        %v3793 = vadd.f32 %v3517, %v3677
        %v3794 = vadd.f32 %v3518, %v3679
        %v3795 = vadd.f32 %v3519, %v3681
        %v3796 = vadd.f32 %v3520, %v3682
        %v3797 = vadd.f32 %v3521, %v3684
        %v3798 = vadd.f32 %v3522, %v3686
        %v3799 = vadd.f32 %v3523, %v3687
        %v3800 = vadd.f32 %v3524, %v3689
        %v3801 = vadd.f32 %v3525, %v3691
        %v3802 = vadd.f32 %v3526, %v3692
        %v3803 = vadd.f32 %v3527, %v3694
        %v3804 = vadd.f32 %v3528, %v3696
        %v3805 = vadd.f32 %v3529, %v3697
        %v3806 = vadd.f32 %v3530, %v3699
        %v3807 = vadd.f32 %v3531, %v3701
        %v3808 = vadd.f32 %v3532, %v3702
        %v3809 = vadd.f32 %v3533, %v3704
        %v3810 = vadd.f32 %v3534, %v3706
        %v3811 = vadd.f32 %v3535, %v3707
        %v3812 = vadd.f32 %v3536, %v3709
        %v3813 = vadd.f32 %v3537, %v3711
        %v3814 = vadd.f32 %v3538, %v3712
        %v3815 = vadd.f32 %v3539, %v3714
        %v3816 = vadd.f32 %v3540, %v3716
        %v3817 = vadd.f32 %v3541, %v3717
        %v3818 = vadd.f32 %v3542, %v3719
        %v3819 = vadd.f32 %v3543, %v3721
        %v3820 = vadd.f32 %v3544, %v3722
        %v3821 = vadd.f32 %v3545, %v3724
        %v3822 = vadd.f32 %v3546, %v3726
        %s3823 = scalar_lea.vmem [#allocation2], 64
        %v3824 = vld [vmem:[%s3823] sm:$0xff]
        %v3825 = vld [vmem:[%s3823 + $0x8] sm:$0xff]
        %v3826 = vld [vmem:[%s3823 + $0x10] sm:$0xff]
        %v3827 = vld [vmem:[%s3823 + $0x18] sm:$0xff]
        %v3828 = vld [vmem:[%s3823 + $0x20] sm:$0xff]
        %v3829 = vld [vmem:[%s3823 + $0x28] sm:$0xff]
        %v3830 = vld [vmem:[%s3823 + $0x30] sm:$0xff]
        %v3831 = vld [vmem:[%s3823 + $0x38] sm:$0xff]
        %v3832 = vld [vmem:[%s3823 + $0x40] sm:$0xff]
        %v3833 = vld [vmem:[%s3823 + $0x48] sm:$0xff]
        %v3834 = vld [vmem:[%s3823 + $0x50] sm:$0xff]
        %v3835 = vld [vmem:[%s3823 + $0x58] sm:$0xff]
        %v3836 = vld [vmem:[%s3823 + $0x60] sm:$0xff]
        %v3837 = vld [vmem:[%s3823 + $0x68] sm:$0xff]
        %v3838 = vld [vmem:[%s3823 + $0x70] sm:$0xff]
        %v3839 = vld [vmem:[%s3823 + $0x78] sm:$0xff]
        %v3840 = vld [vmem:[%s3823 + $0x80] sm:$0xff]
        %v3841 = vld [vmem:[%s3823 + $0x88] sm:$0xff]
        %v3842 = vld [vmem:[%s3823 + $0x90] sm:$0xff]
        %v3843 = vld [vmem:[%s3823 + $0x98] sm:$0xff]
        %v3844 = vld [vmem:[%s3823 + $0xa0] sm:$0xff]
        %v3845 = vld [vmem:[%s3823 + $0xa8] sm:$0xff]
        %v3846 = vld [vmem:[%s3823 + $0xb0] sm:$0xff]
        %v3847 = vld [vmem:[%s3823 + $0xb8] sm:$0xff]
        %v3848 = vld [vmem:[%s3823 + $0xc0] sm:$0xff]
        %v3849 = vld [vmem:[%s3823 + $0xc8] sm:$0xff]
        %v3850 = vld [vmem:[%s3823 + $0xd0] sm:$0xff]
        %v3851 = vld [vmem:[%s3823 + $0xd8] sm:$0xff]
        %v3852 = vld [vmem:[%s3823 + $0xe0] sm:$0xff]
        %v3853 = vld [vmem:[%s3823 + $0xe8] sm:$0xff]
        %v3854 = vld [vmem:[%s3823 + $0xf0] sm:$0xff]
        %v3855 = vld [vmem:[%s3823 + $0xf8] sm:$0xff]
        %v3856 = vld [vmem:[%s3823 + $0x100] sm:$0xff]
        %v3857 = vld [vmem:[%s3823 + $0x108] sm:$0xff]
        %v3858 = vld [vmem:[%s3823 + $0x110] sm:$0xff]
        %v3859 = vld [vmem:[%s3823 + $0x118] sm:$0xff]
        %v3860 = vld [vmem:[%s3823 + $0x120] sm:$0xff]
        %v3861 = vld [vmem:[%s3823 + $0x128] sm:$0xff]
        %v3862 = vld [vmem:[%s3823 + $0x130] sm:$0xff]
        %v3863 = vld [vmem:[%s3823 + $0x138] sm:$0xff]
        %v3864 = vld [vmem:[%s3823 + $0x140] sm:$0xff]
        %v3865 = vld [vmem:[%s3823 + $0x148] sm:$0xff]
        %v3866 = vld [vmem:[%s3823 + $0x150] sm:$0xff]
        %v3867 = vld [vmem:[%s3823 + $0x158] sm:$0xff]
        %v3868 = vld [vmem:[%s3823 + $0x160] sm:$0xff]
        %v3869 = vld [vmem:[%s3823 + $0x168] sm:$0xff]
        %v3870 = vld [vmem:[%s3823 + $0x170] sm:$0xff]
        %v3871 = vld [vmem:[%s3823 + $0x178] sm:$0xff]
        %v3872 = vld [vmem:[%s3823 + $0x180] sm:$0xff]
        %v3873 = vld [vmem:[%s3823 + $0x188] sm:$0xff]
        %v3874 = vld [vmem:[%s3823 + $0x190] sm:$0xff]
        %v3875 = vld [vmem:[%s3823 + $0x198] sm:$0xff]
        %v3876 = vld [vmem:[%s3823 + $0x1a0] sm:$0xff]
        %v3877 = vld [vmem:[%s3823 + $0x1a8] sm:$0xff]
        %v3878 = vld [vmem:[%s3823 + $0x1b0] sm:$0xff]
        %v3879 = vld [vmem:[%s3823 + $0x1b8] sm:$0xff]
        %v3880 = vld [vmem:[%s3823 + $0x1c0] sm:$0xff]
        %v3881 = vld [vmem:[%s3823 + $0x1c8] sm:$0xff]
        %v3882 = vld [vmem:[%s3823 + $0x1d0] sm:$0xff]
        %v3883 = vld [vmem:[%s3823 + $0x1d8] sm:$0xff]
        %v3884 = vld [vmem:[%s3823 + $0x1e0] sm:$0xff]
        %v3885 = vld [vmem:[%s3823 + $0x1e8] sm:$0xff]
        %v3886 = vld [vmem:[%s3823 + $0x1f0] sm:$0xff]
        %v3887 = vld [vmem:[%s3823 + $0x1f8] sm:$0xff]
        %v3888 = vlaneseq
        %v3889 = vshrl.u32 %v3888, 7
        %v3890 = vsub.s32 6, %v3889
        %v3891 = vrot.slane %v2508, %v3890
        %v3892 = vmul.f32 %v3824, %v3891
        %v3893 = vmul.f32 %v3825, %v3891
        %v3894 = vmul.f32 %v3826, %v3891
        %v3895 = vmul.f32 %v3828, %v3891
        %v3896 = vmul.f32 %v3829, %v3891
        %v3897 = vmul.f32 %v3830, %v3891
        %v3898 = vmul.f32 %v3832, %v3891
        %v3899 = vmul.f32 %v3833, %v3891
        %v3900 = vmul.f32 %v3834, %v3891
        %v3901 = vmul.f32 %v3836, %v3891
        %v3902 = vmul.f32 %v3837, %v3891
        %v3903 = vmul.f32 %v3838, %v3891
        %v3904 = vmul.f32 %v3840, %v3891
        %v3905 = vmul.f32 %v3841, %v3891
        %v3906 = vmul.f32 %v3842, %v3891
        %v3907 = vmul.f32 %v3844, %v3891
        %v3908 = vmul.f32 %v3845, %v3891
        %v3909 = vmul.f32 %v3846, %v3891
        %v3910 = vmul.f32 %v3848, %v3891
        %v3911 = vmul.f32 %v3849, %v3891
        %v3912 = vmul.f32 %v3850, %v3891
        %v3913 = vmul.f32 %v3852, %v3891
        %v3914 = vmul.f32 %v3853, %v3891
        %v3915 = vmul.f32 %v3854, %v3891
        %v3916 = vmul.f32 %v3856, %v3891
        %v3917 = vmul.f32 %v3857, %v3891
        %v3918 = vmul.f32 %v3858, %v3891
        %v3919 = vmul.f32 %v3860, %v3891
        %v3920 = vmul.f32 %v3861, %v3891
        %v3921 = vmul.f32 %v3862, %v3891
        %v3922 = vmul.f32 %v3864, %v3891
        %v3923 = vmul.f32 %v3865, %v3891
        %v3924 = vmul.f32 %v3866, %v3891
        %v3925 = vmul.f32 %v3868, %v3891
        %v3926 = vmul.f32 %v3869, %v3891
        %v3927 = vmul.f32 %v3870, %v3891
        %v3928 = vmul.f32 %v3872, %v3891
        %v3929 = vmul.f32 %v3873, %v3891
        %v3930 = vmul.f32 %v3874, %v3891
        %v3931 = vmul.f32 %v3876, %v3891
        %v3932 = vmul.f32 %v3877, %v3891
        %v3933 = vmul.f32 %v3878, %v3891
        %v3934 = vmul.f32 %v3880, %v3891
        %v3935 = vmul.f32 %v3881, %v3891
        %v3936 = vmul.f32 %v3882, %v3891
        %v3937 = vmul.f32 %v3884, %v3891
        %v3938 = vmul.f32 %v3885, %v3891
        %v3939 = vmul.f32 %v3886, %v3891
        %v3940 = vadd.f32 %v3775, %v3892
        %v3941 = vadd.f32 %v3776, %v3893
        %v3942 = vadd.f32 %v3777, %v3894
        %v3943 = vadd.f32 %v3778, %v3895
        %v3944 = vadd.f32 %v3779, %v3896
        %v3945 = vadd.f32 %v3780, %v3897
        %v3946 = vadd.f32 %v3781, %v3898
        %v3947 = vadd.f32 %v3782, %v3899
        %v3948 = vadd.f32 %v3783, %v3900
        %v3949 = vadd.f32 %v3784, %v3901
        %v3950 = vadd.f32 %v3785, %v3902
        %v3951 = vadd.f32 %v3786, %v3903
        %v3952 = vadd.f32 %v3787, %v3904
        %v3953 = vadd.f32 %v3788, %v3905
        %v3954 = vadd.f32 %v3789, %v3906
        %v3955 = vadd.f32 %v3790, %v3907
        %v3956 = vadd.f32 %v3791, %v3908
        %v3957 = vadd.f32 %v3792, %v3909
        %v3958 = vadd.f32 %v3793, %v3910
        %v3959 = vadd.f32 %v3794, %v3911
        %v3960 = vadd.f32 %v3795, %v3912
        %v3961 = vadd.f32 %v3796, %v3913
        %v3962 = vadd.f32 %v3797, %v3914
        %v3963 = vadd.f32 %v3798, %v3915
        %v3964 = vadd.f32 %v3799, %v3916
        %v3965 = vadd.f32 %v3800, %v3917
        %v3966 = vadd.f32 %v3801, %v3918
        %v3967 = vadd.f32 %v3802, %v3919
        %v3968 = vadd.f32 %v3803, %v3920
        %v3969 = vadd.f32 %v3804, %v3921
        %v3970 = vadd.f32 %v3805, %v3922
        %v3971 = vadd.f32 %v3806, %v3923
        %v3972 = vadd.f32 %v3807, %v3924
        %v3973 = vadd.f32 %v3808, %v3925
        %v3974 = vadd.f32 %v3809, %v3926
        %v3975 = vadd.f32 %v3810, %v3927
        %v3976 = vadd.f32 %v3811, %v3928
        %v3977 = vadd.f32 %v3812, %v3929
        %v3978 = vadd.f32 %v3813, %v3930
        %v3979 = vadd.f32 %v3814, %v3931
        %v3980 = vadd.f32 %v3815, %v3932
        %v3981 = vadd.f32 %v3816, %v3933
        %v3982 = vadd.f32 %v3817, %v3934
        %v3983 = vadd.f32 %v3818, %v3935
        %v3984 = vadd.f32 %v3819, %v3936
        %v3985 = vadd.f32 %v3820, %v3937
        %v3986 = vadd.f32 %v3821, %v3938
        %v3987 = vadd.f32 %v3822, %v3939
        %v3988 = vlaneseq
        %v3989 = vshrl.u32 %v3988, 7
        %v3990 = vsub.s32 7, %v3989
        %v3991 = vrot.slane %v2508, %v3990
        %v3992 = vmul.f32 %v3825, %v3991
        %v3993 = vmul.f32 %v3826, %v3991
        %v3994 = vmul.f32 %v3829, %v3991
        %v3995 = vmul.f32 %v3830, %v3991
        %v3996 = vmul.f32 %v3833, %v3991
        %v3997 = vmul.f32 %v3834, %v3991
        %v3998 = vmul.f32 %v3837, %v3991
        %v3999 = vmul.f32 %v3838, %v3991
        %v4000 = vmul.f32 %v3841, %v3991
        %v4001 = vmul.f32 %v3842, %v3991
        %v4002 = vmul.f32 %v3845, %v3991
        %v4003 = vmul.f32 %v3846, %v3991
        %v4004 = vmul.f32 %v3849, %v3991
        %v4005 = vmul.f32 %v3850, %v3991
        %v4006 = vmul.f32 %v3853, %v3991
        %v4007 = vmul.f32 %v3854, %v3991
        %v4008 = vmul.f32 %v3857, %v3991
        %v4009 = vmul.f32 %v3858, %v3991
        %v4010 = vmul.f32 %v3861, %v3991
        %v4011 = vmul.f32 %v3862, %v3991
        %v4012 = vmul.f32 %v3865, %v3991
        %v4013 = vmul.f32 %v3866, %v3991
        %v4014 = vmul.f32 %v3869, %v3991
        %v4015 = vmul.f32 %v3870, %v3991
        %v4016 = vmul.f32 %v3873, %v3991
        %v4017 = vmul.f32 %v3874, %v3991
        %v4018 = vmul.f32 %v3877, %v3991
        %v4019 = vmul.f32 %v3878, %v3991
        %v4020 = vmul.f32 %v3881, %v3991
        %v4021 = vmul.f32 %v3882, %v3991
        %v4022 = vmul.f32 %v3885, %v3991
        %v4023 = vmul.f32 %v3886, %v3991
        %v4056 = vrot.slane %v3992, 1
        %v4057 = vrot.slane %v3993, 1
        %v4058 = vsel %vm2749, %v4056, %v4057
        %v4059 = vrot.slane %v3994, 1
        %v4060 = vrot.slane %v3995, 1
        %v4061 = vsel %vm2749, %v4059, %v4060
        %v4062 = vrot.slane %v3996, 1
        %v4063 = vrot.slane %v3997, 1
        %v4064 = vsel %vm2749, %v4062, %v4063
        %v4065 = vrot.slane %v3998, 1
        %v4066 = vrot.slane %v3999, 1
        %v4067 = vsel %vm2749, %v4065, %v4066
        %v4068 = vrot.slane %v4000, 1
        %v4069 = vrot.slane %v4001, 1
        %v4070 = vsel %vm2749, %v4068, %v4069
        %v4071 = vrot.slane %v4002, 1
        %v4072 = vrot.slane %v4003, 1
        %v4073 = vsel %vm2749, %v4071, %v4072
        %v4074 = vrot.slane %v4004, 1
        %v4075 = vrot.slane %v4005, 1
        %v4076 = vsel %vm2749, %v4074, %v4075
        %v4077 = vrot.slane %v4006, 1
        %v4078 = vrot.slane %v4007, 1
        %v4079 = vsel %vm2749, %v4077, %v4078
        %v4080 = vrot.slane %v4008, 1
        %v4081 = vrot.slane %v4009, 1
        %v4082 = vsel %vm2749, %v4080, %v4081
        %v4083 = vrot.slane %v4010, 1
        %v4084 = vrot.slane %v4011, 1
        %v4085 = vsel %vm2749, %v4083, %v4084
        %v4086 = vrot.slane %v4012, 1
        %v4087 = vrot.slane %v4013, 1
        %v4088 = vsel %vm2749, %v4086, %v4087
        %v4089 = vrot.slane %v4014, 1
        %v4090 = vrot.slane %v4015, 1
        %v4091 = vsel %vm2749, %v4089, %v4090
        %v4092 = vrot.slane %v4016, 1
        %v4093 = vrot.slane %v4017, 1
        %v4094 = vsel %vm2749, %v4092, %v4093
        %v4095 = vrot.slane %v4018, 1
        %v4096 = vrot.slane %v4019, 1
        %v4097 = vsel %vm2749, %v4095, %v4096
        %v4098 = vrot.slane %v4020, 1
        %v4099 = vrot.slane %v4021, 1
        %v4100 = vsel %vm2749, %v4098, %v4099
        %v4101 = vrot.slane %v4022, 1
        %v4102 = vrot.slane %v4023, 1
        %v4103 = vsel %vm2749, %v4101, %v4102
        %v4152 = vadd.f32 %v3940, %v4056
        %v4153 = vadd.f32 %v3941, %v4058
        %v4154 = vadd.f32 %v3942, %v4057
        %v4155 = vadd.f32 %v3943, %v4059
        %v4156 = vadd.f32 %v3944, %v4061
        %v4157 = vadd.f32 %v3945, %v4060
        %v4158 = vadd.f32 %v3946, %v4062
        %v4159 = vadd.f32 %v3947, %v4064
        %v4160 = vadd.f32 %v3948, %v4063
        %v4161 = vadd.f32 %v3949, %v4065
        %v4162 = vadd.f32 %v3950, %v4067
        %v4163 = vadd.f32 %v3951, %v4066
        %v4164 = vadd.f32 %v3952, %v4068
        %v4165 = vadd.f32 %v3953, %v4070
        %v4166 = vadd.f32 %v3954, %v4069
        %v4167 = vadd.f32 %v3955, %v4071
        %v4168 = vadd.f32 %v3956, %v4073
        %v4169 = vadd.f32 %v3957, %v4072
        %v4170 = vadd.f32 %v3958, %v4074
        %v4171 = vadd.f32 %v3959, %v4076
        %v4172 = vadd.f32 %v3960, %v4075
        %v4173 = vadd.f32 %v3961, %v4077
        %v4174 = vadd.f32 %v3962, %v4079
        %v4175 = vadd.f32 %v3963, %v4078
        %v4176 = vadd.f32 %v3964, %v4080
        %v4177 = vadd.f32 %v3965, %v4082
        %v4178 = vadd.f32 %v3966, %v4081
        %v4179 = vadd.f32 %v3967, %v4083
        %v4180 = vadd.f32 %v3968, %v4085
        %v4181 = vadd.f32 %v3969, %v4084
        %v4182 = vadd.f32 %v3970, %v4086
        %v4183 = vadd.f32 %v3971, %v4088
        %v4184 = vadd.f32 %v3972, %v4087
        %v4185 = vadd.f32 %v3973, %v4089
        %v4186 = vadd.f32 %v3974, %v4091
        %v4187 = vadd.f32 %v3975, %v4090
        %v4188 = vadd.f32 %v3976, %v4092
        %v4189 = vadd.f32 %v3977, %v4094
        %v4190 = vadd.f32 %v3978, %v4093
        %v4191 = vadd.f32 %v3979, %v4095
        %v4192 = vadd.f32 %v3980, %v4097
        %v4193 = vadd.f32 %v3981, %v4096
        %v4194 = vadd.f32 %v3982, %v4098
        %v4195 = vadd.f32 %v3983, %v4100
        %v4196 = vadd.f32 %v3984, %v4099
        %v4197 = vadd.f32 %v3985, %v4101
        %v4198 = vadd.f32 %v3986, %v4103
        %v4199 = vadd.f32 %v3987, %v4102
        %v4200 = vlaneseq
        %v4201 = vshrl.u32 %v4200, 7
        %v4202 = vsub.s32 0, %v4201
        %v4203 = vrot.slane %v2509, %v4202
        %v4204 = vmul.f32 %v3825, %v4203
        %v4205 = vmul.f32 %v3826, %v4203
        %v4206 = vmul.f32 %v3827, %v4203
        %v4207 = vmul.f32 %v3829, %v4203
        %v4208 = vmul.f32 %v3830, %v4203
        %v4209 = vmul.f32 %v3831, %v4203
        %v4210 = vmul.f32 %v3833, %v4203
        %v4211 = vmul.f32 %v3834, %v4203
        %v4212 = vmul.f32 %v3835, %v4203
        %v4213 = vmul.f32 %v3837, %v4203
        %v4214 = vmul.f32 %v3838, %v4203
        %v4215 = vmul.f32 %v3839, %v4203
        %v4216 = vmul.f32 %v3841, %v4203
        %v4217 = vmul.f32 %v3842, %v4203
        %v4218 = vmul.f32 %v3843, %v4203
        %v4219 = vmul.f32 %v3845, %v4203
        %v4220 = vmul.f32 %v3846, %v4203
        %v4221 = vmul.f32 %v3847, %v4203
        %v4222 = vmul.f32 %v3849, %v4203
        %v4223 = vmul.f32 %v3850, %v4203
        %v4224 = vmul.f32 %v3851, %v4203
        %v4225 = vmul.f32 %v3853, %v4203
        %v4226 = vmul.f32 %v3854, %v4203
        %v4227 = vmul.f32 %v3855, %v4203
        %v4228 = vmul.f32 %v3857, %v4203
        %v4229 = vmul.f32 %v3858, %v4203
        %v4230 = vmul.f32 %v3859, %v4203
        %v4231 = vmul.f32 %v3861, %v4203
        %v4232 = vmul.f32 %v3862, %v4203
        %v4233 = vmul.f32 %v3863, %v4203
        %v4234 = vmul.f32 %v3865, %v4203
        %v4235 = vmul.f32 %v3866, %v4203
        %v4236 = vmul.f32 %v3867, %v4203
        %v4237 = vmul.f32 %v3869, %v4203
        %v4238 = vmul.f32 %v3870, %v4203
        %v4239 = vmul.f32 %v3871, %v4203
        %v4240 = vmul.f32 %v3873, %v4203
        %v4241 = vmul.f32 %v3874, %v4203
        %v4242 = vmul.f32 %v3875, %v4203
        %v4243 = vmul.f32 %v3877, %v4203
        %v4244 = vmul.f32 %v3878, %v4203
        %v4245 = vmul.f32 %v3879, %v4203
        %v4246 = vmul.f32 %v3881, %v4203
        %v4247 = vmul.f32 %v3882, %v4203
        %v4248 = vmul.f32 %v3883, %v4203
        %v4249 = vmul.f32 %v3885, %v4203
        %v4250 = vmul.f32 %v3886, %v4203
        %v4251 = vmul.f32 %v3887, %v4203
        %v4300 = vrot.slane %v4204, 2
        %v4301 = vrot.slane %v4205, 2
        %v4302 = vsel %vm2994, %v4300, %v4301
        %v4303 = vrot.slane %v4206, 2
        %v4304 = vsel %vm2994, %v4301, %v4303
        %v4305 = vrot.slane %v4207, 2
        %v4306 = vrot.slane %v4208, 2
        %v4307 = vsel %vm2994, %v4305, %v4306
        %v4308 = vrot.slane %v4209, 2
        %v4309 = vsel %vm2994, %v4306, %v4308
        %v4310 = vrot.slane %v4210, 2
        %v4311 = vrot.slane %v4211, 2
        %v4312 = vsel %vm2994, %v4310, %v4311
        %v4313 = vrot.slane %v4212, 2
        %v4314 = vsel %vm2994, %v4311, %v4313
        %v4315 = vrot.slane %v4213, 2
        %v4316 = vrot.slane %v4214, 2
        %v4317 = vsel %vm2994, %v4315, %v4316
        %v4318 = vrot.slane %v4215, 2
        %v4319 = vsel %vm2994, %v4316, %v4318
        %v4320 = vrot.slane %v4216, 2
        %v4321 = vrot.slane %v4217, 2
        %v4322 = vsel %vm2994, %v4320, %v4321
        %v4323 = vrot.slane %v4218, 2
        %v4324 = vsel %vm2994, %v4321, %v4323
        %v4325 = vrot.slane %v4219, 2
        %v4326 = vrot.slane %v4220, 2
        %v4327 = vsel %vm2994, %v4325, %v4326
        %v4328 = vrot.slane %v4221, 2
        %v4329 = vsel %vm2994, %v4326, %v4328
        %v4330 = vrot.slane %v4222, 2
        %v4331 = vrot.slane %v4223, 2
        %v4332 = vsel %vm2994, %v4330, %v4331
        %v4333 = vrot.slane %v4224, 2
        %v4334 = vsel %vm2994, %v4331, %v4333
        %v4335 = vrot.slane %v4225, 2
        %v4336 = vrot.slane %v4226, 2
        %v4337 = vsel %vm2994, %v4335, %v4336
        %v4338 = vrot.slane %v4227, 2
        %v4339 = vsel %vm2994, %v4336, %v4338
        %v4340 = vrot.slane %v4228, 2
        %v4341 = vrot.slane %v4229, 2
        %v4342 = vsel %vm2994, %v4340, %v4341
        %v4343 = vrot.slane %v4230, 2
        %v4344 = vsel %vm2994, %v4341, %v4343
        %v4345 = vrot.slane %v4231, 2
        %v4346 = vrot.slane %v4232, 2
        %v4347 = vsel %vm2994, %v4345, %v4346
        %v4348 = vrot.slane %v4233, 2
        %v4349 = vsel %vm2994, %v4346, %v4348
        %v4350 = vrot.slane %v4234, 2
        %v4351 = vrot.slane %v4235, 2
        %v4352 = vsel %vm2994, %v4350, %v4351
        %v4353 = vrot.slane %v4236, 2
        %v4354 = vsel %vm2994, %v4351, %v4353
        %v4355 = vrot.slane %v4237, 2
        %v4356 = vrot.slane %v4238, 2
        %v4357 = vsel %vm2994, %v4355, %v4356
        %v4358 = vrot.slane %v4239, 2
        %v4359 = vsel %vm2994, %v4356, %v4358
        %v4360 = vrot.slane %v4240, 2
        %v4361 = vrot.slane %v4241, 2
        %v4362 = vsel %vm2994, %v4360, %v4361
        %v4363 = vrot.slane %v4242, 2
        %v4364 = vsel %vm2994, %v4361, %v4363
        %v4365 = vrot.slane %v4243, 2
        %v4366 = vrot.slane %v4244, 2
        %v4367 = vsel %vm2994, %v4365, %v4366
        %v4368 = vrot.slane %v4245, 2
        %v4369 = vsel %vm2994, %v4366, %v4368
        %v4370 = vrot.slane %v4246, 2
        %v4371 = vrot.slane %v4247, 2
        %v4372 = vsel %vm2994, %v4370, %v4371
        %v4373 = vrot.slane %v4248, 2
        %v4374 = vsel %vm2994, %v4371, %v4373
        %v4375 = vrot.slane %v4249, 2
        %v4376 = vrot.slane %v4250, 2
        %v4377 = vsel %vm2994, %v4375, %v4376
        %v4378 = vrot.slane %v4251, 2
        %v4379 = vsel %vm2994, %v4376, %v4378
        %v4428 = vadd.f32 %v4152, %v4300
        %v4429 = vadd.f32 %v4153, %v4302
        %v4430 = vadd.f32 %v4154, %v4304
        %v4431 = vadd.f32 %v4155, %v4305
        %v4432 = vadd.f32 %v4156, %v4307
        %v4433 = vadd.f32 %v4157, %v4309
        %v4434 = vadd.f32 %v4158, %v4310
        %v4435 = vadd.f32 %v4159, %v4312
        %v4436 = vadd.f32 %v4160, %v4314
        %v4437 = vadd.f32 %v4161, %v4315
        %v4438 = vadd.f32 %v4162, %v4317
        %v4439 = vadd.f32 %v4163, %v4319
        %v4440 = vadd.f32 %v4164, %v4320
        %v4441 = vadd.f32 %v4165, %v4322
        %v4442 = vadd.f32 %v4166, %v4324
        %v4443 = vadd.f32 %v4167, %v4325
        %v4444 = vadd.f32 %v4168, %v4327
        %v4445 = vadd.f32 %v4169, %v4329
        %v4446 = vadd.f32 %v4170, %v4330
        %v4447 = vadd.f32 %v4171, %v4332
        %v4448 = vadd.f32 %v4172, %v4334
        %v4449 = vadd.f32 %v4173, %v4335
        %v4450 = vadd.f32 %v4174, %v4337
        %v4451 = vadd.f32 %v4175, %v4339
        %v4452 = vadd.f32 %v4176, %v4340
        %v4453 = vadd.f32 %v4177, %v4342
        %v4454 = vadd.f32 %v4178, %v4344
        %v4455 = vadd.f32 %v4179, %v4345
        %v4456 = vadd.f32 %v4180, %v4347
        %v4457 = vadd.f32 %v4181, %v4349
        %v4458 = vadd.f32 %v4182, %v4350
        %v4459 = vadd.f32 %v4183, %v4352
        %v4460 = vadd.f32 %v4184, %v4354
        %v4461 = vadd.f32 %v4185, %v4355
        %v4462 = vadd.f32 %v4186, %v4357
        %v4463 = vadd.f32 %v4187, %v4359
        %v4464 = vadd.f32 %v4188, %v4360
        %v4465 = vadd.f32 %v4189, %v4362
        %v4466 = vadd.f32 %v4190, %v4364
        %v4467 = vadd.f32 %v4191, %v4365
        %v4468 = vadd.f32 %v4192, %v4367
        %v4469 = vadd.f32 %v4193, %v4369
        %v4470 = vadd.f32 %v4194, %v4370
        %v4471 = vadd.f32 %v4195, %v4372
        %v4472 = vadd.f32 %v4196, %v4374
        %v4473 = vadd.f32 %v4197, %v4375
        %v4474 = vadd.f32 %v4198, %v4377
        %v4475 = vadd.f32 %v4199, %v4379
        %v4476 = vmax.f32 %v4428, 0.0
        %v4477 = vmax.f32 %v4429, 0.0
        %v4478 = vmax.f32 %v4430, 0.0
        %v4479 = vmax.f32 %v4431, 0.0
        %v4480 = vmax.f32 %v4432, 0.0
        %v4481 = vmax.f32 %v4433, 0.0
        %v4482 = vmax.f32 %v4434, 0.0
        %v4483 = vmax.f32 %v4435, 0.0
        %v4484 = vmax.f32 %v4436, 0.0
        %v4485 = vmax.f32 %v4437, 0.0
        %v4486 = vmax.f32 %v4438, 0.0
        %v4487 = vmax.f32 %v4439, 0.0
        %v4488 = vmax.f32 %v4440, 0.0
        %v4489 = vmax.f32 %v4441, 0.0
        %v4490 = vmax.f32 %v4442, 0.0
        %v4491 = vmax.f32 %v4443, 0.0
        %v4492 = vmax.f32 %v4444, 0.0
        %v4493 = vmax.f32 %v4445, 0.0
        %v4494 = vmax.f32 %v4446, 0.0
        %v4495 = vmax.f32 %v4447, 0.0
        %v4496 = vmax.f32 %v4448, 0.0
        %v4497 = vmax.f32 %v4449, 0.0
        %v4498 = vmax.f32 %v4450, 0.0
        %v4499 = vmax.f32 %v4451, 0.0
        %v4500 = vmax.f32 %v4452, 0.0
        %v4501 = vmax.f32 %v4453, 0.0
        %v4502 = vmax.f32 %v4454, 0.0
        %v4503 = vmax.f32 %v4455, 0.0
        %v4504 = vmax.f32 %v4456, 0.0
        %v4505 = vmax.f32 %v4457, 0.0
        %v4506 = vmax.f32 %v4458, 0.0
        %v4507 = vmax.f32 %v4459, 0.0
        %v4508 = vmax.f32 %v4460, 0.0
        %v4509 = vmax.f32 %v4461, 0.0
        %v4510 = vmax.f32 %v4462, 0.0
        %v4511 = vmax.f32 %v4463, 0.0
        %v4512 = vmax.f32 %v4464, 0.0
        %v4513 = vmax.f32 %v4465, 0.0
        %v4514 = vmax.f32 %v4466, 0.0
        %v4515 = vmax.f32 %v4467, 0.0
        %v4516 = vmax.f32 %v4468, 0.0
        %v4517 = vmax.f32 %v4469, 0.0
        %v4518 = vmax.f32 %v4470, 0.0
        %v4519 = vmax.f32 %v4471, 0.0
        %v4520 = vmax.f32 %v4472, 0.0
        %v4521 = vmax.f32 %v4473, 0.0
        %v4522 = vmax.f32 %v4474, 0.0
        %v4523 = vmax.f32 %v4475, 0.0
        %v4524 = vmin.f32 %v4476, 6.0
        %v4525 = vmin.f32 %v4477, 6.0
        %v4526 = vmin.f32 %v4478, 6.0
        %v4527 = vmin.f32 %v4479, 6.0
        %v4528 = vmin.f32 %v4480, 6.0
        %v4529 = vmin.f32 %v4481, 6.0
        %v4530 = vmin.f32 %v4482, 6.0
        %v4531 = vmin.f32 %v4483, 6.0
        %v4532 = vmin.f32 %v4484, 6.0
        %v4533 = vmin.f32 %v4485, 6.0
        %v4534 = vmin.f32 %v4486, 6.0
        %v4535 = vmin.f32 %v4487, 6.0
        %v4536 = vmin.f32 %v4488, 6.0
        %v4537 = vmin.f32 %v4489, 6.0
        %v4538 = vmin.f32 %v4490, 6.0
        %v4539 = vmin.f32 %v4491, 6.0
        %v4540 = vmin.f32 %v4492, 6.0
        %v4541 = vmin.f32 %v4493, 6.0
        %v4542 = vmin.f32 %v4494, 6.0
        %v4543 = vmin.f32 %v4495, 6.0
        %v4544 = vmin.f32 %v4496, 6.0
        %v4545 = vmin.f32 %v4497, 6.0
        %v4546 = vmin.f32 %v4498, 6.0
        %v4547 = vmin.f32 %v4499, 6.0
        %v4548 = vmin.f32 %v4500, 6.0
        %v4549 = vmin.f32 %v4501, 6.0
        %v4550 = vmin.f32 %v4502, 6.0
        %v4551 = vmin.f32 %v4503, 6.0
        %v4552 = vmin.f32 %v4504, 6.0
        %v4553 = vmin.f32 %v4505, 6.0
        %v4554 = vmin.f32 %v4506, 6.0
        %v4555 = vmin.f32 %v4507, 6.0
        %v4556 = vmin.f32 %v4508, 6.0
        %v4557 = vmin.f32 %v4509, 6.0
        %v4558 = vmin.f32 %v4510, 6.0
        %v4559 = vmin.f32 %v4511, 6.0
        %v4560 = vmin.f32 %v4512, 6.0
        %v4561 = vmin.f32 %v4513, 6.0
        %v4562 = vmin.f32 %v4514, 6.0
        %v4563 = vmin.f32 %v4515, 6.0
        %v4564 = vmin.f32 %v4516, 6.0
        %v4565 = vmin.f32 %v4517, 6.0
        %v4566 = vmin.f32 %v4518, 6.0
        %v4567 = vmin.f32 %v4519, 6.0
        %v4568 = vmin.f32 %v4520, 6.0
        %v4569 = vmin.f32 %v4521, 6.0
        %v4570 = vmin.f32 %v4522, 6.0
        %v4571 = vmin.f32 %v4523, 6.0
        %vm4620 = vcmask 1040384
        %v4621 = vrot.slane %v4524, 7
        %v4622 = vrot.slane %v4525, 7
        %v4623 = vsel %vm4620, %v4621, %v4622
        %v4624 = vrot.slane %v4526, 7
        %v4625 = vsel %vm4620, %v4622, %v4624
        %v4626 = vrot.slane %v4527, 7
        %v4627 = vrot.slane %v4528, 7
        %v4628 = vsel %vm4620, %v4626, %v4627
        %v4629 = vrot.slane %v4529, 7
        %v4630 = vsel %vm4620, %v4627, %v4629
        %v4631 = vrot.slane %v4530, 7
        %v4632 = vrot.slane %v4531, 7
        %v4633 = vsel %vm4620, %v4631, %v4632
        %v4634 = vrot.slane %v4532, 7
        %v4635 = vsel %vm4620, %v4632, %v4634
        %v4636 = vrot.slane %v4533, 7
        %v4637 = vrot.slane %v4534, 7
        %v4638 = vsel %vm4620, %v4636, %v4637
        %v4639 = vrot.slane %v4535, 7
        %v4640 = vsel %vm4620, %v4637, %v4639
        %v4641 = vrot.slane %v4536, 7
        %v4642 = vrot.slane %v4537, 7
        %v4643 = vsel %vm4620, %v4641, %v4642
        %v4644 = vrot.slane %v4538, 7
        %v4645 = vsel %vm4620, %v4642, %v4644
        %v4646 = vrot.slane %v4539, 7
        %v4647 = vrot.slane %v4540, 7
        %v4648 = vsel %vm4620, %v4646, %v4647
        %v4649 = vrot.slane %v4541, 7
        %v4650 = vsel %vm4620, %v4647, %v4649
        %v4651 = vrot.slane %v4542, 7
        %v4652 = vrot.slane %v4543, 7
        %v4653 = vsel %vm4620, %v4651, %v4652
        %v4654 = vrot.slane %v4544, 7
        %v4655 = vsel %vm4620, %v4652, %v4654
        %v4656 = vrot.slane %v4545, 7
        %v4657 = vrot.slane %v4546, 7
        %v4658 = vsel %vm4620, %v4656, %v4657
        %v4659 = vrot.slane %v4547, 7
        %v4660 = vsel %vm4620, %v4657, %v4659
        %v4661 = vrot.slane %v4548, 7
        %v4662 = vrot.slane %v4549, 7
        %v4663 = vsel %vm4620, %v4661, %v4662
        %v4664 = vrot.slane %v4550, 7
        %v4665 = vsel %vm4620, %v4662, %v4664
        %v4666 = vrot.slane %v4551, 7
        %v4667 = vrot.slane %v4552, 7
        %v4668 = vsel %vm4620, %v4666, %v4667
        %v4669 = vrot.slane %v4553, 7
        %v4670 = vsel %vm4620, %v4667, %v4669
        %v4671 = vrot.slane %v4554, 7
        %v4672 = vrot.slane %v4555, 7
        %v4673 = vsel %vm4620, %v4671, %v4672
        %v4674 = vrot.slane %v4556, 7
        %v4675 = vsel %vm4620, %v4672, %v4674
        %v4676 = vrot.slane %v4557, 7
        %v4677 = vrot.slane %v4558, 7
        %v4678 = vsel %vm4620, %v4676, %v4677
        %v4679 = vrot.slane %v4559, 7
        %v4680 = vsel %vm4620, %v4677, %v4679
        %v4681 = vrot.slane %v4560, 7
        %v4682 = vrot.slane %v4561, 7
        %v4683 = vsel %vm4620, %v4681, %v4682
        %v4684 = vrot.slane %v4562, 7
        %v4685 = vsel %vm4620, %v4682, %v4684
        %v4686 = vrot.slane %v4563, 7
        %v4687 = vrot.slane %v4564, 7
        %v4688 = vsel %vm4620, %v4686, %v4687
        %v4689 = vrot.slane %v4565, 7
        %v4690 = vsel %vm4620, %v4687, %v4689
        %v4691 = vrot.slane %v4566, 7
        %v4692 = vrot.slane %v4567, 7
        %v4693 = vsel %vm4620, %v4691, %v4692
        %v4694 = vrot.slane %v4568, 7
        %v4695 = vsel %vm4620, %v4692, %v4694
        %v4696 = vrot.slane %v4569, 7
        %v4697 = vrot.slane %v4570, 7
        %v4698 = vsel %vm4620, %v4696, %v4697
        %v4699 = vrot.slane %v4571, 7
        %v4700 = vsel %vm4620, %v4697, %v4699
        %v4733 = vld [vmem:[#allocation9] sm:$0xff]
        %v4734 = vld [vmem:[#allocation9 + $0x8] sm:$0xff]
        %v4735 = vld [vmem:[#allocation9 + $0x10] sm:$0xff]
        %v4736 = vld [vmem:[#allocation9 + $0x18] sm:$0xff]
        %v4737 = vld [vmem:[#allocation9 + $0x20] sm:$0xff]
        %v4738 = vld [vmem:[#allocation9 + $0x28] sm:$0xff]
        %v4739 = vld [vmem:[#allocation9 + $0x30] sm:$0xff]
        %v4740 = vld [vmem:[#allocation9 + $0x38] sm:$0xff]
        %v4741 = vld [vmem:[#allocation9 + $0x40] sm:$0xff]
        %v4742 = vld [vmem:[#allocation9 + $0x48] sm:$0xff]
        %v4743 = vld [vmem:[#allocation9 + $0x50] sm:$0xff]
        %v4744 = vld [vmem:[#allocation9 + $0x58] sm:$0xff]
        %v4745 = vld [vmem:[#allocation9 + $0x60] sm:$0xff]
        %v4746 = vld [vmem:[#allocation9 + $0x68] sm:$0xff]
        %v4747 = vld [vmem:[#allocation9 + $0x70] sm:$0xff]
        %v4748 = vld [vmem:[#allocation9 + $0x78] sm:$0xff]
        %v4749 = vld [vmem:[%s6] sm:$0x1]
        %v4751 = vlaneseq
        %v4752 = vshrl.u32 %v4751, 7
        %v4753 = vsub.s32 0, %v4752
        %v4754 = vrot.slane %v4749, %v4753
        %4756 = vmatprep.subr.mxu0 0.0
        %v4757 = vand.u32 %v4733, 4294901760
        %4758 = vmatpush1.msra.mxu0 %v4757
        %4759 = vmatprep.subr.mxu0 0.0
        %v4760 = vand.u32 %v4734, 4294901760
        %4761 = vmatpush1.msra.mxu0 %v4760
        %4762 = vmatprep.subr.mxu0 0.0
        %v4763 = vand.u32 %v4735, 4294901760
        %4764 = vmatpush1.msra.mxu0 %v4763
        %4765 = vmatprep.subr.mxu0 0.0
        %v4766 = vand.u32 %v4736, 4294901760
        %4767 = vmatpush1.msra.mxu0 %v4766
        %4768 = vmatprep.subr.mxu0 0.0
        %v4769 = vand.u32 %v4737, 4294901760
        %4770 = vmatpush1.msra.mxu0 %v4769
        %4771 = vmatprep.subr.mxu0 0.0
        %v4772 = vand.u32 %v4738, 4294901760
        %4773 = vmatpush1.msra.mxu0 %v4772
        %4774 = vmatprep.subr.mxu0 0.0
        %v4775 = vand.u32 %v4739, 4294901760
        %4776 = vmatpush1.msra.mxu0 %v4775
        %4777 = vmatprep.subr.mxu0 0.0
        %v4778 = vand.u32 %v4740, 4294901760
        %4779 = vmatpush1.msra.mxu0 %v4778
        %4780 = vmatprep.subr.mxu0 0.0
        %v4781 = vand.u32 %v4741, 4294901760
        %4782 = vmatpush1.msra.mxu0 %v4781
        %4783 = vmatprep.subr.mxu0 0.0
        %v4784 = vand.u32 %v4742, 4294901760
        %4785 = vmatpush1.msra.mxu0 %v4784
        %4786 = vmatprep.subr.mxu0 0.0
        %v4787 = vand.u32 %v4743, 4294901760
        %4788 = vmatpush1.msra.mxu0 %v4787
        %4789 = vmatprep.subr.mxu0 0.0
        %v4790 = vand.u32 %v4744, 4294901760
        %4791 = vmatpush1.msra.mxu0 %v4790
        %4792 = vmatprep.subr.mxu0 0.0
        %v4793 = vand.u32 %v4745, 4294901760
        %4794 = vmatpush1.msra.mxu0 %v4793
        %4795 = vmatprep.subr.mxu0 0.0
        %v4796 = vand.u32 %v4746, 4294901760
        %4797 = vmatpush1.msra.mxu0 %v4796
        %4798 = vmatprep.subr.mxu0 0.0
        %v4799 = vand.u32 %v4747, 4294901760
        %4800 = vmatpush1.msra.mxu0 %v4799
        %4801 = vmatprep.subr.mxu0 0.0
        %v4802 = vand.u32 %v4748, 4294901760
        %4803 = vmatpush1.msra.mxu0 %v4802
        %4804 = vmatprep.subr.mxu0 0.0
        %4805 = vmatpush1.msra.mxu0 0.0
        %4806 = vmatprep.subr.mxu0 0.0
        %4807 = vmatpush1.msra.mxu0 0.0
        %4808 = vmatprep.subr.mxu0 0.0
        %4809 = vmatpush1.msra.mxu0 0.0
        %4810 = vmatprep.subr.mxu0 0.0
        %4811 = vmatpush1.msra.mxu0 0.0
        %4812 = vmatprep.subr.mxu0 0.0
        %4813 = vmatpush1.msra.mxu0 0.0
        %4814 = vmatprep.subr.mxu0 0.0
        %4815 = vmatpush1.msra.mxu0 0.0
        %4816 = vmatprep.subr.mxu0 0.0
        %4817 = vmatpush1.msra.mxu0 0.0
        %4818 = vmatprep.subr.mxu0 0.0
        %4819 = vmatpush1.msra.mxu0 0.0
        %4820 = vmatprep.subr.mxu0 0.0
        %4821 = vmatpush1.msra.mxu0 0.0
        %4822 = vmatprep.subr.mxu0 0.0
        %4823 = vmatpush1.msra.mxu0 0.0
        %4824 = vmatprep.subr.mxu0 0.0
        %4825 = vmatpush1.msra.mxu0 0.0
        %4826 = vmatprep.subr.mxu0 0.0
        %4827 = vmatpush1.msra.mxu0 0.0
        %4828 = vmatprep.subr.mxu0 0.0
        %4829 = vmatpush1.msra.mxu0 0.0
        %4830 = vmatprep.subr.mxu0 0.0
        %4831 = vmatpush1.msra.mxu0 0.0
        %4832 = vmatprep.subr.mxu0 0.0
        %4833 = vmatpush1.msra.mxu0 0.0
        %4834 = vmatprep.subr.mxu0 0.0
        %4835 = vmatpush1.msra.mxu0 0.0
        %4836 = vmatprep.mubr.f32.mxu0 0.0
        %v4837 = vand.u32 %v4623, 4294901760
        %v4838 = vsub.f32 %v4623, %v4837
        %v4839 = vand.u32 %v4838, 4294901760
        %v4840 = vsub.f32 %v4838, %v4839
        %v4841 = vand.u32 %v4840, 4294901760
        %4842 = vmatmul.mubr.f32.gmra.mrb[0].mxu0 %v4841
        %v4843 = vpop.f32.mrb[0].mxu0
        %v4844 = vadd.f32 %v4754, %v4843
        %v4845 = vpop.f32.mrb[0].mxu0
        %4846 = vmatprep.mubr.f32.mxu0 0.0
        %v4847 = vand.u32 %v4625, 4294901760
        %v4848 = vsub.f32 %v4625, %v4847
        %v4849 = vand.u32 %v4848, 4294901760
        %v4850 = vsub.f32 %v4848, %v4849
        %v4851 = vand.u32 %v4850, 4294901760
        %4852 = vmatmul.mubr.f32.gmra.mrb[0].mxu0 %v4851
        %v4853 = vpop.f32.mrb[0].mxu0
        %v4854 = vadd.f32 %v4754, %v4853
        %v4855 = vpop.f32.mrb[0].mxu0
        %4856 = vmatprep.mubr.f32.mxu0 0.0
        %v4857 = vand.u32 %v4628, 4294901760
        %v4858 = vsub.f32 %v4628, %v4857
        %v4859 = vand.u32 %v4858, 4294901760
        %v4860 = vsub.f32 %v4858, %v4859
        %v4861 = vand.u32 %v4860, 4294901760
        %4862 = vmatmul.mubr.f32.gmra.mrb[0].mxu0 %v4861
        %v4863 = vpop.f32.mrb[0].mxu0
        %v4864 = vadd.f32 %v4754, %v4863
        %v4865 = vpop.f32.mrb[0].mxu0
        %4866 = vmatprep.mubr.f32.mxu0 0.0
        %v4867 = vand.u32 %v4630, 4294901760
        %v4868 = vsub.f32 %v4630, %v4867
        %v4869 = vand.u32 %v4868, 4294901760
        %v4870 = vsub.f32 %v4868, %v4869
        %v4871 = vand.u32 %v4870, 4294901760
        %4872 = vmatmul.mubr.f32.gmra.mrb[0].mxu0 %v4871
        %v4873 = vpop.f32.mrb[0].mxu0
        %v4874 = vadd.f32 %v4754, %v4873
        %v4875 = vpop.f32.mrb[0].mxu0
        %4876 = vmatprep.mubr.f32.mxu0 0.0
        %v4877 = vand.u32 %v4633, 4294901760
        %v4878 = vsub.f32 %v4633, %v4877
        %v4879 = vand.u32 %v4878, 4294901760
        %v4880 = vsub.f32 %v4878, %v4879
        %v4881 = vand.u32 %v4880, 4294901760
        %4882 = vmatmul.mubr.f32.gmra.mrb[0].mxu0 %v4881
        %v4883 = vpop.f32.mrb[0].mxu0
        %v4884 = vadd.f32 %v4754, %v4883
        %v4885 = vpop.f32.mrb[0].mxu0
        %4886 = vmatprep.mubr.f32.mxu0 0.0
        %v4887 = vand.u32 %v4635, 4294901760
        %v4888 = vsub.f32 %v4635, %v4887
        %v4889 = vand.u32 %v4888, 4294901760
        %v4890 = vsub.f32 %v4888, %v4889
        %v4891 = vand.u32 %v4890, 4294901760
        %4892 = vmatmul.mubr.f32.gmra.mrb[0].mxu0 %v4891
        %v4893 = vpop.f32.mrb[0].mxu0
        %v4894 = vadd.f32 %v4754, %v4893
        %v4895 = vpop.f32.mrb[0].mxu0
        %4896 = vmatprep.mubr.f32.mxu0 0.0
        %v4897 = vand.u32 %v4638, 4294901760
        %v4898 = vsub.f32 %v4638, %v4897
        %v4899 = vand.u32 %v4898, 4294901760
        %v4900 = vsub.f32 %v4898, %v4899
        %v4901 = vand.u32 %v4900, 4294901760
        %4902 = vmatmul.mubr.f32.gmra.mrb[0].mxu0 %v4901
        %v4903 = vpop.f32.mrb[0].mxu0
        %v4904 = vadd.f32 %v4754, %v4903
        %v4905 = vpop.f32.mrb[0].mxu0
        %4906 = vmatprep.mubr.f32.mxu0 0.0
        %v4907 = vand.u32 %v4640, 4294901760
        %v4908 = vsub.f32 %v4640, %v4907
        %v4909 = vand.u32 %v4908, 4294901760
        %v4910 = vsub.f32 %v4908, %v4909
        %v4911 = vand.u32 %v4910, 4294901760
        %4912 = vmatmul.mubr.f32.gmra.mrb[0].mxu0 %v4911
        %v4913 = vpop.f32.mrb[0].mxu0
        %v4914 = vadd.f32 %v4754, %v4913
        %v4915 = vpop.f32.mrb[0].mxu0
        %4916 = vmatprep.mubr.f32.mxu0 0.0
        %v4917 = vand.u32 %v4643, 4294901760
        %v4918 = vsub.f32 %v4643, %v4917
        %v4919 = vand.u32 %v4918, 4294901760
        %v4920 = vsub.f32 %v4918, %v4919
        %v4921 = vand.u32 %v4920, 4294901760
        %4922 = vmatmul.mubr.f32.gmra.mrb[0].mxu0 %v4921
        %v4923 = vpop.f32.mrb[0].mxu0
        %v4924 = vadd.f32 %v4754, %v4923
        %v4925 = vpop.f32.mrb[0].mxu0
        %4926 = vmatprep.mubr.f32.mxu0 0.0
        %v4927 = vand.u32 %v4645, 4294901760
        %v4928 = vsub.f32 %v4645, %v4927
        %v4929 = vand.u32 %v4928, 4294901760
        %v4930 = vsub.f32 %v4928, %v4929
        %v4931 = vand.u32 %v4930, 4294901760
        %4932 = vmatmul.mubr.f32.gmra.mrb[0].mxu0 %v4931
        %v4933 = vpop.f32.mrb[0].mxu0
        %v4934 = vadd.f32 %v4754, %v4933
        %v4935 = vpop.f32.mrb[0].mxu0
        %4936 = vmatprep.mubr.f32.mxu0 0.0
        %v4937 = vand.u32 %v4648, 4294901760
        %v4938 = vsub.f32 %v4648, %v4937
        %v4939 = vand.u32 %v4938, 4294901760
        %v4940 = vsub.f32 %v4938, %v4939
        %v4941 = vand.u32 %v4940, 4294901760
        %4942 = vmatmul.mubr.f32.gmra.mrb[0].mxu0 %v4941
        %v4943 = vpop.f32.mrb[0].mxu0
        %v4944 = vadd.f32 %v4754, %v4943
        %v4945 = vpop.f32.mrb[0].mxu0
        %4946 = vmatprep.mubr.f32.mxu0 0.0
        %v4947 = vand.u32 %v4650, 4294901760
        %v4948 = vsub.f32 %v4650, %v4947
        %v4949 = vand.u32 %v4948, 4294901760
        %v4950 = vsub.f32 %v4948, %v4949
        %v4951 = vand.u32 %v4950, 4294901760
        %4952 = vmatmul.mubr.f32.gmra.mrb[0].mxu0 %v4951
        %v4953 = vpop.f32.mrb[0].mxu0
        %v4954 = vadd.f32 %v4754, %v4953
        %v4955 = vpop.f32.mrb[0].mxu0
        %4956 = vmatprep.mubr.f32.mxu0 0.0
        %v4957 = vand.u32 %v4653, 4294901760
        %v4958 = vsub.f32 %v4653, %v4957
        %v4959 = vand.u32 %v4958, 4294901760
        %v4960 = vsub.f32 %v4958, %v4959
        %v4961 = vand.u32 %v4960, 4294901760
        %4962 = vmatmul.mubr.f32.gmra.mrb[0].mxu0 %v4961
        %v4963 = vpop.f32.mrb[0].mxu0
        %v4964 = vadd.f32 %v4754, %v4963
        %v4965 = vpop.f32.mrb[0].mxu0
        %4966 = vmatprep.mubr.f32.mxu0 0.0
        %v4967 = vand.u32 %v4655, 4294901760
        %v4968 = vsub.f32 %v4655, %v4967
        %v4969 = vand.u32 %v4968, 4294901760
        %v4970 = vsub.f32 %v4968, %v4969
        %v4971 = vand.u32 %v4970, 4294901760
        %4972 = vmatmul.mubr.f32.gmra.mrb[0].mxu0 %v4971
        %v4973 = vpop.f32.mrb[0].mxu0
        %v4974 = vadd.f32 %v4754, %v4973
        %v4975 = vpop.f32.mrb[0].mxu0
        %4976 = vmatprep.mubr.f32.mxu0 0.0
        %v4977 = vand.u32 %v4658, 4294901760
        %v4978 = vsub.f32 %v4658, %v4977
        %v4979 = vand.u32 %v4978, 4294901760
        %v4980 = vsub.f32 %v4978, %v4979
        %v4981 = vand.u32 %v4980, 4294901760
        %4982 = vmatmul.mubr.f32.gmra.mrb[0].mxu0 %v4981
        %v4983 = vpop.f32.mrb[0].mxu0
        %v4984 = vadd.f32 %v4754, %v4983
        %v4985 = vpop.f32.mrb[0].mxu0
        %4986 = vmatprep.mubr.f32.mxu0 0.0
        %v4987 = vand.u32 %v4660, 4294901760
        %v4988 = vsub.f32 %v4660, %v4987
        %v4989 = vand.u32 %v4988, 4294901760
        %v4990 = vsub.f32 %v4988, %v4989
        %v4991 = vand.u32 %v4990, 4294901760
        %4992 = vmatmul.mubr.f32.gmra.mrb[0].mxu0 %v4991
        %v4993 = vpop.f32.mrb[0].mxu0
        %v4994 = vadd.f32 %v4754, %v4993
        %v4995 = vpop.f32.mrb[0].mxu0
        %4996 = vmatprep.mubr.f32.mxu0 0.0
        %v4997 = vand.u32 %v4663, 4294901760
        %v4998 = vsub.f32 %v4663, %v4997
        %v4999 = vand.u32 %v4998, 4294901760
        %v5000 = vsub.f32 %v4998, %v4999
        %v5001 = vand.u32 %v5000, 4294901760
        %5002 = vmatmul.mubr.f32.gmra.mrb[0].mxu0 %v5001
        %v5003 = vpop.f32.mrb[0].mxu0
        %v5004 = vadd.f32 %v4754, %v5003
        %v5005 = vpop.f32.mrb[0].mxu0
        %5006 = vmatprep.mubr.f32.mxu0 0.0
        %v5007 = vand.u32 %v4665, 4294901760
        %v5008 = vsub.f32 %v4665, %v5007
        %v5009 = vand.u32 %v5008, 4294901760
        %v5010 = vsub.f32 %v5008, %v5009
        %v5011 = vand.u32 %v5010, 4294901760
        %5012 = vmatmul.mubr.f32.gmra.mrb[0].mxu0 %v5011
        %v5013 = vpop.f32.mrb[0].mxu0
        %v5014 = vadd.f32 %v4754, %v5013
        %v5015 = vpop.f32.mrb[0].mxu0
        %5016 = vmatprep.mubr.f32.mxu0 0.0
        %v5017 = vand.u32 %v4668, 4294901760
        %v5018 = vsub.f32 %v4668, %v5017
        %v5019 = vand.u32 %v5018, 4294901760
        %v5020 = vsub.f32 %v5018, %v5019
        %v5021 = vand.u32 %v5020, 4294901760
        %5022 = vmatmul.mubr.f32.gmra.mrb[0].mxu0 %v5021
        %v5023 = vpop.f32.mrb[0].mxu0
        %v5024 = vadd.f32 %v4754, %v5023
        %v5025 = vpop.f32.mrb[0].mxu0
        %5026 = vmatprep.mubr.f32.mxu0 0.0
        %v5027 = vand.u32 %v4670, 4294901760
        %v5028 = vsub.f32 %v4670, %v5027
        %v5029 = vand.u32 %v5028, 4294901760
        %v5030 = vsub.f32 %v5028, %v5029
        %v5031 = vand.u32 %v5030, 4294901760
        %5032 = vmatmul.mubr.f32.gmra.mrb[0].mxu0 %v5031
        %v5033 = vpop.f32.mrb[0].mxu0
        %v5034 = vadd.f32 %v4754, %v5033
        %v5035 = vpop.f32.mrb[0].mxu0
        %5036 = vmatprep.mubr.f32.mxu0 0.0
        %v5037 = vand.u32 %v4673, 4294901760
        %v5038 = vsub.f32 %v4673, %v5037
        %v5039 = vand.u32 %v5038, 4294901760
        %v5040 = vsub.f32 %v5038, %v5039
        %v5041 = vand.u32 %v5040, 4294901760
        %5042 = vmatmul.mubr.f32.gmra.mrb[0].mxu0 %v5041
        %v5043 = vpop.f32.mrb[0].mxu0
        %v5044 = vadd.f32 %v4754, %v5043
        %v5045 = vpop.f32.mrb[0].mxu0
        %5046 = vmatprep.mubr.f32.mxu0 0.0
        %v5047 = vand.u32 %v4675, 4294901760
        %v5048 = vsub.f32 %v4675, %v5047
        %v5049 = vand.u32 %v5048, 4294901760
        %v5050 = vsub.f32 %v5048, %v5049
        %v5051 = vand.u32 %v5050, 4294901760
        %5052 = vmatmul.mubr.f32.gmra.mrb[0].mxu0 %v5051
        %v5053 = vpop.f32.mrb[0].mxu0
        %v5054 = vadd.f32 %v4754, %v5053
        %v5055 = vpop.f32.mrb[0].mxu0
        %5056 = vmatprep.mubr.f32.mxu0 0.0
        %v5057 = vand.u32 %v4678, 4294901760
        %v5058 = vsub.f32 %v4678, %v5057
        %v5059 = vand.u32 %v5058, 4294901760
        %v5060 = vsub.f32 %v5058, %v5059
        %v5061 = vand.u32 %v5060, 4294901760
        %5062 = vmatmul.mubr.f32.gmra.mrb[0].mxu0 %v5061
        %v5063 = vpop.f32.mrb[0].mxu0
        %v5064 = vadd.f32 %v4754, %v5063
        %v5065 = vpop.f32.mrb[0].mxu0
        %5066 = vmatprep.mubr.f32.mxu0 0.0
        %v5067 = vand.u32 %v4680, 4294901760
        %v5068 = vsub.f32 %v4680, %v5067
        %v5069 = vand.u32 %v5068, 4294901760
        %v5070 = vsub.f32 %v5068, %v5069
        %v5071 = vand.u32 %v5070, 4294901760
        %5072 = vmatmul.mubr.f32.gmra.mrb[0].mxu0 %v5071
        %v5073 = vpop.f32.mrb[0].mxu0
        %v5074 = vadd.f32 %v4754, %v5073
        %v5075 = vpop.f32.mrb[0].mxu0
        %5076 = vmatprep.mubr.f32.mxu0 0.0
        %v5077 = vand.u32 %v4683, 4294901760
        %v5078 = vsub.f32 %v4683, %v5077
        %v5079 = vand.u32 %v5078, 4294901760
        %v5080 = vsub.f32 %v5078, %v5079
        %v5081 = vand.u32 %v5080, 4294901760
        %5082 = vmatmul.mubr.f32.gmra.mrb[0].mxu0 %v5081
        %v5083 = vpop.f32.mrb[0].mxu0
        %v5084 = vadd.f32 %v4754, %v5083
        %v5085 = vpop.f32.mrb[0].mxu0
        %5086 = vmatprep.mubr.f32.mxu0 0.0
        %v5087 = vand.u32 %v4685, 4294901760
        %v5088 = vsub.f32 %v4685, %v5087
        %v5089 = vand.u32 %v5088, 4294901760
        %v5090 = vsub.f32 %v5088, %v5089
        %v5091 = vand.u32 %v5090, 4294901760
        %5092 = vmatmul.mubr.f32.gmra.mrb[0].mxu0 %v5091
        %v5093 = vpop.f32.mrb[0].mxu0
        %v5094 = vadd.f32 %v4754, %v5093
        %v5095 = vpop.f32.mrb[0].mxu0
        %5096 = vmatprep.mubr.f32.mxu0 0.0
        %v5097 = vand.u32 %v4688, 4294901760
        %v5098 = vsub.f32 %v4688, %v5097
        %v5099 = vand.u32 %v5098, 4294901760
        %v5100 = vsub.f32 %v5098, %v5099
        %v5101 = vand.u32 %v5100, 4294901760
        %5102 = vmatmul.mubr.f32.gmra.mrb[0].mxu0 %v5101
        %v5103 = vpop.f32.mrb[0].mxu0
        %v5104 = vadd.f32 %v4754, %v5103
        %v5105 = vpop.f32.mrb[0].mxu0
        %5106 = vmatprep.mubr.f32.mxu0 0.0
        %v5107 = vand.u32 %v4690, 4294901760
        %v5108 = vsub.f32 %v4690, %v5107
        %v5109 = vand.u32 %v5108, 4294901760
        %v5110 = vsub.f32 %v5108, %v5109
        %v5111 = vand.u32 %v5110, 4294901760
        %5112 = vmatmul.mubr.f32.gmra.mrb[0].mxu0 %v5111
        %v5113 = vpop.f32.mrb[0].mxu0
        %v5114 = vadd.f32 %v4754, %v5113
        %v5115 = vpop.f32.mrb[0].mxu0
        %5116 = vmatprep.mubr.f32.mxu0 0.0
        %v5117 = vand.u32 %v4693, 4294901760
        %v5118 = vsub.f32 %v4693, %v5117
        %v5119 = vand.u32 %v5118, 4294901760
        %v5120 = vsub.f32 %v5118, %v5119
        %v5121 = vand.u32 %v5120, 4294901760
        %5122 = vmatmul.mubr.f32.gmra.mrb[0].mxu0 %v5121
        %v5123 = vpop.f32.mrb[0].mxu0
        %v5124 = vadd.f32 %v4754, %v5123
        %v5125 = vpop.f32.mrb[0].mxu0
        %5126 = vmatprep.mubr.f32.mxu0 0.0
        %v5127 = vand.u32 %v4695, 4294901760
        %v5128 = vsub.f32 %v4695, %v5127
        %v5129 = vand.u32 %v5128, 4294901760
        %v5130 = vsub.f32 %v5128, %v5129
        %v5131 = vand.u32 %v5130, 4294901760
        %5132 = vmatmul.mubr.f32.gmra.mrb[0].mxu0 %v5131
        %v5133 = vpop.f32.mrb[0].mxu0
        %v5134 = vadd.f32 %v4754, %v5133
        %v5135 = vpop.f32.mrb[0].mxu0
        %5136 = vmatprep.mubr.f32.mxu0 0.0
        %v5137 = vand.u32 %v4698, 4294901760
        %v5138 = vsub.f32 %v4698, %v5137
        %v5139 = vand.u32 %v5138, 4294901760
        %v5140 = vsub.f32 %v5138, %v5139
        %v5141 = vand.u32 %v5140, 4294901760
        %5142 = vmatmul.mubr.f32.gmra.mrb[0].mxu0 %v5141
        %v5143 = vpop.f32.mrb[0].mxu0
        %v5144 = vadd.f32 %v4754, %v5143
        %v5145 = vpop.f32.mrb[0].mxu0
        %5146 = vmatprep.mubr.f32.mxu0 0.0
        %v5147 = vand.u32 %v4700, 4294901760
        %v5148 = vsub.f32 %v4700, %v5147
        %v5149 = vand.u32 %v5148, 4294901760
        %v5150 = vsub.f32 %v5148, %v5149
        %v5151 = vand.u32 %v5150, 4294901760
        %5152 = vmatmul.mubr.f32.gmra.mrb[0].mxu0 %v5151
        %v5153 = vpop.f32.mrb[0].mxu0
        %v5154 = vadd.f32 %v4754, %v5153
        %v5155 = vpop.f32.mrb[0].mxu0
        %5156 = vdwg.mxu0
        %5157 = vmatprep.subr.mxu0 0.0
        %v5158 = vand.u32 %v4733, 4294901760
        %v5159 = vsub.f32 %v4733, %v5158
        %v5160 = vand.u32 %v5159, 4294901760
        %v5161 = vsub.f32 %v5159, %v5160
        %v5162 = vand.u32 %v5161, 4294901760
        %5163 = vmatpush1.msra.mxu0 %v5162
        %5164 = vmatprep.subr.mxu0 0.0
        %v5165 = vand.u32 %v4734, 4294901760
        %v5166 = vsub.f32 %v4734, %v5165
        %v5167 = vand.u32 %v5166, 4294901760
        %v5168 = vsub.f32 %v5166, %v5167
        %v5169 = vand.u32 %v5168, 4294901760
        %5170 = vmatpush1.msra.mxu0 %v5169
        %5171 = vmatprep.subr.mxu0 0.0
        %v5172 = vand.u32 %v4735, 4294901760
        %v5173 = vsub.f32 %v4735, %v5172
        %v5174 = vand.u32 %v5173, 4294901760
        %v5175 = vsub.f32 %v5173, %v5174
        %v5176 = vand.u32 %v5175, 4294901760
        %5177 = vmatpush1.msra.mxu0 %v5176
        %5178 = vmatprep.subr.mxu0 0.0
        %v5179 = vand.u32 %v4736, 4294901760
        %v5180 = vsub.f32 %v4736, %v5179
        %v5181 = vand.u32 %v5180, 4294901760
        %v5182 = vsub.f32 %v5180, %v5181
        %v5183 = vand.u32 %v5182, 4294901760
        %5184 = vmatpush1.msra.mxu0 %v5183
        %5185 = vmatprep.subr.mxu0 0.0
        %v5186 = vand.u32 %v4737, 4294901760
        %v5187 = vsub.f32 %v4737, %v5186
        %v5188 = vand.u32 %v5187, 4294901760
        %v5189 = vsub.f32 %v5187, %v5188
        %v5190 = vand.u32 %v5189, 4294901760
        %5191 = vmatpush1.msra.mxu0 %v5190
        %5192 = vmatprep.subr.mxu0 0.0
        %v5193 = vand.u32 %v4738, 4294901760
        %v5194 = vsub.f32 %v4738, %v5193
        %v5195 = vand.u32 %v5194, 4294901760
        %v5196 = vsub.f32 %v5194, %v5195
        %v5197 = vand.u32 %v5196, 4294901760
        %5198 = vmatpush1.msra.mxu0 %v5197
        %5199 = vmatprep.subr.mxu0 0.0
        %v5200 = vand.u32 %v4739, 4294901760
        %v5201 = vsub.f32 %v4739, %v5200
        %v5202 = vand.u32 %v5201, 4294901760
        %v5203 = vsub.f32 %v5201, %v5202
        %v5204 = vand.u32 %v5203, 4294901760
        %5205 = vmatpush1.msra.mxu0 %v5204
        %5206 = vmatprep.subr.mxu0 0.0
        %v5207 = vand.u32 %v4740, 4294901760
        %v5208 = vsub.f32 %v4740, %v5207
        %v5209 = vand.u32 %v5208, 4294901760
        %v5210 = vsub.f32 %v5208, %v5209
        %v5211 = vand.u32 %v5210, 4294901760
        %5212 = vmatpush1.msra.mxu0 %v5211
        %5213 = vmatprep.subr.mxu0 0.0
        %v5214 = vand.u32 %v4741, 4294901760
        %v5215 = vsub.f32 %v4741, %v5214
        %v5216 = vand.u32 %v5215, 4294901760
        %v5217 = vsub.f32 %v5215, %v5216
        %v5218 = vand.u32 %v5217, 4294901760
        %5219 = vmatpush1.msra.mxu0 %v5218
        %5220 = vmatprep.subr.mxu0 0.0
        %v5221 = vand.u32 %v4742, 4294901760
        %v5222 = vsub.f32 %v4742, %v5221
        %v5223 = vand.u32 %v5222, 4294901760
        %v5224 = vsub.f32 %v5222, %v5223
        %v5225 = vand.u32 %v5224, 4294901760
        %5226 = vmatpush1.msra.mxu0 %v5225
        %5227 = vmatprep.subr.mxu0 0.0
        %v5228 = vand.u32 %v4743, 4294901760
        %v5229 = vsub.f32 %v4743, %v5228
        %v5230 = vand.u32 %v5229, 4294901760
        %v5231 = vsub.f32 %v5229, %v5230
        %v5232 = vand.u32 %v5231, 4294901760
        %5233 = vmatpush1.msra.mxu0 %v5232
        %5234 = vmatprep.subr.mxu0 0.0
        %v5235 = vand.u32 %v4744, 4294901760
        %v5236 = vsub.f32 %v4744, %v5235
        %v5237 = vand.u32 %v5236, 4294901760
        %v5238 = vsub.f32 %v5236, %v5237
        %v5239 = vand.u32 %v5238, 4294901760
        %5240 = vmatpush1.msra.mxu0 %v5239
        %5241 = vmatprep.subr.mxu0 0.0
        %v5242 = vand.u32 %v4745, 4294901760
        %v5243 = vsub.f32 %v4745, %v5242
        %v5244 = vand.u32 %v5243, 4294901760
        %v5245 = vsub.f32 %v5243, %v5244
        %v5246 = vand.u32 %v5245, 4294901760
        %5247 = vmatpush1.msra.mxu0 %v5246
        %5248 = vmatprep.subr.mxu0 0.0
        %v5249 = vand.u32 %v4746, 4294901760
        %v5250 = vsub.f32 %v4746, %v5249
        %v5251 = vand.u32 %v5250, 4294901760
        %v5252 = vsub.f32 %v5250, %v5251
        %v5253 = vand.u32 %v5252, 4294901760
        %5254 = vmatpush1.msra.mxu0 %v5253
        %5255 = vmatprep.subr.mxu0 0.0
        %v5256 = vand.u32 %v4747, 4294901760
        %v5257 = vsub.f32 %v4747, %v5256
        %v5258 = vand.u32 %v5257, 4294901760
        %v5259 = vsub.f32 %v5257, %v5258
        %v5260 = vand.u32 %v5259, 4294901760
        %5261 = vmatpush1.msra.mxu0 %v5260
        %5262 = vmatprep.subr.mxu0 0.0
        %v5263 = vand.u32 %v4748, 4294901760
        %v5264 = vsub.f32 %v4748, %v5263
        %v5265 = vand.u32 %v5264, 4294901760
        %v5266 = vsub.f32 %v5264, %v5265
        %v5267 = vand.u32 %v5266, 4294901760
        %5268 = vmatpush1.msra.mxu0 %v5267
        %5269 = vmatprep.subr.mxu0 0.0
        %5270 = vmatpush1.msra.mxu0 0.0
        %5271 = vmatprep.subr.mxu0 0.0
        %5272 = vmatpush1.msra.mxu0 0.0
        %5273 = vmatprep.subr.mxu0 0.0
        %5274 = vmatpush1.msra.mxu0 0.0
        %5275 = vmatprep.subr.mxu0 0.0
        %5276 = vmatpush1.msra.mxu0 0.0
        %5277 = vmatprep.subr.mxu0 0.0
        %5278 = vmatpush1.msra.mxu0 0.0
        %5279 = vmatprep.subr.mxu0 0.0
        %5280 = vmatpush1.msra.mxu0 0.0
        %5281 = vmatprep.subr.mxu0 0.0
        %5282 = vmatpush1.msra.mxu0 0.0
        %5283 = vmatprep.subr.mxu0 0.0
        %5284 = vmatpush1.msra.mxu0 0.0
        %5285 = vmatprep.subr.mxu0 0.0
        %5286 = vmatpush1.msra.mxu0 0.0
        %5287 = vmatprep.subr.mxu0 0.0
        %5288 = vmatpush1.msra.mxu0 0.0
        %5289 = vmatprep.subr.mxu0 0.0
        %5290 = vmatpush1.msra.mxu0 0.0
        %5291 = vmatprep.subr.mxu0 0.0
        %5292 = vmatpush1.msra.mxu0 0.0
        %5293 = vmatprep.subr.mxu0 0.0
        %5294 = vmatpush1.msra.mxu0 0.0
        %5295 = vmatprep.subr.mxu0 0.0
        %5296 = vmatpush1.msra.mxu0 0.0
        %5297 = vmatprep.subr.mxu0 0.0
        %5298 = vmatpush1.msra.mxu0 0.0
        %5299 = vmatprep.subr.mxu0 0.0
        %5300 = vmatpush1.msra.mxu0 0.0
        %5301 = vmatprep.mubr.f32.mxu0 0.0
        %v5302 = vand.u32 %v4623, 4294901760
        %5303 = vmatmul.mubr.f32.gmra.mrb[0].mxu0 %v5302
        %v5304 = vpop.f32.mrb[0].mxu0
        %v5305 = vadd.f32 %v4844, %v5304
        %v5306 = vpop.f32.mrb[0].mxu0
        %5307 = vmatprep.mubr.f32.mxu0 0.0
        %v5308 = vand.u32 %v4625, 4294901760
        %5309 = vmatmul.mubr.f32.gmra.mrb[0].mxu0 %v5308
        %v5310 = vpop.f32.mrb[0].mxu0
        %v5311 = vadd.f32 %v4854, %v5310
        %v5312 = vpop.f32.mrb[0].mxu0
        %5313 = vmatprep.mubr.f32.mxu0 0.0
        %v5314 = vand.u32 %v4628, 4294901760
        %5315 = vmatmul.mubr.f32.gmra.mrb[0].mxu0 %v5314
        %v5316 = vpop.f32.mrb[0].mxu0
        %v5317 = vadd.f32 %v4864, %v5316
        %v5318 = vpop.f32.mrb[0].mxu0
        %5319 = vmatprep.mubr.f32.mxu0 0.0
        %v5320 = vand.u32 %v4630, 4294901760
        %5321 = vmatmul.mubr.f32.gmra.mrb[0].mxu0 %v5320
        %v5322 = vpop.f32.mrb[0].mxu0
        %v5323 = vadd.f32 %v4874, %v5322
        %v5324 = vpop.f32.mrb[0].mxu0
        %5325 = vmatprep.mubr.f32.mxu0 0.0
        %v5326 = vand.u32 %v4633, 4294901760
        %5327 = vmatmul.mubr.f32.gmra.mrb[0].mxu0 %v5326
        %v5328 = vpop.f32.mrb[0].mxu0
        %v5329 = vadd.f32 %v4884, %v5328
        %v5330 = vpop.f32.mrb[0].mxu0
        %5331 = vmatprep.mubr.f32.mxu0 0.0
        %v5332 = vand.u32 %v4635, 4294901760
        %5333 = vmatmul.mubr.f32.gmra.mrb[0].mxu0 %v5332
        %v5334 = vpop.f32.mrb[0].mxu0
        %v5335 = vadd.f32 %v4894, %v5334
        %v5336 = vpop.f32.mrb[0].mxu0
        %5337 = vmatprep.mubr.f32.mxu0 0.0
        %v5338 = vand.u32 %v4638, 4294901760
        %5339 = vmatmul.mubr.f32.gmra.mrb[0].mxu0 %v5338
        %v5340 = vpop.f32.mrb[0].mxu0
        %v5341 = vadd.f32 %v4904, %v5340
        %v5342 = vpop.f32.mrb[0].mxu0
        %5343 = vmatprep.mubr.f32.mxu0 0.0
        %v5344 = vand.u32 %v4640, 4294901760
        %5345 = vmatmul.mubr.f32.gmra.mrb[0].mxu0 %v5344
        %v5346 = vpop.f32.mrb[0].mxu0
        %v5347 = vadd.f32 %v4914, %v5346
        %v5348 = vpop.f32.mrb[0].mxu0
        %5349 = vmatprep.mubr.f32.mxu0 0.0
        %v5350 = vand.u32 %v4643, 4294901760
        %5351 = vmatmul.mubr.f32.gmra.mrb[0].mxu0 %v5350
        %v5352 = vpop.f32.mrb[0].mxu0
        %v5353 = vadd.f32 %v4924, %v5352
        %v5354 = vpop.f32.mrb[0].mxu0
        %5355 = vmatprep.mubr.f32.mxu0 0.0
        %v5356 = vand.u32 %v4645, 4294901760
        %5357 = vmatmul.mubr.f32.gmra.mrb[0].mxu0 %v5356
        %v5358 = vpop.f32.mrb[0].mxu0
        %v5359 = vadd.f32 %v4934, %v5358
        %v5360 = vpop.f32.mrb[0].mxu0
        %5361 = vmatprep.mubr.f32.mxu0 0.0
        %v5362 = vand.u32 %v4648, 4294901760
        %5363 = vmatmul.mubr.f32.gmra.mrb[0].mxu0 %v5362
        %v5364 = vpop.f32.mrb[0].mxu0
        %v5365 = vadd.f32 %v4944, %v5364
        %v5366 = vpop.f32.mrb[0].mxu0
        %5367 = vmatprep.mubr.f32.mxu0 0.0
        %v5368 = vand.u32 %v4650, 4294901760
        %5369 = vmatmul.mubr.f32.gmra.mrb[0].mxu0 %v5368
        %v5370 = vpop.f32.mrb[0].mxu0
        %v5371 = vadd.f32 %v4954, %v5370
        %v5372 = vpop.f32.mrb[0].mxu0
        %5373 = vmatprep.mubr.f32.mxu0 0.0
        %v5374 = vand.u32 %v4653, 4294901760
        %5375 = vmatmul.mubr.f32.gmra.mrb[0].mxu0 %v5374
        %v5376 = vpop.f32.mrb[0].mxu0
        %v5377 = vadd.f32 %v4964, %v5376
        %v5378 = vpop.f32.mrb[0].mxu0
        %5379 = vmatprep.mubr.f32.mxu0 0.0
        %v5380 = vand.u32 %v4655, 4294901760
        %5381 = vmatmul.mubr.f32.gmra.mrb[0].mxu0 %v5380
        %v5382 = vpop.f32.mrb[0].mxu0
        %v5383 = vadd.f32 %v4974, %v5382
        %v5384 = vpop.f32.mrb[0].mxu0
        %5385 = vmatprep.mubr.f32.mxu0 0.0
        %v5386 = vand.u32 %v4658, 4294901760
        %5387 = vmatmul.mubr.f32.gmra.mrb[0].mxu0 %v5386
        %v5388 = vpop.f32.mrb[0].mxu0
        %v5389 = vadd.f32 %v4984, %v5388
        %v5390 = vpop.f32.mrb[0].mxu0
        %5391 = vmatprep.mubr.f32.mxu0 0.0
        %v5392 = vand.u32 %v4660, 4294901760
        %5393 = vmatmul.mubr.f32.gmra.mrb[0].mxu0 %v5392
        %v5394 = vpop.f32.mrb[0].mxu0
        %v5395 = vadd.f32 %v4994, %v5394
        %v5396 = vpop.f32.mrb[0].mxu0
        %5397 = vmatprep.mubr.f32.mxu0 0.0
        %v5398 = vand.u32 %v4663, 4294901760
        %5399 = vmatmul.mubr.f32.gmra.mrb[0].mxu0 %v5398
        %v5400 = vpop.f32.mrb[0].mxu0
        %v5401 = vadd.f32 %v5004, %v5400
        %v5402 = vpop.f32.mrb[0].mxu0
        %5403 = vmatprep.mubr.f32.mxu0 0.0
        %v5404 = vand.u32 %v4665, 4294901760
        %5405 = vmatmul.mubr.f32.gmra.mrb[0].mxu0 %v5404
        %v5406 = vpop.f32.mrb[0].mxu0
        %v5407 = vadd.f32 %v5014, %v5406
        %v5408 = vpop.f32.mrb[0].mxu0
        %5409 = vmatprep.mubr.f32.mxu0 0.0
        %v5410 = vand.u32 %v4668, 4294901760
        %5411 = vmatmul.mubr.f32.gmra.mrb[0].mxu0 %v5410
        %v5412 = vpop.f32.mrb[0].mxu0
        %v5413 = vadd.f32 %v5024, %v5412
        %v5414 = vpop.f32.mrb[0].mxu0
        %5415 = vmatprep.mubr.f32.mxu0 0.0
        %v5416 = vand.u32 %v4670, 4294901760
        %5417 = vmatmul.mubr.f32.gmra.mrb[0].mxu0 %v5416
        %v5418 = vpop.f32.mrb[0].mxu0
        %v5419 = vadd.f32 %v5034, %v5418
        %v5420 = vpop.f32.mrb[0].mxu0
        %5421 = vmatprep.mubr.f32.mxu0 0.0
        %v5422 = vand.u32 %v4673, 4294901760
        %5423 = vmatmul.mubr.f32.gmra.mrb[0].mxu0 %v5422
        %v5424 = vpop.f32.mrb[0].mxu0
        %v5425 = vadd.f32 %v5044, %v5424
        %v5426 = vpop.f32.mrb[0].mxu0
        %5427 = vmatprep.mubr.f32.mxu0 0.0
        %v5428 = vand.u32 %v4675, 4294901760
        %5429 = vmatmul.mubr.f32.gmra.mrb[0].mxu0 %v5428
        %v5430 = vpop.f32.mrb[0].mxu0
        %v5431 = vadd.f32 %v5054, %v5430
        %v5432 = vpop.f32.mrb[0].mxu0
        %5433 = vmatprep.mubr.f32.mxu0 0.0
        %v5434 = vand.u32 %v4678, 4294901760
        %5435 = vmatmul.mubr.f32.gmra.mrb[0].mxu0 %v5434
        %v5436 = vpop.f32.mrb[0].mxu0
        %v5437 = vadd.f32 %v5064, %v5436
        %v5438 = vpop.f32.mrb[0].mxu0
        %5439 = vmatprep.mubr.f32.mxu0 0.0
        %v5440 = vand.u32 %v4680, 4294901760
        %5441 = vmatmul.mubr.f32.gmra.mrb[0].mxu0 %v5440
        %v5442 = vpop.f32.mrb[0].mxu0
        %v5443 = vadd.f32 %v5074, %v5442
        %v5444 = vpop.f32.mrb[0].mxu0
        %5445 = vmatprep.mubr.f32.mxu0 0.0
        %v5446 = vand.u32 %v4683, 4294901760
        %5447 = vmatmul.mubr.f32.gmra.mrb[0].mxu0 %v5446
        %v5448 = vpop.f32.mrb[0].mxu0
        %v5449 = vadd.f32 %v5084, %v5448
        %v5450 = vpop.f32.mrb[0].mxu0
        %5451 = vmatprep.mubr.f32.mxu0 0.0
        %v5452 = vand.u32 %v4685, 4294901760
        %5453 = vmatmul.mubr.f32.gmra.mrb[0].mxu0 %v5452
        %v5454 = vpop.f32.mrb[0].mxu0
        %v5455 = vadd.f32 %v5094, %v5454
        %v5456 = vpop.f32.mrb[0].mxu0
        %5457 = vmatprep.mubr.f32.mxu0 0.0
        %v5458 = vand.u32 %v4688, 4294901760
        %5459 = vmatmul.mubr.f32.gmra.mrb[0].mxu0 %v5458
        %v5460 = vpop.f32.mrb[0].mxu0
        %v5461 = vadd.f32 %v5104, %v5460
        %v5462 = vpop.f32.mrb[0].mxu0
        %5463 = vmatprep.mubr.f32.mxu0 0.0
        %v5464 = vand.u32 %v4690, 4294901760
        %5465 = vmatmul.mubr.f32.gmra.mrb[0].mxu0 %v5464
        %v5466 = vpop.f32.mrb[0].mxu0
        %v5467 = vadd.f32 %v5114, %v5466
        %v5468 = vpop.f32.mrb[0].mxu0
        %5469 = vmatprep.mubr.f32.mxu0 0.0
        %v5470 = vand.u32 %v4693, 4294901760
        %5471 = vmatmul.mubr.f32.gmra.mrb[0].mxu0 %v5470
        %v5472 = vpop.f32.mrb[0].mxu0
        %v5473 = vadd.f32 %v5124, %v5472
        %v5474 = vpop.f32.mrb[0].mxu0
        %5475 = vmatprep.mubr.f32.mxu0 0.0
        %v5476 = vand.u32 %v4695, 4294901760
        %5477 = vmatmul.mubr.f32.gmra.mrb[0].mxu0 %v5476
        %v5478 = vpop.f32.mrb[0].mxu0
        %v5479 = vadd.f32 %v5134, %v5478
        %v5480 = vpop.f32.mrb[0].mxu0
        %5481 = vmatprep.mubr.f32.mxu0 0.0
        %v5482 = vand.u32 %v4698, 4294901760
        %5483 = vmatmul.mubr.f32.gmra.mrb[0].mxu0 %v5482
        %v5484 = vpop.f32.mrb[0].mxu0
        %v5485 = vadd.f32 %v5144, %v5484
        %v5486 = vpop.f32.mrb[0].mxu0
        %5487 = vmatprep.mubr.f32.mxu0 0.0
        %v5488 = vand.u32 %v4700, 4294901760
        %5489 = vmatmul.mubr.f32.gmra.mrb[0].mxu0 %v5488
        %v5490 = vpop.f32.mrb[0].mxu0
        %v5491 = vadd.f32 %v5154, %v5490
        %v5492 = vpop.f32.mrb[0].mxu0
        %5493 = vdwg.mxu0
        %5494 = vmatprep.subr.mxu0 0.0
        %v5495 = vand.u32 %v4733, 4294901760
        %v5496 = vsub.f32 %v4733, %v5495
        %5497 = vmatpush1.msra.mxu0 %v5496
        %5498 = vmatprep.subr.mxu0 0.0
        %v5499 = vand.u32 %v4734, 4294901760
        %v5500 = vsub.f32 %v4734, %v5499
        %5501 = vmatpush1.msra.mxu0 %v5500
        %5502 = vmatprep.subr.mxu0 0.0
        %v5503 = vand.u32 %v4735, 4294901760
        %v5504 = vsub.f32 %v4735, %v5503
        %5505 = vmatpush1.msra.mxu0 %v5504
        %5506 = vmatprep.subr.mxu0 0.0
        %v5507 = vand.u32 %v4736, 4294901760
        %v5508 = vsub.f32 %v4736, %v5507
        %5509 = vmatpush1.msra.mxu0 %v5508
        %5510 = vmatprep.subr.mxu0 0.0
        %v5511 = vand.u32 %v4737, 4294901760
        %v5512 = vsub.f32 %v4737, %v5511
        %5513 = vmatpush1.msra.mxu0 %v5512
        %5514 = vmatprep.subr.mxu0 0.0
        %v5515 = vand.u32 %v4738, 4294901760
        %v5516 = vsub.f32 %v4738, %v5515
        %5517 = vmatpush1.msra.mxu0 %v5516
        %5518 = vmatprep.subr.mxu0 0.0
        %v5519 = vand.u32 %v4739, 4294901760
        %v5520 = vsub.f32 %v4739, %v5519
        %5521 = vmatpush1.msra.mxu0 %v5520
        %5522 = vmatprep.subr.mxu0 0.0
        %v5523 = vand.u32 %v4740, 4294901760
        %v5524 = vsub.f32 %v4740, %v5523
        %5525 = vmatpush1.msra.mxu0 %v5524
        %5526 = vmatprep.subr.mxu0 0.0
        %v5527 = vand.u32 %v4741, 4294901760
        %v5528 = vsub.f32 %v4741, %v5527
        %5529 = vmatpush1.msra.mxu0 %v5528
        %5530 = vmatprep.subr.mxu0 0.0
        %v5531 = vand.u32 %v4742, 4294901760
        %v5532 = vsub.f32 %v4742, %v5531
        %5533 = vmatpush1.msra.mxu0 %v5532
        %5534 = vmatprep.subr.mxu0 0.0
        %v5535 = vand.u32 %v4743, 4294901760
        %v5536 = vsub.f32 %v4743, %v5535
        %5537 = vmatpush1.msra.mxu0 %v5536
        %5538 = vmatprep.subr.mxu0 0.0
        %v5539 = vand.u32 %v4744, 4294901760
        %v5540 = vsub.f32 %v4744, %v5539
        %5541 = vmatpush1.msra.mxu0 %v5540
        %5542 = vmatprep.subr.mxu0 0.0
        %v5543 = vand.u32 %v4745, 4294901760
        %v5544 = vsub.f32 %v4745, %v5543
        %5545 = vmatpush1.msra.mxu0 %v5544
        %5546 = vmatprep.subr.mxu0 0.0
        %v5547 = vand.u32 %v4746, 4294901760
        %v5548 = vsub.f32 %v4746, %v5547
        %5549 = vmatpush1.msra.mxu0 %v5548
        %5550 = vmatprep.subr.mxu0 0.0
        %v5551 = vand.u32 %v4747, 4294901760
        %v5552 = vsub.f32 %v4747, %v5551
        %5553 = vmatpush1.msra.mxu0 %v5552
        %5554 = vmatprep.subr.mxu0 0.0
        %v5555 = vand.u32 %v4748, 4294901760
        %v5556 = vsub.f32 %v4748, %v5555
        %5557 = vmatpush1.msra.mxu0 %v5556
        %5558 = vmatprep.subr.mxu0 0.0
        %5559 = vmatpush1.msra.mxu0 0.0
        %5560 = vmatprep.subr.mxu0 0.0
        %5561 = vmatpush1.msra.mxu0 0.0
        %5562 = vmatprep.subr.mxu0 0.0
        %5563 = vmatpush1.msra.mxu0 0.0
        %5564 = vmatprep.subr.mxu0 0.0
        %5565 = vmatpush1.msra.mxu0 0.0
        %5566 = vmatprep.subr.mxu0 0.0
        %5567 = vmatpush1.msra.mxu0 0.0
        %5568 = vmatprep.subr.mxu0 0.0
        %5569 = vmatpush1.msra.mxu0 0.0
        %5570 = vmatprep.subr.mxu0 0.0
        %5571 = vmatpush1.msra.mxu0 0.0
        %5572 = vmatprep.subr.mxu0 0.0
        %5573 = vmatpush1.msra.mxu0 0.0
        %5574 = vmatprep.subr.mxu0 0.0
        %5575 = vmatpush1.msra.mxu0 0.0
        %5576 = vmatprep.subr.mxu0 0.0
        %5577 = vmatpush1.msra.mxu0 0.0
        %5578 = vmatprep.subr.mxu0 0.0
        %5579 = vmatpush1.msra.mxu0 0.0
        %5580 = vmatprep.subr.mxu0 0.0
        %5581 = vmatpush1.msra.mxu0 0.0
        %5582 = vmatprep.subr.mxu0 0.0
        %5583 = vmatpush1.msra.mxu0 0.0
        %5584 = vmatprep.subr.mxu0 0.0
        %5585 = vmatpush1.msra.mxu0 0.0
        %5586 = vmatprep.subr.mxu0 0.0
        %5587 = vmatpush1.msra.mxu0 0.0
        %5588 = vmatprep.subr.mxu0 0.0
        %5589 = vmatpush1.msra.mxu0 0.0
        %5590 = vmatprep.mubr.f32.mxu0 0.0
        %v5591 = vand.u32 %v4623, 4294901760
        %v5592 = vsub.f32 %v4623, %v5591
        %5593 = vmatmul.mubr.f32.gmra.mrb[0].mxu0 %v5592
        %v5594 = vpop.f32.mrb[0].mxu0
        %v5595 = vadd.f32 %v5305, %v5594
        %v5596 = vpop.f32.mrb[0].mxu0
        %5597 = vmatprep.mubr.f32.mxu0 0.0
        %v5598 = vand.u32 %v4625, 4294901760
        %v5599 = vsub.f32 %v4625, %v5598
        %5600 = vmatmul.mubr.f32.gmra.mrb[0].mxu0 %v5599
        %v5601 = vpop.f32.mrb[0].mxu0
        %v5602 = vadd.f32 %v5311, %v5601
        %v5603 = vpop.f32.mrb[0].mxu0
        %5604 = vmatprep.mubr.f32.mxu0 0.0
        %v5605 = vand.u32 %v4628, 4294901760
        %v5606 = vsub.f32 %v4628, %v5605
        %5607 = vmatmul.mubr.f32.gmra.mrb[0].mxu0 %v5606
        %v5608 = vpop.f32.mrb[0].mxu0
        %v5609 = vadd.f32 %v5317, %v5608
        %v5610 = vpop.f32.mrb[0].mxu0
        %5611 = vmatprep.mubr.f32.mxu0 0.0
        %v5612 = vand.u32 %v4630, 4294901760
        %v5613 = vsub.f32 %v4630, %v5612
        %5614 = vmatmul.mubr.f32.gmra.mrb[0].mxu0 %v5613
        %v5615 = vpop.f32.mrb[0].mxu0
        %v5616 = vadd.f32 %v5323, %v5615
        %v5617 = vpop.f32.mrb[0].mxu0
        %5618 = vmatprep.mubr.f32.mxu0 0.0
        %v5619 = vand.u32 %v4633, 4294901760
        %v5620 = vsub.f32 %v4633, %v5619
        %5621 = vmatmul.mubr.f32.gmra.mrb[0].mxu0 %v5620
        %v5622 = vpop.f32.mrb[0].mxu0
        %v5623 = vadd.f32 %v5329, %v5622
        %v5624 = vpop.f32.mrb[0].mxu0
        %5625 = vmatprep.mubr.f32.mxu0 0.0
        %v5626 = vand.u32 %v4635, 4294901760
        %v5627 = vsub.f32 %v4635, %v5626
        %5628 = vmatmul.mubr.f32.gmra.mrb[0].mxu0 %v5627
        %v5629 = vpop.f32.mrb[0].mxu0
        %v5630 = vadd.f32 %v5335, %v5629
        %v5631 = vpop.f32.mrb[0].mxu0
        %5632 = vmatprep.mubr.f32.mxu0 0.0
        %v5633 = vand.u32 %v4638, 4294901760
        %v5634 = vsub.f32 %v4638, %v5633
        %5635 = vmatmul.mubr.f32.gmra.mrb[0].mxu0 %v5634
        %v5636 = vpop.f32.mrb[0].mxu0
        %v5637 = vadd.f32 %v5341, %v5636
        %v5638 = vpop.f32.mrb[0].mxu0
        %5639 = vmatprep.mubr.f32.mxu0 0.0
        %v5640 = vand.u32 %v4640, 4294901760
        %v5641 = vsub.f32 %v4640, %v5640
        %5642 = vmatmul.mubr.f32.gmra.mrb[0].mxu0 %v5641
        %v5643 = vpop.f32.mrb[0].mxu0
        %v5644 = vadd.f32 %v5347, %v5643
        %v5645 = vpop.f32.mrb[0].mxu0
        %5646 = vmatprep.mubr.f32.mxu0 0.0
        %v5647 = vand.u32 %v4643, 4294901760
        %v5648 = vsub.f32 %v4643, %v5647
        %5649 = vmatmul.mubr.f32.gmra.mrb[0].mxu0 %v5648
        %v5650 = vpop.f32.mrb[0].mxu0
        %v5651 = vadd.f32 %v5353, %v5650
        %v5652 = vpop.f32.mrb[0].mxu0
        %5653 = vmatprep.mubr.f32.mxu0 0.0
        %v5654 = vand.u32 %v4645, 4294901760
        %v5655 = vsub.f32 %v4645, %v5654
        %5656 = vmatmul.mubr.f32.gmra.mrb[0].mxu0 %v5655
        %v5657 = vpop.f32.mrb[0].mxu0
        %v5658 = vadd.f32 %v5359, %v5657
        %v5659 = vpop.f32.mrb[0].mxu0
        %5660 = vmatprep.mubr.f32.mxu0 0.0
        %v5661 = vand.u32 %v4648, 4294901760
        %v5662 = vsub.f32 %v4648, %v5661
        %5663 = vmatmul.mubr.f32.gmra.mrb[0].mxu0 %v5662
        %v5664 = vpop.f32.mrb[0].mxu0
        %v5665 = vadd.f32 %v5365, %v5664
        %v5666 = vpop.f32.mrb[0].mxu0
        %5667 = vmatprep.mubr.f32.mxu0 0.0
        %v5668 = vand.u32 %v4650, 4294901760
        %v5669 = vsub.f32 %v4650, %v5668
        %5670 = vmatmul.mubr.f32.gmra.mrb[0].mxu0 %v5669
        %v5671 = vpop.f32.mrb[0].mxu0
        %v5672 = vadd.f32 %v5371, %v5671
        %v5673 = vpop.f32.mrb[0].mxu0
        %5674 = vmatprep.mubr.f32.mxu0 0.0
        %v5675 = vand.u32 %v4653, 4294901760
        %v5676 = vsub.f32 %v4653, %v5675
        %5677 = vmatmul.mubr.f32.gmra.mrb[0].mxu0 %v5676
        %v5678 = vpop.f32.mrb[0].mxu0
        %v5679 = vadd.f32 %v5377, %v5678
        %v5680 = vpop.f32.mrb[0].mxu0
        %5681 = vmatprep.mubr.f32.mxu0 0.0
        %v5682 = vand.u32 %v4655, 4294901760
        %v5683 = vsub.f32 %v4655, %v5682
        %5684 = vmatmul.mubr.f32.gmra.mrb[0].mxu0 %v5683
        %v5685 = vpop.f32.mrb[0].mxu0
        %v5686 = vadd.f32 %v5383, %v5685
        %v5687 = vpop.f32.mrb[0].mxu0
        %5688 = vmatprep.mubr.f32.mxu0 0.0
        %v5689 = vand.u32 %v4658, 4294901760
        %v5690 = vsub.f32 %v4658, %v5689
        %5691 = vmatmul.mubr.f32.gmra.mrb[0].mxu0 %v5690
        %v5692 = vpop.f32.mrb[0].mxu0
        %v5693 = vadd.f32 %v5389, %v5692
        %v5694 = vpop.f32.mrb[0].mxu0
        %5695 = vmatprep.mubr.f32.mxu0 0.0
        %v5696 = vand.u32 %v4660, 4294901760
        %v5697 = vsub.f32 %v4660, %v5696
        %5698 = vmatmul.mubr.f32.gmra.mrb[0].mxu0 %v5697
        %v5699 = vpop.f32.mrb[0].mxu0
        %v5700 = vadd.f32 %v5395, %v5699
        %v5701 = vpop.f32.mrb[0].mxu0
        %5702 = vmatprep.mubr.f32.mxu0 0.0
        %v5703 = vand.u32 %v4663, 4294901760
        %v5704 = vsub.f32 %v4663, %v5703
        %5705 = vmatmul.mubr.f32.gmra.mrb[0].mxu0 %v5704
        %v5706 = vpop.f32.mrb[0].mxu0
        %v5707 = vadd.f32 %v5401, %v5706
        %v5708 = vpop.f32.mrb[0].mxu0
        %5709 = vmatprep.mubr.f32.mxu0 0.0
        %v5710 = vand.u32 %v4665, 4294901760
        %v5711 = vsub.f32 %v4665, %v5710
        %5712 = vmatmul.mubr.f32.gmra.mrb[0].mxu0 %v5711
        %v5713 = vpop.f32.mrb[0].mxu0
        %v5714 = vadd.f32 %v5407, %v5713
        %v5715 = vpop.f32.mrb[0].mxu0
        %5716 = vmatprep.mubr.f32.mxu0 0.0
        %v5717 = vand.u32 %v4668, 4294901760
        %v5718 = vsub.f32 %v4668, %v5717
        %5719 = vmatmul.mubr.f32.gmra.mrb[0].mxu0 %v5718
        %v5720 = vpop.f32.mrb[0].mxu0
        %v5721 = vadd.f32 %v5413, %v5720
        %v5722 = vpop.f32.mrb[0].mxu0
        %5723 = vmatprep.mubr.f32.mxu0 0.0
        %v5724 = vand.u32 %v4670, 4294901760
        %v5725 = vsub.f32 %v4670, %v5724
        %5726 = vmatmul.mubr.f32.gmra.mrb[0].mxu0 %v5725
        %v5727 = vpop.f32.mrb[0].mxu0
        %v5728 = vadd.f32 %v5419, %v5727
        %v5729 = vpop.f32.mrb[0].mxu0
        %5730 = vmatprep.mubr.f32.mxu0 0.0
        %v5731 = vand.u32 %v4673, 4294901760
        %v5732 = vsub.f32 %v4673, %v5731
        %5733 = vmatmul.mubr.f32.gmra.mrb[0].mxu0 %v5732
        %v5734 = vpop.f32.mrb[0].mxu0
        %v5735 = vadd.f32 %v5425, %v5734
        %v5736 = vpop.f32.mrb[0].mxu0
        %5737 = vmatprep.mubr.f32.mxu0 0.0
        %v5738 = vand.u32 %v4675, 4294901760
        %v5739 = vsub.f32 %v4675, %v5738
        %5740 = vmatmul.mubr.f32.gmra.mrb[0].mxu0 %v5739
        %v5741 = vpop.f32.mrb[0].mxu0
        %v5742 = vadd.f32 %v5431, %v5741
        %v5743 = vpop.f32.mrb[0].mxu0
        %5744 = vmatprep.mubr.f32.mxu0 0.0
        %v5745 = vand.u32 %v4678, 4294901760
        %v5746 = vsub.f32 %v4678, %v5745
        %5747 = vmatmul.mubr.f32.gmra.mrb[0].mxu0 %v5746
        %v5748 = vpop.f32.mrb[0].mxu0
        %v5749 = vadd.f32 %v5437, %v5748
        %v5750 = vpop.f32.mrb[0].mxu0
        %5751 = vmatprep.mubr.f32.mxu0 0.0
        %v5752 = vand.u32 %v4680, 4294901760
        %v5753 = vsub.f32 %v4680, %v5752
        %5754 = vmatmul.mubr.f32.gmra.mrb[0].mxu0 %v5753
        %v5755 = vpop.f32.mrb[0].mxu0
        %v5756 = vadd.f32 %v5443, %v5755
        %v5757 = vpop.f32.mrb[0].mxu0
        %5758 = vmatprep.mubr.f32.mxu0 0.0
        %v5759 = vand.u32 %v4683, 4294901760
        %v5760 = vsub.f32 %v4683, %v5759
        %5761 = vmatmul.mubr.f32.gmra.mrb[0].mxu0 %v5760
        %v5762 = vpop.f32.mrb[0].mxu0
        %v5763 = vadd.f32 %v5449, %v5762
        %v5764 = vpop.f32.mrb[0].mxu0
        %5765 = vmatprep.mubr.f32.mxu0 0.0
        %v5766 = vand.u32 %v4685, 4294901760
        %v5767 = vsub.f32 %v4685, %v5766
        %5768 = vmatmul.mubr.f32.gmra.mrb[0].mxu0 %v5767
        %v5769 = vpop.f32.mrb[0].mxu0
        %v5770 = vadd.f32 %v5455, %v5769
        %v5771 = vpop.f32.mrb[0].mxu0
        %5772 = vmatprep.mubr.f32.mxu0 0.0
        %v5773 = vand.u32 %v4688, 4294901760
        %v5774 = vsub.f32 %v4688, %v5773
        %5775 = vmatmul.mubr.f32.gmra.mrb[0].mxu0 %v5774
        %v5776 = vpop.f32.mrb[0].mxu0
        %v5777 = vadd.f32 %v5461, %v5776
        %v5778 = vpop.f32.mrb[0].mxu0
        %5779 = vmatprep.mubr.f32.mxu0 0.0
        %v5780 = vand.u32 %v4690, 4294901760
        %v5781 = vsub.f32 %v4690, %v5780
        %5782 = vmatmul.mubr.f32.gmra.mrb[0].mxu0 %v5781
        %v5783 = vpop.f32.mrb[0].mxu0
        %v5784 = vadd.f32 %v5467, %v5783
        %v5785 = vpop.f32.mrb[0].mxu0
        %5786 = vmatprep.mubr.f32.mxu0 0.0
        %v5787 = vand.u32 %v4693, 4294901760
        %v5788 = vsub.f32 %v4693, %v5787
        %5789 = vmatmul.mubr.f32.gmra.mrb[0].mxu0 %v5788
        %v5790 = vpop.f32.mrb[0].mxu0
        %v5791 = vadd.f32 %v5473, %v5790
        %v5792 = vpop.f32.mrb[0].mxu0
        %5793 = vmatprep.mubr.f32.mxu0 0.0
        %v5794 = vand.u32 %v4695, 4294901760
        %v5795 = vsub.f32 %v4695, %v5794
        %5796 = vmatmul.mubr.f32.gmra.mrb[0].mxu0 %v5795
        %v5797 = vpop.f32.mrb[0].mxu0
        %v5798 = vadd.f32 %v5479, %v5797
        %v5799 = vpop.f32.mrb[0].mxu0
        %5800 = vmatprep.mubr.f32.mxu0 0.0
        %v5801 = vand.u32 %v4698, 4294901760
        %v5802 = vsub.f32 %v4698, %v5801
        %5803 = vmatmul.mubr.f32.gmra.mrb[0].mxu0 %v5802
        %v5804 = vpop.f32.mrb[0].mxu0
        %v5805 = vadd.f32 %v5485, %v5804
        %v5806 = vpop.f32.mrb[0].mxu0
        %5807 = vmatprep.mubr.f32.mxu0 0.0
        %v5808 = vand.u32 %v4700, 4294901760
        %v5809 = vsub.f32 %v4700, %v5808
        %5810 = vmatmul.mubr.f32.gmra.mrb[0].mxu0 %v5809
        %v5811 = vpop.f32.mrb[0].mxu0
        %v5812 = vadd.f32 %v5491, %v5811
        %v5813 = vpop.f32.mrb[0].mxu0
        %5814 = vdwg.mxu0
        %5815 = vmatprep.subr.mxu0 0.0
        %v5816 = vand.u32 %v4733, 4294901760
        %5817 = vmatpush1.msra.mxu0 %v5816
        %5818 = vmatprep.subr.mxu0 0.0
        %v5819 = vand.u32 %v4734, 4294901760
        %5820 = vmatpush1.msra.mxu0 %v5819
        %5821 = vmatprep.subr.mxu0 0.0
        %v5822 = vand.u32 %v4735, 4294901760
        %5823 = vmatpush1.msra.mxu0 %v5822
        %5824 = vmatprep.subr.mxu0 0.0
        %v5825 = vand.u32 %v4736, 4294901760
        %5826 = vmatpush1.msra.mxu0 %v5825
        %5827 = vmatprep.subr.mxu0 0.0
        %v5828 = vand.u32 %v4737, 4294901760
        %5829 = vmatpush1.msra.mxu0 %v5828
        %5830 = vmatprep.subr.mxu0 0.0
        %v5831 = vand.u32 %v4738, 4294901760
        %5832 = vmatpush1.msra.mxu0 %v5831
        %5833 = vmatprep.subr.mxu0 0.0
        %v5834 = vand.u32 %v4739, 4294901760
        %5835 = vmatpush1.msra.mxu0 %v5834
        %5836 = vmatprep.subr.mxu0 0.0
        %v5837 = vand.u32 %v4740, 4294901760
        %5838 = vmatpush1.msra.mxu0 %v5837
        %5839 = vmatprep.subr.mxu0 0.0
        %v5840 = vand.u32 %v4741, 4294901760
        %5841 = vmatpush1.msra.mxu0 %v5840
        %5842 = vmatprep.subr.mxu0 0.0
        %v5843 = vand.u32 %v4742, 4294901760
        %5844 = vmatpush1.msra.mxu0 %v5843
        %5845 = vmatprep.subr.mxu0 0.0
        %v5846 = vand.u32 %v4743, 4294901760
        %5847 = vmatpush1.msra.mxu0 %v5846
        %5848 = vmatprep.subr.mxu0 0.0
        %v5849 = vand.u32 %v4744, 4294901760
        %5850 = vmatpush1.msra.mxu0 %v5849
        %5851 = vmatprep.subr.mxu0 0.0
        %v5852 = vand.u32 %v4745, 4294901760
        %5853 = vmatpush1.msra.mxu0 %v5852
        %5854 = vmatprep.subr.mxu0 0.0
        %v5855 = vand.u32 %v4746, 4294901760
        %5856 = vmatpush1.msra.mxu0 %v5855
        %5857 = vmatprep.subr.mxu0 0.0
        %v5858 = vand.u32 %v4747, 4294901760
        %5859 = vmatpush1.msra.mxu0 %v5858
        %5860 = vmatprep.subr.mxu0 0.0
        %v5861 = vand.u32 %v4748, 4294901760
        %5862 = vmatpush1.msra.mxu0 %v5861
        %5863 = vmatprep.subr.mxu0 0.0
        %5864 = vmatpush1.msra.mxu0 0.0
        %5865 = vmatprep.subr.mxu0 0.0
        %5866 = vmatpush1.msra.mxu0 0.0
        %5867 = vmatprep.subr.mxu0 0.0
        %5868 = vmatpush1.msra.mxu0 0.0
        %5869 = vmatprep.subr.mxu0 0.0
        %5870 = vmatpush1.msra.mxu0 0.0
        %5871 = vmatprep.subr.mxu0 0.0
        %5872 = vmatpush1.msra.mxu0 0.0
        %5873 = vmatprep.subr.mxu0 0.0
        %5874 = vmatpush1.msra.mxu0 0.0
        %5875 = vmatprep.subr.mxu0 0.0
        %5876 = vmatpush1.msra.mxu0 0.0
        %5877 = vmatprep.subr.mxu0 0.0
        %5878 = vmatpush1.msra.mxu0 0.0
        %5879 = vmatprep.subr.mxu0 0.0
        %5880 = vmatpush1.msra.mxu0 0.0
        %5881 = vmatprep.subr.mxu0 0.0
        %5882 = vmatpush1.msra.mxu0 0.0
        %5883 = vmatprep.subr.mxu0 0.0
        %5884 = vmatpush1.msra.mxu0 0.0
        %5885 = vmatprep.subr.mxu0 0.0
        %5886 = vmatpush1.msra.mxu0 0.0
        %5887 = vmatprep.subr.mxu0 0.0
        %5888 = vmatpush1.msra.mxu0 0.0
        %5889 = vmatprep.subr.mxu0 0.0
        %5890 = vmatpush1.msra.mxu0 0.0
        %5891 = vmatprep.subr.mxu0 0.0
        %5892 = vmatpush1.msra.mxu0 0.0
        %5893 = vmatprep.subr.mxu0 0.0
        %5894 = vmatpush1.msra.mxu0 0.0
        %5895 = vmatprep.mubr.f32.mxu0 0.0
        %v5896 = vand.u32 %v4623, 4294901760
        %v5897 = vsub.f32 %v4623, %v5896
        %v5898 = vand.u32 %v5897, 4294901760
        %5899 = vmatmul.mubr.f32.gmra.mrb[0].mxu0 %v5898
        %v5900 = vpop.f32.mrb[0].mxu0
        %v5901 = vadd.f32 %v5595, %v5900
        %v5902 = vpop.f32.mrb[0].mxu0
        %5903 = vmatprep.mubr.f32.mxu0 0.0
        %v5904 = vand.u32 %v4625, 4294901760
        %v5905 = vsub.f32 %v4625, %v5904
        %v5906 = vand.u32 %v5905, 4294901760
        %5907 = vmatmul.mubr.f32.gmra.mrb[0].mxu0 %v5906
        %v5908 = vpop.f32.mrb[0].mxu0
        %v5909 = vadd.f32 %v5602, %v5908
        %v5910 = vpop.f32.mrb[0].mxu0
        %5911 = vmatprep.mubr.f32.mxu0 0.0
        %v5912 = vand.u32 %v4628, 4294901760
        %v5913 = vsub.f32 %v4628, %v5912
        %v5914 = vand.u32 %v5913, 4294901760
        %5915 = vmatmul.mubr.f32.gmra.mrb[0].mxu0 %v5914
        %v5916 = vpop.f32.mrb[0].mxu0
        %v5917 = vadd.f32 %v5609, %v5916
        %v5918 = vpop.f32.mrb[0].mxu0
        %5919 = vmatprep.mubr.f32.mxu0 0.0
        %v5920 = vand.u32 %v4630, 4294901760
        %v5921 = vsub.f32 %v4630, %v5920
        %v5922 = vand.u32 %v5921, 4294901760
        %5923 = vmatmul.mubr.f32.gmra.mrb[0].mxu0 %v5922
        %v5924 = vpop.f32.mrb[0].mxu0
        %v5925 = vadd.f32 %v5616, %v5924
        %v5926 = vpop.f32.mrb[0].mxu0
        %5927 = vmatprep.mubr.f32.mxu0 0.0
        %v5928 = vand.u32 %v4633, 4294901760
        %v5929 = vsub.f32 %v4633, %v5928
        %v5930 = vand.u32 %v5929, 4294901760
        %5931 = vmatmul.mubr.f32.gmra.mrb[0].mxu0 %v5930
        %v5932 = vpop.f32.mrb[0].mxu0
        %v5933 = vadd.f32 %v5623, %v5932
        %v5934 = vpop.f32.mrb[0].mxu0
        %5935 = vmatprep.mubr.f32.mxu0 0.0
        %v5936 = vand.u32 %v4635, 4294901760
        %v5937 = vsub.f32 %v4635, %v5936
        %v5938 = vand.u32 %v5937, 4294901760
        %5939 = vmatmul.mubr.f32.gmra.mrb[0].mxu0 %v5938
        %v5940 = vpop.f32.mrb[0].mxu0
        %v5941 = vadd.f32 %v5630, %v5940
        %v5942 = vpop.f32.mrb[0].mxu0
        %5943 = vmatprep.mubr.f32.mxu0 0.0
        %v5944 = vand.u32 %v4638, 4294901760
        %v5945 = vsub.f32 %v4638, %v5944
        %v5946 = vand.u32 %v5945, 4294901760
        %5947 = vmatmul.mubr.f32.gmra.mrb[0].mxu0 %v5946
        %v5948 = vpop.f32.mrb[0].mxu0
        %v5949 = vadd.f32 %v5637, %v5948
        %v5950 = vpop.f32.mrb[0].mxu0
        %5951 = vmatprep.mubr.f32.mxu0 0.0
        %v5952 = vand.u32 %v4640, 4294901760
        %v5953 = vsub.f32 %v4640, %v5952
        %v5954 = vand.u32 %v5953, 4294901760
        %5955 = vmatmul.mubr.f32.gmra.mrb[0].mxu0 %v5954
        %v5956 = vpop.f32.mrb[0].mxu0
        %v5957 = vadd.f32 %v5644, %v5956
        %v5958 = vpop.f32.mrb[0].mxu0
        %5959 = vmatprep.mubr.f32.mxu0 0.0
        %v5960 = vand.u32 %v4643, 4294901760
        %v5961 = vsub.f32 %v4643, %v5960
        %v5962 = vand.u32 %v5961, 4294901760
        %5963 = vmatmul.mubr.f32.gmra.mrb[0].mxu0 %v5962
        %v5964 = vpop.f32.mrb[0].mxu0
        %v5965 = vadd.f32 %v5651, %v5964
        %v5966 = vpop.f32.mrb[0].mxu0
        %5967 = vmatprep.mubr.f32.mxu0 0.0
        %v5968 = vand.u32 %v4645, 4294901760
        %v5969 = vsub.f32 %v4645, %v5968
        %v5970 = vand.u32 %v5969, 4294901760
        %5971 = vmatmul.mubr.f32.gmra.mrb[0].mxu0 %v5970
        %v5972 = vpop.f32.mrb[0].mxu0
        %v5973 = vadd.f32 %v5658, %v5972
        %v5974 = vpop.f32.mrb[0].mxu0
        %5975 = vmatprep.mubr.f32.mxu0 0.0
        %v5976 = vand.u32 %v4648, 4294901760
        %v5977 = vsub.f32 %v4648, %v5976
        %v5978 = vand.u32 %v5977, 4294901760
        %5979 = vmatmul.mubr.f32.gmra.mrb[0].mxu0 %v5978
        %v5980 = vpop.f32.mrb[0].mxu0
        %v5981 = vadd.f32 %v5665, %v5980
        %v5982 = vpop.f32.mrb[0].mxu0
        %5983 = vmatprep.mubr.f32.mxu0 0.0
        %v5984 = vand.u32 %v4650, 4294901760
        %v5985 = vsub.f32 %v4650, %v5984
        %v5986 = vand.u32 %v5985, 4294901760
        %5987 = vmatmul.mubr.f32.gmra.mrb[0].mxu0 %v5986
        %v5988 = vpop.f32.mrb[0].mxu0
        %v5989 = vadd.f32 %v5672, %v5988
        %v5990 = vpop.f32.mrb[0].mxu0
        %5991 = vmatprep.mubr.f32.mxu0 0.0
        %v5992 = vand.u32 %v4653, 4294901760
        %v5993 = vsub.f32 %v4653, %v5992
        %v5994 = vand.u32 %v5993, 4294901760
        %5995 = vmatmul.mubr.f32.gmra.mrb[0].mxu0 %v5994
        %v5996 = vpop.f32.mrb[0].mxu0
        %v5997 = vadd.f32 %v5679, %v5996
        %v5998 = vpop.f32.mrb[0].mxu0
        %5999 = vmatprep.mubr.f32.mxu0 0.0
        %v6000 = vand.u32 %v4655, 4294901760
        %v6001 = vsub.f32 %v4655, %v6000
        %v6002 = vand.u32 %v6001, 4294901760
        %6003 = vmatmul.mubr.f32.gmra.mrb[0].mxu0 %v6002
        %v6004 = vpop.f32.mrb[0].mxu0
        %v6005 = vadd.f32 %v5686, %v6004
        %v6006 = vpop.f32.mrb[0].mxu0
        %6007 = vmatprep.mubr.f32.mxu0 0.0
        %v6008 = vand.u32 %v4658, 4294901760
        %v6009 = vsub.f32 %v4658, %v6008
        %v6010 = vand.u32 %v6009, 4294901760
        %6011 = vmatmul.mubr.f32.gmra.mrb[0].mxu0 %v6010
        %v6012 = vpop.f32.mrb[0].mxu0
        %v6013 = vadd.f32 %v5693, %v6012
        %v6014 = vpop.f32.mrb[0].mxu0
        %6015 = vmatprep.mubr.f32.mxu0 0.0
        %v6016 = vand.u32 %v4660, 4294901760
        %v6017 = vsub.f32 %v4660, %v6016
        %v6018 = vand.u32 %v6017, 4294901760
        %6019 = vmatmul.mubr.f32.gmra.mrb[0].mxu0 %v6018
        %v6020 = vpop.f32.mrb[0].mxu0
        %v6021 = vadd.f32 %v5700, %v6020
        %v6022 = vpop.f32.mrb[0].mxu0
        %6023 = vmatprep.mubr.f32.mxu0 0.0
        %v6024 = vand.u32 %v4663, 4294901760
        %v6025 = vsub.f32 %v4663, %v6024
        %v6026 = vand.u32 %v6025, 4294901760
        %6027 = vmatmul.mubr.f32.gmra.mrb[0].mxu0 %v6026
        %v6028 = vpop.f32.mrb[0].mxu0
        %v6029 = vadd.f32 %v5707, %v6028
        %v6030 = vpop.f32.mrb[0].mxu0
        %6031 = vmatprep.mubr.f32.mxu0 0.0
        %v6032 = vand.u32 %v4665, 4294901760
        %v6033 = vsub.f32 %v4665, %v6032
        %v6034 = vand.u32 %v6033, 4294901760
        %6035 = vmatmul.mubr.f32.gmra.mrb[0].mxu0 %v6034
        %v6036 = vpop.f32.mrb[0].mxu0
        %v6037 = vadd.f32 %v5714, %v6036
        %v6038 = vpop.f32.mrb[0].mxu0
        %6039 = vmatprep.mubr.f32.mxu0 0.0
        %v6040 = vand.u32 %v4668, 4294901760
        %v6041 = vsub.f32 %v4668, %v6040
        %v6042 = vand.u32 %v6041, 4294901760
        %6043 = vmatmul.mubr.f32.gmra.mrb[0].mxu0 %v6042
        %v6044 = vpop.f32.mrb[0].mxu0
        %v6045 = vadd.f32 %v5721, %v6044
        %v6046 = vpop.f32.mrb[0].mxu0
        %6047 = vmatprep.mubr.f32.mxu0 0.0
        %v6048 = vand.u32 %v4670, 4294901760
        %v6049 = vsub.f32 %v4670, %v6048
        %v6050 = vand.u32 %v6049, 4294901760
        %6051 = vmatmul.mubr.f32.gmra.mrb[0].mxu0 %v6050
        %v6052 = vpop.f32.mrb[0].mxu0
        %v6053 = vadd.f32 %v5728, %v6052
        %v6054 = vpop.f32.mrb[0].mxu0
        %6055 = vmatprep.mubr.f32.mxu0 0.0
        %v6056 = vand.u32 %v4673, 4294901760
        %v6057 = vsub.f32 %v4673, %v6056
        %v6058 = vand.u32 %v6057, 4294901760
        %6059 = vmatmul.mubr.f32.gmra.mrb[0].mxu0 %v6058
        %v6060 = vpop.f32.mrb[0].mxu0
        %v6061 = vadd.f32 %v5735, %v6060
        %v6062 = vpop.f32.mrb[0].mxu0
        %6063 = vmatprep.mubr.f32.mxu0 0.0
        %v6064 = vand.u32 %v4675, 4294901760
        %v6065 = vsub.f32 %v4675, %v6064
        %v6066 = vand.u32 %v6065, 4294901760
        %6067 = vmatmul.mubr.f32.gmra.mrb[0].mxu0 %v6066
        %v6068 = vpop.f32.mrb[0].mxu0
        %v6069 = vadd.f32 %v5742, %v6068
        %v6070 = vpop.f32.mrb[0].mxu0
        %6071 = vmatprep.mubr.f32.mxu0 0.0
        %v6072 = vand.u32 %v4678, 4294901760
        %v6073 = vsub.f32 %v4678, %v6072
        %v6074 = vand.u32 %v6073, 4294901760
        %6075 = vmatmul.mubr.f32.gmra.mrb[0].mxu0 %v6074
        %v6076 = vpop.f32.mrb[0].mxu0
        %v6077 = vadd.f32 %v5749, %v6076
        %v6078 = vpop.f32.mrb[0].mxu0
        %6079 = vmatprep.mubr.f32.mxu0 0.0
        %v6080 = vand.u32 %v4680, 4294901760
        %v6081 = vsub.f32 %v4680, %v6080
        %v6082 = vand.u32 %v6081, 4294901760
        %6083 = vmatmul.mubr.f32.gmra.mrb[0].mxu0 %v6082
        %v6084 = vpop.f32.mrb[0].mxu0
        %v6085 = vadd.f32 %v5756, %v6084
        %v6086 = vpop.f32.mrb[0].mxu0
        %6087 = vmatprep.mubr.f32.mxu0 0.0
        %v6088 = vand.u32 %v4683, 4294901760
        %v6089 = vsub.f32 %v4683, %v6088
        %v6090 = vand.u32 %v6089, 4294901760
        %6091 = vmatmul.mubr.f32.gmra.mrb[0].mxu0 %v6090
        %v6092 = vpop.f32.mrb[0].mxu0
        %v6093 = vadd.f32 %v5763, %v6092
        %v6094 = vpop.f32.mrb[0].mxu0
        %6095 = vmatprep.mubr.f32.mxu0 0.0
        %v6096 = vand.u32 %v4685, 4294901760
        %v6097 = vsub.f32 %v4685, %v6096
        %v6098 = vand.u32 %v6097, 4294901760
        %6099 = vmatmul.mubr.f32.gmra.mrb[0].mxu0 %v6098
        %v6100 = vpop.f32.mrb[0].mxu0
        %v6101 = vadd.f32 %v5770, %v6100
        %v6102 = vpop.f32.mrb[0].mxu0
        %6103 = vmatprep.mubr.f32.mxu0 0.0
        %v6104 = vand.u32 %v4688, 4294901760
        %v6105 = vsub.f32 %v4688, %v6104
        %v6106 = vand.u32 %v6105, 4294901760
        %6107 = vmatmul.mubr.f32.gmra.mrb[0].mxu0 %v6106
        %v6108 = vpop.f32.mrb[0].mxu0
        %v6109 = vadd.f32 %v5777, %v6108
        %v6110 = vpop.f32.mrb[0].mxu0
        %6111 = vmatprep.mubr.f32.mxu0 0.0
        %v6112 = vand.u32 %v4690, 4294901760
        %v6113 = vsub.f32 %v4690, %v6112
        %v6114 = vand.u32 %v6113, 4294901760
        %6115 = vmatmul.mubr.f32.gmra.mrb[0].mxu0 %v6114
        %v6116 = vpop.f32.mrb[0].mxu0
        %v6117 = vadd.f32 %v5784, %v6116
        %v6118 = vpop.f32.mrb[0].mxu0
        %6119 = vmatprep.mubr.f32.mxu0 0.0
        %v6120 = vand.u32 %v4693, 4294901760
        %v6121 = vsub.f32 %v4693, %v6120
        %v6122 = vand.u32 %v6121, 4294901760
        %6123 = vmatmul.mubr.f32.gmra.mrb[0].mxu0 %v6122
        %v6124 = vpop.f32.mrb[0].mxu0
        %v6125 = vadd.f32 %v5791, %v6124
        %v6126 = vpop.f32.mrb[0].mxu0
        %6127 = vmatprep.mubr.f32.mxu0 0.0
        %v6128 = vand.u32 %v4695, 4294901760
        %v6129 = vsub.f32 %v4695, %v6128
        %v6130 = vand.u32 %v6129, 4294901760
        %6131 = vmatmul.mubr.f32.gmra.mrb[0].mxu0 %v6130
        %v6132 = vpop.f32.mrb[0].mxu0
        %v6133 = vadd.f32 %v5798, %v6132
        %v6134 = vpop.f32.mrb[0].mxu0
        %6135 = vmatprep.mubr.f32.mxu0 0.0
        %v6136 = vand.u32 %v4698, 4294901760
        %v6137 = vsub.f32 %v4698, %v6136
        %v6138 = vand.u32 %v6137, 4294901760
        %6139 = vmatmul.mubr.f32.gmra.mrb[0].mxu0 %v6138
        %v6140 = vpop.f32.mrb[0].mxu0
        %v6141 = vadd.f32 %v5805, %v6140
        %v6142 = vpop.f32.mrb[0].mxu0
        %6143 = vmatprep.mubr.f32.mxu0 0.0
        %v6144 = vand.u32 %v4700, 4294901760
        %v6145 = vsub.f32 %v4700, %v6144
        %v6146 = vand.u32 %v6145, 4294901760
        %6147 = vmatmul.mubr.f32.gmra.mrb[0].mxu0 %v6146
        %v6148 = vpop.f32.mrb[0].mxu0
        %v6149 = vadd.f32 %v5812, %v6148
        %v6150 = vpop.f32.mrb[0].mxu0
        %6151 = vdwg.mxu0
        %6152 = vmatprep.subr.mxu0 0.0
        %v6153 = vand.u32 %v4733, 4294901760
        %v6154 = vsub.f32 %v4733, %v6153
        %v6155 = vand.u32 %v6154, 4294901760
        %6156 = vmatpush1.msra.mxu0 %v6155
        %6157 = vmatprep.subr.mxu0 0.0
        %v6158 = vand.u32 %v4734, 4294901760
        %v6159 = vsub.f32 %v4734, %v6158
        %v6160 = vand.u32 %v6159, 4294901760
        %6161 = vmatpush1.msra.mxu0 %v6160
        %6162 = vmatprep.subr.mxu0 0.0
        %v6163 = vand.u32 %v4735, 4294901760
        %v6164 = vsub.f32 %v4735, %v6163
        %v6165 = vand.u32 %v6164, 4294901760
        %6166 = vmatpush1.msra.mxu0 %v6165
        %6167 = vmatprep.subr.mxu0 0.0
        %v6168 = vand.u32 %v4736, 4294901760
        %v6169 = vsub.f32 %v4736, %v6168
        %v6170 = vand.u32 %v6169, 4294901760
        %6171 = vmatpush1.msra.mxu0 %v6170
        %6172 = vmatprep.subr.mxu0 0.0
        %v6173 = vand.u32 %v4737, 4294901760
        %v6174 = vsub.f32 %v4737, %v6173
        %v6175 = vand.u32 %v6174, 4294901760
        %6176 = vmatpush1.msra.mxu0 %v6175
        %6177 = vmatprep.subr.mxu0 0.0
        %v6178 = vand.u32 %v4738, 4294901760
        %v6179 = vsub.f32 %v4738, %v6178
        %v6180 = vand.u32 %v6179, 4294901760
        %6181 = vmatpush1.msra.mxu0 %v6180
        %6182 = vmatprep.subr.mxu0 0.0
        %v6183 = vand.u32 %v4739, 4294901760
        %v6184 = vsub.f32 %v4739, %v6183
        %v6185 = vand.u32 %v6184, 4294901760
        %6186 = vmatpush1.msra.mxu0 %v6185
        %6187 = vmatprep.subr.mxu0 0.0
        %v6188 = vand.u32 %v4740, 4294901760
        %v6189 = vsub.f32 %v4740, %v6188
        %v6190 = vand.u32 %v6189, 4294901760
        %6191 = vmatpush1.msra.mxu0 %v6190
        %6192 = vmatprep.subr.mxu0 0.0
        %v6193 = vand.u32 %v4741, 4294901760
        %v6194 = vsub.f32 %v4741, %v6193
        %v6195 = vand.u32 %v6194, 4294901760
        %6196 = vmatpush1.msra.mxu0 %v6195
        %6197 = vmatprep.subr.mxu0 0.0
        %v6198 = vand.u32 %v4742, 4294901760
        %v6199 = vsub.f32 %v4742, %v6198
        %v6200 = vand.u32 %v6199, 4294901760
        %6201 = vmatpush1.msra.mxu0 %v6200
        %6202 = vmatprep.subr.mxu0 0.0
        %v6203 = vand.u32 %v4743, 4294901760
        %v6204 = vsub.f32 %v4743, %v6203
        %v6205 = vand.u32 %v6204, 4294901760
        %6206 = vmatpush1.msra.mxu0 %v6205
        %6207 = vmatprep.subr.mxu0 0.0
        %v6208 = vand.u32 %v4744, 4294901760
        %v6209 = vsub.f32 %v4744, %v6208
        %v6210 = vand.u32 %v6209, 4294901760
        %6211 = vmatpush1.msra.mxu0 %v6210
        %6212 = vmatprep.subr.mxu0 0.0
        %v6213 = vand.u32 %v4745, 4294901760
        %v6214 = vsub.f32 %v4745, %v6213
        %v6215 = vand.u32 %v6214, 4294901760
        %6216 = vmatpush1.msra.mxu0 %v6215
        %6217 = vmatprep.subr.mxu0 0.0
        %v6218 = vand.u32 %v4746, 4294901760
        %v6219 = vsub.f32 %v4746, %v6218
        %v6220 = vand.u32 %v6219, 4294901760
        %6221 = vmatpush1.msra.mxu0 %v6220
        %6222 = vmatprep.subr.mxu0 0.0
        %v6223 = vand.u32 %v4747, 4294901760
        %v6224 = vsub.f32 %v4747, %v6223
        %v6225 = vand.u32 %v6224, 4294901760
        %6226 = vmatpush1.msra.mxu0 %v6225
        %6227 = vmatprep.subr.mxu0 0.0
        %v6228 = vand.u32 %v4748, 4294901760
        %v6229 = vsub.f32 %v4748, %v6228
        %v6230 = vand.u32 %v6229, 4294901760
        %6231 = vmatpush1.msra.mxu0 %v6230
        %6232 = vmatprep.subr.mxu0 0.0
        %6233 = vmatpush1.msra.mxu0 0.0
        %6234 = vmatprep.subr.mxu0 0.0
        %6235 = vmatpush1.msra.mxu0 0.0
        %6236 = vmatprep.subr.mxu0 0.0
        %6237 = vmatpush1.msra.mxu0 0.0
        %6238 = vmatprep.subr.mxu0 0.0
        %6239 = vmatpush1.msra.mxu0 0.0
        %6240 = vmatprep.subr.mxu0 0.0
        %6241 = vmatpush1.msra.mxu0 0.0
        %6242 = vmatprep.subr.mxu0 0.0
        %6243 = vmatpush1.msra.mxu0 0.0
        %6244 = vmatprep.subr.mxu0 0.0
        %6245 = vmatpush1.msra.mxu0 0.0
        %6246 = vmatprep.subr.mxu0 0.0
        %6247 = vmatpush1.msra.mxu0 0.0
        %6248 = vmatprep.subr.mxu0 0.0
        %6249 = vmatpush1.msra.mxu0 0.0
        %6250 = vmatprep.subr.mxu0 0.0
        %6251 = vmatpush1.msra.mxu0 0.0
        %6252 = vmatprep.subr.mxu0 0.0
        %6253 = vmatpush1.msra.mxu0 0.0
        %6254 = vmatprep.subr.mxu0 0.0
        %6255 = vmatpush1.msra.mxu0 0.0
        %6256 = vmatprep.subr.mxu0 0.0
        %6257 = vmatpush1.msra.mxu0 0.0
        %6258 = vmatprep.subr.mxu0 0.0
        %6259 = vmatpush1.msra.mxu0 0.0
        %6260 = vmatprep.subr.mxu0 0.0
        %6261 = vmatpush1.msra.mxu0 0.0
        %6262 = vmatprep.subr.mxu0 0.0
        %6263 = vmatpush1.msra.mxu0 0.0
        %6264 = vmatprep.mubr.f32.mxu0 0.0
        %v6265 = vand.u32 %v4623, 4294901760
        %6266 = vmatmul.mubr.f32.gmra.mrb[0].mxu0 %v6265
        %v6267 = vpop.f32.mrb[0].mxu0
        %v6268 = vadd.f32 %v5901, %v6267
        %v6269 = vpop.f32.mrb[0].mxu0
        %6270 = vmatprep.mubr.f32.mxu0 0.0
        %v6271 = vand.u32 %v4625, 4294901760
        %6272 = vmatmul.mubr.f32.gmra.mrb[0].mxu0 %v6271
        %v6273 = vpop.f32.mrb[0].mxu0
        %v6274 = vadd.f32 %v5909, %v6273
        %v6275 = vpop.f32.mrb[0].mxu0
        %6276 = vmatprep.mubr.f32.mxu0 0.0
        %v6277 = vand.u32 %v4628, 4294901760
        %6278 = vmatmul.mubr.f32.gmra.mrb[0].mxu0 %v6277
        %v6279 = vpop.f32.mrb[0].mxu0
        %v6280 = vadd.f32 %v5917, %v6279
        %v6281 = vpop.f32.mrb[0].mxu0
        %6282 = vmatprep.mubr.f32.mxu0 0.0
        %v6283 = vand.u32 %v4630, 4294901760
        %6284 = vmatmul.mubr.f32.gmra.mrb[0].mxu0 %v6283
        %v6285 = vpop.f32.mrb[0].mxu0
        %v6286 = vadd.f32 %v5925, %v6285
        %v6287 = vpop.f32.mrb[0].mxu0
        %6288 = vmatprep.mubr.f32.mxu0 0.0
        %v6289 = vand.u32 %v4633, 4294901760
        %6290 = vmatmul.mubr.f32.gmra.mrb[0].mxu0 %v6289
        %v6291 = vpop.f32.mrb[0].mxu0
        %v6292 = vadd.f32 %v5933, %v6291
        %v6293 = vpop.f32.mrb[0].mxu0
        %6294 = vmatprep.mubr.f32.mxu0 0.0
        %v6295 = vand.u32 %v4635, 4294901760
        %6296 = vmatmul.mubr.f32.gmra.mrb[0].mxu0 %v6295
        %v6297 = vpop.f32.mrb[0].mxu0
        %v6298 = vadd.f32 %v5941, %v6297
        %v6299 = vpop.f32.mrb[0].mxu0
        %6300 = vmatprep.mubr.f32.mxu0 0.0
        %v6301 = vand.u32 %v4638, 4294901760
        %6302 = vmatmul.mubr.f32.gmra.mrb[0].mxu0 %v6301
        %v6303 = vpop.f32.mrb[0].mxu0
        %v6304 = vadd.f32 %v5949, %v6303
        %v6305 = vpop.f32.mrb[0].mxu0
        %6306 = vmatprep.mubr.f32.mxu0 0.0
        %v6307 = vand.u32 %v4640, 4294901760
        %6308 = vmatmul.mubr.f32.gmra.mrb[0].mxu0 %v6307
        %v6309 = vpop.f32.mrb[0].mxu0
        %v6310 = vadd.f32 %v5957, %v6309
        %v6311 = vpop.f32.mrb[0].mxu0
        %6312 = vmatprep.mubr.f32.mxu0 0.0
        %v6313 = vand.u32 %v4643, 4294901760
        %6314 = vmatmul.mubr.f32.gmra.mrb[0].mxu0 %v6313
        %v6315 = vpop.f32.mrb[0].mxu0
        %v6316 = vadd.f32 %v5965, %v6315
        %v6317 = vpop.f32.mrb[0].mxu0
        %6318 = vmatprep.mubr.f32.mxu0 0.0
        %v6319 = vand.u32 %v4645, 4294901760
        %6320 = vmatmul.mubr.f32.gmra.mrb[0].mxu0 %v6319
        %v6321 = vpop.f32.mrb[0].mxu0
        %v6322 = vadd.f32 %v5973, %v6321
        %v6323 = vpop.f32.mrb[0].mxu0
        %6324 = vmatprep.mubr.f32.mxu0 0.0
        %v6325 = vand.u32 %v4648, 4294901760
        %6326 = vmatmul.mubr.f32.gmra.mrb[0].mxu0 %v6325
        %v6327 = vpop.f32.mrb[0].mxu0
        %v6328 = vadd.f32 %v5981, %v6327
        %v6329 = vpop.f32.mrb[0].mxu0
        %6330 = vmatprep.mubr.f32.mxu0 0.0
        %v6331 = vand.u32 %v4650, 4294901760
        %6332 = vmatmul.mubr.f32.gmra.mrb[0].mxu0 %v6331
        %v6333 = vpop.f32.mrb[0].mxu0
        %v6334 = vadd.f32 %v5989, %v6333
        %v6335 = vpop.f32.mrb[0].mxu0
        %6336 = vmatprep.mubr.f32.mxu0 0.0
        %v6337 = vand.u32 %v4653, 4294901760
        %6338 = vmatmul.mubr.f32.gmra.mrb[0].mxu0 %v6337
        %v6339 = vpop.f32.mrb[0].mxu0
        %v6340 = vadd.f32 %v5997, %v6339
        %v6341 = vpop.f32.mrb[0].mxu0
        %6342 = vmatprep.mubr.f32.mxu0 0.0
        %v6343 = vand.u32 %v4655, 4294901760
        %6344 = vmatmul.mubr.f32.gmra.mrb[0].mxu0 %v6343
        %v6345 = vpop.f32.mrb[0].mxu0
        %v6346 = vadd.f32 %v6005, %v6345
        %v6347 = vpop.f32.mrb[0].mxu0
        %6348 = vmatprep.mubr.f32.mxu0 0.0
        %v6349 = vand.u32 %v4658, 4294901760
        %6350 = vmatmul.mubr.f32.gmra.mrb[0].mxu0 %v6349
        %v6351 = vpop.f32.mrb[0].mxu0
        %v6352 = vadd.f32 %v6013, %v6351
        %v6353 = vpop.f32.mrb[0].mxu0
        %6354 = vmatprep.mubr.f32.mxu0 0.0
        %v6355 = vand.u32 %v4660, 4294901760
        %6356 = vmatmul.mubr.f32.gmra.mrb[0].mxu0 %v6355
        %v6357 = vpop.f32.mrb[0].mxu0
        %v6358 = vadd.f32 %v6021, %v6357
        %v6359 = vpop.f32.mrb[0].mxu0
        %6360 = vmatprep.mubr.f32.mxu0 0.0
        %v6361 = vand.u32 %v4663, 4294901760
        %6362 = vmatmul.mubr.f32.gmra.mrb[0].mxu0 %v6361
        %v6363 = vpop.f32.mrb[0].mxu0
        %v6364 = vadd.f32 %v6029, %v6363
        %v6365 = vpop.f32.mrb[0].mxu0
        %6366 = vmatprep.mubr.f32.mxu0 0.0
        %v6367 = vand.u32 %v4665, 4294901760
        %6368 = vmatmul.mubr.f32.gmra.mrb[0].mxu0 %v6367
        %v6369 = vpop.f32.mrb[0].mxu0
        %v6370 = vadd.f32 %v6037, %v6369
        %v6371 = vpop.f32.mrb[0].mxu0
        %6372 = vmatprep.mubr.f32.mxu0 0.0
        %v6373 = vand.u32 %v4668, 4294901760
        %6374 = vmatmul.mubr.f32.gmra.mrb[0].mxu0 %v6373
        %v6375 = vpop.f32.mrb[0].mxu0
        %v6376 = vadd.f32 %v6045, %v6375
        %v6377 = vpop.f32.mrb[0].mxu0
        %6378 = vmatprep.mubr.f32.mxu0 0.0
        %v6379 = vand.u32 %v4670, 4294901760
        %6380 = vmatmul.mubr.f32.gmra.mrb[0].mxu0 %v6379
        %v6381 = vpop.f32.mrb[0].mxu0
        %v6382 = vadd.f32 %v6053, %v6381
        %v6383 = vpop.f32.mrb[0].mxu0
        %6384 = vmatprep.mubr.f32.mxu0 0.0
        %v6385 = vand.u32 %v4673, 4294901760
        %6386 = vmatmul.mubr.f32.gmra.mrb[0].mxu0 %v6385
        %v6387 = vpop.f32.mrb[0].mxu0
        %v6388 = vadd.f32 %v6061, %v6387
        %v6389 = vpop.f32.mrb[0].mxu0
        %6390 = vmatprep.mubr.f32.mxu0 0.0
        %v6391 = vand.u32 %v4675, 4294901760
        %6392 = vmatmul.mubr.f32.gmra.mrb[0].mxu0 %v6391
        %v6393 = vpop.f32.mrb[0].mxu0
        %v6394 = vadd.f32 %v6069, %v6393
        %v6395 = vpop.f32.mrb[0].mxu0
        %6396 = vmatprep.mubr.f32.mxu0 0.0
        %v6397 = vand.u32 %v4678, 4294901760
        %6398 = vmatmul.mubr.f32.gmra.mrb[0].mxu0 %v6397
        %v6399 = vpop.f32.mrb[0].mxu0
        %v6400 = vadd.f32 %v6077, %v6399
        %v6401 = vpop.f32.mrb[0].mxu0
        %6402 = vmatprep.mubr.f32.mxu0 0.0
        %v6403 = vand.u32 %v4680, 4294901760
        %6404 = vmatmul.mubr.f32.gmra.mrb[0].mxu0 %v6403
        %v6405 = vpop.f32.mrb[0].mxu0
        %v6406 = vadd.f32 %v6085, %v6405
        %v6407 = vpop.f32.mrb[0].mxu0
        %6408 = vmatprep.mubr.f32.mxu0 0.0
        %v6409 = vand.u32 %v4683, 4294901760
        %6410 = vmatmul.mubr.f32.gmra.mrb[0].mxu0 %v6409
        %v6411 = vpop.f32.mrb[0].mxu0
        %v6412 = vadd.f32 %v6093, %v6411
        %v6413 = vpop.f32.mrb[0].mxu0
        %6414 = vmatprep.mubr.f32.mxu0 0.0
        %v6415 = vand.u32 %v4685, 4294901760
        %6416 = vmatmul.mubr.f32.gmra.mrb[0].mxu0 %v6415
        %v6417 = vpop.f32.mrb[0].mxu0
        %v6418 = vadd.f32 %v6101, %v6417
        %v6419 = vpop.f32.mrb[0].mxu0
        %6420 = vmatprep.mubr.f32.mxu0 0.0
        %v6421 = vand.u32 %v4688, 4294901760
        %6422 = vmatmul.mubr.f32.gmra.mrb[0].mxu0 %v6421
        %v6423 = vpop.f32.mrb[0].mxu0
        %v6424 = vadd.f32 %v6109, %v6423
        %v6425 = vpop.f32.mrb[0].mxu0
        %6426 = vmatprep.mubr.f32.mxu0 0.0
        %v6427 = vand.u32 %v4690, 4294901760
        %6428 = vmatmul.mubr.f32.gmra.mrb[0].mxu0 %v6427
        %v6429 = vpop.f32.mrb[0].mxu0
        %v6430 = vadd.f32 %v6117, %v6429
        %v6431 = vpop.f32.mrb[0].mxu0
        %6432 = vmatprep.mubr.f32.mxu0 0.0
        %v6433 = vand.u32 %v4693, 4294901760
        %6434 = vmatmul.mubr.f32.gmra.mrb[0].mxu0 %v6433
        %v6435 = vpop.f32.mrb[0].mxu0
        %v6436 = vadd.f32 %v6125, %v6435
        %v6437 = vpop.f32.mrb[0].mxu0
        %6438 = vmatprep.mubr.f32.mxu0 0.0
        %v6439 = vand.u32 %v4695, 4294901760
        %6440 = vmatmul.mubr.f32.gmra.mrb[0].mxu0 %v6439
        %v6441 = vpop.f32.mrb[0].mxu0
        %v6442 = vadd.f32 %v6133, %v6441
        %v6443 = vpop.f32.mrb[0].mxu0
        %6444 = vmatprep.mubr.f32.mxu0 0.0
        %v6445 = vand.u32 %v4698, 4294901760
        %6446 = vmatmul.mubr.f32.gmra.mrb[0].mxu0 %v6445
        %v6447 = vpop.f32.mrb[0].mxu0
        %v6448 = vadd.f32 %v6141, %v6447
        %v6449 = vpop.f32.mrb[0].mxu0
        %6450 = vmatprep.mubr.f32.mxu0 0.0
        %v6451 = vand.u32 %v4700, 4294901760
        %6452 = vmatmul.mubr.f32.gmra.mrb[0].mxu0 %v6451
        %v6453 = vpop.f32.mrb[0].mxu0
        %v6454 = vadd.f32 %v6149, %v6453
        %v6455 = vpop.f32.mrb[0].mxu0
        %6456 = vdwg.mxu0
        %6457 = vmatprep.subr.mxu0 0.0
        %v6458 = vand.u32 %v4733, 4294901760
        %6459 = vmatpush1.msra.mxu0 %v6458
        %6460 = vmatprep.subr.mxu0 0.0
        %v6461 = vand.u32 %v4734, 4294901760
        %6462 = vmatpush1.msra.mxu0 %v6461
        %6463 = vmatprep.subr.mxu0 0.0
        %v6464 = vand.u32 %v4735, 4294901760
        %6465 = vmatpush1.msra.mxu0 %v6464
        %6466 = vmatprep.subr.mxu0 0.0
        %v6467 = vand.u32 %v4736, 4294901760
        %6468 = vmatpush1.msra.mxu0 %v6467
        %6469 = vmatprep.subr.mxu0 0.0
        %v6470 = vand.u32 %v4737, 4294901760
        %6471 = vmatpush1.msra.mxu0 %v6470
        %6472 = vmatprep.subr.mxu0 0.0
        %v6473 = vand.u32 %v4738, 4294901760
        %6474 = vmatpush1.msra.mxu0 %v6473
        %6475 = vmatprep.subr.mxu0 0.0
        %v6476 = vand.u32 %v4739, 4294901760
        %6477 = vmatpush1.msra.mxu0 %v6476
        %6478 = vmatprep.subr.mxu0 0.0
        %v6479 = vand.u32 %v4740, 4294901760
        %6480 = vmatpush1.msra.mxu0 %v6479
        %6481 = vmatprep.subr.mxu0 0.0
        %v6482 = vand.u32 %v4741, 4294901760
        %6483 = vmatpush1.msra.mxu0 %v6482
        %6484 = vmatprep.subr.mxu0 0.0
        %v6485 = vand.u32 %v4742, 4294901760
        %6486 = vmatpush1.msra.mxu0 %v6485
        %6487 = vmatprep.subr.mxu0 0.0
        %v6488 = vand.u32 %v4743, 4294901760
        %6489 = vmatpush1.msra.mxu0 %v6488
        %6490 = vmatprep.subr.mxu0 0.0
        %v6491 = vand.u32 %v4744, 4294901760
        %6492 = vmatpush1.msra.mxu0 %v6491
        %6493 = vmatprep.subr.mxu0 0.0
        %v6494 = vand.u32 %v4745, 4294901760
        %6495 = vmatpush1.msra.mxu0 %v6494
        %6496 = vmatprep.subr.mxu0 0.0
        %v6497 = vand.u32 %v4746, 4294901760
        %6498 = vmatpush1.msra.mxu0 %v6497
        %6499 = vmatprep.subr.mxu0 0.0
        %v6500 = vand.u32 %v4747, 4294901760
        %6501 = vmatpush1.msra.mxu0 %v6500
        %6502 = vmatprep.subr.mxu0 0.0
        %v6503 = vand.u32 %v4748, 4294901760
        %6504 = vmatpush1.msra.mxu0 %v6503
        %6505 = vmatprep.subr.mxu0 0.0
        %6506 = vmatpush1.msra.mxu0 0.0
        %6507 = vmatprep.subr.mxu0 0.0
        %6508 = vmatpush1.msra.mxu0 0.0
        %6509 = vmatprep.subr.mxu0 0.0
        %6510 = vmatpush1.msra.mxu0 0.0
        %6511 = vmatprep.subr.mxu0 0.0
        %6512 = vmatpush1.msra.mxu0 0.0
        %6513 = vmatprep.subr.mxu0 0.0
        %6514 = vmatpush1.msra.mxu0 0.0
        %6515 = vmatprep.subr.mxu0 0.0
        %6516 = vmatpush1.msra.mxu0 0.0
        %6517 = vmatprep.subr.mxu0 0.0
        %6518 = vmatpush1.msra.mxu0 0.0
        %6519 = vmatprep.subr.mxu0 0.0
        %6520 = vmatpush1.msra.mxu0 0.0
        %6521 = vmatprep.subr.mxu0 0.0
        %6522 = vmatpush1.msra.mxu0 0.0
        %6523 = vmatprep.subr.mxu0 0.0
        %6524 = vmatpush1.msra.mxu0 0.0
        %6525 = vmatprep.subr.mxu0 0.0
        %6526 = vmatpush1.msra.mxu0 0.0
        %6527 = vmatprep.subr.mxu0 0.0
        %6528 = vmatpush1.msra.mxu0 0.0
        %6529 = vmatprep.subr.mxu0 0.0
        %6530 = vmatpush1.msra.mxu0 0.0
        %6531 = vmatprep.subr.mxu0 0.0
        %6532 = vmatpush1.msra.mxu0 0.0
        %6533 = vmatprep.subr.mxu0 0.0
        %6534 = vmatpush1.msra.mxu0 0.0
        %6535 = vmatprep.subr.mxu0 0.0
        %6536 = vmatpush1.msra.mxu0 0.0
        %6537 = vmatprep.mubr.f32.mxu0 0.0
        %v6538 = vand.u32 %v4623, 4294901760
        %6539 = vmatmul.mubr.f32.gmra.mrb[0].mxu0 %v6538
        %v6540 = vpop.f32.mrb[0].mxu0
        %v6541 = vadd.f32 %v6268, %v6540
        %v6542 = vpop.f32.mrb[0].mxu0
        %6543 = vmatprep.mubr.f32.mxu0 0.0
        %v6544 = vand.u32 %v4625, 4294901760
        %6545 = vmatmul.mubr.f32.gmra.mrb[0].mxu0 %v6544
        %v6546 = vpop.f32.mrb[0].mxu0
        %v6547 = vadd.f32 %v6274, %v6546
        %v6548 = vpop.f32.mrb[0].mxu0
        %6549 = vmatprep.mubr.f32.mxu0 0.0
        %v6550 = vand.u32 %v4628, 4294901760
        %6551 = vmatmul.mubr.f32.gmra.mrb[0].mxu0 %v6550
        %v6552 = vpop.f32.mrb[0].mxu0
        %v6553 = vadd.f32 %v6280, %v6552
        %v6554 = vpop.f32.mrb[0].mxu0
        %6555 = vmatprep.mubr.f32.mxu0 0.0
        %v6556 = vand.u32 %v4630, 4294901760
        %6557 = vmatmul.mubr.f32.gmra.mrb[0].mxu0 %v6556
        %v6558 = vpop.f32.mrb[0].mxu0
        %v6559 = vadd.f32 %v6286, %v6558
        %v6560 = vpop.f32.mrb[0].mxu0
        %6561 = vmatprep.mubr.f32.mxu0 0.0
        %v6562 = vand.u32 %v4633, 4294901760
        %6563 = vmatmul.mubr.f32.gmra.mrb[0].mxu0 %v6562
        %v6564 = vpop.f32.mrb[0].mxu0
        %v6565 = vadd.f32 %v6292, %v6564
        %v6566 = vpop.f32.mrb[0].mxu0
        %6567 = vmatprep.mubr.f32.mxu0 0.0
        %v6568 = vand.u32 %v4635, 4294901760
        %6569 = vmatmul.mubr.f32.gmra.mrb[0].mxu0 %v6568
        %v6570 = vpop.f32.mrb[0].mxu0
        %v6571 = vadd.f32 %v6298, %v6570
        %v6572 = vpop.f32.mrb[0].mxu0
        %6573 = vmatprep.mubr.f32.mxu0 0.0
        %v6574 = vand.u32 %v4638, 4294901760
        %6575 = vmatmul.mubr.f32.gmra.mrb[0].mxu0 %v6574
        %v6576 = vpop.f32.mrb[0].mxu0
        %v6577 = vadd.f32 %v6304, %v6576
        %v6578 = vpop.f32.mrb[0].mxu0
        %6579 = vmatprep.mubr.f32.mxu0 0.0
        %v6580 = vand.u32 %v4640, 4294901760
        %6581 = vmatmul.mubr.f32.gmra.mrb[0].mxu0 %v6580
        %v6582 = vpop.f32.mrb[0].mxu0
        %v6583 = vadd.f32 %v6310, %v6582
        %v6584 = vpop.f32.mrb[0].mxu0
        %6585 = vmatprep.mubr.f32.mxu0 0.0
        %v6586 = vand.u32 %v4643, 4294901760
        %6587 = vmatmul.mubr.f32.gmra.mrb[0].mxu0 %v6586
        %v6588 = vpop.f32.mrb[0].mxu0
        %v6589 = vadd.f32 %v6316, %v6588
        %v6590 = vpop.f32.mrb[0].mxu0
        %6591 = vmatprep.mubr.f32.mxu0 0.0
        %v6592 = vand.u32 %v4645, 4294901760
        %6593 = vmatmul.mubr.f32.gmra.mrb[0].mxu0 %v6592
        %v6594 = vpop.f32.mrb[0].mxu0
        %v6595 = vadd.f32 %v6322, %v6594
        %v6596 = vpop.f32.mrb[0].mxu0
        %6597 = vmatprep.mubr.f32.mxu0 0.0
        %v6598 = vand.u32 %v4648, 4294901760
        %6599 = vmatmul.mubr.f32.gmra.mrb[0].mxu0 %v6598
        %v6600 = vpop.f32.mrb[0].mxu0
        %v6601 = vadd.f32 %v6328, %v6600
        %v6602 = vpop.f32.mrb[0].mxu0
        %6603 = vmatprep.mubr.f32.mxu0 0.0
        %v6604 = vand.u32 %v4650, 4294901760
        %6605 = vmatmul.mubr.f32.gmra.mrb[0].mxu0 %v6604
        %v6606 = vpop.f32.mrb[0].mxu0
        %v6607 = vadd.f32 %v6334, %v6606
        %v6608 = vpop.f32.mrb[0].mxu0
        %6609 = vmatprep.mubr.f32.mxu0 0.0
        %v6610 = vand.u32 %v4653, 4294901760
        %6611 = vmatmul.mubr.f32.gmra.mrb[0].mxu0 %v6610
        %v6612 = vpop.f32.mrb[0].mxu0
        %v6613 = vadd.f32 %v6340, %v6612
        %v6614 = vpop.f32.mrb[0].mxu0
        %6615 = vmatprep.mubr.f32.mxu0 0.0
        %v6616 = vand.u32 %v4655, 4294901760
        %6617 = vmatmul.mubr.f32.gmra.mrb[0].mxu0 %v6616
        %v6618 = vpop.f32.mrb[0].mxu0
        %v6619 = vadd.f32 %v6346, %v6618
        %v6620 = vpop.f32.mrb[0].mxu0
        %6621 = vmatprep.mubr.f32.mxu0 0.0
        %v6622 = vand.u32 %v4658, 4294901760
        %6623 = vmatmul.mubr.f32.gmra.mrb[0].mxu0 %v6622
        %v6624 = vpop.f32.mrb[0].mxu0
        %v6625 = vadd.f32 %v6352, %v6624
        %v6626 = vpop.f32.mrb[0].mxu0
        %6627 = vmatprep.mubr.f32.mxu0 0.0
        %v6628 = vand.u32 %v4660, 4294901760
        %6629 = vmatmul.mubr.f32.gmra.mrb[0].mxu0 %v6628
        %v6630 = vpop.f32.mrb[0].mxu0
        %v6631 = vadd.f32 %v6358, %v6630
        %v6632 = vpop.f32.mrb[0].mxu0
        %6633 = vmatprep.mubr.f32.mxu0 0.0
        %v6634 = vand.u32 %v4663, 4294901760
        %6635 = vmatmul.mubr.f32.gmra.mrb[0].mxu0 %v6634
        %v6636 = vpop.f32.mrb[0].mxu0
        %v6637 = vadd.f32 %v6364, %v6636
        %v6638 = vpop.f32.mrb[0].mxu0
        %6639 = vmatprep.mubr.f32.mxu0 0.0
        %v6640 = vand.u32 %v4665, 4294901760
        %6641 = vmatmul.mubr.f32.gmra.mrb[0].mxu0 %v6640
        %v6642 = vpop.f32.mrb[0].mxu0
        %v6643 = vadd.f32 %v6370, %v6642
        %v6644 = vpop.f32.mrb[0].mxu0
        %6645 = vmatprep.mubr.f32.mxu0 0.0
        %v6646 = vand.u32 %v4668, 4294901760
        %6647 = vmatmul.mubr.f32.gmra.mrb[0].mxu0 %v6646
        %v6648 = vpop.f32.mrb[0].mxu0
        %v6649 = vadd.f32 %v6376, %v6648
        %v6650 = vpop.f32.mrb[0].mxu0
        %6651 = vmatprep.mubr.f32.mxu0 0.0
        %v6652 = vand.u32 %v4670, 4294901760
        %6653 = vmatmul.mubr.f32.gmra.mrb[0].mxu0 %v6652
        %v6654 = vpop.f32.mrb[0].mxu0
        %v6655 = vadd.f32 %v6382, %v6654
        %v6656 = vpop.f32.mrb[0].mxu0
        %6657 = vmatprep.mubr.f32.mxu0 0.0
        %v6658 = vand.u32 %v4673, 4294901760
        %6659 = vmatmul.mubr.f32.gmra.mrb[0].mxu0 %v6658
        %v6660 = vpop.f32.mrb[0].mxu0
        %v6661 = vadd.f32 %v6388, %v6660
        %v6662 = vpop.f32.mrb[0].mxu0
        %6663 = vmatprep.mubr.f32.mxu0 0.0
        %v6664 = vand.u32 %v4675, 4294901760
        %6665 = vmatmul.mubr.f32.gmra.mrb[0].mxu0 %v6664
        %v6666 = vpop.f32.mrb[0].mxu0
        %v6667 = vadd.f32 %v6394, %v6666
        %v6668 = vpop.f32.mrb[0].mxu0
        %6669 = vmatprep.mubr.f32.mxu0 0.0
        %v6670 = vand.u32 %v4678, 4294901760
        %6671 = vmatmul.mubr.f32.gmra.mrb[0].mxu0 %v6670
        %v6672 = vpop.f32.mrb[0].mxu0
        %v6673 = vadd.f32 %v6400, %v6672
        %v6674 = vpop.f32.mrb[0].mxu0
        %6675 = vmatprep.mubr.f32.mxu0 0.0
        %v6676 = vand.u32 %v4680, 4294901760
        %6677 = vmatmul.mubr.f32.gmra.mrb[0].mxu0 %v6676
        %v6678 = vpop.f32.mrb[0].mxu0
        %v6679 = vadd.f32 %v6406, %v6678
        %v6680 = vpop.f32.mrb[0].mxu0
        %6681 = vmatprep.mubr.f32.mxu0 0.0
        %v6682 = vand.u32 %v4683, 4294901760
        %6683 = vmatmul.mubr.f32.gmra.mrb[0].mxu0 %v6682
        %v6684 = vpop.f32.mrb[0].mxu0
        %v6685 = vadd.f32 %v6412, %v6684
        %v6686 = vpop.f32.mrb[0].mxu0
        %6687 = vmatprep.mubr.f32.mxu0 0.0
        %v6688 = vand.u32 %v4685, 4294901760
        %6689 = vmatmul.mubr.f32.gmra.mrb[0].mxu0 %v6688
        %v6690 = vpop.f32.mrb[0].mxu0
        %v6691 = vadd.f32 %v6418, %v6690
        %v6692 = vpop.f32.mrb[0].mxu0
        %6693 = vmatprep.mubr.f32.mxu0 0.0
        %v6694 = vand.u32 %v4688, 4294901760
        %6695 = vmatmul.mubr.f32.gmra.mrb[0].mxu0 %v6694
        %v6696 = vpop.f32.mrb[0].mxu0
        %v6697 = vadd.f32 %v6424, %v6696
        %v6698 = vpop.f32.mrb[0].mxu0
        %6699 = vmatprep.mubr.f32.mxu0 0.0
        %v6700 = vand.u32 %v4690, 4294901760
        %6701 = vmatmul.mubr.f32.gmra.mrb[0].mxu0 %v6700
        %v6702 = vpop.f32.mrb[0].mxu0
        %v6703 = vadd.f32 %v6430, %v6702
        %v6704 = vpop.f32.mrb[0].mxu0
        %6705 = vmatprep.mubr.f32.mxu0 0.0
        %v6706 = vand.u32 %v4693, 4294901760
        %6707 = vmatmul.mubr.f32.gmra.mrb[0].mxu0 %v6706
        %v6708 = vpop.f32.mrb[0].mxu0
        %v6709 = vadd.f32 %v6436, %v6708
        %v6710 = vpop.f32.mrb[0].mxu0
        %6711 = vmatprep.mubr.f32.mxu0 0.0
        %v6712 = vand.u32 %v4695, 4294901760
        %6713 = vmatmul.mubr.f32.gmra.mrb[0].mxu0 %v6712
        %v6714 = vpop.f32.mrb[0].mxu0
        %v6715 = vadd.f32 %v6442, %v6714
        %v6716 = vpop.f32.mrb[0].mxu0
        %6717 = vmatprep.mubr.f32.mxu0 0.0
        %v6718 = vand.u32 %v4698, 4294901760
        %6719 = vmatmul.mubr.f32.gmra.mrb[0].mxu0 %v6718
        %v6720 = vpop.f32.mrb[0].mxu0
        %v6721 = vadd.f32 %v6448, %v6720
        %v6722 = vpop.f32.mrb[0].mxu0
        %6723 = vmatprep.mubr.f32.mxu0 0.0
        %v6724 = vand.u32 %v4700, 4294901760
        %6725 = vmatmul.mubr.f32.gmra.mrb[0].mxu0 %v6724
        %v6726 = vpop.f32.mrb[0].mxu0
        %v6727 = vadd.f32 %v6454, %v6726
        %v6728 = vpop.f32.mrb[0].mxu0
        %6729 = vdwg.mxu0
        %v6730 = vadd.f32 %v6541, %v341
        %v6731 = vadd.f32 %v6547, %v342
        %v6732 = vadd.f32 %v6553, %v343
        %v6733 = vadd.f32 %v6559, %v344
        %v6734 = vadd.f32 %v6565, %v345
        %v6735 = vadd.f32 %v6571, %v346
        %v6736 = vadd.f32 %v6577, %v347
        %v6737 = vadd.f32 %v6583, %v348
        %v6738 = vadd.f32 %v6589, %v349
        %v6739 = vadd.f32 %v6595, %v350
        %v6740 = vadd.f32 %v6601, %v351
        %v6741 = vadd.f32 %v6607, %v352
        %v6742 = vadd.f32 %v6613, %v353
        %v6743 = vadd.f32 %v6619, %v354
        %v6744 = vadd.f32 %v6625, %v355
        %v6745 = vadd.f32 %v6631, %v356
        %v6746 = vadd.f32 %v6637, %v357
        %v6747 = vadd.f32 %v6643, %v358
        %v6748 = vadd.f32 %v6649, %v359
        %v6749 = vadd.f32 %v6655, %v360
        %v6750 = vadd.f32 %v6661, %v361
        %v6751 = vadd.f32 %v6667, %v362
        %v6752 = vadd.f32 %v6673, %v363
        %v6753 = vadd.f32 %v6679, %v364
        %v6754 = vadd.f32 %v6685, %v365
        %v6755 = vadd.f32 %v6691, %v366
        %v6756 = vadd.f32 %v6697, %v367
        %v6757 = vadd.f32 %v6703, %v368
        %v6758 = vadd.f32 %v6709, %v369
        %v6759 = vadd.f32 %v6715, %v370
        %v6760 = vadd.f32 %v6721, %v371
        %v6761 = vadd.f32 %v6727, %v372
        %6762 = vst [vmem:[%s340] sm:$0xff] %v6730
        %6763 = vst [vmem:[%s340 + $0x8] sm:$0xff] %v6731
        %6764 = vst [vmem:[%s340 + $0x10] sm:$0xff] %v6732
        %6765 = vst [vmem:[%s340 + $0x18] sm:$0xff] %v6733
        %6766 = vst [vmem:[%s340 + $0x20] sm:$0xff] %v6734
        %6767 = vst [vmem:[%s340 + $0x28] sm:$0xff] %v6735
        %6768 = vst [vmem:[%s340 + $0x30] sm:$0xff] %v6736
        %6769 = vst [vmem:[%s340 + $0x38] sm:$0xff] %v6737
        %6770 = vst [vmem:[%s340 + $0x40] sm:$0xff] %v6738
        %6771 = vst [vmem:[%s340 + $0x48] sm:$0xff] %v6739
        %6772 = vst [vmem:[%s340 + $0x50] sm:$0xff] %v6740
        %6773 = vst [vmem:[%s340 + $0x58] sm:$0xff] %v6741
        %6774 = vst [vmem:[%s340 + $0x60] sm:$0xff] %v6742
        %6775 = vst [vmem:[%s340 + $0x68] sm:$0xff] %v6743
        %6776 = vst [vmem:[%s340 + $0x70] sm:$0xff] %v6744
        %6777 = vst [vmem:[%s340 + $0x78] sm:$0xff] %v6745
        %6778 = vst [vmem:[%s340 + $0x80] sm:$0xff] %v6746
        %6779 = vst [vmem:[%s340 + $0x88] sm:$0xff] %v6747
        %6780 = vst [vmem:[%s340 + $0x90] sm:$0xff] %v6748
        %6781 = vst [vmem:[%s340 + $0x98] sm:$0xff] %v6749
        %6782 = vst [vmem:[%s340 + $0xa0] sm:$0xff] %v6750
        %6783 = vst [vmem:[%s340 + $0xa8] sm:$0xff] %v6751
        %6784 = vst [vmem:[%s340 + $0xb0] sm:$0xff] %v6752
        %6785 = vst [vmem:[%s340 + $0xb8] sm:$0xff] %v6753
        %6786 = vst [vmem:[%s340 + $0xc0] sm:$0xff] %v6754
        %6787 = vst [vmem:[%s340 + $0xc8] sm:$0xff] %v6755
        %6788 = vst [vmem:[%s340 + $0xd0] sm:$0xff] %v6756
        %6789 = vst [vmem:[%s340 + $0xd8] sm:$0xff] %v6757
        %6790 = vst [vmem:[%s340 + $0xe0] sm:$0xff] %v6758
        %6791 = vst [vmem:[%s340 + $0xe8] sm:$0xff] %v6759
        %6792 = vst [vmem:[%s340 + $0xf0] sm:$0xff] %v6760
        %6793 = vst [vmem:[%s340 + $0xf8] sm:$0xff] %v6761
        %s6794 = sand.u32 %s186, 1
        %s6795 = scalar_lea.sflag [#allocation5], %s6794
        %s6796 = sand.u32 %s186, 1
        %s6797 = smul.addr %s6796, 256
        %s6798 = scalar_lea.vmem [#allocation11], %s6797
        // Predicated region
        $region65: #{tpu_custom_call.1} parent=47 // pred_check
          %p6799 = pneg %p196
        $region66: #{tpu_custom_call.1} parent=47 // pred_check_branch
          %6801 = sbr.rel (%p6799) target = $region68
        $region67: #{tpu_custom_call.1} parent=47 // pred_region
          %s6803 = ssub.s32 4096, 4096
          %6804 = vsyncadd %s6795, %s6803
          %s6805 = smul.addr %s26, 32
          %s6806 = smul.addr %s6805, 128
          %s6807 = scalar_lea.hbm %s7, %s6806
          %s6808 = sshll.u32 %s6798, 4
          %s6809 = int_to_ptr.vmem [resolvable:$true] %s6808
          %6814 = dma.vmem_to_hbm [thread:$0]  %s6809, 4096, %s6807, %s6795, 128, 128, 8
        $region68: #{tpu_custom_call.1} parent=47 // pred_fallthru
          _
      $region48: #{tpu_custom_call.1} parent=5 // pred_fallthru
        _
      %p6815 = scmp.le.s32.totalorder 2, %s21
      // Predicated region
      $region69: #{tpu_custom_call.1} parent=5 // pred_check
        %p6816 = pneg %p6815
      $region70: #{tpu_custom_call.1} parent=5 // pred_check_branch
        %6818 = sbr.rel (%p6816) target = $region72
      $region71: #{tpu_custom_call.1} parent=5 // pred_region
        %s6819 = ssub.s32 %s21, 2
        // Predicated region
        $region73: #{tpu_custom_call.1} parent=71 // pred_check
          %p6820 = pneg %p202
        $region74: #{tpu_custom_call.1} parent=71 // pred_check_branch
          %6822 = sbr.rel (%p6820) target = $region76
        $region75: #{tpu_custom_call.1} parent=71 // pred_region
          %s6823 = sand.u32 %s187, 1
          %s6824 = scalar_lea.sflag [#allocation5], %s6823
          %s6825 = sand.u32 %s187, 1
          %s6826 = smul.addr %s6825, 256
          %s6827 = scalar_lea.vmem [#allocation11], %s6826
          %6828 = dma.done %s6824, 4096
        $region76: #{tpu_custom_call.1} parent=71 // pred_fallthru
          _
      $region72: #{tpu_custom_call.1} parent=5 // pred_fallthru
        _
    $region6: #{tpu_custom_call.1} parent=1 // loop_footer
      %s25 = sadd.s32 1, %s21
    $region7: #{tpu_custom_call.1} parent=1 // loop_footer_branch
      %20 = sbr.rel target = $region3
    $region8: #{tpu_custom_call.1} parent=1 // loop_exit
      _
    %6829 = vsyncpa [#allocation4], 1
    %s6830 = scalar_lea.sflag [#allocation4], 1
    %6831 = vsyncpa %s6830, 1
    %6832 = vsyncpa [#allocation7], 1
    %6833 = vsyncpa [#allocation10], 1
    %6834 = vsyncpa [#allocation5], 1
    %s6835 = scalar_lea.sflag [#allocation5], 1
    %6836 = vsyncpa %s6835, 1

</llo_original>
